<compile_context>
chip_gen: v7x
topology: tpu7x:2x2x1
jax: 0.10.0
libtpu: 0.0.40
codegen_flags: <defaults>
</compile_context>

<pallas_src>
import functools

import jax
import jax.numpy as jnp
from jax.experimental import pallas as pl
from jax.experimental.pallas import tpu as pltpu

# ------------------------- small synthetic CLIP config -------------------------
D_TXT = 64        # ctx_dim (text transformer width)
D_VIS = 64        # vision transformer width
D_OUT = 64        # joint embedding dim (real CLIP: 512; Adapter(c_in=D_OUT, reduction=4))
N_HEADS = 4
N_LAYERS_T = 3    # text transformer resblocks
N_LAYERS_V = 3    # vision transformer resblocks
N_TPRO = 2
N_SET = 2
N_VPRO = 2
N_CLS = 3
L_TXT = 16        # tokenized prompt length (real CLIP: 77)
VOCAB = 100
ALPHA = 0.1       # cfg.TRAINER.HPT_PLUS.ALPHA
PATCH = 8
IMG = 32
TEXT_ADAPTER_M = 0.2
LN_EPS = 1e-5

_BLK_KEYS = ('ln1_g', 'ln1_b', 'w_qkv', 'b_qkv', 'w_o', 'b_o',
             'ln2_g', 'ln2_b', 'w_1', 'b_1', 'w_2', 'b_2')
_BLK_MAT_KEYS = ('w_qkv', 'w_o', 'w_1', 'w_2')     # stored in bf16


def _default_core_split():
    # v7x has 2 TensorCores per chip: shard the folded batch across them with a 2-way
    # leading "parallel" grid axis.  On v5e/v6e (1 TC) keep the batch fully collapsed.
    try:
        kind = jax.devices()[0].device_kind.lower()
        if 'v7' in kind or 'tpu7' in kind:
            return 2
    except Exception:
        pass
    return 1


# ------------------------------ Pallas kernels ---------------------------------
def _ln(x, g, b):
    m = jnp.mean(x, axis=-1, keepdims=True)
    v = jnp.mean((x - m) ** 2, axis=-1, keepdims=True)
    return (x - m) * jax.lax.rsqrt(v + LN_EPS) * g + b


def _tower_kernel(*refs, streams, n_heads, n_tpro, n_set, n_vpro):
    """Fused CLIP transformer tower (1..N residual streams sharing the same weight stack).

    grid = (core_split, layer).  The batch is folded into the block, so all LN / QKV / MLP
    matmuls run on the full (sum_i B_i*S_i, D) activation slab resident in VMEM scratch.
    """
    it = iter(refs)
    x_refs = [next(it) for _ in streams]
    eot_refs = {i: next(it) for i, st in enumerate(streams) if st['use_eot']}
    aw_refs = {i: next(it) for i, st in enumerate(streams) if st['use_aw']}
    puni_ref = pins_ref = pvis_ref = None
    if any(st['inject'] == 'txt' for st in streams):
        puni_ref = next(it)
        pins_ref = next(it)
    if any(st['inject'] == 'vis' for st in streams):
        pvis_ref = next(it)
    preg_ref = preb_ref = None
    if any(st['use_preln'] for st in streams):
        preg_ref = next(it)
        preb_ref = next(it)
    blk = {k: next(it) for k in _BLK_KEYS}
    fing_ref = next(it)
    finb_ref = next(it)
    proj_ref = next(it)
    out_refs = [next(it) for _ in streams]
    feats_refs = {i: next(it) for i, st in enumerate(streams) if st['emit_feats']}
    x_sc = next(it)

    c = pl.program_id(0)
    l = pl.program_id(1)
    n_layers = pl.num_programs(1)
    D = x_sc.shape[-1]
    dh = D // n_heads
    scale = 1.0 / float(dh) ** 0.5

    offs, r = [], 0
    for st in streams:
        offs.append(r)
        r += st['B'] * st['S']

    # ---- layer 0: load the residual streams into VMEM (+ optional ln_pre) ----
    @pl.when(l == 0)
    def _():
        for si, st in enumerate(streams):
            xin = x_refs[si][...].reshape(st['B'] * st['S'], D)
            if st['use_preln']:
                xin = _ln(xin, preg_ref[...], preb_ref[...])
            x_sc[offs[si]:offs[si] + st['B'] * st['S'], :] = xin

    # ---- HPT deep-prompt injection (layers > 0) ----
    if any(st['inject'] for st in streams):
        @pl.when(l > 0)
        def _():
            for si, st in enumerate(streams):
                if st['inject'] == 'vis':
                    pv = pvis_ref[0]                                   # p_visual[l-1]
                    for b in range(st['B']):
                        base = offs[si] + b * st['S'] + st['S'] - n_vpro
                        x_sc[base:base + n_vpro, :] = pv
                elif st['inject'] == 'txt':
                    pg = puni_ref[0]                                   # ctx_g = p_uni[l-1]
                    for b in range(st['B']):
                        base = offs[si] + b * st['S']
                        x_sc[base + 1:base + 1 + n_tpro, :] = pg
                        x_sc[base + 1 + n_tpro:base + 1 + n_tpro + n_set, :] = pins_ref[0, b]

    x = x_sc[...]                                                       # (R, D) f32

    # ---- attention ----
    h = _ln(x, blk['ln1_g'][0], blk['ln1_b'][0])
    qkv = (jnp.dot(h.astype(jnp.bfloat16), blk['w_qkv'][0],
                   preferred_element_type=jnp.float32) + blk['b_qkv'][0])

    attn_rows = []
    for si, st in enumerate(streams):
        Bb, S = st['B'], st['S']
        r0 = offs[si]
        r1 = r0 + Bb * S
        q = qkv[r0:r1, 0:D].reshape(Bb, S, D).astype(jnp.bfloat16)
        k = qkv[r0:r1, D:2 * D].reshape(Bb, S, D).astype(jnp.bfloat16)
        v = qkv[r0:r1, 2 * D:3 * D].reshape(Bb, S, D).astype(jnp.bfloat16)
        keep = None
        if st['causal']:
            qi = jax.lax.broadcasted_iota(jnp.int32, (S, S), 0)
            ki = jax.lax.broadcasted_iota(jnp.int32, (S, S), 1)
            keep = (ki <= qi)[None, :, :]                               # CLIP causal mask
        aw_eff = None
        if st['use_aw']:
            # HPT multiplicative attention re-weighting, only the first 9 layers.
            # TODO(synk): exact placement of HPT's attn re-weighting (modified resblock not shown)
            aw_eff = jnp.where(l < 9, aw_refs[si][...], 1.0)            # (Bb, S, S)
        head_outs = []
        for hh in range(n_heads):
            sl = slice(hh * dh, (hh + 1) * dh)
            s = jnp.einsum('bqd,bkd->bqk', q[:, :, sl], k[:, :, sl],
                           preferred_element_type=jnp.float32) * scale
            if keep is not None:
                s = jnp.where(keep, s, -1e30)
            s = s - jnp.max(s, axis=-1, keepdims=True)
            p = jnp.exp(s)
            if aw_eff is not None:
                p = p * aw_eff
            p = p * pl.reciprocal(jnp.sum(p, axis=-1, keepdims=True), approx=True)
            head_outs.append(jnp.einsum('bqk,bkd->bqd', p.astype(jnp.bfloat16), v[:, :, sl],
                                        preferred_element_type=jnp.float32))
        o = jnp.concatenate(head_outs, axis=-1).reshape(Bb * S, D)
        attn_rows.append(o)
    attn = attn_rows[0] if len(attn_rows) == 1 else jnp.concatenate(attn_rows, axis=0)
    attn = (jnp.dot(attn.astype(jnp.bfloat16), blk['w_o'][0],
                    preferred_element_type=jnp.float32) + blk['b_o'][0])
    x = x + attn

    # ---- MLP (QuickGELU) ----
    h2 = _ln(x, blk['ln2_g'][0], blk['ln2_b'][0])
    h2 = (jnp.dot(h2.astype(jnp.bfloat16), blk['w_1'][0],
                  preferred_element_type=jnp.float32) + blk['b_1'][0])
    h2 = h2 * jax.nn.sigmoid(1.702 * h2)
    h2 = (jnp.dot(h2.astype(jnp.bfloat16), blk['w_2'][0],
                  preferred_element_type=jnp.float32) + blk['b_2'][0])
    x = x + h2
    x_sc[...] = x

    # ---- per-layer EOT features (TextEncoderZS) ----
    for si, st in enumerate(streams):
        if st['emit_feats']:
            Bb, S = st['B'], st['S']
            rows = [x_sc[pl.ds(offs[si] + b * S + eot_refs[si][c * Bb + b], 1), :]
                    for b in range(Bb)]
            sel = rows[0] if Bb == 1 else jnp.concatenate(rows, axis=0)
            feats_refs[si][...] = sel.reshape(1, Bb, 1, D)

    # ---- fused tail: gather CLS/EOT row -> final LayerNorm -> projection ----
    @pl.when(l == n_layers - 1)
    def _():
        for si, st in enumerate(streams):
            Bb, S = st['B'], st['S']
            if st['gather'] == 'eot':
                rows = [x_sc[pl.ds(offs[si] + b * S + eot_refs[si][c * Bb + b], 1), :]
                        for b in range(Bb)]
            else:
                rows = [x_sc[offs[si] + b * S: offs[si] + b * S + 1, :] for b in range(Bb)]
            sel = rows[0] if Bb == 1 else jnp.concatenate(rows, axis=0)    # (Bb, D)
            sel = _ln(sel, fing_ref[...], finb_ref[...])
            out = jnp.dot(sel.astype(jnp.bfloat16), proj_ref[...],
                          preferred_element_type=jnp.float32)              # (Bb, D_OUT)
            out_refs[si][...] = out.reshape(Bb, 1, out.shape[-1])


def run_tower(streams, stack, *, n_heads, final_ln, proj,
              p_uni=None, p_ins=None, p_vis=None, pre_ln=None,
              n_tpro=0, n_set=0, n_vpro=0, core_split=None):
    """One fused pallas_call for a full transformer tower (1..N streams).

    grid = (core_split, layer); batch folded into the block; returns a list of
    (out, feats_or_None) per stream.
    """
    D = streams[0]['x'].shape[-1]
    L = stack['w_qkv'].shape[0]
    Do = proj.shape[-1]

    if core_split is None:
        core_split = _default_core_split()
    core_split = max(1, core_split)
    for st in streams:
        if st['x'].shape[0] % core_split != 0:
            core_split = 1

    def const_spec(a):
        nd = a.ndim
        return pl.BlockSpec(a.shape, lambda c, l, nd=nd: (0,) * nd)

    def layer_spec(a):
        nd = a.ndim
        return pl.BlockSpec((1,) + a.shape[1:], lambda c, l, nd=nd: (l,) + (0,) * (nd - 1))

    scfg, inputs, in_specs = [], [], []
    for st in streams:
        x = st['x']
        B, S, _ = x.shape
        Bb = B // core_split
        scfg.append(dict(B=Bb, S=S,
                         gather=st.get('gather', 'cls'),
                         inject=st.get('inject', None),
                         emit_feats=st.get('emit_feats', False),
                         causal=st.get('causal', False),
                         use_aw=st.get('aw', None) is not None,
                         use_eot=st.get('eot', None) is not None,
                         use_preln=pre_ln is not None))
        inputs.append(x)
        in_specs.append(pl.BlockSpec((Bb, S, D), lambda c, l: (c, 0, 0)))
    for st in streams:                                         # EOT indices -> SMEM
        if st.get('eot', None) is not None:
            inputs.append(st['eot'].astype(jnp.int32))
            in_specs.append(pl.BlockSpec(memory_space=pltpu.MemorySpace.SMEM))
    for si, st in enumerate(streams):                          # HPT attention re-weighting
        if st.get('aw', None) is not None:
            a = st['aw']
            inputs.append(a)
            in_specs.append(pl.BlockSpec((scfg[si]['B'],) + a.shape[1:],
                                         lambda c, l: (c, 0, 0)))
    if any(s['inject'] == 'txt' for s in scfg):
        inputs.append(p_uni)
        in_specs.append(layer_spec(p_uni))
        si = [i for i, s in enumerate(scfg) if s['inject'] == 'txt'][0]
        inputs.append(p_ins)
        in_specs.append(pl.BlockSpec((1, scfg[si]['B']) + p_ins.shape[2:],
                                     lambda c, l: (l, c, 0, 0)))
    if any(s['inject'] == 'vis' for s in scfg):
        inputs.append(p_vis)
        in_specs.append(layer_spec(p_vis))
    if pre_ln is not None:
        inputs += [pre_ln[0], pre_ln[1]]
        in_specs += [const_spec(pre_ln[0]), const_spec(pre_ln[1])]
    for kname in _BLK_KEYS:
        a = stack[kname]
        inputs.append(a)
        in_specs.append(layer_spec(a))
    projb = proj.astype(jnp.bfloat16)
    inputs += [final_ln[0], final_ln[1], projb]
    in_specs += [const_spec(final_ln[0]), const_spec(final_ln[1]), const_spec(projb)]

    out_shape, out_specs = [], []
    for si, st in enumerate(streams):
        B = st['x'].shape[0]
        out_shape.append(jax.ShapeDtypeStruct((B, 1, Do), jnp.float32))
        out_specs.append(pl.BlockSpec((scfg[si]['B'], 1, Do), lambda c, l: (c, 0, 0)))
    for si, st in enumerate(streams):
        if scfg[si]['emit_feats']:
            B = st['x'].shape[0]
            out_shape.append(jax.ShapeDtypeStruct((L, B, 1, D), jnp.float32))
            out_specs.append(pl.BlockSpec((1, scfg[si]['B'], 1, D),
                                          lambda c, l: (l, c, 0, 0)))

    total_rows = sum(s['B'] * s['S'] for s in scfg)
    kernel = functools.partial(_tower_kernel, streams=tuple(scfg), n_heads=n_heads,
                               n_tpro=n_tpro, n_set=n_set, n_vpro=n_vpro)

    results = pl.pallas_call(
        kernel,
        grid=(core_split, L),
        in_specs=in_specs,
        out_specs=tuple(out_specs),
        out_shape=tuple(out_shape),
        scratch_shapes=[pltpu.VMEM((total_rows, D), jnp.float32)],   # fused residual slab
        compiler_params=pltpu.CompilerParams(
            dimension_semantics=("parallel", "arbitrary"),
            vmem_limit_bytes=64 * 1024 * 1024),
    )(*inputs)

    if not isinstance(results, (list, tuple)):
        results = (results,)
    results = list(results)
    outs = results[:len(streams)]
    feats_iter = iter(results[len(streams):])
    packed = []
    for si in range(len(streams)):
        f = next(feats_iter) if scfg[si]['emit_feats'] else None
        packed.append((outs[si], f))
    return packed


def _head_kernel(tf_ref, w1_ref, w2_ref, avg_ref, img_ref, imgzs_ref, tzs_ref, sc_ref,
                 o_ref, *, m):
    # Adapter (2-layer ReLU MLP, no bias) + residual mix + L2 norm + mean over n_set
    tf = tf_ref[...]                                             # (n_cls*n_set, D_OUT)
    h = jnp.maximum(jnp.dot(tf, w1_ref[...], preferred_element_type=jnp.float32), 0.0)
    xb = jnp.maximum(jnp.dot(h, w2_ref[...], preferred_element_type=jnp.float32), 0.0)
    y = m * xb + (1.0 - m) * tf
    y = y * jax.lax.rsqrt(jnp.sum(y * y, axis=-1, keepdims=True))
    y = jnp.dot(avg_ref[...], y, preferred_element_type=jnp.float32)   # mean over n_set
    y = y * jax.lax.rsqrt(jnp.sum(y * y, axis=-1, keepdims=True))      # re-normalize
    img = img_ref[...]
    img = img * jax.lax.rsqrt(jnp.sum(img * img, axis=-1, keepdims=True))
    imz = imgzs_ref[...]
    imz = imz * jax.lax.rsqrt(jnp.sum(imz * imz, axis=-1, keepdims=True))
    sc = sc_ref[0]                                               # logit_scale (SMEM scalar)
    logits_i = jnp.dot(img, tzs_ref[...], preferred_element_type=jnp.float32)
    logits_t = jax.lax.dot_general(imz, y, (((1,), (1,)), ((), ())),
                                   preferred_element_type=jnp.float32)
    o_ref[...] = 0.5 * sc * (logits_i + logits_t)


def compute_head(tf_flat, w1, w2, avg, img, imgzs, tzs, scale):
    sc = jnp.reshape(scale, (1,)).astype(jnp.float32)
    args = (tf_flat, w1, w2, avg, img, imgzs, tzs)
    in_specs = [pl.BlockSpec(a.shape, lambda *_, nd=a.ndim: (0,) * nd) for a in args]
    in_specs.append(pl.BlockSpec(memory_space=pltpu.MemorySpace.SMEM))
    return pl.pallas_call(
        functools.partial(_head_kernel, m=TEXT_ADAPTER_M),
        in_specs=in_specs,
        out_shape=jax.ShapeDtypeStruct((img.shape[0], tzs.shape[1]), jnp.float32),
    )(*args, sc)


# ------------------------------ parameter init ----------------------------------
def init_params(key):
    ks = iter(jax.random.split(key, 200))

    def nrm(shape, std=0.02):
        return (std * jax.random.normal(next(ks), shape)).astype(jnp.float32)

    def block_params(D):
        return dict(
            ln1_g=jnp.ones((1, D), jnp.float32), ln1_b=jnp.zeros((1, D), jnp.float32),
            w_qkv=nrm((D, 3 * D)), b_qkv=jnp.zeros((1, 3 * D), jnp.float32),
            w_o=nrm((D, D)), b_o=jnp.zeros((1, D), jnp.float32),
            ln2_g=jnp.ones((1, D), jnp.float32), ln2_b=jnp.zeros((1, D), jnp.float32),
            w_1=nrm((D, 4 * D)), b_1=jnp.zeros((1, 4 * D), jnp.float32),
            w_2=nrm((4 * D, D)), b_2=jnp.zeros((1, D), jnp.float32))

    def stacked(blocks):
        out = {}
        for k in _BLK_KEYS:
            a = jnp.stack([b[k] for b in blocks], axis=0)
            if k in _BLK_MAT_KEYS:
                a = a.astype(jnp.bfloat16)           # MXU-native, halves weight DMA bytes
            out[k] = a
        return out

    n_patches = (IMG // PATCH) ** 2
    txt_blocks = [block_params(D_TXT) for _ in range(N_LAYERS_T)]
    vis_blocks = [block_params(D_VIS) for _ in range(N_LAYERS_V)]
    return dict(
        # frozen CLIP text tower
        token_embedding=nrm((VOCAB, D_TXT)),
        pos_emb_txt=nrm((L_TXT, D_TXT)),
        ln_final_g=jnp.ones((1, D_TXT), jnp.float32), ln_final_b=jnp.zeros((1, D_TXT), jnp.float32),
        text_projection=nrm((D_TXT, D_OUT)),
        txt_stack=stacked(txt_blocks),
        # frozen CLIP vision tower
        conv1_w=nrm((D_VIS, 3, PATCH, PATCH)),
        class_embedding=nrm((D_VIS,)),
        pos_emb_vis=nrm((1 + n_patches, D_VIS)),
        ln_pre_g=jnp.ones((1, D_VIS), jnp.float32), ln_pre_b=jnp.zeros((1, D_VIS), jnp.float32),
        ln_post_g=jnp.ones((1, D_VIS), jnp.float32), ln_post_b=jnp.zeros((1, D_VIS), jnp.float32),
        vis_proj=nrm((D_VIS, D_OUT)),
        vis_stack=stacked(vis_blocks),
        logit_scale=jnp.asarray(jnp.log(1.0 / 0.07), jnp.float32),
        # PromptLearner
        p_uni=[nrm((N_TPRO, D_TXT)) for _ in range(N_LAYERS_T - 1)],
        p_ins_proj_w=nrm((D_TXT, D_TXT)), p_ins_proj_b=jnp.zeros((1, D_TXT), jnp.float32),
        p_input_txt=nrm((N_TPRO + N_SET, D_TXT)),
        # VisionPromptLearner
        p_visual=[nrm((N_VPRO, D_VIS)) for _ in range(N_LAYERS_V - 1)],
        p_input_vis=nrm((N_VPRO, D_VIS)),
        # Adapter(c_in=D_OUT, reduction=4), bias=False
        adapter_w1=nrm((D_OUT, D_OUT // 4)), adapter_w2=nrm((D_OUT // 4, D_OUT)),
    )


# ------------------------------- model pieces -----------------------------------
def patch_embed(params, image):
    # image: (B, 3, H, W) NCHW -> (B, 1+P, D_VIS); conv1 (stride==kernel) as matmul
    # TODO(synk): could be folded into the vision tower's l==0 phase.
    B, C, H, W = image.shape
    gh, gw = H // PATCH, W // PATCH
    x = image.reshape(B, C, gh, PATCH, gw, PATCH)
    x = x.transpose(0, 2, 4, 1, 3, 5).reshape(B, gh * gw, C * PATCH * PATCH)
    w = params['conv1_w'].reshape(D_VIS, C * PATCH * PATCH).T
    x = jnp.dot(x, w)
    cls = jnp.broadcast_to(params['class_embedding'][None, None, :], (B, 1, D_VIS))
    x = jnp.concatenate([cls, x], axis=1)
    return x + params['pos_emb_vis'][None]


def vision_encoders(params, x_base):
    """Fused ZS + prompted vision passes: one pallas_call, one weight stream per layer."""
    B = x_base.shape[0]
    p_in = jnp.broadcast_to(params['p_input_vis'][None], (B, N_VPRO, D_VIS))
    x_pt = jnp.concatenate([x_base, p_in], axis=1)
    # pad a dummy layer-0 entry so p_vis[l] == p_visual[l-1]
    p_vis = jnp.concatenate([jnp.zeros((1, N_VPRO, D_VIS), jnp.float32),
                             jnp.stack(params['p_visual'])], axis=0)
    streams = [dict(x=x_base, gather='cls'),
               dict(x=x_pt, gather='cls', inject='vis')]
    res = run_tower(streams, params['vis_stack'], n_heads=N_HEADS,
                    p_vis=p_vis, n_vpro=N_VPRO,
                    pre_ln=(params['ln_pre_g'], params['ln_pre_b']),
                    final_ln=(params['ln_post_g'], params['ln_post_b']),
                    proj=params['vis_proj'])
    image_features_zs = res[0][0].reshape(B, D_OUT)
    image_features_pt = res[1][0].reshape(B, D_OUT)
    return image_features_zs, image_features_pt


def text_encoder_zs(params, tokens):
    # tokens: (Bt, L) int32 — all classes batched into one fused tower call
    emb = jnp.take(params['token_embedding'], tokens, axis=0)
    x = emb + params['pos_emb_txt'][None]
    Bt, _ = tokens.shape
    eot = jnp.argmax(tokens, axis=-1).astype(jnp.int32)
    streams = [dict(x=x, eot=eot, gather='eot', emit_feats=True, causal=True)]
    res = run_tower(streams, params['txt_stack'], n_heads=N_HEADS,
                    final_ln=(params['ln_final_g'], params['ln_final_b']),
                    proj=params['text_projection'])
    out, feats = res[0]
    return out.reshape(Bt, D_OUT), feats.reshape(N_LAYERS_T, Bt, D_TXT)


def build_zs_features(params, text_tokens_zs):
    # mirrors CustomCLIP.__init__ buffers text_features_zs / text_features_ft
    C, Sset, Lseq = text_tokens_zs.shape
    tokens = text_tokens_zs.reshape(C * Sset, Lseq)
    ce, feats = text_encoder_zs(params, tokens)
    ce = ce.reshape(C, Sset, -1)
    ce = ce / jnp.linalg.norm(ce, axis=-1, keepdims=True)
    emb = jnp.mean(ce, axis=1)
    emb = emb / jnp.linalg.norm(emb, axis=-1, keepdims=True)
    text_features_zs = emb.T                                    # (D_OUT, n_cls)
    feats = feats.reshape(feats.shape[0], C, Sset, -1)          # (layers, n_cls, n_set, D)
    text_features_ft = feats / jnp.linalg.norm(feats, axis=-1, keepdims=True)
    return text_features_zs, text_features_ft


def prompt_learner(params, feats_ft, tokenized_prompts):
    # eval path (flag=False): one prompt per (class, description-id)
    # TODO(synk): clip.tokenize / python string prompt assembly has no Pallas equivalent;
    #             tokenized_prompts are provided as synthetic int ids.
    Bt = N_CLS * N_SET
    emb = jnp.take(params['token_embedding'], tokenized_prompts, axis=0)       # (Bt, L, D)
    p_input = jnp.broadcast_to(params['p_input_txt'][None], (Bt, N_TPRO + N_SET, D_TXT))
    prefix = emb[:, :1]
    suffix = emb[:, 1 + N_TPRO + N_SET:]
    p_ori = jnp.concatenate([prefix, p_input, suffix], axis=1)                 # (Bt, L, D)
    lmax = N_LAYERS_T - 1
    f = feats_ft[:lmax].reshape(lmax * Bt, D_TXT)
    # residual p_ins projector: tiny, left to XLA rather than a standalone pallas_call
    p_ins = f + jnp.dot(f, params['p_ins_proj_w']) + params['p_ins_proj_b']
    return p_ori, p_ins.reshape(lmax, Bt, D_TXT)


def text_encoder_pt(params, p_ori, p_ins, tokenized_prompts, attn_bin):
    Bt, Lseq, D = p_ori.shape
    alpha = 1.0 + ALPHA
    aw = jnp.where(attn_bin > 0, alpha, 1.0 / alpha)                           # (Bt, L, L)
    lmax = p_ins.shape[0]
    p_ins = p_ins.reshape(lmax, N_CLS, N_SET, D)
    # flag=False: every description-prompt of a class shares that class's full set
    p_ins = jnp.broadcast_to(p_ins[:, :, None], (lmax, N_CLS, N_SET, N_SET, D))
    p_ins = p_ins.reshape(lmax, Bt, N_SET, D)
    p_ins = jnp.concatenate([jnp.zeros((1, Bt, N_SET, D), jnp.float32), p_ins], axis=0)
    p_uni = jnp.concatenate([jnp.zeros((1, N_TPRO, D), jnp.float32),
                             jnp.stack(params['p_uni'])], axis=0)
    x = p_ori + params['pos_emb_txt'][None]
    eot = jnp.argmax(tokenized_prompts, axis=-1).astype(jnp.int32)
    streams = [dict(x=x, eot=eot, aw=aw, inject='txt', gather='eot', causal=True)]
    res = run_tower(streams, params['txt_stack'], n_heads=N_HEADS,
                    p_uni=p_uni, p_ins=p_ins, n_tpro=N_TPRO, n_set=N_SET,
                    final_ln=(params['ln_final_g'], params['ln_final_b']),
                    proj=params['text_projection'])
    return res[0][0].reshape(Bt, D_OUT)                          # rows are class-major


def custom_clip_forward(params, image, tokenized_prompts, attn_bin, buffers):
    """Eval-mode (self.training == False) forward: returns logits (B, n_cls)."""
    text_features_zs, text_features_ft = buffers
    logit_scale = jnp.exp(params['logit_scale'])

    x_base = patch_embed(params, image)                          # shared conv1 / patch-embed

    # TopoPromptLearner(): intra + cross attention matrices (precomputed binary masks)
    attns = attn_bin.reshape(N_CLS * N_SET, L_TXT, L_TXT)
    p_ori, p_ins = prompt_learner(params, text_features_ft, tokenized_prompts)
    text_features = text_encoder_pt(params, p_ori, p_ins, tokenized_prompts, attns)  # (Bt, D_OUT)

    # fused ZS + prompted vision towers (one pallas_call)
    image_features_zs, image_features = vision_encoders(params, x_base)

    # fused head: Adapter + residual mix + L2 norms + mean over n_set + both logit matmuls
    avg = jnp.repeat(jnp.eye(N_CLS, dtype=jnp.float32), N_SET, axis=1) / N_SET  # (n_cls, n_cls*n_set)
    logits = compute_head(text_features, params['adapter_w1'], params['adapter_w2'],
                          avg, image_features, image_features_zs, text_features_zs, logit_scale)
    # TODO(synk): training branch (logits_i, logits_t, sim_distance) omitted — eval path only.
    return logits


# ------------------------------------ main ---------------------------------------
if __name__ == "__main__":
    key = jax.random.PRNGKey(0)
    kp, kimg, ktok1, ktok2, kattn = jax.random.split(key, 5)
    params = init_params(kp)

    B = 2
    image = jax.random.normal(kimg, (B, 3, IMG, IMG), jnp.float32)

    # synthetic tokenized text (clip.tokenize unavailable); EOT = max token id
    text_tokens_zs = jax.random.randint(ktok1, (N_CLS, N_SET, L_TXT), 1, VOCAB - 2)
    text_tokens_zs = text_tokens_zs.at[:, :, L_TXT - 3].set(VOCAB - 1)
    tokenized_prompts = jax.random.randint(ktok2, (N_CLS * N_SET, L_TXT), 1, VOCAB - 2)
    tokenized_prompts = tokenized_prompts.at[:, L_TXT - 2].set(VOCAB - 1)

    # synthetic intra+cross topology attention masks (TopoPromptLearner output)
    attn_bin = (jax.random.uniform(kattn, (N_CLS, N_SET, L_TXT, L_TXT)) < 0.2).astype(jnp.float32)

    buffers = build_zs_features(params, text_tokens_zs)   # __init__-time buffers
    logits = custom_clip_forward(params, image, tokenized_prompts, attn_bin, buffers)
    jax.block_until_ready(logits)
    assert logits.shape == (B, N_CLS) and logits.dtype == jnp.float32
    print("KERNEL_OK")
</pallas_src>

<mosaic_0001>
module attributes {stable_mosaic.version = 11 : i64} {
  func.func @_tower_kernel(%arg0: i32, %arg1: i32, %arg2: memref<6x16x64xf32, #tpu.memory_space<vmem>>, %arg3: memref<6xi32, #tpu.memory_space<smem>>, %arg4: memref<1x1x64xf32, #tpu.memory_space<vmem>>, %arg5: memref<1x1x64xf32, #tpu.memory_space<vmem>>, %arg6: memref<1x64x192xbf16, #tpu.memory_space<vmem>>, %arg7: memref<1x1x192xf32, #tpu.memory_space<vmem>>, %arg8: memref<1x64x64xbf16, #tpu.memory_space<vmem>>, %arg9: memref<1x1x64xf32, #tpu.memory_space<vmem>>, %arg10: memref<1x1x64xf32, #tpu.memory_space<vmem>>, %arg11: memref<1x1x64xf32, #tpu.memory_space<vmem>>, %arg12: memref<1x64x256xbf16, #tpu.memory_space<vmem>>, %arg13: memref<1x1x256xf32, #tpu.memory_space<vmem>>, %arg14: memref<1x256x64xbf16, #tpu.memory_space<vmem>>, %arg15: memref<1x1x64xf32, #tpu.memory_space<vmem>>, %arg16: memref<1x64xf32, #tpu.memory_space<vmem>>, %arg17: memref<1x64xf32, #tpu.memory_space<vmem>>, %arg18: memref<64x64xbf16, #tpu.memory_space<vmem>>, %arg19: memref<6x1x64xf32, #tpu.memory_space<vmem>>, %arg20: memref<1x6x1x64xf32, #tpu.memory_space<vmem>>, %arg21: memref<96x64xf32, #tpu.memory_space<vmem>>) attributes {dimension_semantics = [#tpu.dimension_semantics<parallel>, #tpu.dimension_semantics<arbitrary>], iteration_bounds = array<i64: 1, 3>, scalar_prefetch = 0 : i64, scratch_operands = 1 : i64, tpu.core_type = #tpu.core_type<tc>, window_params = [{transform_indices = @transform_0, window_bounds = array<i64: 6, 16, 64>}, {transform_indices = @transform_1, window_bounds = array<i64: 6>}, {transform_indices = @transform_2, window_bounds = array<i64: 1, 1, 64>}, {transform_indices = @transform_3, window_bounds = array<i64: 1, 1, 64>}, {transform_indices = @transform_4, window_bounds = array<i64: 1, 64, 192>}, {transform_indices = @transform_5, window_bounds = array<i64: 1, 1, 192>}, {transform_indices = @transform_6, window_bounds = array<i64: 1, 64, 64>}, {transform_indices = @transform_7, window_bounds = array<i64: 1, 1, 64>}, {transform_indices = @transform_8, window_bounds = array<i64: 1, 1, 64>}, {transform_indices = @transform_9, window_bounds = array<i64: 1, 1, 64>}, {transform_indices = @transform_10, window_bounds = array<i64: 1, 64, 256>}, {transform_indices = @transform_11, window_bounds = array<i64: 1, 1, 256>}, {transform_indices = @transform_12, window_bounds = array<i64: 1, 256, 64>}, {transform_indices = @transform_13, window_bounds = array<i64: 1, 1, 64>}, {pipeline_mode = #tpu.pipeline_mode<synchronous>, transform_indices = @transform_14, window_bounds = array<i64: 1, 64>}, {pipeline_mode = #tpu.pipeline_mode<synchronous>, transform_indices = @transform_15, window_bounds = array<i64: 1, 64>}, {pipeline_mode = #tpu.pipeline_mode<synchronous>, transform_indices = @transform_16, window_bounds = array<i64: 64, 64>}, {transform_indices = @transform_17, window_bounds = array<i64: 6, 1, 64>}, {transform_indices = @transform_18, window_bounds = array<i64: 1, 6, 1, 64>}]} {
    %c0_i32 = arith.constant 0 : i32
    %0 = arith.cmpi eq, %arg1, %c0_i32 : i32
    %1 = arith.extui %0 : i1 to i32
    %c0_i32_0 = arith.constant 0 : i32
    %2 = arith.cmpi ne, %1, %c0_i32_0 : i32
    scf.if %2 {
      %c0_98 = arith.constant 0 : index
      %c0_99 = arith.constant 0 : index
      %c0_100 = arith.constant 0 : index
      %250 = vector.load %arg2[%c0_98, %c0_99, %c0_100] : memref<6x16x64xf32, #tpu.memory_space<vmem>>, vector<6x16x64xf32>
      %251 = vector.shape_cast %250 : vector<6x16x64xf32> to vector<96x64xf32>
      %c0_101 = arith.constant 0 : index
      %c0_102 = arith.constant 0 : index
      %252 = vector.load %arg21[%c0_101, %c0_102] : memref<96x64xf32, #tpu.memory_space<vmem>>, vector<96x64xf32>
      tpu.vector_store %arg21[%c0_101, %c0_102], %251 {strides = array<i32>} : memref<96x64xf32, #tpu.memory_space<vmem>>, vector<96x64xf32>,
    } else {
    }
    %c0 = arith.constant 0 : index
    %c0_1 = arith.constant 0 : index
    %3 = vector.load %arg21[%c0, %c0_1] : memref<96x64xf32, #tpu.memory_space<vmem>>, vector<96x64xf32>
    %c0_2 = arith.constant 0 : index
    %c0_3 = arith.constant 0 : index
    %c0_4 = arith.constant 0 : index
    %4 = vector.load %arg4[%c0_2, %c0_3, %c0_4] : memref<1x1x64xf32, #tpu.memory_space<vmem>>, vector<1x1x64xf32>
    %5 = vector.shape_cast %4 : vector<1x1x64xf32> to vector<1x64xf32>
    %c0_5 = arith.constant 0 : index
    %c0_6 = arith.constant 0 : index
    %c0_7 = arith.constant 0 : index
    %6 = vector.load %arg5[%c0_5, %c0_6, %c0_7] : memref<1x1x64xf32, #tpu.memory_space<vmem>>, vector<1x1x64xf32>
    %7 = vector.shape_cast %6 : vector<1x1x64xf32> to vector<1x64xf32>
    %cst = arith.constant dense<0.000000e+00> : vector<96xf32>
    %8 = vector.multi_reduction <add>, %3, %cst [1] : vector<96x64xf32> to vector<96xf32>
    %9 = vector.shape_cast %8 : vector<96xf32> to vector<96x1xf32>
    %cst_8 = arith.constant 6.400000e+01 : f32
    %10 = vector.broadcast %cst_8 : f32 to vector<96x1xf32>
    %11 = arith.divf %9, %10 : vector<96x1xf32>
    %12 = vector.broadcast %11 : vector<96x1xf32> to vector<96x64xf32>
    %13 = arith.subf %3, %12 : vector<96x64xf32>
    %14 = arith.mulf %13, %13 : vector<96x64xf32>
    %cst_9 = arith.constant dense<0.000000e+00> : vector<96xf32>
    %15 = vector.multi_reduction <add>, %14, %cst_9 [1] : vector<96x64xf32> to vector<96xf32>
    %16 = vector.shape_cast %15 : vector<96xf32> to vector<96x1xf32>
    %cst_10 = arith.constant 6.400000e+01 : f32
    %17 = vector.broadcast %cst_10 : f32 to vector<96x1xf32>
    %18 = arith.divf %16, %17 : vector<96x1xf32>
    %19 = vector.broadcast %11 : vector<96x1xf32> to vector<96x64xf32>
    %20 = arith.subf %3, %19 : vector<96x64xf32>
    %cst_11 = arith.constant 9.99999974E-6 : f32
    %21 = vector.broadcast %cst_11 : f32 to vector<96x1xf32>
    %22 = arith.addf %18, %21 : vector<96x1xf32>
    %23 = math.rsqrt %22 : vector<96x1xf32>
    %24 = vector.broadcast %23 : vector<96x1xf32> to vector<96x64xf32>
    %25 = arith.mulf %20, %24 : vector<96x64xf32>
    %26 = vector.broadcast %5 : vector<1x64xf32> to vector<96x64xf32>
    %27 = arith.mulf %25, %26 : vector<96x64xf32>
    %28 = vector.broadcast %7 : vector<1x64xf32> to vector<96x64xf32>
    %29 = arith.addf %27, %28 : vector<96x64xf32>
    %30 = arith.truncf %29 : vector<96x64xf32> to vector<96x64xbf16>
    %c0_12 = arith.constant 0 : index
    %c0_13 = arith.constant 0 : index
    %c0_14 = arith.constant 0 : index
    %31 = vector.load %arg6[%c0_12, %c0_13, %c0_14] : memref<1x64x192xbf16, #tpu.memory_space<vmem>>, vector<1x64x192xbf16>
    %32 = vector.shape_cast %31 : vector<1x64x192xbf16> to vector<64x192xbf16>
    %cst_15 = arith.constant dense<0.000000e+00> : vector<96x192xf32>
    %33 = tpu.matmul %30, %32, %cst_15 {dimension_numbers = #tpu.dot_dimension_numbers<[1], [0], [0], [1], [0, 0, 1, 1], [], []>} : vector<96x64xbf16>, vector<64x192xbf16>, vector<96x192xf32> -> vector<96x192xf32>
    %c0_16 = arith.constant 0 : index
    %c0_17 = arith.constant 0 : index
    %c0_18 = arith.constant 0 : index
    %34 = vector.load %arg7[%c0_16, %c0_17, %c0_18] : memref<1x1x192xf32, #tpu.memory_space<vmem>>, vector<1x1x192xf32>
    %35 = vector.shape_cast %34 : vector<1x1x192xf32> to vector<1x192xf32>
    %36 = vector.broadcast %35 : vector<1x192xf32> to vector<96x192xf32>
    %37 = arith.addf %33, %36 : vector<96x192xf32>
    %38 = vector.extract_strided_slice %37 {offsets = [0, 0], sizes = [96, 64], strides = [1, 1]} : vector<96x192xf32> to vector<96x64xf32>
    %39 = vector.shape_cast %38 : vector<96x64xf32> to vector<6x16x64xf32>
    %40 = arith.truncf %39 : vector<6x16x64xf32> to vector<6x16x64xbf16>
    %41 = vector.extract_strided_slice %37 {offsets = [0, 64], sizes = [96, 64], strides = [1, 1]} : vector<96x192xf32> to vector<96x64xf32>
    %42 = vector.shape_cast %41 : vector<96x64xf32> to vector<6x16x64xf32>
    %43 = arith.truncf %42 : vector<6x16x64xf32> to vector<6x16x64xbf16>
    %44 = vector.extract_strided_slice %37 {offsets = [0, 128], sizes = [96, 64], strides = [1, 1]} : vector<96x192xf32> to vector<96x64xf32>
    %45 = vector.shape_cast %44 : vector<96x64xf32> to vector<6x16x64xf32>
    %46 = arith.truncf %45 : vector<6x16x64xf32> to vector<6x16x64xbf16>
    %47 = tpu.iota {dimensions = array<i32: 0>} : vector<16x16xi32>
    %48 = tpu.iota {dimensions = array<i32: 1>} : vector<16x16xi32>
    %49 = arith.cmpi sle, %48, %47 : vector<16x16xi32>
    %50 = vector.shape_cast %49 : vector<16x16xi1> to vector<1x16x16xi1>
    %51 = vector.extract_strided_slice %40 {offsets = [0, 0, 0], sizes = [6, 16, 16], strides = [1, 1, 1]} : vector<6x16x64xbf16> to vector<6x16x16xbf16>
    %52 = vector.extract_strided_slice %43 {offsets = [0, 0, 0], sizes = [6, 16, 16], strides = [1, 1, 1]} : vector<6x16x64xbf16> to vector<6x16x16xbf16>
    "tpu.trace_start"() <{level = 10 : i32, message = "bqd,bkd->bqk"}> : () -> ()
    %cst_19 = arith.constant dense<0.000000e+00> : vector<6x16x16xf32>
    %53 = tpu.matmul %51, %52, %cst_19 {dimension_numbers = #tpu.dot_dimension_numbers<[2], [2], [1], [1], [0, 0, 0, 1, 1, 1], [0], [0]>} : vector<6x16x16xbf16>, vector<6x16x16xbf16>, vector<6x16x16xf32> -> vector<6x16x16xf32>
    "tpu.trace_stop"() : () -> ()
    %cst_20 = arith.constant 2.500000e-01 : f32
    %54 = vector.broadcast %cst_20 : f32 to vector<6x16x16xf32>
    %55 = arith.mulf %53, %54 : vector<6x16x16xf32>
    %cst_21 = arith.constant -1.000000e+30 : f32
    %56 = vector.shape_cast %50 : vector<1x16x16xi1> to vector<1x16x16xi1>
    %57 = vector.broadcast %56 : vector<1x16x16xi1> to vector<6x16x16xi1>
    %58 = vector.broadcast %cst_21 : f32 to vector<6x16x16xf32>
    %59 = arith.select %57, %55, %58 : vector<6x16x16xi1>, vector<6x16x16xf32>
    %cst_22 = arith.constant dense<0xFF800000> : vector<6x16xf32>
    %60 = vector.multi_reduction <maximumf>, %59, %cst_22 [2] : vector<6x16x16xf32> to vector<6x16xf32>
    %61 = vector.shape_cast %60 : vector<6x16xf32> to vector<6x16x1xf32>
    %62 = vector.broadcast %61 : vector<6x16x1xf32> to vector<6x16x16xf32>
    %63 = arith.subf %59, %62 : vector<6x16x16xf32>
    %64 = math.exp %63 : vector<6x16x16xf32>
    %cst_23 = arith.constant dense<0.000000e+00> : vector<6x16xf32>
    %65 = vector.multi_reduction <add>, %64, %cst_23 [2] : vector<6x16x16xf32> to vector<6x16xf32>
    %66 = vector.shape_cast %65 : vector<6x16xf32> to vector<6x16x1xf32>
    %67 = tpu.reciprocal %66 {approx = true} : vector<6x16x1xf32> -> vector<6x16x1xf32>
    %68 = vector.broadcast %67 : vector<6x16x1xf32> to vector<6x16x16xf32>
    %69 = arith.mulf %64, %68 : vector<6x16x16xf32>
    %70 = arith.truncf %69 : vector<6x16x16xf32> to vector<6x16x16xbf16>
    %71 = vector.extract_strided_slice %46 {offsets = [0, 0, 0], sizes = [6, 16, 16], strides = [1, 1, 1]} : vector<6x16x64xbf16> to vector<6x16x16xbf16>
    "tpu.trace_start"() <{level = 10 : i32, message = "bqk,bkd->bqd"}> : () -> ()
    %cst_24 = arith.constant dense<0.000000e+00> : vector<6x16x16xf32>
    %72 = tpu.matmul %70, %71, %cst_24 {dimension_numbers = #tpu.dot_dimension_numbers<[2], [1], [1], [2], [0, 0, 0, 1, 1, 2], [0], [0]>} : vector<6x16x16xbf16>, vector<6x16x16xbf16>, vector<6x16x16xf32> -> vector<6x16x16xf32>
    "tpu.trace_stop"() : () -> ()
    %73 = vector.extract_strided_slice %40 {offsets = [0, 0, 16], sizes = [6, 16, 16], strides = [1, 1, 1]} : vector<6x16x64xbf16> to vector<6x16x16xbf16>
    %74 = vector.extract_strided_slice %43 {offsets = [0, 0, 16], sizes = [6, 16, 16], strides = [1, 1, 1]} : vector<6x16x64xbf16> to vector<6x16x16xbf16>
    "tpu.trace_start"() <{level = 10 : i32, message = "bqd,bkd->bqk"}> : () -> ()
    %cst_25 = arith.constant dense<0.000000e+00> : vector<6x16x16xf32>
    %75 = tpu.matmul %73, %74, %cst_25 {dimension_numbers = #tpu.dot_dimension_numbers<[2], [2], [1], [1], [0, 0, 0, 1, 1, 1], [0], [0]>} : vector<6x16x16xbf16>, vector<6x16x16xbf16>, vector<6x16x16xf32> -> vector<6x16x16xf32>
    "tpu.trace_stop"() : () -> ()
    %cst_26 = arith.constant 2.500000e-01 : f32
    %76 = vector.broadcast %cst_26 : f32 to vector<6x16x16xf32>
    %77 = arith.mulf %75, %76 : vector<6x16x16xf32>
    %cst_27 = arith.constant -1.000000e+30 : f32
    %78 = vector.shape_cast %50 : vector<1x16x16xi1> to vector<1x16x16xi1>
    %79 = vector.broadcast %78 : vector<1x16x16xi1> to vector<6x16x16xi1>
    %80 = vector.broadcast %cst_27 : f32 to vector<6x16x16xf32>
    %81 = arith.select %79, %77, %80 : vector<6x16x16xi1>, vector<6x16x16xf32>
    %cst_28 = arith.constant dense<0xFF800000> : vector<6x16xf32>
    %82 = vector.multi_reduction <maximumf>, %81, %cst_28 [2] : vector<6x16x16xf32> to vector<6x16xf32>
    %83 = vector.shape_cast %82 : vector<6x16xf32> to vector<6x16x1xf32>
    %84 = vector.broadcast %83 : vector<6x16x1xf32> to vector<6x16x16xf32>
    %85 = arith.subf %81, %84 : vector<6x16x16xf32>
    %86 = math.exp %85 : vector<6x16x16xf32>
    %cst_29 = arith.constant dense<0.000000e+00> : vector<6x16xf32>
    %87 = vector.multi_reduction <add>, %86, %cst_29 [2] : vector<6x16x16xf32> to vector<6x16xf32>
    %88 = vector.shape_cast %87 : vector<6x16xf32> to vector<6x16x1xf32>
    %89 = tpu.reciprocal %88 {approx = true} : vector<6x16x1xf32> -> vector<6x16x1xf32>
    %90 = vector.broadcast %89 : vector<6x16x1xf32> to vector<6x16x16xf32>
    %91 = arith.mulf %86, %90 : vector<6x16x16xf32>
    %92 = arith.truncf %91 : vector<6x16x16xf32> to vector<6x16x16xbf16>
    %93 = vector.extract_strided_slice %46 {offsets = [0, 0, 16], sizes = [6, 16, 16], strides = [1, 1, 1]} : vector<6x16x64xbf16> to vector<6x16x16xbf16>
    "tpu.trace_start"() <{level = 10 : i32, message = "bqk,bkd->bqd"}> : () -> ()
    %cst_30 = arith.constant dense<0.000000e+00> : vector<6x16x16xf32>
    %94 = tpu.matmul %92, %93, %cst_30 {dimension_numbers = #tpu.dot_dimension_numbers<[2], [1], [1], [2], [0, 0, 0, 1, 1, 2], [0], [0]>} : vector<6x16x16xbf16>, vector<6x16x16xbf16>, vector<6x16x16xf32> -> vector<6x16x16xf32>
    "tpu.trace_stop"() : () -> ()
    %95 = vector.extract_strided_slice %40 {offsets = [0, 0, 32], sizes = [6, 16, 16], strides = [1, 1, 1]} : vector<6x16x64xbf16> to vector<6x16x16xbf16>
    %96 = vector.extract_strided_slice %43 {offsets = [0, 0, 32], sizes = [6, 16, 16], strides = [1, 1, 1]} : vector<6x16x64xbf16> to vector<6x16x16xbf16>
    "tpu.trace_start"() <{level = 10 : i32, message = "bqd,bkd->bqk"}> : () -> ()
    %cst_31 = arith.constant dense<0.000000e+00> : vector<6x16x16xf32>
    %97 = tpu.matmul %95, %96, %cst_31 {dimension_numbers = #tpu.dot_dimension_numbers<[2], [2], [1], [1], [0, 0, 0, 1, 1, 1], [0], [0]>} : vector<6x16x16xbf16>, vector<6x16x16xbf16>, vector<6x16x16xf32> -> vector<6x16x16xf32>
    "tpu.trace_stop"() : () -> ()
    %cst_32 = arith.constant 2.500000e-01 : f32
    %98 = vector.broadcast %cst_32 : f32 to vector<6x16x16xf32>
    %99 = arith.mulf %97, %98 : vector<6x16x16xf32>
    %cst_33 = arith.constant -1.000000e+30 : f32
    %100 = vector.shape_cast %50 : vector<1x16x16xi1> to vector<1x16x16xi1>
    %101 = vector.broadcast %100 : vector<1x16x16xi1> to vector<6x16x16xi1>
    %102 = vector.broadcast %cst_33 : f32 to vector<6x16x16xf32>
    %103 = arith.select %101, %99, %102 : vector<6x16x16xi1>, vector<6x16x16xf32>
    %cst_34 = arith.constant dense<0xFF800000> : vector<6x16xf32>
    %104 = vector.multi_reduction <maximumf>, %103, %cst_34 [2] : vector<6x16x16xf32> to vector<6x16xf32>
    %105 = vector.shape_cast %104 : vector<6x16xf32> to vector<6x16x1xf32>
    %106 = vector.broadcast %105 : vector<6x16x1xf32> to vector<6x16x16xf32>
    %107 = arith.subf %103, %106 : vector<6x16x16xf32>
    %108 = math.exp %107 : vector<6x16x16xf32>
    %cst_35 = arith.constant dense<0.000000e+00> : vector<6x16xf32>
    %109 = vector.multi_reduction <add>, %108, %cst_35 [2] : vector<6x16x16xf32> to vector<6x16xf32>
    %110 = vector.shape_cast %109 : vector<6x16xf32> to vector<6x16x1xf32>
    %111 = tpu.reciprocal %110 {approx = true} : vector<6x16x1xf32> -> vector<6x16x1xf32>
    %112 = vector.broadcast %111 : vector<6x16x1xf32> to vector<6x16x16xf32>
    %113 = arith.mulf %108, %112 : vector<6x16x16xf32>
    %114 = arith.truncf %113 : vector<6x16x16xf32> to vector<6x16x16xbf16>
    %115 = vector.extract_strided_slice %46 {offsets = [0, 0, 32], sizes = [6, 16, 16], strides = [1, 1, 1]} : vector<6x16x64xbf16> to vector<6x16x16xbf16>
    "tpu.trace_start"() <{level = 10 : i32, message = "bqk,bkd->bqd"}> : () -> ()
    %cst_36 = arith.constant dense<0.000000e+00> : vector<6x16x16xf32>
    %116 = tpu.matmul %114, %115, %cst_36 {dimension_numbers = #tpu.dot_dimension_numbers<[2], [1], [1], [2], [0, 0, 0, 1, 1, 2], [0], [0]>} : vector<6x16x16xbf16>, vector<6x16x16xbf16>, vector<6x16x16xf32> -> vector<6x16x16xf32>
    "tpu.trace_stop"() : () -> ()
    %117 = vector.extract_strided_slice %40 {offsets = [0, 0, 48], sizes = [6, 16, 16], strides = [1, 1, 1]} : vector<6x16x64xbf16> to vector<6x16x16xbf16>
    %118 = vector.extract_strided_slice %43 {offsets = [0, 0, 48], sizes = [6, 16, 16], strides = [1, 1, 1]} : vector<6x16x64xbf16> to vector<6x16x16xbf16>
    "tpu.trace_start"() <{level = 10 : i32, message = "bqd,bkd->bqk"}> : () -> ()
    %cst_37 = arith.constant dense<0.000000e+00> : vector<6x16x16xf32>
    %119 = tpu.matmul %117, %118, %cst_37 {dimension_numbers = #tpu.dot_dimension_numbers<[2], [2], [1], [1], [0, 0, 0, 1, 1, 1], [0], [0]>} : vector<6x16x16xbf16>, vector<6x16x16xbf16>, vector<6x16x16xf32> -> vector<6x16x16xf32>
    "tpu.trace_stop"() : () -> ()
    %cst_38 = arith.constant 2.500000e-01 : f32
    %120 = vector.broadcast %cst_38 : f32 to vector<6x16x16xf32>
    %121 = arith.mulf %119, %120 : vector<6x16x16xf32>
    %cst_39 = arith.constant -1.000000e+30 : f32
    %122 = vector.shape_cast %50 : vector<1x16x16xi1> to vector<1x16x16xi1>
    %123 = vector.broadcast %122 : vector<1x16x16xi1> to vector<6x16x16xi1>
    %124 = vector.broadcast %cst_39 : f32 to vector<6x16x16xf32>
    %125 = arith.select %123, %121, %124 : vector<6x16x16xi1>, vector<6x16x16xf32>
    %cst_40 = arith.constant dense<0xFF800000> : vector<6x16xf32>
    %126 = vector.multi_reduction <maximumf>, %125, %cst_40 [2] : vector<6x16x16xf32> to vector<6x16xf32>
    %127 = vector.shape_cast %126 : vector<6x16xf32> to vector<6x16x1xf32>
    %128 = vector.broadcast %127 : vector<6x16x1xf32> to vector<6x16x16xf32>
    %129 = arith.subf %125, %128 : vector<6x16x16xf32>
    %130 = math.exp %129 : vector<6x16x16xf32>
    %cst_41 = arith.constant dense<0.000000e+00> : vector<6x16xf32>
    %131 = vector.multi_reduction <add>, %130, %cst_41 [2] : vector<6x16x16xf32> to vector<6x16xf32>
    %132 = vector.shape_cast %131 : vector<6x16xf32> to vector<6x16x1xf32>
    %133 = tpu.reciprocal %132 {approx = true} : vector<6x16x1xf32> -> vector<6x16x1xf32>
    %134 = vector.broadcast %133 : vector<6x16x1xf32> to vector<6x16x16xf32>
    %135 = arith.mulf %130, %134 : vector<6x16x16xf32>
    %136 = arith.truncf %135 : vector<6x16x16xf32> to vector<6x16x16xbf16>
    %137 = vector.extract_strided_slice %46 {offsets = [0, 0, 48], sizes = [6, 16, 16], strides = [1, 1, 1]} : vector<6x16x64xbf16> to vector<6x16x16xbf16>
    "tpu.trace_start"() <{level = 10 : i32, message = "bqk,bkd->bqd"}> : () -> ()
    %cst_42 = arith.constant dense<0.000000e+00> : vector<6x16x16xf32>
    %138 = tpu.matmul %136, %137, %cst_42 {dimension_numbers = #tpu.dot_dimension_numbers<[2], [1], [1], [2], [0, 0, 0, 1, 1, 2], [0], [0]>} : vector<6x16x16xbf16>, vector<6x16x16xbf16>, vector<6x16x16xf32> -> vector<6x16x16xf32>
    "tpu.trace_stop"() : () -> ()
    %139 = tpu.concatenate %72, %94, %116, %138 in 2 : vector<6x16x16xf32>, vector<6x16x16xf32>, vector<6x16x16xf32>, vector<6x16x16xf32> -> vector<6x16x64xf32>
    %140 = vector.shape_cast %139 : vector<6x16x64xf32> to vector<96x64xf32>
    %141 = arith.truncf %140 : vector<96x64xf32> to vector<96x64xbf16>
    %c0_43 = arith.constant 0 : index
    %c0_44 = arith.constant 0 : index
    %c0_45 = arith.constant 0 : index
    %142 = vector.load %arg8[%c0_43, %c0_44, %c0_45] : memref<1x64x64xbf16, #tpu.memory_space<vmem>>, vector<1x64x64xbf16>
    %143 = vector.shape_cast %142 : vector<1x64x64xbf16> to vector<64x64xbf16>
    %cst_46 = arith.constant dense<0.000000e+00> : vector<96x64xf32>
    %144 = tpu.matmul %141, %143, %cst_46 {dimension_numbers = #tpu.dot_dimension_numbers<[1], [0], [0], [1], [0, 0, 1, 1], [], []>} : vector<96x64xbf16>, vector<64x64xbf16>, vector<96x64xf32> -> vector<96x64xf32>
    %c0_47 = arith.constant 0 : index
    %c0_48 = arith.constant 0 : index
    %c0_49 = arith.constant 0 : index
    %145 = vector.load %arg9[%c0_47, %c0_48, %c0_49] : memref<1x1x64xf32, #tpu.memory_space<vmem>>, vector<1x1x64xf32>
    %146 = vector.shape_cast %145 : vector<1x1x64xf32> to vector<1x64xf32>
    %147 = vector.broadcast %146 : vector<1x64xf32> to vector<96x64xf32>
    %148 = arith.addf %144, %147 : vector<96x64xf32>
    %149 = arith.addf %3, %148 : vector<96x64xf32>
    %c0_50 = arith.constant 0 : index
    %c0_51 = arith.constant 0 : index
    %c0_52 = arith.constant 0 : index
    %150 = vector.load %arg10[%c0_50, %c0_51, %c0_52] : memref<1x1x64xf32, #tpu.memory_space<vmem>>, vector<1x1x64xf32>
    %151 = vector.shape_cast %150 : vector<1x1x64xf32> to vector<1x64xf32>
    %c0_53 = arith.constant 0 : index
    %c0_54 = arith.constant 0 : index
    %c0_55 = arith.constant 0 : index
    %152 = vector.load %arg11[%c0_53, %c0_54, %c0_55] : memref<1x1x64xf32, #tpu.memory_space<vmem>>, vector<1x1x64xf32>
    %153 = vector.shape_cast %152 : vector<1x1x64xf32> to vector<1x64xf32>
    %cst_56 = arith.constant dense<0.000000e+00> : vector<96xf32>
    %154 = vector.multi_reduction <add>, %149, %cst_56 [1] : vector<96x64xf32> to vector<96xf32>
    %155 = vector.shape_cast %154 : vector<96xf32> to vector<96x1xf32>
    %cst_57 = arith.constant 6.400000e+01 : f32
    %156 = vector.broadcast %cst_57 : f32 to vector<96x1xf32>
    %157 = arith.divf %155, %156 : vector<96x1xf32>
    %158 = vector.broadcast %157 : vector<96x1xf32> to vector<96x64xf32>
    %159 = arith.subf %149, %158 : vector<96x64xf32>
    %160 = arith.mulf %159, %159 : vector<96x64xf32>
    %cst_58 = arith.constant dense<0.000000e+00> : vector<96xf32>
    %161 = vector.multi_reduction <add>, %160, %cst_58 [1] : vector<96x64xf32> to vector<96xf32>
    %162 = vector.shape_cast %161 : vector<96xf32> to vector<96x1xf32>
    %cst_59 = arith.constant 6.400000e+01 : f32
    %163 = vector.broadcast %cst_59 : f32 to vector<96x1xf32>
    %164 = arith.divf %162, %163 : vector<96x1xf32>
    %165 = vector.broadcast %157 : vector<96x1xf32> to vector<96x64xf32>
    %166 = arith.subf %149, %165 : vector<96x64xf32>
    %cst_60 = arith.constant 9.99999974E-6 : f32
    %167 = vector.broadcast %cst_60 : f32 to vector<96x1xf32>
    %168 = arith.addf %164, %167 : vector<96x1xf32>
    %169 = math.rsqrt %168 : vector<96x1xf32>
    %170 = vector.broadcast %169 : vector<96x1xf32> to vector<96x64xf32>
    %171 = arith.mulf %166, %170 : vector<96x64xf32>
    %172 = vector.broadcast %151 : vector<1x64xf32> to vector<96x64xf32>
    %173 = arith.mulf %171, %172 : vector<96x64xf32>
    %174 = vector.broadcast %153 : vector<1x64xf32> to vector<96x64xf32>
    %175 = arith.addf %173, %174 : vector<96x64xf32>
    %176 = arith.truncf %175 : vector<96x64xf32> to vector<96x64xbf16>
    %c0_61 = arith.constant 0 : index
    %c0_62 = arith.constant 0 : index
    %c0_63 = arith.constant 0 : index
    %177 = vector.load %arg12[%c0_61, %c0_62, %c0_63] : memref<1x64x256xbf16, #tpu.memory_space<vmem>>, vector<1x64x256xbf16>
    %178 = vector.shape_cast %177 : vector<1x64x256xbf16> to vector<64x256xbf16>
    %cst_64 = arith.constant dense<0.000000e+00> : vector<96x256xf32>
    %179 = tpu.matmul %176, %178, %cst_64 {dimension_numbers = #tpu.dot_dimension_numbers<[1], [0], [0], [1], [0, 0, 1, 1], [], []>} : vector<96x64xbf16>, vector<64x256xbf16>, vector<96x256xf32> -> vector<96x256xf32>
    %c0_65 = arith.constant 0 : index
    %c0_66 = arith.constant 0 : index
    %c0_67 = arith.constant 0 : index
    %180 = vector.load %arg13[%c0_65, %c0_66, %c0_67] : memref<1x1x256xf32, #tpu.memory_space<vmem>>, vector<1x1x256xf32>
    %181 = vector.shape_cast %180 : vector<1x1x256xf32> to vector<1x256xf32>
    %182 = vector.broadcast %181 : vector<1x256xf32> to vector<96x256xf32>
    %183 = arith.addf %179, %182 : vector<96x256xf32>
    %cst_68 = arith.constant 1.702000e+00 : f32
    %184 = vector.broadcast %cst_68 : f32 to vector<96x256xf32>
    %185 = arith.mulf %184, %183 : vector<96x256xf32>
    %186 = arith.negf %185 : vector<96x256xf32>
    %187 = math.exp %186 : vector<96x256xf32>
    %cst_69 = arith.constant 1.000000e+00 : f32
    %188 = vector.broadcast %cst_69 : f32 to vector<96x256xf32>
    %189 = arith.addf %188, %187 : vector<96x256xf32>
    %190 = arith.divf %188, %189 : vector<96x256xf32>
    %191 = arith.mulf %183, %190 : vector<96x256xf32>
    %192 = arith.truncf %191 : vector<96x256xf32> to vector<96x256xbf16>
    %c0_70 = arith.constant 0 : index
    %c0_71 = arith.constant 0 : index
    %c0_72 = arith.constant 0 : index
    %193 = vector.load %arg14[%c0_70, %c0_71, %c0_72] : memref<1x256x64xbf16, #tpu.memory_space<vmem>>, vector<1x256x64xbf16>
    %194 = vector.shape_cast %193 : vector<1x256x64xbf16> to vector<256x64xbf16>
    %cst_73 = arith.constant dense<0.000000e+00> : vector<96x64xf32>
    %195 = tpu.matmul %192, %194, %cst_73 {dimension_numbers = #tpu.dot_dimension_numbers<[1], [0], [0], [1], [0, 0, 1, 1], [], []>} : vector<96x256xbf16>, vector<256x64xbf16>, vector<96x64xf32> -> vector<96x64xf32>
    %c0_74 = arith.constant 0 : index
    %c0_75 = arith.constant 0 : index
    %c0_76 = arith.constant 0 : index
    %196 = vector.load %arg15[%c0_74, %c0_75, %c0_76] : memref<1x1x64xf32, #tpu.memory_space<vmem>>, vector<1x1x64xf32>
    %197 = vector.shape_cast %196 : vector<1x1x64xf32> to vector<1x64xf32>
    %198 = vector.broadcast %197 : vector<1x64xf32> to vector<96x64xf32>
    %199 = arith.addf %195, %198 : vector<96x64xf32>
    %200 = arith.addf %149, %199 : vector<96x64xf32>
    %c0_77 = arith.constant 0 : index
    %c0_78 = arith.constant 0 : index
    %201 = vector.load %arg21[%c0_77, %c0_78] : memref<96x64xf32, #tpu.memory_space<vmem>>, vector<96x64xf32>
    tpu.vector_store %arg21[%c0_77, %c0_78], %200 {strides = array<i32>} : memref<96x64xf32, #tpu.memory_space<vmem>>, vector<96x64xf32>,
    %c6_i32 = arith.constant 6 : i32
    %202 = arith.muli %arg0, %c6_i32 : i32
    %c0_i32_79 = arith.constant 0 : i32
    %203 = arith.addi %202, %c0_i32_79 : i32
    %204 = arith.index_cast %203 : i32 to index
    %205 = memref.load %arg3[%204] : memref<6xi32, #tpu.memory_space<smem>>
    %c0_i32_80 = arith.constant 0 : i32
    %206 = arith.addi %c0_i32_80, %205 : i32
    %207 = arith.index_cast %206 : i32 to index
    %c0_81 = arith.constant 0 : index
    %208 = vector.load %arg21[%207, %c0_81] : memref<96x64xf32, #tpu.memory_space<vmem>>, vector<1x64xf32>
    %c6_i32_82 = arith.constant 6 : i32
    %209 = arith.muli %arg0, %c6_i32_82 : i32
    %c1_i32 = arith.constant 1 : i32
    %210 = arith.addi %209, %c1_i32 : i32
    %211 = arith.index_cast %210 : i32 to index
    %212 = memref.load %arg3[%211] : memref<6xi32, #tpu.memory_space<smem>>
    %c16_i32 = arith.constant 16 : i32
    %213 = arith.addi %c16_i32, %212 : i32
    %214 = arith.index_cast %213 : i32 to index
    %c0_83 = arith.constant 0 : index
    %215 = vector.load %arg21[%214, %c0_83] : memref<96x64xf32, #tpu.memory_space<vmem>>, vector<1x64xf32>
    %c6_i32_84 = arith.constant 6 : i32
    %216 = arith.muli %arg0, %c6_i32_84 : i32
    %c2_i32 = arith.constant 2 : i32
    %217 = arith.addi %216, %c2_i32 : i32
    %218 = arith.index_cast %217 : i32 to index
    %219 = memref.load %arg3[%218] : memref<6xi32, #tpu.memory_space<smem>>
    %c32_i32 = arith.constant 32 : i32
    %220 = arith.addi %c32_i32, %219 : i32
    %221 = arith.index_cast %220 : i32 to index
    %c0_85 = arith.constant 0 : index
    %222 = vector.load %arg21[%221, %c0_85] : memref<96x64xf32, #tpu.memory_space<vmem>>, vector<1x64xf32>
    %c6_i32_86 = arith.constant 6 : i32
    %223 = arith.muli %arg0, %c6_i32_86 : i32
    %c3_i32 = arith.constant 3 : i32
    %224 = arith.addi %223, %c3_i32 : i32
    %225 = arith.index_cast %224 : i32 to index
    %226 = memref.load %arg3[%225] : memref<6xi32, #tpu.memory_space<smem>>
    %c48_i32 = arith.constant 48 : i32
    %227 = arith.addi %c48_i32, %226 : i32
    %228 = arith.index_cast %227 : i32 to index
    %c0_87 = arith.constant 0 : index
    %229 = vector.load %arg21[%228, %c0_87] : memref<96x64xf32, #tpu.memory_space<vmem>>, vector<1x64xf32>
    %c6_i32_88 = arith.constant 6 : i32
    %230 = arith.muli %arg0, %c6_i32_88 : i32
    %c4_i32 = arith.constant 4 : i32
    %231 = arith.addi %230, %c4_i32 : i32
    %232 = arith.index_cast %231 : i32 to index
    %233 = memref.load %arg3[%232] : memref<6xi32, #tpu.memory_space<smem>>
    %c64_i32 = arith.constant 64 : i32
    %234 = arith.addi %c64_i32, %233 : i32
    %235 = arith.index_cast %234 : i32 to index
    %c0_89 = arith.constant 0 : index
    %236 = vector.load %arg21[%235, %c0_89] : memref<96x64xf32, #tpu.memory_space<vmem>>, vector<1x64xf32>
    %c6_i32_90 = arith.constant 6 : i32
    %237 = arith.muli %arg0, %c6_i32_90 : i32
    %c5_i32 = arith.constant 5 : i32
    %238 = arith.addi %237, %c5_i32 : i32
    %239 = arith.index_cast %238 : i32 to index
    %240 = memref.load %arg3[%239] : memref<6xi32, #tpu.memory_space<smem>>
    %c80_i32 = arith.constant 80 : i32
    %241 = arith.addi %c80_i32, %240 : i32
    %242 = arith.index_cast %241 : i32 to index
    %c0_91 = arith.constant 0 : index
    %243 = vector.load %arg21[%242, %c0_91] : memref<96x64xf32, #tpu.memory_space<vmem>>, vector<1x64xf32>
    %244 = tpu.concatenate %208, %215, %222, %229, %236, %243 in 0 : vector<1x64xf32>, vector<1x64xf32>, vector<1x64xf32>, vector<1x64xf32>, vector<1x64xf32>, vector<1x64xf32> -> vector<6x64xf32>
    %245 = vector.shape_cast %244 : vector<6x64xf32> to vector<1x6x1x64xf32>
    %c0_92 = arith.constant 0 : index
    %c0_93 = arith.constant 0 : index
    %c0_94 = arith.constant 0 : index
    %c0_95 = arith.constant 0 : index
    %246 = vector.load %arg20[%c0_92, %c0_93, %c0_94, %c0_95] : memref<1x6x1x64xf32, #tpu.memory_space<vmem>>, vector<1x6x1x64xf32>
    tpu.vector_store %arg20[%c0_92, %c0_93, %c0_94, %c0_95], %245 {strides = array<i32>} : memref<1x6x1x64xf32, #tpu.memory_space<vmem>>, vector<1x6x1x64xf32>,
    %c2_i32_96 = arith.constant 2 : i32
    %247 = arith.cmpi eq, %arg1, %c2_i32_96 : i32
    %248 = arith.extui %247 : i1 to i32
    %c0_i32_97 = arith.constant 0 : i32
    %249 = arith.cmpi ne, %248, %c0_i32_97 : i32
    scf.if %249 {
      %c6_i32_98 = arith.constant 6 : i32
      %250 = arith.muli %arg0, %c6_i32_98 : i32
      %c0_i32_99 = arith.constant 0 : i32
      %251 = arith.addi %250, %c0_i32_99 : i32
      %252 = arith.index_cast %251 : i32 to index
      %253 = memref.load %arg3[%252] : memref<6xi32, #tpu.memory_space<smem>>
      %c0_i32_100 = arith.constant 0 : i32
      %254 = arith.addi %c0_i32_100, %253 : i32
      %255 = arith.index_cast %254 : i32 to index
      %c0_101 = arith.constant 0 : index
      %256 = vector.load %arg21[%255, %c0_101] : memref<96x64xf32, #tpu.memory_space<vmem>>, vector<1x64xf32>
      %c6_i32_102 = arith.constant 6 : i32
      %257 = arith.muli %arg0, %c6_i32_102 : i32
      %c1_i32_103 = arith.constant 1 : i32
      %258 = arith.addi %257, %c1_i32_103 : i32
      %259 = arith.index_cast %258 : i32 to index
      %260 = memref.load %arg3[%259] : memref<6xi32, #tpu.memory_space<smem>>
      %c16_i32_104 = arith.constant 16 : i32
      %261 = arith.addi %c16_i32_104, %260 : i32
      %262 = arith.index_cast %261 : i32 to index
      %c0_105 = arith.constant 0 : index
      %263 = vector.load %arg21[%262, %c0_105] : memref<96x64xf32, #tpu.memory_space<vmem>>, vector<1x64xf32>
      %c6_i32_106 = arith.constant 6 : i32
      %264 = arith.muli %arg0, %c6_i32_106 : i32
      %c2_i32_107 = arith.constant 2 : i32
      %265 = arith.addi %264, %c2_i32_107 : i32
      %266 = arith.index_cast %265 : i32 to index
      %267 = memref.load %arg3[%266] : memref<6xi32, #tpu.memory_space<smem>>
      %c32_i32_108 = arith.constant 32 : i32
      %268 = arith.addi %c32_i32_108, %267 : i32
      %269 = arith.index_cast %268 : i32 to index
      %c0_109 = arith.constant 0 : index
      %270 = vector.load %arg21[%269, %c0_109] : memref<96x64xf32, #tpu.memory_space<vmem>>, vector<1x64xf32>
      %c6_i32_110 = arith.constant 6 : i32
      %271 = arith.muli %arg0, %c6_i32_110 : i32
      %c3_i32_111 = arith.constant 3 : i32
      %272 = arith.addi %271, %c3_i32_111 : i32
      %273 = arith.index_cast %272 : i32 to index
      %274 = memref.load %arg3[%273] : memref<6xi32, #tpu.memory_space<smem>>
      %c48_i32_112 = arith.constant 48 : i32
      %275 = arith.addi %c48_i32_112, %274 : i32
      %276 = arith.index_cast %275 : i32 to index
      %c0_113 = arith.constant 0 : index
      %277 = vector.load %arg21[%276, %c0_113] : memref<96x64xf32, #tpu.memory_space<vmem>>, vector<1x64xf32>
      %c6_i32_114 = arith.constant 6 : i32
      %278 = arith.muli %arg0, %c6_i32_114 : i32
      %c4_i32_115 = arith.constant 4 : i32
      %279 = arith.addi %278, %c4_i32_115 : i32
      %280 = arith.index_cast %279 : i32 to index
      %281 = memref.load %arg3[%280] : memref<6xi32, #tpu.memory_space<smem>>
      %c64_i32_116 = arith.constant 64 : i32
      %282 = arith.addi %c64_i32_116, %281 : i32
      %283 = arith.index_cast %282 : i32 to index
      %c0_117 = arith.constant 0 : index
      %284 = vector.load %arg21[%283, %c0_117] : memref<96x64xf32, #tpu.memory_space<vmem>>, vector<1x64xf32>
      %c6_i32_118 = arith.constant 6 : i32
      %285 = arith.muli %arg0, %c6_i32_118 : i32
      %c5_i32_119 = arith.constant 5 : i32
      %286 = arith.addi %285, %c5_i32_119 : i32
      %287 = arith.index_cast %286 : i32 to index
      %288 = memref.load %arg3[%287] : memref<6xi32, #tpu.memory_space<smem>>
      %c80_i32_120 = arith.constant 80 : i32
      %289 = arith.addi %c80_i32_120, %288 : i32
      %290 = arith.index_cast %289 : i32 to index
      %c0_121 = arith.constant 0 : index
      %291 = vector.load %arg21[%290, %c0_121] : memref<96x64xf32, #tpu.memory_space<vmem>>, vector<1x64xf32>
      %292 = tpu.concatenate %256, %263, %270, %277, %284, %291 in 0 : vector<1x64xf32>, vector<1x64xf32>, vector<1x64xf32>, vector<1x64xf32>, vector<1x64xf32>, vector<1x64xf32> -> vector<6x64xf32>
      %c0_122 = arith.constant 0 : index
      %c0_123 = arith.constant 0 : index
      %293 = vector.load %arg16[%c0_122, %c0_123] : memref<1x64xf32, #tpu.memory_space<vmem>>, vector<1x64xf32>
      %c0_124 = arith.constant 0 : index
      %c0_125 = arith.constant 0 : index
      %294 = vector.load %arg17[%c0_124, %c0_125] : memref<1x64xf32, #tpu.memory_space<vmem>>, vector<1x64xf32>
      %cst_126 = arith.constant dense<0.000000e+00> : vector<6xf32>
      %295 = vector.multi_reduction <add>, %292, %cst_126 [1] : vector<6x64xf32> to vector<6xf32>
      %296 = vector.shape_cast %295 : vector<6xf32> to vector<6x1xf32>
      %cst_127 = arith.constant 6.400000e+01 : f32
      %297 = vector.broadcast %cst_127 : f32 to vector<6x1xf32>
      %298 = arith.divf %296, %297 : vector<6x1xf32>
      %299 = vector.broadcast %298 : vector<6x1xf32> to vector<6x64xf32>
      %300 = arith.subf %292, %299 : vector<6x64xf32>
      %301 = arith.mulf %300, %300 : vector<6x64xf32>
      %cst_128 = arith.constant dense<0.000000e+00> : vector<6xf32>
      %302 = vector.multi_reduction <add>, %301, %cst_128 [1] : vector<6x64xf32> to vector<6xf32>
      %303 = vector.shape_cast %302 : vector<6xf32> to vector<6x1xf32>
      %cst_129 = arith.constant 6.400000e+01 : f32
      %304 = vector.broadcast %cst_129 : f32 to vector<6x1xf32>
      %305 = arith.divf %303, %304 : vector<6x1xf32>
      %306 = vector.broadcast %298 : vector<6x1xf32> to vector<6x64xf32>
      %307 = arith.subf %292, %306 : vector<6x64xf32>
      %cst_130 = arith.constant 9.99999974E-6 : f32
      %308 = vector.broadcast %cst_130 : f32 to vector<6x1xf32>
      %309 = arith.addf %305, %308 : vector<6x1xf32>
      %310 = math.rsqrt %309 : vector<6x1xf32>
      %311 = vector.broadcast %310 : vector<6x1xf32> to vector<6x64xf32>
      %312 = arith.mulf %307, %311 : vector<6x64xf32>
      %313 = vector.broadcast %293 : vector<1x64xf32> to vector<6x64xf32>
      %314 = arith.mulf %312, %313 : vector<6x64xf32>
      %315 = vector.broadcast %294 : vector<1x64xf32> to vector<6x64xf32>
      %316 = arith.addf %314, %315 : vector<6x64xf32>
      %317 = arith.truncf %316 : vector<6x64xf32> to vector<6x64xbf16>
      %c0_131 = arith.constant 0 : index
      %c0_132 = arith.constant 0 : index
      %318 = vector.load %arg18[%c0_131, %c0_132] : memref<64x64xbf16, #tpu.memory_space<vmem>>, vector<64x64xbf16>
      %cst_133 = arith.constant dense<0.000000e+00> : vector<6x64xf32>
      %319 = tpu.matmul %317, %318, %cst_133 {dimension_numbers = #tpu.dot_dimension_numbers<[1], [0], [0], [1], [0, 0, 1, 1], [], []>} : vector<6x64xbf16>, vector<64x64xbf16>, vector<6x64xf32> -> vector<6x64xf32>
      %320 = vector.shape_cast %319 : vector<6x64xf32> to vector<6x1x64xf32>
      %c0_134 = arith.constant 0 : index
      %c0_135 = arith.constant 0 : index
      %c0_136 = arith.constant 0 : index
      %321 = vector.load %arg19[%c0_134, %c0_135, %c0_136] : memref<6x1x64xf32, #tpu.memory_space<vmem>>, vector<6x1x64xf32>
      tpu.vector_store %arg19[%c0_134, %c0_135, %c0_136], %320 {strides = array<i32>} : memref<6x1x64xf32, #tpu.memory_space<vmem>>, vector<6x1x64xf32>,
    } else {
    }
    return
  }
  func.func @transform_0(%arg0: i32, %arg1: i32) -> (i32, i32, i32) {
    %c0_i32 = arith.constant 0 : i32
    %c0_i32_0 = arith.constant 0 : i32
    %c0_i32_1 = arith.constant 0 : i32
    return %arg0, %c0_i32, %c0_i32_0 : i32, i32, i32
  }
  func.func @transform_1(%arg0: i32, %arg1: i32) -> i32 {
    %c0_i32 = arith.constant 0 : i32
    %c0_i32_0 = arith.constant 0 : i32
    return %c0_i32 : i32
  }
  func.func @transform_2(%arg0: i32, %arg1: i32) -> (i32, i32, i32) {
    %c0_i32 = arith.constant 0 : i32
    %c0_i32_0 = arith.constant 0 : i32
    %c0_i32_1 = arith.constant 0 : i32
    return %arg1, %c0_i32, %c0_i32_0 : i32, i32, i32
  }
  func.func @transform_3(%arg0: i32, %arg1: i32) -> (i32, i32, i32) {
    %c0_i32 = arith.constant 0 : i32
    %c0_i32_0 = arith.constant 0 : i32
    %c0_i32_1 = arith.constant 0 : i32
    return %arg1, %c0_i32, %c0_i32_0 : i32, i32, i32
  }
  func.func @transform_4(%arg0: i32, %arg1: i32) -> (i32, i32, i32) {
    %c0_i32 = arith.constant 0 : i32
    %c0_i32_0 = arith.constant 0 : i32
    %c0_i32_1 = arith.constant 0 : i32
    return %arg1, %c0_i32, %c0_i32_0 : i32, i32, i32
  }
  func.func @transform_5(%arg0: i32, %arg1: i32) -> (i32, i32, i32) {
    %c0_i32 = arith.constant 0 : i32
    %c0_i32_0 = arith.constant 0 : i32
    %c0_i32_1 = arith.constant 0 : i32
    return %arg1, %c0_i32, %c0_i32_0 : i32, i32, i32
  }
  func.func @transform_6(%arg0: i32, %arg1: i32) -> (i32, i32, i32) {
    %c0_i32 = arith.constant 0 : i32
    %c0_i32_0 = arith.constant 0 : i32
    %c0_i32_1 = arith.constant 0 : i32
    return %arg1, %c0_i32, %c0_i32_0 : i32, i32, i32
  }
  func.func @transform_7(%arg0: i32, %arg1: i32) -> (i32, i32, i32) {
    %c0_i32 = arith.constant 0 : i32
    %c0_i32_0 = arith.constant 0 : i32
    %c0_i32_1 = arith.constant 0 : i32
    return %arg1, %c0_i32, %c0_i32_0 : i32, i32, i32
  }
  func.func @transform_8(%arg0: i32, %arg1: i32) -> (i32, i32, i32) {
    %c0_i32 = arith.constant 0 : i32
    %c0_i32_0 = arith.constant 0 : i32
    %c0_i32_1 = arith.constant 0 : i32
    return %arg1, %c0_i32, %c0_i32_0 : i32, i32, i32
  }
  func.func @transform_9(%arg0: i32, %arg1: i32) -> (i32, i32, i32) {
    %c0_i32 = arith.constant 0 : i32
    %c0_i32_0 = arith.constant 0 : i32
    %c0_i32_1 = arith.constant 0 : i32
    return %arg1, %c0_i32, %c0_i32_0 : i32, i32, i32
  }
  func.func @transform_10(%arg0: i32, %arg1: i32) -> (i32, i32, i32) {
    %c0_i32 = arith.constant 0 : i32
    %c0_i32_0 = arith.constant 0 : i32
    %c0_i32_1 = arith.constant 0 : i32
    return %arg1, %c0_i32, %c0_i32_0 : i32, i32, i32
  }
  func.func @transform_11(%arg0: i32, %arg1: i32) -> (i32, i32, i32) {
    %c0_i32 = arith.constant 0 : i32
    %c0_i32_0 = arith.constant 0 : i32
    %c0_i32_1 = arith.constant 0 : i32
    return %arg1, %c0_i32, %c0_i32_0 : i32, i32, i32
  }
  func.func @transform_12(%arg0: i32, %arg1: i32) -> (i32, i32, i32) {
    %c0_i32 = arith.constant 0 : i32
    %c0_i32_0 = arith.constant 0 : i32
    %c0_i32_1 = arith.constant 0 : i32
    return %arg1, %c0_i32, %c0_i32_0 : i32, i32, i32
  }
  func.func @transform_13(%arg0: i32, %arg1: i32) -> (i32, i32, i32) {
    %c0_i32 = arith.constant 0 : i32
    %c0_i32_0 = arith.constant 0 : i32
    %c0_i32_1 = arith.constant 0 : i32
    return %arg1, %c0_i32, %c0_i32_0 : i32, i32, i32
  }
  func.func @transform_14(%arg0: i32, %arg1: i32) -> (i32, i32) {
    %c0_i32 = arith.constant 0 : i32
    %c0_i32_0 = arith.constant 0 : i32
    %c0_i32_1 = arith.constant 0 : i32
    return %c0_i32, %c0_i32_0 : i32, i32
  }
  func.func @transform_15(%arg0: i32, %arg1: i32) -> (i32, i32) {
    %c0_i32 = arith.constant 0 : i32
    %c0_i32_0 = arith.constant 0 : i32
    %c0_i32_1 = arith.constant 0 : i32
    return %c0_i32, %c0_i32_0 : i32, i32
  }
  func.func @transform_16(%arg0: i32, %arg1: i32) -> (i32, i32) {
    %c0_i32 = arith.constant 0 : i32
    %c0_i32_0 = arith.constant 0 : i32
    %c0_i32_1 = arith.constant 0 : i32
    return %c0_i32, %c0_i32_0 : i32, i32
  }
  func.func @transform_17(%arg0: i32, %arg1: i32) -> (i32, i32, i32) {
    %c0_i32 = arith.constant 0 : i32
    %c0_i32_0 = arith.constant 0 : i32
    %c0_i32_1 = arith.constant 0 : i32
    return %arg0, %c0_i32, %c0_i32_0 : i32, i32, i32
  }
  func.func @transform_18(%arg0: i32, %arg1: i32) -> (i32, i32, i32, i32) {
    %c0_i32 = arith.constant 0 : i32
    %c0_i32_0 = arith.constant 0 : i32
    %c0_i32_1 = arith.constant 0 : i32
    return %arg1, %arg0, %c0_i32, %c0_i32_0 : i32, i32, i32, i32
  }
}

</mosaic_0001>

<llo_original>
// kernel: tpu_custom_call.1
$region0: #{tpu_custom_call.1}
  #allocation0 [shape = 'u32[]', space=smem, size = 0x4, offset = 0x4, fixed_abs, tag = 'smem constant byte address 0x4 - core index']
  #allocation1 [shape = 'u32[144,128]{1,0:T(1,128)}', space=vmem, size = 0x12000, scoped, tag = 'internal scratch']
  #allocation2 [shape = 'f32[96,64]{1,0:T(8,128)}', space=vmem, size = 0xc000, scoped, tag = 'scratch operand']
  %s0 = inlined_call_operand.hbm [shape: f32[6,16,64], index: 0, kind: input, shape index: {}]
  %s1 = inlined_call_operand.hbm [shape: s32[6], index: 1, kind: input, shape index: {}]
  %s2 = inlined_call_operand.hbm [shape: f32[3,1,64], index: 2, kind: input, shape index: {}]
  %s3 = inlined_call_operand.hbm [shape: f32[3,1,64], index: 3, kind: input, shape index: {}]
  %s4 = inlined_call_operand.hbm [shape: bf16[3,64,192], index: 4, kind: input, shape index: {}]
  %s5 = inlined_call_operand.hbm [shape: f32[3,1,192], index: 5, kind: input, shape index: {}]
  %s6 = inlined_call_operand.hbm [shape: bf16[3,64,64], index: 6, kind: input, shape index: {}]
  %s7 = inlined_call_operand.hbm [shape: f32[3,1,64], index: 7, kind: input, shape index: {}]
  %s8 = inlined_call_operand.hbm [shape: f32[3,1,64], index: 8, kind: input, shape index: {}]
  %s9 = inlined_call_operand.hbm [shape: f32[3,1,64], index: 9, kind: input, shape index: {}]
  %s10 = inlined_call_operand.hbm [shape: bf16[3,64,256], index: 10, kind: input, shape index: {}]
  %s11 = inlined_call_operand.hbm [shape: f32[3,1,256], index: 11, kind: input, shape index: {}]
  %s12 = inlined_call_operand.hbm [shape: bf16[3,256,64], index: 12, kind: input, shape index: {}]
  %s13 = inlined_call_operand.hbm [shape: f32[3,1,64], index: 13, kind: input, shape index: {}]
  %s14 = inlined_call_operand.hbm [shape: f32[1,64], index: 14, kind: input, shape index: {}]
  %s15 = inlined_call_operand.hbm [shape: f32[1,64], index: 15, kind: input, shape index: {}]
  %s16 = inlined_call_operand.hbm [shape: bf16[64,64], index: 16, kind: input, shape index: {}]
  %s17 = inlined_call_operand.hbm [shape: f32[6,1,64], index: 17, kind: output, shape index: {0}]
  %s18 = inlined_call_operand.hbm [shape: f32[3,6,1,64], index: 18, kind: output, shape index: {1}]
  %19 = xla_tuple %s17, %s18
  %s20 = sld [smem:[#allocation0]]
  $region185: #{tpu_custom_call.1} parent=0
    _
  %s22 = ssub.s32 1, %s20
  %s23 = scalar_select 0, %s22, %s20
  $region1: #{tpu_custom_call.1} parent=0
    #allocation3 [shape = 'u8[49152]{0}', space=vmem, size = 0xc000, scoped, tag = 'input window, operand 0, single buffered']
    #allocation4 [shape = 's32[2]{0}', space=sflag, size = 0x8, scoped, tag = 'scoped memory for tpu_custom_call.1']
    #allocation5 [shape = 's32[2]{0}', space=sflag, size = 0x8, scoped, tag = 'scoped memory for tpu_custom_call.1']
    #allocation6 [shape = 's32[2]{0}', space=sflag, size = 0x8, scoped, tag = 'scoped memory for tpu_custom_call.1']
    #allocation7 [shape = 'u8[512]{0}', space=smem, size = 0x200, scoped, tag = 'input window, operand 1, single buffered']
    #allocation8 [shape = 'u8[1024]{0}', space=vmem, size = 0x400, scoped, tag = 'input window, operand 2']
    #allocation9 [shape = 's32[2]{0}', space=sflag, size = 0x8, scoped, tag = 'scoped memory for tpu_custom_call.1']
    #allocation10 [shape = 'u8[1024]{0}', space=vmem, size = 0x400, scoped, tag = 'input window, operand 3']
    #allocation11 [shape = 'u8[65536]{0}', space=vmem, size = 0x10000, scoped, tag = 'input window, operand 4']
    #allocation12 [shape = 's32[2]{0}', space=sflag, size = 0x8, scoped, tag = 'scoped memory for tpu_custom_call.1']
    #allocation13 [shape = 'u8[2048]{0}', space=vmem, size = 0x800, scoped, tag = 'input window, operand 5']
    #allocation14 [shape = 'u8[32768]{0}', space=vmem, size = 0x8000, scoped, tag = 'input window, operand 6']
    #allocation15 [shape = 's32[2]{0}', space=sflag, size = 0x8, scoped, tag = 'scoped memory for tpu_custom_call.1']
    #allocation16 [shape = 'u8[1024]{0}', space=vmem, size = 0x400, scoped, tag = 'input window, operand 7']
    #allocation17 [shape = 'u8[1024]{0}', space=vmem, size = 0x400, scoped, tag = 'input window, operand 8']
    #allocation18 [shape = 's32[2]{0}', space=sflag, size = 0x8, scoped, tag = 'scoped memory for tpu_custom_call.1']
    #allocation19 [shape = 'u8[1024]{0}', space=vmem, size = 0x400, scoped, tag = 'input window, operand 9']
    #allocation20 [shape = 'u8[65536]{0}', space=vmem, size = 0x10000, scoped, tag = 'input window, operand 10']
    #allocation21 [shape = 's32[2]{0}', space=sflag, size = 0x8, scoped, tag = 'scoped memory for tpu_custom_call.1']
    #allocation22 [shape = 'u8[2048]{0}', space=vmem, size = 0x800, scoped, tag = 'input window, operand 11']
    #allocation23 [shape = 'u8[131072]{0}', space=vmem, size = 0x20000, scoped, tag = 'input window, operand 12']
    #allocation24 [shape = 's32[2]{0}', space=sflag, size = 0x8, scoped, tag = 'scoped memory for tpu_custom_call.1']
    #allocation25 [shape = 'u8[1024]{0}', space=vmem, size = 0x400, scoped, tag = 'input window, operand 13']
    #allocation26 [shape = 'u8[512]{0}', space=vmem, size = 0x400, scoped, tag = 'input window, operand 14, single buffered']
    #allocation27 [shape = 's32[1]{0}', space=sflag, size = 0x4, scoped, tag = 'scoped memory for tpu_custom_call.1']
    #allocation28 [shape = 'u8[512]{0}', space=vmem, size = 0x400, scoped, tag = 'input window, operand 15, single buffered']
    #allocation29 [shape = 'u8[16384]{0}', space=vmem, size = 0x4000, scoped, tag = 'input window, operand 16, single buffered']
    #allocation30 [shape = 's32[1]{0}', space=sflag, size = 0x4, scoped, tag = 'scoped memory for tpu_custom_call.1']
    #allocation31 [shape = 'u8[3072]{0}', space=vmem, size = 0xc00, scoped, tag = 'output window, operand 0, single buffered']
    #allocation32 [shape = 'u8[6144]{0}', space=vmem, size = 0x1800, scoped, tag = 'output window, operand 1']
    #allocation33 [shape = 's32[2]{0}', space=sflag, size = 0x8, scoped, tag = 'scoped memory for tpu_custom_call.1']
    %24 = vsyncpa [#allocation4], 0
    %25 = vsyncpa [#allocation6], 0
    %26 = vsyncpa [#allocation9], 0
    %s27 = scalar_lea.sflag [#allocation9], 1
    %28 = vsyncpa %s27, 0
    %29 = vsyncpa [#allocation12], 0
    %s30 = scalar_lea.sflag [#allocation12], 1
    %31 = vsyncpa %s30, 0
    %32 = vsyncpa [#allocation15], 0
    %s33 = scalar_lea.sflag [#allocation15], 1
    %34 = vsyncpa %s33, 0
    %35 = vsyncpa [#allocation18], 0
    %s36 = scalar_lea.sflag [#allocation18], 1
    %37 = vsyncpa %s36, 0
    %38 = vsyncpa [#allocation21], 0
    %s39 = scalar_lea.sflag [#allocation21], 1
    %40 = vsyncpa %s39, 0
    %41 = vsyncpa [#allocation24], 0
    %s42 = scalar_lea.sflag [#allocation24], 1
    %43 = vsyncpa %s42, 0
    %44 = vsyncpa [#allocation27], 0
    %45 = vsyncpa [#allocation30], 0
    %46 = vsyncpa [#allocation5], 0
    %47 = vsyncpa [#allocation33], 0
    %s48 = scalar_lea.sflag [#allocation33], 1
    %49 = vsyncpa %s48, 0
    loop: start=0, step=1, limit=5
    $region2: #{tpu_custom_call.1} parent=1 // loop_pre_header
      _
    $region3: #{tpu_custom_call.1} parent=1 // loop_header
      %s51 = sphi 0, %s55
      %p52 = scmp.ge.s32.totalorder %s51, 5
      %s58 = sphi 0, %s70
      %s59 = sphi 0, %s66
      %s60 = sphi 0, %s58
      %s61 = sphi 0, %s59
      %s62 = sphi 0, %s60
      %s63 = sphi 0, %s61
      %s73 = sphi 0, %s75
      %s76 = sphi 0, %s73
      %s77 = sphi 0, %s76
      %s93 = sphi 0, %s77
      %s97 = sphi 0, %s97
      %s99 = sphi 0, %s97
      %s100 = sphi 0, %s99
      %s114 = sphi 0, %s100
      %s120 = sphi 0, %s122
      %s123 = sphi 0, %s120
      %s124 = sphi 0, %s123
      %s140 = sphi 0, %s124
      %s146 = sphi 0, %s148
      %s149 = sphi 0, %s146
      %s150 = sphi 0, %s149
      %s166 = sphi 0, %s150
      %s172 = sphi 0, %s174
      %s175 = sphi 0, %s172
      %s176 = sphi 0, %s175
      %s192 = sphi 0, %s176
      %s198 = sphi 0, %s200
      %s201 = sphi 0, %s198
      %s202 = sphi 0, %s201
      %s218 = sphi 0, %s202
      %s224 = sphi 0, %s226
      %s227 = sphi 0, %s224
      %s228 = sphi 0, %s227
      %s244 = sphi 0, %s228
      %s250 = sphi 0, %s252
      %s253 = sphi 0, %s250
      %s254 = sphi 0, %s253
      %s270 = sphi 0, %s254
      %s276 = sphi 0, %s278
      %s279 = sphi 0, %s276
      %s280 = sphi 0, %s279
      %s296 = sphi 0, %s280
      %s302 = sphi 0, %s304
      %s305 = sphi 0, %s302
      %s306 = sphi 0, %s305
      %s322 = sphi 0, %s306
      %s328 = sphi 0, %s330
      %s331 = sphi 0, %s328
      %s332 = sphi 0, %s331
      %s348 = sphi 0, %s332
      %s354 = sphi 0, %s356
      %s357 = sphi 0, %s354
      %s358 = sphi 0, %s357
      %s374 = sphi 0, %s358
      %s380 = sphi 0, %s382
      %s383 = sphi 0, %s380
      %s384 = sphi 0, %s383
      %s400 = sphi 0, %s384
      %s406 = sphi 0, %s408
      %s409 = sphi 0, %s406
      %s410 = sphi 0, %s409
      %s426 = sphi 0, %s410
      %s430 = sphi 0, %s430
      %s432 = sphi 0, %s430
      %s433 = sphi 0, %s432
      %s447 = sphi 0, %s433
      %s451 = sphi 0, %s451
      %s453 = sphi 0, %s451
      %s454 = sphi 0, %s453
      %s468 = sphi 0, %s454
      %s472 = sphi 0, %s472
      %s474 = sphi 0, %s472
      %s475 = sphi 0, %s474
      %s489 = sphi 0, %s475
      %s495 = sphi 0, %s497
      %s498 = sphi 0, %s495
      %s499 = sphi 0, %s498
      %s515 = sphi 0, %s499
      %s523 = sphi 0, %s525
      %s526 = sphi 0, %s523
      %s527 = sphi 0, %s526
      %s543 = sphi 0, %s527
    $region4: #{tpu_custom_call.1} parent=1 // loop_header_branch
      %54 = sbr.rel (%p52) target = $region8
    $region5: #{tpu_custom_call.1} parent=1 // loop_body
      %s56 = ssub.s32 %s51, 1
      %s57 = ssub.s32 %s51, 2
      %s64 = sadd.s32 1, %s59
      %p65 = scmp.ge.s32.totalorder %s64, 3
      %s66 = scalar_select %p65, 0, %s64
      %s67 = sadd.s32 1, %s58
      %s68 = scalar_select %p65, %s67, %s58
      %p69 = scmp.ge.s32.totalorder %s68, 1
      %s70 = scalar_select %p69, 0, %s68
      %s71 = ssub.s32 %s58, %s70
      %p72 = scmp.eq.s32.totalorder %s71, 0
      %s74 = sadd.s32 %s73, 1
      %s75 = scalar_select %p72, %s73, %s74
      %p78 = pneg %p72
      %p79 = scmp.eq.s32.totalorder %s51, 2
      %p80 = por %p78, %p79
      %p81 = scmp.ne.s32.totalorder %s73, %s76
      %p82 = scmp.eq.s32.totalorder %s51, 0
      %p83 = por %p81, %p82
      %p84 = scmp.ne.s32.totalorder %s73, %s76
      %p85 = scmp.eq.s32.totalorder %s56, 2
      %p86 = por %p84, %p85
      %p87 = scmp.ne.s32.totalorder %s76, %s77
      %p88 = scmp.eq.s32.totalorder %s56, 0
      %p89 = por %p87, %p88
      %p90 = scmp.ne.s32.totalorder %s76, %s77
      %p91 = scmp.eq.s32.totalorder %s57, 2
      %p92 = por %p90, %p91
      %p94 = scmp.ne.s32.totalorder %s77, %s93
      %p95 = scmp.eq.s32.totalorder %s57, 0
      %p96 = por %p94, %p95
      %s98 = sadd.s32 %s97, 1
      %p101 = scmp.eq.s32.totalorder %s51, 2
      %p102 = scmp.ne.s32.totalorder %s97, %s99
      %p103 = scmp.eq.s32.totalorder %s51, 0
      %p104 = por %p102, %p103
      %p105 = scmp.ne.s32.totalorder %s97, %s99
      %p106 = scmp.eq.s32.totalorder %s56, 2
      %p107 = por %p105, %p106
      %p108 = scmp.ne.s32.totalorder %s99, %s100
      %p109 = scmp.eq.s32.totalorder %s56, 0
      %p110 = por %p108, %p109
      %p111 = scmp.ne.s32.totalorder %s99, %s100
      %p112 = scmp.eq.s32.totalorder %s57, 2
      %p113 = por %p111, %p112
      %p115 = scmp.ne.s32.totalorder %s100, %s114
      %p116 = scmp.eq.s32.totalorder %s57, 0
      %p117 = por %p115, %p116
      %s118 = ssub.s32 %s59, %s66
      %p119 = scmp.eq.s32.totalorder %s118, 0
      %s121 = sadd.s32 %s120, 1
      %s122 = scalar_select %p119, %s120, %s121
      %p125 = pneg %p119
      %p126 = scmp.eq.s32.totalorder %s51, 2
      %p127 = por %p125, %p126
      %p128 = scmp.ne.s32.totalorder %s120, %s123
      %p129 = scmp.eq.s32.totalorder %s51, 0
      %p130 = por %p128, %p129
      %p131 = scmp.ne.s32.totalorder %s120, %s123
      %p132 = scmp.eq.s32.totalorder %s56, 2
      %p133 = por %p131, %p132
      %p134 = scmp.ne.s32.totalorder %s123, %s124
      %p135 = scmp.eq.s32.totalorder %s56, 0
      %p136 = por %p134, %p135
      %p137 = scmp.ne.s32.totalorder %s123, %s124
      %p138 = scmp.eq.s32.totalorder %s57, 2
      %p139 = por %p137, %p138
      %p141 = scmp.ne.s32.totalorder %s124, %s140
      %p142 = scmp.eq.s32.totalorder %s57, 0
      %p143 = por %p141, %p142
      %s144 = ssub.s32 %s59, %s66
      %p145 = scmp.eq.s32.totalorder %s144, 0
      %s147 = sadd.s32 %s146, 1
      %s148 = scalar_select %p145, %s146, %s147
      %p151 = pneg %p145
      %p152 = scmp.eq.s32.totalorder %s51, 2
      %p153 = por %p151, %p152
      %p154 = scmp.ne.s32.totalorder %s146, %s149
      %p155 = scmp.eq.s32.totalorder %s51, 0
      %p156 = por %p154, %p155
      %p157 = scmp.ne.s32.totalorder %s146, %s149
      %p158 = scmp.eq.s32.totalorder %s56, 2
      %p159 = por %p157, %p158
      %p160 = scmp.ne.s32.totalorder %s149, %s150
      %p161 = scmp.eq.s32.totalorder %s56, 0
      %p162 = por %p160, %p161
      %p163 = scmp.ne.s32.totalorder %s149, %s150
      %p164 = scmp.eq.s32.totalorder %s57, 2
      %p165 = por %p163, %p164
      %p167 = scmp.ne.s32.totalorder %s150, %s166
      %p168 = scmp.eq.s32.totalorder %s57, 0
      %p169 = por %p167, %p168
      %s170 = ssub.s32 %s59, %s66
      %p171 = scmp.eq.s32.totalorder %s170, 0
      %s173 = sadd.s32 %s172, 1
      %s174 = scalar_select %p171, %s172, %s173
      %p177 = pneg %p171
      %p178 = scmp.eq.s32.totalorder %s51, 2
      %p179 = por %p177, %p178
      %p180 = scmp.ne.s32.totalorder %s172, %s175
      %p181 = scmp.eq.s32.totalorder %s51, 0
      %p182 = por %p180, %p181
      %p183 = scmp.ne.s32.totalorder %s172, %s175
      %p184 = scmp.eq.s32.totalorder %s56, 2
      %p185 = por %p183, %p184
      %p186 = scmp.ne.s32.totalorder %s175, %s176
      %p187 = scmp.eq.s32.totalorder %s56, 0
      %p188 = por %p186, %p187
      %p189 = scmp.ne.s32.totalorder %s175, %s176
      %p190 = scmp.eq.s32.totalorder %s57, 2
      %p191 = por %p189, %p190
      %p193 = scmp.ne.s32.totalorder %s176, %s192
      %p194 = scmp.eq.s32.totalorder %s57, 0
      %p195 = por %p193, %p194
      %s196 = ssub.s32 %s59, %s66
      %p197 = scmp.eq.s32.totalorder %s196, 0
      %s199 = sadd.s32 %s198, 1
      %s200 = scalar_select %p197, %s198, %s199
      %p203 = pneg %p197
      %p204 = scmp.eq.s32.totalorder %s51, 2
      %p205 = por %p203, %p204
      %p206 = scmp.ne.s32.totalorder %s198, %s201
      %p207 = scmp.eq.s32.totalorder %s51, 0
      %p208 = por %p206, %p207
      %p209 = scmp.ne.s32.totalorder %s198, %s201
      %p210 = scmp.eq.s32.totalorder %s56, 2
      %p211 = por %p209, %p210
      %p212 = scmp.ne.s32.totalorder %s201, %s202
      %p213 = scmp.eq.s32.totalorder %s56, 0
      %p214 = por %p212, %p213
      %p215 = scmp.ne.s32.totalorder %s201, %s202
      %p216 = scmp.eq.s32.totalorder %s57, 2
      %p217 = por %p215, %p216
      %p219 = scmp.ne.s32.totalorder %s202, %s218
      %p220 = scmp.eq.s32.totalorder %s57, 0
      %p221 = por %p219, %p220
      %s222 = ssub.s32 %s59, %s66
      %p223 = scmp.eq.s32.totalorder %s222, 0
      %s225 = sadd.s32 %s224, 1
      %s226 = scalar_select %p223, %s224, %s225
      %p229 = pneg %p223
      %p230 = scmp.eq.s32.totalorder %s51, 2
      %p231 = por %p229, %p230
      %p232 = scmp.ne.s32.totalorder %s224, %s227
      %p233 = scmp.eq.s32.totalorder %s51, 0
      %p234 = por %p232, %p233
      %p235 = scmp.ne.s32.totalorder %s224, %s227
      %p236 = scmp.eq.s32.totalorder %s56, 2
      %p237 = por %p235, %p236
      %p238 = scmp.ne.s32.totalorder %s227, %s228
      %p239 = scmp.eq.s32.totalorder %s56, 0
      %p240 = por %p238, %p239
      %p241 = scmp.ne.s32.totalorder %s227, %s228
      %p242 = scmp.eq.s32.totalorder %s57, 2
      %p243 = por %p241, %p242
      %p245 = scmp.ne.s32.totalorder %s228, %s244
      %p246 = scmp.eq.s32.totalorder %s57, 0
      %p247 = por %p245, %p246
      %s248 = ssub.s32 %s59, %s66
      %p249 = scmp.eq.s32.totalorder %s248, 0
      %s251 = sadd.s32 %s250, 1
      %s252 = scalar_select %p249, %s250, %s251
      %p255 = pneg %p249
      %p256 = scmp.eq.s32.totalorder %s51, 2
      %p257 = por %p255, %p256
      %p258 = scmp.ne.s32.totalorder %s250, %s253
      %p259 = scmp.eq.s32.totalorder %s51, 0
      %p260 = por %p258, %p259
      %p261 = scmp.ne.s32.totalorder %s250, %s253
      %p262 = scmp.eq.s32.totalorder %s56, 2
      %p263 = por %p261, %p262
      %p264 = scmp.ne.s32.totalorder %s253, %s254
      %p265 = scmp.eq.s32.totalorder %s56, 0
      %p266 = por %p264, %p265
      %p267 = scmp.ne.s32.totalorder %s253, %s254
      %p268 = scmp.eq.s32.totalorder %s57, 2
      %p269 = por %p267, %p268
      %p271 = scmp.ne.s32.totalorder %s254, %s270
      %p272 = scmp.eq.s32.totalorder %s57, 0
      %p273 = por %p271, %p272
      %s274 = ssub.s32 %s59, %s66
      %p275 = scmp.eq.s32.totalorder %s274, 0
      %s277 = sadd.s32 %s276, 1
      %s278 = scalar_select %p275, %s276, %s277
      %p281 = pneg %p275
      %p282 = scmp.eq.s32.totalorder %s51, 2
      %p283 = por %p281, %p282
      %p284 = scmp.ne.s32.totalorder %s276, %s279
      %p285 = scmp.eq.s32.totalorder %s51, 0
      %p286 = por %p284, %p285
      %p287 = scmp.ne.s32.totalorder %s276, %s279
      %p288 = scmp.eq.s32.totalorder %s56, 2
      %p289 = por %p287, %p288
      %p290 = scmp.ne.s32.totalorder %s279, %s280
      %p291 = scmp.eq.s32.totalorder %s56, 0
      %p292 = por %p290, %p291
      %p293 = scmp.ne.s32.totalorder %s279, %s280
      %p294 = scmp.eq.s32.totalorder %s57, 2
      %p295 = por %p293, %p294
      %p297 = scmp.ne.s32.totalorder %s280, %s296
      %p298 = scmp.eq.s32.totalorder %s57, 0
      %p299 = por %p297, %p298
      %s300 = ssub.s32 %s59, %s66
      %p301 = scmp.eq.s32.totalorder %s300, 0
      %s303 = sadd.s32 %s302, 1
      %s304 = scalar_select %p301, %s302, %s303
      %p307 = pneg %p301
      %p308 = scmp.eq.s32.totalorder %s51, 2
      %p309 = por %p307, %p308
      %p310 = scmp.ne.s32.totalorder %s302, %s305
      %p311 = scmp.eq.s32.totalorder %s51, 0
      %p312 = por %p310, %p311
      %p313 = scmp.ne.s32.totalorder %s302, %s305
      %p314 = scmp.eq.s32.totalorder %s56, 2
      %p315 = por %p313, %p314
      %p316 = scmp.ne.s32.totalorder %s305, %s306
      %p317 = scmp.eq.s32.totalorder %s56, 0
      %p318 = por %p316, %p317
      %p319 = scmp.ne.s32.totalorder %s305, %s306
      %p320 = scmp.eq.s32.totalorder %s57, 2
      %p321 = por %p319, %p320
      %p323 = scmp.ne.s32.totalorder %s306, %s322
      %p324 = scmp.eq.s32.totalorder %s57, 0
      %p325 = por %p323, %p324
      %s326 = ssub.s32 %s59, %s66
      %p327 = scmp.eq.s32.totalorder %s326, 0
      %s329 = sadd.s32 %s328, 1
      %s330 = scalar_select %p327, %s328, %s329
      %p333 = pneg %p327
      %p334 = scmp.eq.s32.totalorder %s51, 2
      %p335 = por %p333, %p334
      %p336 = scmp.ne.s32.totalorder %s328, %s331
      %p337 = scmp.eq.s32.totalorder %s51, 0
      %p338 = por %p336, %p337
      %p339 = scmp.ne.s32.totalorder %s328, %s331
      %p340 = scmp.eq.s32.totalorder %s56, 2
      %p341 = por %p339, %p340
      %p342 = scmp.ne.s32.totalorder %s331, %s332
      %p343 = scmp.eq.s32.totalorder %s56, 0
      %p344 = por %p342, %p343
      %p345 = scmp.ne.s32.totalorder %s331, %s332
      %p346 = scmp.eq.s32.totalorder %s57, 2
      %p347 = por %p345, %p346
      %p349 = scmp.ne.s32.totalorder %s332, %s348
      %p350 = scmp.eq.s32.totalorder %s57, 0
      %p351 = por %p349, %p350
      %s352 = ssub.s32 %s59, %s66
      %p353 = scmp.eq.s32.totalorder %s352, 0
      %s355 = sadd.s32 %s354, 1
      %s356 = scalar_select %p353, %s354, %s355
      %p359 = pneg %p353
      %p360 = scmp.eq.s32.totalorder %s51, 2
      %p361 = por %p359, %p360
      %p362 = scmp.ne.s32.totalorder %s354, %s357
      %p363 = scmp.eq.s32.totalorder %s51, 0
      %p364 = por %p362, %p363
      %p365 = scmp.ne.s32.totalorder %s354, %s357
      %p366 = scmp.eq.s32.totalorder %s56, 2
      %p367 = por %p365, %p366
      %p368 = scmp.ne.s32.totalorder %s357, %s358
      %p369 = scmp.eq.s32.totalorder %s56, 0
      %p370 = por %p368, %p369
      %p371 = scmp.ne.s32.totalorder %s357, %s358
      %p372 = scmp.eq.s32.totalorder %s57, 2
      %p373 = por %p371, %p372
      %p375 = scmp.ne.s32.totalorder %s358, %s374
      %p376 = scmp.eq.s32.totalorder %s57, 0
      %p377 = por %p375, %p376
      %s378 = ssub.s32 %s59, %s66
      %p379 = scmp.eq.s32.totalorder %s378, 0
      %s381 = sadd.s32 %s380, 1
      %s382 = scalar_select %p379, %s380, %s381
      %p385 = pneg %p379
      %p386 = scmp.eq.s32.totalorder %s51, 2
      %p387 = por %p385, %p386
      %p388 = scmp.ne.s32.totalorder %s380, %s383
      %p389 = scmp.eq.s32.totalorder %s51, 0
      %p390 = por %p388, %p389
      %p391 = scmp.ne.s32.totalorder %s380, %s383
      %p392 = scmp.eq.s32.totalorder %s56, 2
      %p393 = por %p391, %p392
      %p394 = scmp.ne.s32.totalorder %s383, %s384
      %p395 = scmp.eq.s32.totalorder %s56, 0
      %p396 = por %p394, %p395
      %p397 = scmp.ne.s32.totalorder %s383, %s384
      %p398 = scmp.eq.s32.totalorder %s57, 2
      %p399 = por %p397, %p398
      %p401 = scmp.ne.s32.totalorder %s384, %s400
      %p402 = scmp.eq.s32.totalorder %s57, 0
      %p403 = por %p401, %p402
      %s404 = ssub.s32 %s59, %s66
      %p405 = scmp.eq.s32.totalorder %s404, 0
      %s407 = sadd.s32 %s406, 1
      %s408 = scalar_select %p405, %s406, %s407
      %p411 = pneg %p405
      %p412 = scmp.eq.s32.totalorder %s51, 2
      %p413 = por %p411, %p412
      %p414 = scmp.ne.s32.totalorder %s406, %s409
      %p415 = scmp.eq.s32.totalorder %s51, 0
      %p416 = por %p414, %p415
      %p417 = scmp.ne.s32.totalorder %s406, %s409
      %p418 = scmp.eq.s32.totalorder %s56, 2
      %p419 = por %p417, %p418
      %p420 = scmp.ne.s32.totalorder %s409, %s410
      %p421 = scmp.eq.s32.totalorder %s56, 0
      %p422 = por %p420, %p421
      %p423 = scmp.ne.s32.totalorder %s409, %s410
      %p424 = scmp.eq.s32.totalorder %s57, 2
      %p425 = por %p423, %p424
      %p427 = scmp.ne.s32.totalorder %s410, %s426
      %p428 = scmp.eq.s32.totalorder %s57, 0
      %p429 = por %p427, %p428
      %s431 = sadd.s32 %s430, 1
      %p434 = scmp.eq.s32.totalorder %s51, 2
      %p435 = scmp.ne.s32.totalorder %s430, %s432
      %p436 = scmp.eq.s32.totalorder %s51, 0
      %p437 = por %p435, %p436
      %p438 = scmp.ne.s32.totalorder %s430, %s432
      %p439 = scmp.eq.s32.totalorder %s56, 2
      %p440 = por %p438, %p439
      %p441 = scmp.ne.s32.totalorder %s432, %s433
      %p442 = scmp.eq.s32.totalorder %s56, 0
      %p443 = por %p441, %p442
      %p444 = scmp.ne.s32.totalorder %s432, %s433
      %p445 = scmp.eq.s32.totalorder %s57, 2
      %p446 = por %p444, %p445
      %p448 = scmp.ne.s32.totalorder %s433, %s447
      %p449 = scmp.eq.s32.totalorder %s57, 0
      %p450 = por %p448, %p449
      %s452 = sadd.s32 %s451, 1
      %p455 = scmp.eq.s32.totalorder %s51, 2
      %p456 = scmp.ne.s32.totalorder %s451, %s453
      %p457 = scmp.eq.s32.totalorder %s51, 0
      %p458 = por %p456, %p457
      %p459 = scmp.ne.s32.totalorder %s451, %s453
      %p460 = scmp.eq.s32.totalorder %s56, 2
      %p461 = por %p459, %p460
      %p462 = scmp.ne.s32.totalorder %s453, %s454
      %p463 = scmp.eq.s32.totalorder %s56, 0
      %p464 = por %p462, %p463
      %p465 = scmp.ne.s32.totalorder %s453, %s454
      %p466 = scmp.eq.s32.totalorder %s57, 2
      %p467 = por %p465, %p466
      %p469 = scmp.ne.s32.totalorder %s454, %s468
      %p470 = scmp.eq.s32.totalorder %s57, 0
      %p471 = por %p469, %p470
      %s473 = sadd.s32 %s472, 1
      %p476 = scmp.eq.s32.totalorder %s51, 2
      %p477 = scmp.ne.s32.totalorder %s472, %s474
      %p478 = scmp.eq.s32.totalorder %s51, 0
      %p479 = por %p477, %p478
      %p480 = scmp.ne.s32.totalorder %s472, %s474
      %p481 = scmp.eq.s32.totalorder %s56, 2
      %p482 = por %p480, %p481
      %p483 = scmp.ne.s32.totalorder %s474, %s475
      %p484 = scmp.eq.s32.totalorder %s56, 0
      %p485 = por %p483, %p484
      %p486 = scmp.ne.s32.totalorder %s474, %s475
      %p487 = scmp.eq.s32.totalorder %s57, 2
      %p488 = por %p486, %p487
      %p490 = scmp.ne.s32.totalorder %s475, %s489
      %p491 = scmp.eq.s32.totalorder %s57, 0
      %p492 = por %p490, %p491
      %s493 = ssub.s32 %s58, %s70
      %p494 = scmp.eq.s32.totalorder %s493, 0
      %s496 = sadd.s32 %s495, 1
      %s497 = scalar_select %p494, %s495, %s496
      %p500 = pneg %p494
      %p501 = scmp.eq.s32.totalorder %s51, 2
      %p502 = por %p500, %p501
      %p503 = scmp.ne.s32.totalorder %s495, %s498
      %p504 = scmp.eq.s32.totalorder %s51, 0
      %p505 = por %p503, %p504
      %p506 = scmp.ne.s32.totalorder %s495, %s498
      %p507 = scmp.eq.s32.totalorder %s56, 2
      %p508 = por %p506, %p507
      %p509 = scmp.ne.s32.totalorder %s498, %s499
      %p510 = scmp.eq.s32.totalorder %s56, 0
      %p511 = por %p509, %p510
      %p512 = scmp.ne.s32.totalorder %s498, %s499
      %p513 = scmp.eq.s32.totalorder %s57, 2
      %p514 = por %p512, %p513
      %p516 = scmp.ne.s32.totalorder %s499, %s515
      %p517 = scmp.eq.s32.totalorder %s57, 0
      %p518 = por %p516, %p517
      %s519 = ssub.s32 %s59, %s66
      %s520 = ssub.s32 %s58, %s70
      %s521 = sor.u32 %s519, %s520
      %p522 = scmp.eq.s32.totalorder %s521, 0
      %s524 = sadd.s32 %s523, 1
      %s525 = scalar_select %p522, %s523, %s524
      %p528 = pneg %p522
      %p529 = scmp.eq.s32.totalorder %s51, 2
      %p530 = por %p528, %p529
      %p531 = scmp.ne.s32.totalorder %s523, %s526
      %p532 = scmp.eq.s32.totalorder %s51, 0
      %p533 = por %p531, %p532
      %p534 = scmp.ne.s32.totalorder %s523, %s526
      %p535 = scmp.eq.s32.totalorder %s56, 2
      %p536 = por %p534, %p535
      %p537 = scmp.ne.s32.totalorder %s526, %s527
      %p538 = scmp.eq.s32.totalorder %s56, 0
      %p539 = por %p537, %p538
      %p540 = scmp.ne.s32.totalorder %s526, %s527
      %p541 = scmp.eq.s32.totalorder %s57, 2
      %p542 = por %p540, %p541
      %p544 = scmp.ne.s32.totalorder %s527, %s543
      %p545 = scmp.eq.s32.totalorder %s57, 0
      %p546 = por %p544, %p545
      %p547 = scmp.le.s32.totalorder 1, %s51
      %p548 = scmp.lt.s32.totalorder %s51, 4
      %p549 = pnand %p547, %p548
      %p550 = pneg %p549
      // Predicated region
      $region9: #{tpu_custom_call.1} parent=5 // pred_check
        _
      $region10: #{tpu_custom_call.1} parent=5 // pred_check_branch
        %552 = sbr.rel (%p549) target = $region12
      $region11: #{tpu_custom_call.1} parent=5 // pred_region
        %s553 = ssub.s32 %s51, 1
        // Predicated region
        $region13: #{tpu_custom_call.1} parent=11 // pred_check
          %p554 = pneg %p89
        $region14: #{tpu_custom_call.1} parent=11 // pred_check_branch
          %556 = sbr.rel (%p554) target = $region16
        $region15: #{tpu_custom_call.1} parent=11 // pred_region
          %s557 = smul.u32 6, %s60
          %s559 = ssub.s32 1536, 1536
          %560 = vsyncadd [#allocation4], %s559
          %s561 = smul.addr %s557, 2
          %s562 = smul.addr %s561, 128
          %s563 = scalar_lea.hbm %s0, %s562
          %s564 = sshll.u32 [#allocation3], 4
          %s565 = int_to_ptr.vmem [resolvable:$true] %s564
          %570 = dma.hbm_to_vmem [thread:$0]  %s563, 1536, %s565, [#allocation4], 128, 128, 8
        $region16: #{tpu_custom_call.1} parent=11 // pred_fallthru
          _
        // Predicated region
        $region17: #{tpu_custom_call.1} parent=11 // pred_check
          %p571 = pneg %p110
        $region18: #{tpu_custom_call.1} parent=11 // pred_check_branch
          %573 = sbr.rel (%p571) target = $region20
        $region19: #{tpu_custom_call.1} parent=11 // pred_region
          %s575 = ssub.s32 16, 16
          %576 = vsyncadd [#allocation6], %s575
          %579 = dma.hbm_to_smem %s1, 16, [#allocation7], [#allocation6]
        $region20: #{tpu_custom_call.1} parent=11 // pred_fallthru
          _
        // Predicated region
        $region21: #{tpu_custom_call.1} parent=11 // pred_check
          %p580 = pneg %p443
        $region22: #{tpu_custom_call.1} parent=11 // pred_check_branch
          %582 = sbr.rel (%p580) target = $region24
        $region23: #{tpu_custom_call.1} parent=11 // pred_region
          %s584 = ssub.s32 16, 16
          %585 = vsyncadd [#allocation27], %s584
          %s587 = sshll.u32 [#allocation26], 4
          %s588 = int_to_ptr.vmem [resolvable:$true] %s587
          %590 = dma.hbm_to_vmem [thread:$0]  %s14, 16, %s588, [#allocation27]
        $region24: #{tpu_custom_call.1} parent=11 // pred_fallthru
          _
        // Predicated region
        $region25: #{tpu_custom_call.1} parent=11 // pred_check
          %p591 = pneg %p464
        $region26: #{tpu_custom_call.1} parent=11 // pred_check_branch
          %593 = sbr.rel (%p591) target = $region28
        $region27: #{tpu_custom_call.1} parent=11 // pred_region
          %s595 = ssub.s32 16, 16
          %596 = vsyncadd [#allocation27], %s595
          %s598 = sshll.u32 [#allocation28], 4
          %s599 = int_to_ptr.vmem [resolvable:$true] %s598
          %601 = dma.hbm_to_vmem [thread:$0]  %s15, 16, %s599, [#allocation27]
        $region28: #{tpu_custom_call.1} parent=11 // pred_fallthru
          _
        // Predicated region
        $region29: #{tpu_custom_call.1} parent=11 // pred_check
          %p602 = pneg %p485
        $region30: #{tpu_custom_call.1} parent=11 // pred_check_branch
          %604 = sbr.rel (%p602) target = $region32
        $region31: #{tpu_custom_call.1} parent=11 // pred_region
          %s606 = ssub.s32 512, 512
          %607 = vsyncadd [#allocation30], %s606
          %s608 = sshll.u32 [#allocation29], 4
          %s609 = int_to_ptr.vmem [resolvable:$true] %s608
          %614 = dma.hbm_to_vmem [thread:$0]  %s16, 512, %s609, [#allocation30], 64, 64, 4
        $region32: #{tpu_custom_call.1} parent=11 // pred_fallthru
          _
      $region12: #{tpu_custom_call.1} parent=5 // pred_fallthru
        _
      %p615 = scmp.lt.s32.totalorder %s51, 3
      // Predicated region
      $region33: #{tpu_custom_call.1} parent=5 // pred_check
        %p616 = pneg %p615
      $region34: #{tpu_custom_call.1} parent=5 // pred_check_branch
        %618 = sbr.rel (%p616) target = $region36
      $region35: #{tpu_custom_call.1} parent=5 // pred_region
        // Predicated region
        $region37: #{tpu_custom_call.1} parent=35 // pred_check
          %p619 = pneg %p130
        $region38: #{tpu_custom_call.1} parent=35 // pred_check_branch
          %621 = sbr.rel (%p619) target = $region40
        $region39: #{tpu_custom_call.1} parent=35 // pred_region
          %s622 = sand.u32 %s51, 1
          %s623 = scalar_lea.sflag [#allocation9], %s622
          %s624 = sand.u32 %s120, 1
          %s625 = scalar_lea.vmem [#allocation8], %s624
          %s627 = ssub.s32 16, 16
          %628 = vsyncadd %s623, %s627
          %s629 = smul.addr %s59, 16
          %s630 = scalar_lea.hbm %s2, %s629
          %s632 = sshll.u32 %s625, 4
          %s633 = int_to_ptr.vmem [resolvable:$true] %s632
          %635 = dma.hbm_to_vmem [thread:$0]  %s630, 16, %s633, %s623
        $region40: #{tpu_custom_call.1} parent=35 // pred_fallthru
          _
        // Predicated region
        $region41: #{tpu_custom_call.1} parent=35 // pred_check
          %p636 = pneg %p156
        $region42: #{tpu_custom_call.1} parent=35 // pred_check_branch
          %638 = sbr.rel (%p636) target = $region44
        $region43: #{tpu_custom_call.1} parent=35 // pred_region
          %s639 = sand.u32 %s51, 1
          %s640 = scalar_lea.sflag [#allocation9], %s639
          %s641 = sand.u32 %s146, 1
          %s642 = scalar_lea.vmem [#allocation10], %s641
          %s644 = ssub.s32 16, 16
          %645 = vsyncadd %s640, %s644
          %s646 = smul.addr %s59, 16
          %s647 = scalar_lea.hbm %s3, %s646
          %s649 = sshll.u32 %s642, 4
          %s650 = int_to_ptr.vmem [resolvable:$true] %s649
          %652 = dma.hbm_to_vmem [thread:$0]  %s647, 16, %s650, %s640
        $region44: #{tpu_custom_call.1} parent=35 // pred_fallthru
          _
        // Predicated region
        $region45: #{tpu_custom_call.1} parent=35 // pred_check
          %p653 = pneg %p182
        $region46: #{tpu_custom_call.1} parent=35 // pred_check_branch
          %655 = sbr.rel (%p653) target = $region48
        $region47: #{tpu_custom_call.1} parent=35 // pred_region
          %s656 = sand.u32 %s51, 1
          %s657 = scalar_lea.sflag [#allocation12], %s656
          %s658 = sand.u32 %s172, 1
          %s659 = smul.addr %s658, 64
          %s660 = scalar_lea.vmem [#allocation11], %s659
          %s662 = ssub.s32 1024, 1024
          %663 = vsyncadd %s657, %s662
          %s664 = smul.addr %s59, 16
          %s665 = smul.addr %s664, 64
          %s666 = scalar_lea.hbm %s4, %s665
          %s667 = sshll.u32 %s660, 4
          %s668 = int_to_ptr.vmem [resolvable:$true] %s667
          %673 = dma.hbm_to_vmem [thread:$0]  %s666, 1024, %s668, %s657, 128, 128, 8
        $region48: #{tpu_custom_call.1} parent=35 // pred_fallthru
          _
        // Predicated region
        $region49: #{tpu_custom_call.1} parent=35 // pred_check
          %p674 = pneg %p208
        $region50: #{tpu_custom_call.1} parent=35 // pred_check_branch
          %676 = sbr.rel (%p674) target = $region52
        $region51: #{tpu_custom_call.1} parent=35 // pred_region
          %s677 = sand.u32 %s51, 1
          %s678 = scalar_lea.sflag [#allocation12], %s677
          %s679 = sand.u32 %s198, 1
          %s680 = smul.addr %s679, 2
          %s681 = scalar_lea.vmem [#allocation13], %s680
          %s683 = ssub.s32 32, 32
          %684 = vsyncadd %s678, %s683
          %s685 = smul.addr %s59, 2
          %s686 = smul.addr %s685, 16
          %s687 = scalar_lea.hbm %s5, %s686
          %s689 = sshll.u32 %s681, 4
          %s690 = int_to_ptr.vmem [resolvable:$true] %s689
          %692 = dma.hbm_to_vmem [thread:$0]  %s687, 32, %s690, %s678
        $region52: #{tpu_custom_call.1} parent=35 // pred_fallthru
          _
        // Predicated region
        $region53: #{tpu_custom_call.1} parent=35 // pred_check
          %p693 = pneg %p234
        $region54: #{tpu_custom_call.1} parent=35 // pred_check_branch
          %695 = sbr.rel (%p693) target = $region56
        $region55: #{tpu_custom_call.1} parent=35 // pred_region
          %s696 = sand.u32 %s51, 1
          %s697 = scalar_lea.sflag [#allocation15], %s696
          %s698 = sand.u32 %s224, 1
          %s699 = smul.addr %s698, 32
          %s700 = scalar_lea.vmem [#allocation14], %s699
          %s702 = ssub.s32 512, 512
          %703 = vsyncadd %s697, %s702
          %s704 = smul.addr %s59, 8
          %s705 = smul.addr %s704, 64
          %s706 = scalar_lea.hbm %s6, %s705
          %s707 = sshll.u32 %s700, 4
          %s708 = int_to_ptr.vmem [resolvable:$true] %s707
          %713 = dma.hbm_to_vmem [thread:$0]  %s706, 512, %s708, %s697, 64, 64, 4
        $region56: #{tpu_custom_call.1} parent=35 // pred_fallthru
          _
        // Predicated region
        $region57: #{tpu_custom_call.1} parent=35 // pred_check
          %p714 = pneg %p260
        $region58: #{tpu_custom_call.1} parent=35 // pred_check_branch
          %716 = sbr.rel (%p714) target = $region60
        $region59: #{tpu_custom_call.1} parent=35 // pred_region
          %s717 = sand.u32 %s51, 1
          %s718 = scalar_lea.sflag [#allocation15], %s717
          %s719 = sand.u32 %s250, 1
          %s720 = scalar_lea.vmem [#allocation16], %s719
          %s722 = ssub.s32 16, 16
          %723 = vsyncadd %s718, %s722
          %s724 = smul.addr %s59, 16
          %s725 = scalar_lea.hbm %s7, %s724
          %s727 = sshll.u32 %s720, 4
          %s728 = int_to_ptr.vmem [resolvable:$true] %s727
          %730 = dma.hbm_to_vmem [thread:$0]  %s725, 16, %s728, %s718
        $region60: #{tpu_custom_call.1} parent=35 // pred_fallthru
          _
        // Predicated region
        $region61: #{tpu_custom_call.1} parent=35 // pred_check
          %p731 = pneg %p286
        $region62: #{tpu_custom_call.1} parent=35 // pred_check_branch
          %733 = sbr.rel (%p731) target = $region64
        $region63: #{tpu_custom_call.1} parent=35 // pred_region
          %s734 = sand.u32 %s51, 1
          %s735 = scalar_lea.sflag [#allocation18], %s734
          %s736 = sand.u32 %s276, 1
          %s737 = scalar_lea.vmem [#allocation17], %s736
          %s739 = ssub.s32 16, 16
          %740 = vsyncadd %s735, %s739
          %s741 = smul.addr %s59, 16
          %s742 = scalar_lea.hbm %s8, %s741
          %s744 = sshll.u32 %s737, 4
          %s745 = int_to_ptr.vmem [resolvable:$true] %s744
          %747 = dma.hbm_to_vmem [thread:$0]  %s742, 16, %s745, %s735
        $region64: #{tpu_custom_call.1} parent=35 // pred_fallthru
          _
        // Predicated region
        $region65: #{tpu_custom_call.1} parent=35 // pred_check
          %p748 = pneg %p312
        $region66: #{tpu_custom_call.1} parent=35 // pred_check_branch
          %750 = sbr.rel (%p748) target = $region68
        $region67: #{tpu_custom_call.1} parent=35 // pred_region
          %s751 = sand.u32 %s51, 1
          %s752 = scalar_lea.sflag [#allocation18], %s751
          %s753 = sand.u32 %s302, 1
          %s754 = scalar_lea.vmem [#allocation19], %s753
          %s756 = ssub.s32 16, 16
          %757 = vsyncadd %s752, %s756
          %s758 = smul.addr %s59, 16
          %s759 = scalar_lea.hbm %s9, %s758
          %s761 = sshll.u32 %s754, 4
          %s762 = int_to_ptr.vmem [resolvable:$true] %s761
          %764 = dma.hbm_to_vmem [thread:$0]  %s759, 16, %s762, %s752
        $region68: #{tpu_custom_call.1} parent=35 // pred_fallthru
          _
        // Predicated region
        $region69: #{tpu_custom_call.1} parent=35 // pred_check
          %p765 = pneg %p338
        $region70: #{tpu_custom_call.1} parent=35 // pred_check_branch
          %767 = sbr.rel (%p765) target = $region72
        $region71: #{tpu_custom_call.1} parent=35 // pred_region
          %s768 = sand.u32 %s51, 1
          %s769 = scalar_lea.sflag [#allocation21], %s768
          %s770 = sand.u32 %s328, 1
          %s771 = smul.addr %s770, 64
          %s772 = scalar_lea.vmem [#allocation20], %s771
          %s774 = ssub.s32 1024, 1024
          %775 = vsyncadd %s769, %s774
          %s776 = smul.addr %s59, 16
          %s777 = smul.addr %s776, 64
          %s778 = scalar_lea.hbm %s10, %s777
          %s779 = sshll.u32 %s772, 4
          %s780 = int_to_ptr.vmem [resolvable:$true] %s779
          %785 = dma.hbm_to_vmem [thread:$0]  %s778, 1024, %s780, %s769, 128, 128, 8
        $region72: #{tpu_custom_call.1} parent=35 // pred_fallthru
          _
        // Predicated region
        $region73: #{tpu_custom_call.1} parent=35 // pred_check
          %p786 = pneg %p364
        $region74: #{tpu_custom_call.1} parent=35 // pred_check_branch
          %788 = sbr.rel (%p786) target = $region76
        $region75: #{tpu_custom_call.1} parent=35 // pred_region
          %s789 = sand.u32 %s51, 1
          %s790 = scalar_lea.sflag [#allocation21], %s789
          %s791 = sand.u32 %s354, 1
          %s792 = smul.addr %s791, 2
          %s793 = scalar_lea.vmem [#allocation22], %s792
          %s795 = ssub.s32 32, 32
          %796 = vsyncadd %s790, %s795
          %s797 = smul.addr %s59, 2
          %s798 = smul.addr %s797, 16
          %s799 = scalar_lea.hbm %s11, %s798
          %s801 = sshll.u32 %s793, 4
          %s802 = int_to_ptr.vmem [resolvable:$true] %s801
          %804 = dma.hbm_to_vmem [thread:$0]  %s799, 32, %s802, %s790
        $region76: #{tpu_custom_call.1} parent=35 // pred_fallthru
          _
        // Predicated region
        $region77: #{tpu_custom_call.1} parent=35 // pred_check
          %p805 = pneg %p390
        $region78: #{tpu_custom_call.1} parent=35 // pred_check_branch
          %807 = sbr.rel (%p805) target = $region80
        $region79: #{tpu_custom_call.1} parent=35 // pred_region
          %s808 = sand.u32 %s51, 1
          %s809 = scalar_lea.sflag [#allocation24], %s808
          %s810 = sand.u32 %s380, 1
          %s811 = smul.addr %s810, 128
          %s812 = scalar_lea.vmem [#allocation23], %s811
          %s814 = ssub.s32 2048, 2048
          %815 = vsyncadd %s809, %s814
          %s816 = smul.addr %s59, 32
          %s817 = smul.addr %s816, 64
          %s818 = scalar_lea.hbm %s12, %s817
          %s819 = sshll.u32 %s812, 4
          %s820 = int_to_ptr.vmem [resolvable:$true] %s819
          %825 = dma.hbm_to_vmem [thread:$0]  %s818, 2048, %s820, %s809, 64, 64, 4
        $region80: #{tpu_custom_call.1} parent=35 // pred_fallthru
          _
        // Predicated region
        $region81: #{tpu_custom_call.1} parent=35 // pred_check
          %p826 = pneg %p416
        $region82: #{tpu_custom_call.1} parent=35 // pred_check_branch
          %828 = sbr.rel (%p826) target = $region84
        $region83: #{tpu_custom_call.1} parent=35 // pred_region
          %s829 = sand.u32 %s51, 1
          %s830 = scalar_lea.sflag [#allocation24], %s829
          %s831 = sand.u32 %s406, 1
          %s832 = scalar_lea.vmem [#allocation25], %s831
          %s834 = ssub.s32 16, 16
          %835 = vsyncadd %s830, %s834
          %s836 = smul.addr %s59, 16
          %s837 = scalar_lea.hbm %s13, %s836
          %s839 = sshll.u32 %s832, 4
          %s840 = int_to_ptr.vmem [resolvable:$true] %s839
          %842 = dma.hbm_to_vmem [thread:$0]  %s837, 16, %s840, %s830
        $region84: #{tpu_custom_call.1} parent=35 // pred_fallthru
          _
      $region36: #{tpu_custom_call.1} parent=5 // pred_fallthru
        _
      %p843 = scmp.le.s32.totalorder 1, %s51
      %p844 = scmp.lt.s32.totalorder %s51, 4
      %p845 = pnand %p843, %p844
      %p846 = pneg %p845
      // Predicated region
      $region85: #{tpu_custom_call.1} parent=5 // pred_check
        _
      $region86: #{tpu_custom_call.1} parent=5 // pred_check_branch
        %848 = sbr.rel (%p845) target = $region88
      $region87: #{tpu_custom_call.1} parent=5 // pred_region
        %s849 = ssub.s32 %s51, 1
        // Predicated region
        $region89: #{tpu_custom_call.1} parent=87 // pred_check
          %p850 = pneg %p89
        $region90: #{tpu_custom_call.1} parent=87 // pred_check_branch
          %852 = sbr.rel (%p850) target = $region92
        $region91: #{tpu_custom_call.1} parent=87 // pred_region
          %853 = dma.done [#allocation4], 1536
        $region92: #{tpu_custom_call.1} parent=87 // pred_fallthru
          _
        // Predicated region
        $region93: #{tpu_custom_call.1} parent=87 // pred_check
          %p854 = pneg %p110
        $region94: #{tpu_custom_call.1} parent=87 // pred_check_branch
          %856 = sbr.rel (%p854) target = $region96
        $region95: #{tpu_custom_call.1} parent=87 // pred_region
          %857 = dma.done [#allocation6], 16
        $region96: #{tpu_custom_call.1} parent=87 // pred_fallthru
          _
        %s858 = sand.u32 %s56, 1
        %s859 = scalar_lea.sflag [#allocation9], %s858
        %s860 = sand.u32 %s123, 1
        %s861 = scalar_lea.vmem [#allocation8], %s860
        // Predicated region
        $region97: #{tpu_custom_call.1} parent=87 // pred_check
          %p862 = pneg %p136
        $region98: #{tpu_custom_call.1} parent=87 // pred_check_branch
          %864 = sbr.rel (%p862) target = $region100
        $region99: #{tpu_custom_call.1} parent=87 // pred_region
          %865 = dma.done %s859, 16
        $region100: #{tpu_custom_call.1} parent=87 // pred_fallthru
          _
        %s866 = sand.u32 %s56, 1
        %s867 = scalar_lea.sflag [#allocation9], %s866
        %s868 = sand.u32 %s149, 1
        %s869 = scalar_lea.vmem [#allocation10], %s868
        // Predicated region
        $region101: #{tpu_custom_call.1} parent=87 // pred_check
          %p870 = pneg %p162
        $region102: #{tpu_custom_call.1} parent=87 // pred_check_branch
          %872 = sbr.rel (%p870) target = $region104
        $region103: #{tpu_custom_call.1} parent=87 // pred_region
          %873 = dma.done %s867, 16
        $region104: #{tpu_custom_call.1} parent=87 // pred_fallthru
          _
        %s874 = sand.u32 %s56, 1
        %s875 = scalar_lea.sflag [#allocation12], %s874
        %s876 = sand.u32 %s175, 1
        %s877 = smul.addr %s876, 64
        %s878 = scalar_lea.vmem [#allocation11], %s877
        // Predicated region
        $region105: #{tpu_custom_call.1} parent=87 // pred_check
          %p879 = pneg %p188
        $region106: #{tpu_custom_call.1} parent=87 // pred_check_branch
          %881 = sbr.rel (%p879) target = $region108
        $region107: #{tpu_custom_call.1} parent=87 // pred_region
          %882 = dma.done %s875, 1024
        $region108: #{tpu_custom_call.1} parent=87 // pred_fallthru
          _
        %s883 = sand.u32 %s56, 1
        %s884 = scalar_lea.sflag [#allocation12], %s883
        %s885 = sand.u32 %s201, 1
        %s886 = smul.addr %s885, 2
        %s887 = scalar_lea.vmem [#allocation13], %s886
        // Predicated region
        $region109: #{tpu_custom_call.1} parent=87 // pred_check
          %p888 = pneg %p214
        $region110: #{tpu_custom_call.1} parent=87 // pred_check_branch
          %890 = sbr.rel (%p888) target = $region112
        $region111: #{tpu_custom_call.1} parent=87 // pred_region
          %891 = dma.done %s884, 32
        $region112: #{tpu_custom_call.1} parent=87 // pred_fallthru
          _
        %s892 = sand.u32 %s56, 1
        %s893 = scalar_lea.sflag [#allocation15], %s892
        %s894 = sand.u32 %s227, 1
        %s895 = smul.addr %s894, 32
        %s896 = scalar_lea.vmem [#allocation14], %s895
        // Predicated region
        $region113: #{tpu_custom_call.1} parent=87 // pred_check
          %p897 = pneg %p240
        $region114: #{tpu_custom_call.1} parent=87 // pred_check_branch
          %899 = sbr.rel (%p897) target = $region116
        $region115: #{tpu_custom_call.1} parent=87 // pred_region
          %900 = dma.done %s893, 512
        $region116: #{tpu_custom_call.1} parent=87 // pred_fallthru
          _
        %s901 = sand.u32 %s56, 1
        %s902 = scalar_lea.sflag [#allocation15], %s901
        %s903 = sand.u32 %s253, 1
        %s904 = scalar_lea.vmem [#allocation16], %s903
        // Predicated region
        $region117: #{tpu_custom_call.1} parent=87 // pred_check
          %p905 = pneg %p266
        $region118: #{tpu_custom_call.1} parent=87 // pred_check_branch
          %907 = sbr.rel (%p905) target = $region120
        $region119: #{tpu_custom_call.1} parent=87 // pred_region
          %908 = dma.done %s902, 16
        $region120: #{tpu_custom_call.1} parent=87 // pred_fallthru
          _
        %s909 = sand.u32 %s56, 1
        %s910 = scalar_lea.sflag [#allocation18], %s909
        %s911 = sand.u32 %s279, 1
        %s912 = scalar_lea.vmem [#allocation17], %s911
        // Predicated region
        $region121: #{tpu_custom_call.1} parent=87 // pred_check
          %p913 = pneg %p292
        $region122: #{tpu_custom_call.1} parent=87 // pred_check_branch
          %915 = sbr.rel (%p913) target = $region124
        $region123: #{tpu_custom_call.1} parent=87 // pred_region
          %916 = dma.done %s910, 16
        $region124: #{tpu_custom_call.1} parent=87 // pred_fallthru
          _
        %s917 = sand.u32 %s56, 1
        %s918 = scalar_lea.sflag [#allocation18], %s917
        %s919 = sand.u32 %s305, 1
        %s920 = scalar_lea.vmem [#allocation19], %s919
        // Predicated region
        $region125: #{tpu_custom_call.1} parent=87 // pred_check
          %p921 = pneg %p318
        $region126: #{tpu_custom_call.1} parent=87 // pred_check_branch
          %923 = sbr.rel (%p921) target = $region128
        $region127: #{tpu_custom_call.1} parent=87 // pred_region
          %924 = dma.done %s918, 16
        $region128: #{tpu_custom_call.1} parent=87 // pred_fallthru
          _
        %s925 = sand.u32 %s56, 1
        %s926 = scalar_lea.sflag [#allocation21], %s925
        %s927 = sand.u32 %s331, 1
        %s928 = smul.addr %s927, 64
        %s929 = scalar_lea.vmem [#allocation20], %s928
        // Predicated region
        $region129: #{tpu_custom_call.1} parent=87 // pred_check
          %p930 = pneg %p344
        $region130: #{tpu_custom_call.1} parent=87 // pred_check_branch
          %932 = sbr.rel (%p930) target = $region132
        $region131: #{tpu_custom_call.1} parent=87 // pred_region
          %933 = dma.done %s926, 1024
        $region132: #{tpu_custom_call.1} parent=87 // pred_fallthru
          _
        %s934 = sand.u32 %s56, 1
        %s935 = scalar_lea.sflag [#allocation21], %s934
        %s936 = sand.u32 %s357, 1
        %s937 = smul.addr %s936, 2
        %s938 = scalar_lea.vmem [#allocation22], %s937
        // Predicated region
        $region133: #{tpu_custom_call.1} parent=87 // pred_check
          %p939 = pneg %p370
        $region134: #{tpu_custom_call.1} parent=87 // pred_check_branch
          %941 = sbr.rel (%p939) target = $region136
        $region135: #{tpu_custom_call.1} parent=87 // pred_region
          %942 = dma.done %s935, 32
        $region136: #{tpu_custom_call.1} parent=87 // pred_fallthru
          _
        %s943 = sand.u32 %s56, 1
        %s944 = scalar_lea.sflag [#allocation24], %s943
        %s945 = sand.u32 %s383, 1
        %s946 = smul.addr %s945, 128
        %s947 = scalar_lea.vmem [#allocation23], %s946
        // Predicated region
        $region137: #{tpu_custom_call.1} parent=87 // pred_check
          %p948 = pneg %p396
        $region138: #{tpu_custom_call.1} parent=87 // pred_check_branch
          %950 = sbr.rel (%p948) target = $region140
        $region139: #{tpu_custom_call.1} parent=87 // pred_region
          %951 = dma.done %s944, 2048
        $region140: #{tpu_custom_call.1} parent=87 // pred_fallthru
          _
        %s952 = sand.u32 %s56, 1
        %s953 = scalar_lea.sflag [#allocation24], %s952
        %s954 = sand.u32 %s409, 1
        %s955 = scalar_lea.vmem [#allocation25], %s954
        // Predicated region
        $region141: #{tpu_custom_call.1} parent=87 // pred_check
          %p956 = pneg %p422
        $region142: #{tpu_custom_call.1} parent=87 // pred_check_branch
          %958 = sbr.rel (%p956) target = $region144
        $region143: #{tpu_custom_call.1} parent=87 // pred_region
          %959 = dma.done %s953, 16
        $region144: #{tpu_custom_call.1} parent=87 // pred_fallthru
          _
        // Predicated region
        $region145: #{tpu_custom_call.1} parent=87 // pred_check
          %p960 = pneg %p443
        $region146: #{tpu_custom_call.1} parent=87 // pred_check_branch
          %962 = sbr.rel (%p960) target = $region148
        $region147: #{tpu_custom_call.1} parent=87 // pred_region
          %963 = dma.done [#allocation27], 16
        $region148: #{tpu_custom_call.1} parent=87 // pred_fallthru
          _
        // Predicated region
        $region149: #{tpu_custom_call.1} parent=87 // pred_check
          %p964 = pneg %p464
        $region150: #{tpu_custom_call.1} parent=87 // pred_check_branch
          %966 = sbr.rel (%p964) target = $region152
        $region151: #{tpu_custom_call.1} parent=87 // pred_region
          %967 = dma.done [#allocation27], 16
        $region152: #{tpu_custom_call.1} parent=87 // pred_fallthru
          _
        // Predicated region
        $region153: #{tpu_custom_call.1} parent=87 // pred_check
          %p968 = pneg %p485
        $region154: #{tpu_custom_call.1} parent=87 // pred_check_branch
          %970 = sbr.rel (%p968) target = $region156
        $region155: #{tpu_custom_call.1} parent=87 // pred_region
          %971 = dma.done [#allocation30], 512
        $region156: #{tpu_custom_call.1} parent=87 // pred_fallthru
          _
        %972 = sfence
        %p973 = pneg %p89
        %p974 = pneg %p86
        %p975 = pneg %p110
        %p976 = pneg %p107
        %s977 = sand.u32 %s56, 1
        %s978 = scalar_lea.sflag [#allocation9], %s977
        %s979 = sand.u32 %s123, 1
        %s980 = scalar_lea.vmem [#allocation8], %s979
        %p981 = pneg %p136
        %p982 = pneg %p133
        %s983 = sand.u32 %s56, 1
        %s984 = scalar_lea.sflag [#allocation9], %s983
        %s985 = sand.u32 %s149, 1
        %s986 = scalar_lea.vmem [#allocation10], %s985
        %p987 = pneg %p162
        %p988 = pneg %p159
        %s989 = sand.u32 %s56, 1
        %s990 = scalar_lea.sflag [#allocation12], %s989
        %s991 = sand.u32 %s175, 1
        %s992 = smul.addr %s991, 64
        %s993 = scalar_lea.vmem [#allocation11], %s992
        %p994 = pneg %p188
        %p995 = pneg %p185
        %s996 = sand.u32 %s56, 1
        %s997 = scalar_lea.sflag [#allocation12], %s996
        %s998 = sand.u32 %s201, 1
        %s999 = smul.addr %s998, 2
        %s1000 = scalar_lea.vmem [#allocation13], %s999
        %p1001 = pneg %p214
        %p1002 = pneg %p211
        %s1003 = sand.u32 %s56, 1
        %s1004 = scalar_lea.sflag [#allocation15], %s1003
        %s1005 = sand.u32 %s227, 1
        %s1006 = smul.addr %s1005, 32
        %s1007 = scalar_lea.vmem [#allocation14], %s1006
        %p1008 = pneg %p240
        %p1009 = pneg %p237
        %s1010 = sand.u32 %s56, 1
        %s1011 = scalar_lea.sflag [#allocation15], %s1010
        %s1012 = sand.u32 %s253, 1
        %s1013 = scalar_lea.vmem [#allocation16], %s1012
        %p1014 = pneg %p266
        %p1015 = pneg %p263
        %s1016 = sand.u32 %s56, 1
        %s1017 = scalar_lea.sflag [#allocation18], %s1016
        %s1018 = sand.u32 %s279, 1
        %s1019 = scalar_lea.vmem [#allocation17], %s1018
        %p1020 = pneg %p292
        %p1021 = pneg %p289
        %s1022 = sand.u32 %s56, 1
        %s1023 = scalar_lea.sflag [#allocation18], %s1022
        %s1024 = sand.u32 %s305, 1
        %s1025 = scalar_lea.vmem [#allocation19], %s1024
        %p1026 = pneg %p318
        %p1027 = pneg %p315
        %s1028 = sand.u32 %s56, 1
        %s1029 = scalar_lea.sflag [#allocation21], %s1028
        %s1030 = sand.u32 %s331, 1
        %s1031 = smul.addr %s1030, 64
        %s1032 = scalar_lea.vmem [#allocation20], %s1031
        %p1033 = pneg %p344
        %p1034 = pneg %p341
        %s1035 = sand.u32 %s56, 1
        %s1036 = scalar_lea.sflag [#allocation21], %s1035
        %s1037 = sand.u32 %s357, 1
        %s1038 = smul.addr %s1037, 2
        %s1039 = scalar_lea.vmem [#allocation22], %s1038
        %p1040 = pneg %p370
        %p1041 = pneg %p367
        %s1042 = sand.u32 %s56, 1
        %s1043 = scalar_lea.sflag [#allocation24], %s1042
        %s1044 = sand.u32 %s383, 1
        %s1045 = smul.addr %s1044, 128
        %s1046 = scalar_lea.vmem [#allocation23], %s1045
        %p1047 = pneg %p396
        %p1048 = pneg %p393
        %s1049 = sand.u32 %s56, 1
        %s1050 = scalar_lea.sflag [#allocation24], %s1049
        %s1051 = sand.u32 %s409, 1
        %s1052 = scalar_lea.vmem [#allocation25], %s1051
        %p1053 = pneg %p422
        %p1054 = pneg %p419
        %p1055 = pneg %p443
        %p1056 = pneg %p440
        %p1057 = pneg %p464
        %p1058 = pneg %p461
        %p1059 = pneg %p485
        %p1060 = pneg %p482
        %p1061 = pneg %p511
        %p1062 = pneg %p508
        %p1063 = pneg %p539
        %p1064 = pneg %p536
        %s1065 = sand.u32 %s526, 1
        %s1066 = scalar_lea.sflag [#allocation33], %s1065
        %s1067 = sand.u32 %s526, 1
        %s1068 = smul.addr %s1067, 6
        %s1069 = scalar_lea.vmem [#allocation32], %s1068
        %s1070 = smul.u32 6, %s60
        %s1071 = smul.u32 6, %s60
        %s1072 = smul.u32 6, %s60
        %p1074 = scmp.eq.s32.totalorder %s61, 0
        // Predicated region
        $region157: #{tpu_custom_call.1} parent=87 // pred_check
          %p1075 = pneg %p1074
        $region158: #{tpu_custom_call.1} parent=87 // pred_check_branch
          %1077 = sbr.rel (%p1075) target = $region160
        $region159: #{tpu_custom_call.1} parent=87 // pred_region
          %v1078 = vld [vmem:[#allocation3] sm:$0xff]
          %v1079 = vld [vmem:[#allocation3 + $0x8] sm:$0xff]
          %v1080 = vld [vmem:[#allocation3 + $0x10] sm:$0xff]
          %v1081 = vld [vmem:[#allocation3 + $0x18] sm:$0xff]
          %v1082 = vld [vmem:[#allocation3 + $0x20] sm:$0xff]
          %v1083 = vld [vmem:[#allocation3 + $0x28] sm:$0xff]
          %v1084 = vld [vmem:[#allocation3 + $0x30] sm:$0xff]
          %v1085 = vld [vmem:[#allocation3 + $0x38] sm:$0xff]
          %v1086 = vld [vmem:[#allocation3 + $0x40] sm:$0xff]
          %v1087 = vld [vmem:[#allocation3 + $0x48] sm:$0xff]
          %v1088 = vld [vmem:[#allocation3 + $0x50] sm:$0xff]
          %v1089 = vld [vmem:[#allocation3 + $0x58] sm:$0xff]
          %vm1090 = vcmask 523264
          %1091 = vst.msk [vmem:[#allocation2] sm:$0xff] %vm1090, %v1078
          %1092 = vst.msk [vmem:[#allocation2 + $0x8] sm:$0xff] %vm1090, %v1079
          %1093 = vst.msk [vmem:[#allocation2 + $0x10] sm:$0xff] %vm1090, %v1080
          %1094 = vst.msk [vmem:[#allocation2 + $0x18] sm:$0xff] %vm1090, %v1081
          %1095 = vst.msk [vmem:[#allocation2 + $0x20] sm:$0xff] %vm1090, %v1082
          %1096 = vst.msk [vmem:[#allocation2 + $0x28] sm:$0xff] %vm1090, %v1083
          %1097 = vst.msk [vmem:[#allocation2 + $0x30] sm:$0xff] %vm1090, %v1084
          %1098 = vst.msk [vmem:[#allocation2 + $0x38] sm:$0xff] %vm1090, %v1085
          %1099 = vst.msk [vmem:[#allocation2 + $0x40] sm:$0xff] %vm1090, %v1086
          %1100 = vst.msk [vmem:[#allocation2 + $0x48] sm:$0xff] %vm1090, %v1087
          %1101 = vst.msk [vmem:[#allocation2 + $0x50] sm:$0xff] %vm1090, %v1088
          %1102 = vst.msk [vmem:[#allocation2 + $0x58] sm:$0xff] %vm1090, %v1089
        $region160: #{tpu_custom_call.1} parent=87 // pred_fallthru
          _
        %v1103 = vld [vmem:[#allocation2] sm:$0xff]
        %v1104 = vld [vmem:[#allocation2 + $0x8] sm:$0xff]
        %v1105 = vld [vmem:[#allocation2 + $0x10] sm:$0xff]
        %v1106 = vld [vmem:[#allocation2 + $0x18] sm:$0xff]
        %v1107 = vld [vmem:[#allocation2 + $0x20] sm:$0xff]
        %v1108 = vld [vmem:[#allocation2 + $0x28] sm:$0xff]
        %v1109 = vld [vmem:[#allocation2 + $0x30] sm:$0xff]
        %v1110 = vld [vmem:[#allocation2 + $0x38] sm:$0xff]
        %v1111 = vld [vmem:[#allocation2 + $0x40] sm:$0xff]
        %v1112 = vld [vmem:[#allocation2 + $0x48] sm:$0xff]
        %v1113 = vld [vmem:[#allocation2 + $0x50] sm:$0xff]
        %v1114 = vld [vmem:[#allocation2 + $0x58] sm:$0xff]
        %v1115 = vld [vmem:[%s861] sm:$0x1]
        %v1116 = vld [vmem:[%s869] sm:$0x1]
        %vm1117 = vcmask 523264
        %v1118 = vsel %vm1117, %v1103, 0.0
        %1119 = vadd.xlane.f32.xlu0 %v1118
        %v1120 = vpop.xlane.xlu0 %1119
        %v1121 = vsel %vm1117, %v1104, 0.0
        %1122 = vadd.xlane.f32.xlu0 %v1121
        %v1123 = vpop.xlane.xlu0 %1122
        %v1124 = vsel %vm1117, %v1105, 0.0
        %1125 = vadd.xlane.f32.xlu0 %v1124
        %v1126 = vpop.xlane.xlu0 %1125
        %v1127 = vsel %vm1117, %v1106, 0.0
        %1128 = vadd.xlane.f32.xlu0 %v1127
        %v1129 = vpop.xlane.xlu0 %1128
        %v1130 = vsel %vm1117, %v1107, 0.0
        %1131 = vadd.xlane.f32.xlu0 %v1130
        %v1132 = vpop.xlane.xlu0 %1131
        %v1133 = vsel %vm1117, %v1108, 0.0
        %1134 = vadd.xlane.f32.xlu0 %v1133
        %v1135 = vpop.xlane.xlu0 %1134
        %v1136 = vsel %vm1117, %v1109, 0.0
        %1137 = vadd.xlane.f32.xlu0 %v1136
        %v1138 = vpop.xlane.xlu0 %1137
        %v1139 = vsel %vm1117, %v1110, 0.0
        %1140 = vadd.xlane.f32.xlu0 %v1139
        %v1141 = vpop.xlane.xlu0 %1140
        %v1142 = vsel %vm1117, %v1111, 0.0
        %1143 = vadd.xlane.f32.xlu0 %v1142
        %v1144 = vpop.xlane.xlu0 %1143
        %v1145 = vsel %vm1117, %v1112, 0.0
        %1146 = vadd.xlane.f32.xlu0 %v1145
        %v1147 = vpop.xlane.xlu0 %1146
        %v1148 = vsel %vm1117, %v1113, 0.0
        %1149 = vadd.xlane.f32.xlu0 %v1148
        %v1150 = vpop.xlane.xlu0 %1149
        %v1151 = vsel %vm1117, %v1114, 0.0
        %1152 = vadd.xlane.f32.xlu0 %v1151
        %v1153 = vpop.xlane.xlu0 %1152
        %v1154 = vrcp.pop 64.0
        %v1155 = vmul.f32 %v1120, %v1154
        %v1156 = vmul.f32 %v1123, %v1154
        %v1157 = vmul.f32 %v1126, %v1154
        %v1158 = vmul.f32 %v1129, %v1154
        %v1159 = vmul.f32 %v1132, %v1154
        %v1160 = vmul.f32 %v1135, %v1154
        %v1161 = vmul.f32 %v1138, %v1154
        %v1162 = vmul.f32 %v1141, %v1154
        %v1163 = vmul.f32 %v1144, %v1154
        %v1164 = vmul.f32 %v1147, %v1154
        %v1165 = vmul.f32 %v1150, %v1154
        %v1166 = vmul.f32 %v1153, %v1154
        %v1167 = vsub.f32 %v1103, %v1155
        %v1168 = vsub.f32 %v1104, %v1156
        %v1169 = vsub.f32 %v1105, %v1157
        %v1170 = vsub.f32 %v1106, %v1158
        %v1171 = vsub.f32 %v1107, %v1159
        %v1172 = vsub.f32 %v1108, %v1160
        %v1173 = vsub.f32 %v1109, %v1161
        %v1174 = vsub.f32 %v1110, %v1162
        %v1175 = vsub.f32 %v1111, %v1163
        %v1176 = vsub.f32 %v1112, %v1164
        %v1177 = vsub.f32 %v1113, %v1165
        %v1178 = vsub.f32 %v1114, %v1166
        %v1179 = vmul.f32 %v1167, %v1167
        %v1180 = vmul.f32 %v1168, %v1168
        %v1181 = vmul.f32 %v1169, %v1169
        %v1182 = vmul.f32 %v1170, %v1170
        %v1183 = vmul.f32 %v1171, %v1171
        %v1184 = vmul.f32 %v1172, %v1172
        %v1185 = vmul.f32 %v1173, %v1173
        %v1186 = vmul.f32 %v1174, %v1174
        %v1187 = vmul.f32 %v1175, %v1175
        %v1188 = vmul.f32 %v1176, %v1176
        %v1189 = vmul.f32 %v1177, %v1177
        %v1190 = vmul.f32 %v1178, %v1178
        %v1191 = vsel %vm1117, %v1179, 0.0
        %1192 = vadd.xlane.f32.xlu0 %v1191
        %v1193 = vpop.xlane.xlu0 %1192
        %v1194 = vsel %vm1117, %v1180, 0.0
        %1195 = vadd.xlane.f32.xlu0 %v1194
        %v1196 = vpop.xlane.xlu0 %1195
        %v1197 = vsel %vm1117, %v1181, 0.0
        %1198 = vadd.xlane.f32.xlu0 %v1197
        %v1199 = vpop.xlane.xlu0 %1198
        %v1200 = vsel %vm1117, %v1182, 0.0
        %1201 = vadd.xlane.f32.xlu0 %v1200
        %v1202 = vpop.xlane.xlu0 %1201
        %v1203 = vsel %vm1117, %v1183, 0.0
        %1204 = vadd.xlane.f32.xlu0 %v1203
        %v1205 = vpop.xlane.xlu0 %1204
        %v1206 = vsel %vm1117, %v1184, 0.0
        %1207 = vadd.xlane.f32.xlu0 %v1206
        %v1208 = vpop.xlane.xlu0 %1207
        %v1209 = vsel %vm1117, %v1185, 0.0
        %1210 = vadd.xlane.f32.xlu0 %v1209
        %v1211 = vpop.xlane.xlu0 %1210
        %v1212 = vsel %vm1117, %v1186, 0.0
        %1213 = vadd.xlane.f32.xlu0 %v1212
        %v1214 = vpop.xlane.xlu0 %1213
        %v1215 = vsel %vm1117, %v1187, 0.0
        %1216 = vadd.xlane.f32.xlu0 %v1215
        %v1217 = vpop.xlane.xlu0 %1216
        %v1218 = vsel %vm1117, %v1188, 0.0
        %1219 = vadd.xlane.f32.xlu0 %v1218
        %v1220 = vpop.xlane.xlu0 %1219
        %v1221 = vsel %vm1117, %v1189, 0.0
        %1222 = vadd.xlane.f32.xlu0 %v1221
        %v1223 = vpop.xlane.xlu0 %1222
        %v1224 = vsel %vm1117, %v1190, 0.0
        %1225 = vadd.xlane.f32.xlu0 %v1224
        %v1226 = vpop.xlane.xlu0 %1225
        %v1227 = vmul.f32 %v1193, %v1154
        %v1228 = vmul.f32 %v1196, %v1154
        %v1229 = vmul.f32 %v1199, %v1154
        %v1230 = vmul.f32 %v1202, %v1154
        %v1231 = vmul.f32 %v1205, %v1154
        %v1232 = vmul.f32 %v1208, %v1154
        %v1233 = vmul.f32 %v1211, %v1154
        %v1234 = vmul.f32 %v1214, %v1154
        %v1235 = vmul.f32 %v1217, %v1154
        %v1236 = vmul.f32 %v1220, %v1154
        %v1237 = vmul.f32 %v1223, %v1154
        %v1238 = vmul.f32 %v1226, %v1154
        %v1239 = vadd.f32 %v1227, 1e-05
        %v1240 = vadd.f32 %v1228, 1e-05
        %v1241 = vadd.f32 %v1229, 1e-05
        %v1242 = vadd.f32 %v1230, 1e-05
        %v1243 = vadd.f32 %v1231, 1e-05
        %v1244 = vadd.f32 %v1232, 1e-05
        %v1245 = vadd.f32 %v1233, 1e-05
        %v1246 = vadd.f32 %v1234, 1e-05
        %v1247 = vadd.f32 %v1235, 1e-05
        %v1248 = vadd.f32 %v1236, 1e-05
        %v1249 = vadd.f32 %v1237, 1e-05
        %v1250 = vadd.f32 %v1238, 1e-05
        %v1251 = vrsqrt.pop %v1239
        %v1252 = vrsqrt.pop %v1240
        %v1253 = vrsqrt.pop %v1241
        %v1254 = vrsqrt.pop %v1242
        %v1255 = vrsqrt.pop %v1243
        %v1256 = vrsqrt.pop %v1244
        %v1257 = vrsqrt.pop %v1245
        %v1258 = vrsqrt.pop %v1246
        %v1259 = vrsqrt.pop %v1247
        %v1260 = vrsqrt.pop %v1248
        %v1261 = vrsqrt.pop %v1249
        %v1262 = vrsqrt.pop %v1250
        %v1263 = vmul.f32 %v1167, %v1251
        %v1264 = vmul.f32 %v1168, %v1252
        %v1265 = vmul.f32 %v1169, %v1253
        %v1266 = vmul.f32 %v1170, %v1254
        %v1267 = vmul.f32 %v1171, %v1255
        %v1268 = vmul.f32 %v1172, %v1256
        %v1269 = vmul.f32 %v1173, %v1257
        %v1270 = vmul.f32 %v1174, %v1258
        %v1271 = vmul.f32 %v1175, %v1259
        %v1272 = vmul.f32 %v1176, %v1260
        %v1273 = vmul.f32 %v1177, %v1261
        %v1274 = vmul.f32 %v1178, %v1262
        %v1276 = vlaneseq
        %v1277 = vshrl.u32 %v1276, 7
        %v1278 = vsub.s32 0, %v1277
        %v1279 = vrot.slane %v1115, %v1278
        %v1281 = vmul.f32 %v1263, %v1279
        %v1282 = vmul.f32 %v1264, %v1279
        %v1283 = vmul.f32 %v1265, %v1279
        %v1284 = vmul.f32 %v1266, %v1279
        %v1285 = vmul.f32 %v1267, %v1279
        %v1286 = vmul.f32 %v1268, %v1279
        %v1287 = vmul.f32 %v1269, %v1279
        %v1288 = vmul.f32 %v1270, %v1279
        %v1289 = vmul.f32 %v1271, %v1279
        %v1290 = vmul.f32 %v1272, %v1279
        %v1291 = vmul.f32 %v1273, %v1279
        %v1292 = vmul.f32 %v1274, %v1279
        %v1294 = vlaneseq
        %v1295 = vshrl.u32 %v1294, 7
        %v1296 = vsub.s32 0, %v1295
        %v1297 = vrot.slane %v1116, %v1296
        %v1299 = vadd.f32 %v1281, %v1297
        %v1300 = vadd.f32 %v1282, %v1297
        %v1301 = vadd.f32 %v1283, %v1297
        %v1302 = vadd.f32 %v1284, %v1297
        %v1303 = vadd.f32 %v1285, %v1297
        %v1304 = vadd.f32 %v1286, %v1297
        %v1305 = vadd.f32 %v1287, %v1297
        %v1306 = vadd.f32 %v1288, %v1297
        %v1307 = vadd.f32 %v1289, %v1297
        %v1308 = vadd.f32 %v1290, %v1297
        %v1309 = vadd.f32 %v1291, %v1297
        %v1310 = vadd.f32 %v1292, %v1297
        %v1311 = vpack.c.bf16 %v1300, %v1299
        %v1312 = vpack.c.bf16 %v1302, %v1301
        %v1313 = vpack.c.bf16 %v1304, %v1303
        %v1314 = vpack.c.bf16 %v1306, %v1305
        %v1315 = vpack.c.bf16 %v1308, %v1307
        %v1316 = vpack.c.bf16 %v1310, %v1309
        %v1317 = vld [vmem:[%s878] sm:$0xff]
        %v1318 = vld [vmem:[%s878 + $0x8] sm:$0xff]
        %v1319 = vld [vmem:[%s878 + $0x10] sm:$0xff]
        %v1320 = vld [vmem:[%s878 + $0x18] sm:$0xff]
        %v1321 = vld [vmem:[%s878 + $0x20] sm:$0xff]
        %v1322 = vld [vmem:[%s878 + $0x28] sm:$0xff]
        %v1323 = vld [vmem:[%s878 + $0x30] sm:$0xff]
        %v1324 = vld [vmem:[%s878 + $0x38] sm:$0xff]
        %v1325 = vld [vmem:[%s887] sm:$0x3]
        %v1327 = vlaneseq
        %v1328 = vshrl.u32 %v1327, 7
        %v1329 = vsub.s32 0, %v1328
        %v1330 = vrot.slane %v1325, %v1329
        %v1331 = vlaneseq
        %v1332 = vshrl.u32 %v1331, 7
        %v1333 = vsub.s32 1, %v1332
        %v1334 = vrot.slane %v1325, %v1333
        %v1345 = vunpack.c.l.b16 %v1317
        %v1346 = vunpack.c.h.b16 %v1317
        %v1347 = vunpack.c.l.b16 %v1318
        %v1348 = vunpack.c.h.b16 %v1318
        %v1349 = vunpack.c.l.b16 %v1319
        %v1350 = vunpack.c.h.b16 %v1319
        %v1351 = vunpack.c.l.b16 %v1320
        %v1352 = vunpack.c.h.b16 %v1320
        %v1353 = vunpack.c.l.b16 %v1321
        %v1354 = vunpack.c.h.b16 %v1321
        %v1355 = vunpack.c.l.b16 %v1322
        %v1356 = vunpack.c.h.b16 %v1322
        %v1357 = vunpack.c.l.b16 %v1323
        %v1358 = vunpack.c.h.b16 %v1323
        %v1359 = vunpack.c.l.b16 %v1324
        %v1360 = vunpack.c.h.b16 %v1324
        %v1361 = vpack.c.b16 %v1347, %v1345
        %v1362 = vpack.c.b16 %v1348, %v1346
        %v1363 = vpack.c.b16 %v1351, %v1349
        %v1364 = vpack.c.b16 %v1352, %v1350
        %v1365 = vpack.c.b16 %v1355, %v1353
        %v1366 = vpack.c.b16 %v1356, %v1354
        %v1367 = vpack.c.b16 %v1359, %v1357
        %v1368 = vpack.c.b16 %v1360, %v1358
        %v1378 = vsel %vm1117, %v1311, 0
        %v1381 = vsel %vm1117, %v1312, 0
        %v1384 = vsel %vm1117, %v1313, 0
        %v1387 = vsel %vm1117, %v1314, 0
        %v1390 = vsel %vm1117, %v1315, 0
        %v1393 = vsel %vm1117, %v1316, 0
        %1395 = vmatprep.subr.bf16.mxu0 %v1362
        %1396 = vmatpush1.bf16.msra.mxu0 %v1361
        %1397 = vmatprep.subr.bf16.mxu0 %v1364
        %1398 = vmatpush1.bf16.msra.mxu0 %v1363
        %1399 = vmatprep.subr.bf16.mxu0 %v1366
        %1400 = vmatpush1.bf16.msra.mxu0 %v1365
        %1401 = vmatprep.subr.bf16.mxu0 %v1368
        %1402 = vmatpush1.bf16.msra.mxu0 %v1367
        %1403 = vmatprep.subr.bf16.mxu0 0
        %1404 = vmatpush1.bf16.msra.mxu0 0
        %1405 = vmatprep.subr.bf16.mxu0 0
        %1406 = vmatpush1.bf16.msra.mxu0 0
        %1407 = vmatprep.subr.bf16.mxu0 0
        %1408 = vmatpush1.bf16.msra.mxu0 0
        %1409 = vmatprep.subr.bf16.mxu0 0
        %1410 = vmatpush1.bf16.msra.mxu0 0
        %1411 = vmatprep.subr.bf16.mxu0 0
        %1412 = vmatpush1.bf16.msra.mxu0 0
        %1413 = vmatprep.subr.bf16.mxu0 0
        %1414 = vmatpush1.bf16.msra.mxu0 0
        %1415 = vmatprep.subr.bf16.mxu0 0
        %1416 = vmatpush1.bf16.msra.mxu0 0
        %1417 = vmatprep.subr.bf16.mxu0 0
        %1418 = vmatpush1.bf16.msra.mxu0 0
        %1419 = vmatprep.subr.bf16.mxu0 0
        %1420 = vmatpush1.bf16.msra.mxu0 0
        %1421 = vmatprep.subr.bf16.mxu0 0
        %1422 = vmatpush1.bf16.msra.mxu0 0
        %1423 = vmatprep.subr.bf16.mxu0 0
        %1424 = vmatpush1.bf16.msra.mxu0 0
        %1425 = vmatprep.subr.bf16.mxu0 0
        %1426 = vmatpush1.bf16.msra.mxu0 0
        %1427 = vmatprep.mubr.bf16.mxu0 0
        %1428 = vmatmul.mubr.bf16.gmra.mrb[0].mxu0 %v1378
        %v1429 = vpop.f32.mrb[0].mxu0
        %v1430 = vadd.f32 %v1330, %v1429
        %v1431 = vpop.f32.mrb[0].mxu0
        %v1432 = vadd.f32 %v1334, %v1431
        %v1433 = vpop.f32.mrb[0].mxu0
        %v1434 = vadd.f32 %v1330, %v1433
        %v1435 = vpop.f32.mrb[0].mxu0
        %v1436 = vadd.f32 %v1334, %v1435
        %1437 = vmatprep.mubr.bf16.mxu0 0
        %1438 = vmatmul.mubr.bf16.gmra.mrb[0].mxu0 %v1381
        %v1439 = vpop.f32.mrb[0].mxu0
        %v1440 = vadd.f32 %v1330, %v1439
        %v1441 = vpop.f32.mrb[0].mxu0
        %v1442 = vadd.f32 %v1334, %v1441
        %v1443 = vpop.f32.mrb[0].mxu0
        %v1444 = vadd.f32 %v1330, %v1443
        %v1445 = vpop.f32.mrb[0].mxu0
        %v1446 = vadd.f32 %v1334, %v1445
        %1447 = vmatprep.mubr.bf16.mxu0 0
        %1448 = vmatmul.mubr.bf16.gmra.mrb[0].mxu0 %v1384
        %v1449 = vpop.f32.mrb[0].mxu0
        %v1450 = vadd.f32 %v1330, %v1449
        %v1451 = vpop.f32.mrb[0].mxu0
        %v1452 = vadd.f32 %v1334, %v1451
        %v1453 = vpop.f32.mrb[0].mxu0
        %v1454 = vadd.f32 %v1330, %v1453
        %v1455 = vpop.f32.mrb[0].mxu0
        %v1456 = vadd.f32 %v1334, %v1455
        %1457 = vmatprep.mubr.bf16.mxu0 0
        %1458 = vmatmul.mubr.bf16.gmra.mrb[0].mxu0 %v1387
        %v1459 = vpop.f32.mrb[0].mxu0
        %v1460 = vadd.f32 %v1330, %v1459
        %v1461 = vpop.f32.mrb[0].mxu0
        %v1462 = vadd.f32 %v1334, %v1461
        %v1463 = vpop.f32.mrb[0].mxu0
        %v1464 = vadd.f32 %v1330, %v1463
        %v1465 = vpop.f32.mrb[0].mxu0
        %v1466 = vadd.f32 %v1334, %v1465
        %1467 = vmatprep.mubr.bf16.mxu0 0
        %1468 = vmatmul.mubr.bf16.gmra.mrb[0].mxu0 %v1390
        %v1469 = vpop.f32.mrb[0].mxu0
        %v1470 = vadd.f32 %v1330, %v1469
        %v1471 = vpop.f32.mrb[0].mxu0
        %v1472 = vadd.f32 %v1334, %v1471
        %v1473 = vpop.f32.mrb[0].mxu0
        %v1474 = vadd.f32 %v1330, %v1473
        %v1475 = vpop.f32.mrb[0].mxu0
        %v1476 = vadd.f32 %v1334, %v1475
        %1477 = vmatprep.mubr.bf16.mxu0 0
        %1478 = vmatmul.mubr.bf16.gmra.mrb[0].mxu0 %v1393
        %v1479 = vpop.f32.mrb[0].mxu0
        %v1480 = vadd.f32 %v1330, %v1479
        %v1481 = vpop.f32.mrb[0].mxu0
        %v1482 = vadd.f32 %v1334, %v1481
        %v1483 = vpop.f32.mrb[0].mxu0
        %v1484 = vadd.f32 %v1330, %v1483
        %v1485 = vpop.f32.mrb[0].mxu0
        %v1486 = vadd.f32 %v1334, %v1485
        %1487 = vdwg.mxu0
        %v1488 = vpack.c.bf16 %v1434, %v1430
        %v1489 = vpack.c.bf16 %v1444, %v1440
        %v1490 = vpack.c.bf16 %v1454, %v1450
        %v1491 = vpack.c.bf16 %v1464, %v1460
        %v1492 = vpack.c.bf16 %v1474, %v1470
        %v1493 = vpack.c.bf16 %v1484, %v1480
        %v1494 = vpack.c.bf16 %v1436, %v1432
        %v1495 = vpack.c.bf16 %v1446, %v1442
        %v1496 = vpack.c.bf16 %v1456, %v1452
        %v1497 = vpack.c.bf16 %v1466, %v1462
        %v1498 = vpack.c.bf16 %v1476, %v1472
        %v1499 = vpack.c.bf16 %v1486, %v1482
        %v1500 = vlaneseq
        %v1501 = vshrl.u32 %v1500, 7
        %v1502 = vadd.s32 %v1501, 8
        %v1503 = vlaneseq
        %v1504 = vand.u32 %v1503, 127
        %vm1505 = vcmp.le.s32.totalorder %v1504, %v1501
        %vm1506 = vcmp.le.s32.totalorder %v1504, %v1502
        %1508 = vrot.lane.b32.xlu0 %v1488, 64
        %v1509 = vpop.permute.xlu0 %1508
        %vm1510 = vcmask 130048
        %v1512 = vsel %vm1510, %v1488, 0
        %v1515 = vsel %vm1510, %v1509, 0
        %1517 = vmatprep.subr.bf16.mxu0 0
        %1518 = vmatpush1.bf16.xpose.msra.mxu0 %v1515
        %1519 = vmatprep.subr.bf16.mxu0 0
        %1520 = vmatpush1.bf16.xpose.msra.mxu0 0
        %1521 = vmatprep.subr.bf16.mxu0 0
        %1522 = vmatpush1.bf16.xpose.msra.mxu0 0
        %1523 = vmatprep.subr.bf16.mxu0 0
        %1524 = vmatpush1.bf16.xpose.msra.mxu0 0
        %1525 = vmatprep.subr.bf16.mxu0 0
        %1526 = vmatpush1.bf16.xpose.msra.mxu0 0
        %1527 = vmatprep.subr.bf16.mxu0 0
        %1528 = vmatpush1.bf16.xpose.msra.mxu0 0
        %1529 = vmatprep.subr.bf16.mxu0 0
        %1530 = vmatpush1.bf16.xpose.msra.mxu0 0
        %1531 = vmatprep.subr.bf16.mxu0 0
        %1532 = vmatpush1.bf16.xpose.msra.mxu0 0
        %1533 = vmatprep.subr.bf16.mxu0 0
        %1534 = vmatpush1.bf16.xpose.msra.mxu0 0
        %1535 = vmatprep.subr.bf16.mxu0 0
        %1536 = vmatpush1.bf16.xpose.msra.mxu0 0
        %1537 = vmatprep.subr.bf16.mxu0 0
        %1538 = vmatpush1.bf16.xpose.msra.mxu0 0
        %1539 = vmatprep.subr.bf16.mxu0 0
        %1540 = vmatpush1.bf16.xpose.msra.mxu0 0
        %1541 = vmatprep.subr.bf16.mxu0 0
        %1542 = vmatpush1.bf16.xpose.msra.mxu0 0
        %1543 = vmatprep.subr.bf16.mxu0 0
        %1544 = vmatpush1.bf16.xpose.msra.mxu0 0
        %1545 = vmatprep.subr.bf16.mxu0 0
        %1546 = vmatpush1.bf16.xpose.msra.mxu0 0
        %1547 = vmatprep.subr.bf16.mxu0 0
        %1548 = vmatpush1.bf16.xpose.msra.mxu0 0
        %1549 = vmatprep.mubr.bf16.mxu0 0
        %1550 = vmatmul.mubr.bf16.gmra.mrb[0].mxu0 %v1512
        %v1551 = vpop.f32.mrb[0].mxu0
        %v1552 = vadd.f32 0.0, %v1551
        %v1553 = vpop.f32.mrb[0].mxu0
        %v1554 = vpop.f32.mrb[0].mxu0
        %v1555 = vadd.f32 0.0, %v1554
        %v1556 = vpop.f32.mrb[0].mxu0
        %1557 = vdwg.mxu0
        %1559 = vrot.lane.b32.xlu0 %v1489, 64
        %v1560 = vpop.permute.xlu0 %1559
        %v1562 = vsel %vm1510, %v1489, 0
        %v1565 = vsel %vm1510, %v1560, 0
        %1567 = vmatprep.subr.bf16.mxu0 0
        %1568 = vmatpush1.bf16.xpose.msra.mxu0 %v1565
        %1569 = vmatprep.subr.bf16.mxu0 0
        %1570 = vmatpush1.bf16.xpose.msra.mxu0 0
        %1571 = vmatprep.subr.bf16.mxu0 0
        %1572 = vmatpush1.bf16.xpose.msra.mxu0 0
        %1573 = vmatprep.subr.bf16.mxu0 0
        %1574 = vmatpush1.bf16.xpose.msra.mxu0 0
        %1575 = vmatprep.subr.bf16.mxu0 0
        %1576 = vmatpush1.bf16.xpose.msra.mxu0 0
        %1577 = vmatprep.subr.bf16.mxu0 0
        %1578 = vmatpush1.bf16.xpose.msra.mxu0 0
        %1579 = vmatprep.subr.bf16.mxu0 0
        %1580 = vmatpush1.bf16.xpose.msra.mxu0 0
        %1581 = vmatprep.subr.bf16.mxu0 0
        %1582 = vmatpush1.bf16.xpose.msra.mxu0 0
        %1583 = vmatprep.subr.bf16.mxu0 0
        %1584 = vmatpush1.bf16.xpose.msra.mxu0 0
        %1585 = vmatprep.subr.bf16.mxu0 0
        %1586 = vmatpush1.bf16.xpose.msra.mxu0 0
        %1587 = vmatprep.subr.bf16.mxu0 0
        %1588 = vmatpush1.bf16.xpose.msra.mxu0 0
        %1589 = vmatprep.subr.bf16.mxu0 0
        %1590 = vmatpush1.bf16.xpose.msra.mxu0 0
        %1591 = vmatprep.subr.bf16.mxu0 0
        %1592 = vmatpush1.bf16.xpose.msra.mxu0 0
        %1593 = vmatprep.subr.bf16.mxu0 0
        %1594 = vmatpush1.bf16.xpose.msra.mxu0 0
        %1595 = vmatprep.subr.bf16.mxu0 0
        %1596 = vmatpush1.bf16.xpose.msra.mxu0 0
        %1597 = vmatprep.subr.bf16.mxu0 0
        %1598 = vmatpush1.bf16.xpose.msra.mxu0 0
        %1599 = vmatprep.mubr.bf16.mxu0 0
        %1600 = vmatmul.mubr.bf16.gmra.mrb[0].mxu0 %v1562
        %v1601 = vpop.f32.mrb[0].mxu0
        %v1602 = vadd.f32 0.0, %v1601
        %v1603 = vpop.f32.mrb[0].mxu0
        %v1604 = vpop.f32.mrb[0].mxu0
        %v1605 = vadd.f32 0.0, %v1604
        %v1606 = vpop.f32.mrb[0].mxu0
        %1607 = vdwg.mxu0
        %1609 = vrot.lane.b32.xlu0 %v1490, 64
        %v1610 = vpop.permute.xlu0 %1609
        %v1612 = vsel %vm1510, %v1490, 0
        %v1615 = vsel %vm1510, %v1610, 0
        %1617 = vmatprep.subr.bf16.mxu0 0
        %1618 = vmatpush1.bf16.xpose.msra.mxu0 %v1615
        %1619 = vmatprep.subr.bf16.mxu0 0
        %1620 = vmatpush1.bf16.xpose.msra.mxu0 0
        %1621 = vmatprep.subr.bf16.mxu0 0
        %1622 = vmatpush1.bf16.xpose.msra.mxu0 0
        %1623 = vmatprep.subr.bf16.mxu0 0
        %1624 = vmatpush1.bf16.xpose.msra.mxu0 0
        %1625 = vmatprep.subr.bf16.mxu0 0
        %1626 = vmatpush1.bf16.xpose.msra.mxu0 0
        %1627 = vmatprep.subr.bf16.mxu0 0
        %1628 = vmatpush1.bf16.xpose.msra.mxu0 0
        %1629 = vmatprep.subr.bf16.mxu0 0
        %1630 = vmatpush1.bf16.xpose.msra.mxu0 0
        %1631 = vmatprep.subr.bf16.mxu0 0
        %1632 = vmatpush1.bf16.xpose.msra.mxu0 0
        %1633 = vmatprep.subr.bf16.mxu0 0
        %1634 = vmatpush1.bf16.xpose.msra.mxu0 0
        %1635 = vmatprep.subr.bf16.mxu0 0
        %1636 = vmatpush1.bf16.xpose.msra.mxu0 0
        %1637 = vmatprep.subr.bf16.mxu0 0
        %1638 = vmatpush1.bf16.xpose.msra.mxu0 0
        %1639 = vmatprep.subr.bf16.mxu0 0
        %1640 = vmatpush1.bf16.xpose.msra.mxu0 0
        %1641 = vmatprep.subr.bf16.mxu0 0
        %1642 = vmatpush1.bf16.xpose.msra.mxu0 0
        %1643 = vmatprep.subr.bf16.mxu0 0
        %1644 = vmatpush1.bf16.xpose.msra.mxu0 0
        %1645 = vmatprep.subr.bf16.mxu0 0
        %1646 = vmatpush1.bf16.xpose.msra.mxu0 0
        %1647 = vmatprep.subr.bf16.mxu0 0
        %1648 = vmatpush1.bf16.xpose.msra.mxu0 0
        %1649 = vmatprep.mubr.bf16.mxu0 0
        %1650 = vmatmul.mubr.bf16.gmra.mrb[0].mxu0 %v1612
        %v1651 = vpop.f32.mrb[0].mxu0
        %v1652 = vadd.f32 0.0, %v1651
        %v1653 = vpop.f32.mrb[0].mxu0
        %v1654 = vpop.f32.mrb[0].mxu0
        %v1655 = vadd.f32 0.0, %v1654
        %v1656 = vpop.f32.mrb[0].mxu0
        %1657 = vdwg.mxu0
        %1659 = vrot.lane.b32.xlu0 %v1491, 64
        %v1660 = vpop.permute.xlu0 %1659
        %v1662 = vsel %vm1510, %v1491, 0
        %v1665 = vsel %vm1510, %v1660, 0
        %1667 = vmatprep.subr.bf16.mxu0 0
        %1668 = vmatpush1.bf16.xpose.msra.mxu0 %v1665
        %1669 = vmatprep.subr.bf16.mxu0 0
        %1670 = vmatpush1.bf16.xpose.msra.mxu0 0
        %1671 = vmatprep.subr.bf16.mxu0 0
        %1672 = vmatpush1.bf16.xpose.msra.mxu0 0
        %1673 = vmatprep.subr.bf16.mxu0 0
        %1674 = vmatpush1.bf16.xpose.msra.mxu0 0
        %1675 = vmatprep.subr.bf16.mxu0 0
        %1676 = vmatpush1.bf16.xpose.msra.mxu0 0
        %1677 = vmatprep.subr.bf16.mxu0 0
        %1678 = vmatpush1.bf16.xpose.msra.mxu0 0
        %1679 = vmatprep.subr.bf16.mxu0 0
        %1680 = vmatpush1.bf16.xpose.msra.mxu0 0
        %1681 = vmatprep.subr.bf16.mxu0 0
        %1682 = vmatpush1.bf16.xpose.msra.mxu0 0
        %1683 = vmatprep.subr.bf16.mxu0 0
        %1684 = vmatpush1.bf16.xpose.msra.mxu0 0
        %1685 = vmatprep.subr.bf16.mxu0 0
        %1686 = vmatpush1.bf16.xpose.msra.mxu0 0
        %1687 = vmatprep.subr.bf16.mxu0 0
        %1688 = vmatpush1.bf16.xpose.msra.mxu0 0
        %1689 = vmatprep.subr.bf16.mxu0 0
        %1690 = vmatpush1.bf16.xpose.msra.mxu0 0
        %1691 = vmatprep.subr.bf16.mxu0 0
        %1692 = vmatpush1.bf16.xpose.msra.mxu0 0
        %1693 = vmatprep.subr.bf16.mxu0 0
        %1694 = vmatpush1.bf16.xpose.msra.mxu0 0
        %1695 = vmatprep.subr.bf16.mxu0 0
        %1696 = vmatpush1.bf16.xpose.msra.mxu0 0
        %1697 = vmatprep.subr.bf16.mxu0 0
        %1698 = vmatpush1.bf16.xpose.msra.mxu0 0
        %1699 = vmatprep.mubr.bf16.mxu0 0
        %1700 = vmatmul.mubr.bf16.gmra.mrb[0].mxu0 %v1662
        %v1701 = vpop.f32.mrb[0].mxu0
        %v1702 = vadd.f32 0.0, %v1701
        %v1703 = vpop.f32.mrb[0].mxu0
        %v1704 = vpop.f32.mrb[0].mxu0
        %v1705 = vadd.f32 0.0, %v1704
        %v1706 = vpop.f32.mrb[0].mxu0
        %1707 = vdwg.mxu0
        %1709 = vrot.lane.b32.xlu0 %v1492, 64
        %v1710 = vpop.permute.xlu0 %1709
        %v1712 = vsel %vm1510, %v1492, 0
        %v1715 = vsel %vm1510, %v1710, 0
        %1717 = vmatprep.subr.bf16.mxu0 0
        %1718 = vmatpush1.bf16.xpose.msra.mxu0 %v1715
        %1719 = vmatprep.subr.bf16.mxu0 0
        %1720 = vmatpush1.bf16.xpose.msra.mxu0 0
        %1721 = vmatprep.subr.bf16.mxu0 0
        %1722 = vmatpush1.bf16.xpose.msra.mxu0 0
        %1723 = vmatprep.subr.bf16.mxu0 0
        %1724 = vmatpush1.bf16.xpose.msra.mxu0 0
        %1725 = vmatprep.subr.bf16.mxu0 0
        %1726 = vmatpush1.bf16.xpose.msra.mxu0 0
        %1727 = vmatprep.subr.bf16.mxu0 0
        %1728 = vmatpush1.bf16.xpose.msra.mxu0 0
        %1729 = vmatprep.subr.bf16.mxu0 0
        %1730 = vmatpush1.bf16.xpose.msra.mxu0 0
        %1731 = vmatprep.subr.bf16.mxu0 0
        %1732 = vmatpush1.bf16.xpose.msra.mxu0 0
        %1733 = vmatprep.subr.bf16.mxu0 0
        %1734 = vmatpush1.bf16.xpose.msra.mxu0 0
        %1735 = vmatprep.subr.bf16.mxu0 0
        %1736 = vmatpush1.bf16.xpose.msra.mxu0 0
        %1737 = vmatprep.subr.bf16.mxu0 0
        %1738 = vmatpush1.bf16.xpose.msra.mxu0 0
        %1739 = vmatprep.subr.bf16.mxu0 0
        %1740 = vmatpush1.bf16.xpose.msra.mxu0 0
        %1741 = vmatprep.subr.bf16.mxu0 0
        %1742 = vmatpush1.bf16.xpose.msra.mxu0 0
        %1743 = vmatprep.subr.bf16.mxu0 0
        %1744 = vmatpush1.bf16.xpose.msra.mxu0 0
        %1745 = vmatprep.subr.bf16.mxu0 0
        %1746 = vmatpush1.bf16.xpose.msra.mxu0 0
        %1747 = vmatprep.subr.bf16.mxu0 0
        %1748 = vmatpush1.bf16.xpose.msra.mxu0 0
        %1749 = vmatprep.mubr.bf16.mxu0 0
        %1750 = vmatmul.mubr.bf16.gmra.mrb[0].mxu0 %v1712
        %v1751 = vpop.f32.mrb[0].mxu0
        %v1752 = vadd.f32 0.0, %v1751
        %v1753 = vpop.f32.mrb[0].mxu0
        %v1754 = vpop.f32.mrb[0].mxu0
        %v1755 = vadd.f32 0.0, %v1754
        %v1756 = vpop.f32.mrb[0].mxu0
        %1757 = vdwg.mxu0
        %1759 = vrot.lane.b32.xlu0 %v1493, 64
        %v1760 = vpop.permute.xlu0 %1759
        %v1762 = vsel %vm1510, %v1493, 0
        %v1765 = vsel %vm1510, %v1760, 0
        %1767 = vmatprep.subr.bf16.mxu0 0
        %1768 = vmatpush1.bf16.xpose.msra.mxu0 %v1765
        %1769 = vmatprep.subr.bf16.mxu0 0
        %1770 = vmatpush1.bf16.xpose.msra.mxu0 0
        %1771 = vmatprep.subr.bf16.mxu0 0
        %1772 = vmatpush1.bf16.xpose.msra.mxu0 0
        %1773 = vmatprep.subr.bf16.mxu0 0
        %1774 = vmatpush1.bf16.xpose.msra.mxu0 0
        %1775 = vmatprep.subr.bf16.mxu0 0
        %1776 = vmatpush1.bf16.xpose.msra.mxu0 0
        %1777 = vmatprep.subr.bf16.mxu0 0
        %1778 = vmatpush1.bf16.xpose.msra.mxu0 0
        %1779 = vmatprep.subr.bf16.mxu0 0
        %1780 = vmatpush1.bf16.xpose.msra.mxu0 0
        %1781 = vmatprep.subr.bf16.mxu0 0
        %1782 = vmatpush1.bf16.xpose.msra.mxu0 0
        %1783 = vmatprep.subr.bf16.mxu0 0
        %1784 = vmatpush1.bf16.xpose.msra.mxu0 0
        %1785 = vmatprep.subr.bf16.mxu0 0
        %1786 = vmatpush1.bf16.xpose.msra.mxu0 0
        %1787 = vmatprep.subr.bf16.mxu0 0
        %1788 = vmatpush1.bf16.xpose.msra.mxu0 0
        %1789 = vmatprep.subr.bf16.mxu0 0
        %1790 = vmatpush1.bf16.xpose.msra.mxu0 0
        %1791 = vmatprep.subr.bf16.mxu0 0
        %1792 = vmatpush1.bf16.xpose.msra.mxu0 0
        %1793 = vmatprep.subr.bf16.mxu0 0
        %1794 = vmatpush1.bf16.xpose.msra.mxu0 0
        %1795 = vmatprep.subr.bf16.mxu0 0
        %1796 = vmatpush1.bf16.xpose.msra.mxu0 0
        %1797 = vmatprep.subr.bf16.mxu0 0
        %1798 = vmatpush1.bf16.xpose.msra.mxu0 0
        %1799 = vmatprep.mubr.bf16.mxu0 0
        %1800 = vmatmul.mubr.bf16.gmra.mrb[0].mxu0 %v1762
        %v1801 = vpop.f32.mrb[0].mxu0
        %v1802 = vadd.f32 0.0, %v1801
        %v1803 = vpop.f32.mrb[0].mxu0
        %v1804 = vpop.f32.mrb[0].mxu0
        %v1805 = vadd.f32 0.0, %v1804
        %v1806 = vpop.f32.mrb[0].mxu0
        %1807 = vdwg.mxu0
        %v1808 = vmul.f32 %v1552, 0.25
        %v1809 = vmul.f32 %v1555, 0.25
        %v1810 = vmul.f32 %v1602, 0.25
        %v1811 = vmul.f32 %v1605, 0.25
        %v1812 = vmul.f32 %v1652, 0.25
        %v1813 = vmul.f32 %v1655, 0.25
        %v1814 = vmul.f32 %v1702, 0.25
        %v1815 = vmul.f32 %v1705, 0.25
        %v1816 = vmul.f32 %v1752, 0.25
        %v1817 = vmul.f32 %v1755, 0.25
        %v1818 = vmul.f32 %v1802, 0.25
        %v1819 = vmul.f32 %v1805, 0.25
        %v1820 = vsel %vm1505, 1, 0
        %v1821 = vsel %vm1506, 1, 0
        %vm1822 = vcmp.eq.s32.totalorder %v1820, 1
        %vm1823 = vcmp.eq.s32.totalorder %v1821, 1
        %v1824 = vsel %vm1822, %v1808, -1e+30
        %v1825 = vsel %vm1823, %v1809, -1e+30
        %v1826 = vsel %vm1822, %v1810, -1e+30
        %v1827 = vsel %vm1823, %v1811, -1e+30
        %v1828 = vsel %vm1822, %v1812, -1e+30
        %v1829 = vsel %vm1823, %v1813, -1e+30
        %v1830 = vsel %vm1822, %v1814, -1e+30
        %v1831 = vsel %vm1823, %v1815, -1e+30
        %v1832 = vsel %vm1822, %v1816, -1e+30
        %v1833 = vsel %vm1823, %v1817, -1e+30
        %v1834 = vsel %vm1822, %v1818, -1e+30
        %v1835 = vsel %vm1823, %v1819, -1e+30
        %v1836 = vsel %vm1510, %v1824, -inf
        %1837 = vmax.xlane.f32.xlu0 %v1836
        %v1838 = vpop.xlane.xlu0 %1837
        %v1839 = vsel %vm1510, %v1825, -inf
        %1840 = vmax.xlane.f32.xlu0 %v1839
        %v1841 = vpop.xlane.xlu0 %1840
        %v1842 = vsel %vm1510, %v1826, -inf
        %1843 = vmax.xlane.f32.xlu0 %v1842
        %v1844 = vpop.xlane.xlu0 %1843
        %v1845 = vsel %vm1510, %v1827, -inf
        %1846 = vmax.xlane.f32.xlu0 %v1845
        %v1847 = vpop.xlane.xlu0 %1846
        %v1848 = vsel %vm1510, %v1828, -inf
        %1849 = vmax.xlane.f32.xlu0 %v1848
        %v1850 = vpop.xlane.xlu0 %1849
        %v1851 = vsel %vm1510, %v1829, -inf
        %1852 = vmax.xlane.f32.xlu0 %v1851
        %v1853 = vpop.xlane.xlu0 %1852
        %v1854 = vsel %vm1510, %v1830, -inf
        %1855 = vmax.xlane.f32.xlu0 %v1854
        %v1856 = vpop.xlane.xlu0 %1855
        %v1857 = vsel %vm1510, %v1831, -inf
        %1858 = vmax.xlane.f32.xlu0 %v1857
        %v1859 = vpop.xlane.xlu0 %1858
        %v1860 = vsel %vm1510, %v1832, -inf
        %1861 = vmax.xlane.f32.xlu0 %v1860
        %v1862 = vpop.xlane.xlu0 %1861
        %v1863 = vsel %vm1510, %v1833, -inf
        %1864 = vmax.xlane.f32.xlu0 %v1863
        %v1865 = vpop.xlane.xlu0 %1864
        %v1866 = vsel %vm1510, %v1834, -inf
        %1867 = vmax.xlane.f32.xlu0 %v1866
        %v1868 = vpop.xlane.xlu0 %1867
        %v1869 = vsel %vm1510, %v1835, -inf
        %1870 = vmax.xlane.f32.xlu0 %v1869
        %v1871 = vpop.xlane.xlu0 %1870
        %v1872 = vsub.f32 %v1824, %v1838
        %v1873 = vsub.f32 %v1825, %v1841
        %v1874 = vsub.f32 %v1826, %v1844
        %v1875 = vsub.f32 %v1827, %v1847
        %v1876 = vsub.f32 %v1828, %v1850
        %v1877 = vsub.f32 %v1829, %v1853
        %v1878 = vsub.f32 %v1830, %v1856
        %v1879 = vsub.f32 %v1831, %v1859
        %v1880 = vsub.f32 %v1832, %v1862
        %v1881 = vsub.f32 %v1833, %v1865
        %v1882 = vsub.f32 %v1834, %v1868
        %v1883 = vsub.f32 %v1835, %v1871
        %v1884 = vmul.f32 %v1872, 1.442695
        %v1885 = vpow.pop %v1884
        %v1886 = vmul.f32 %v1873, 1.442695
        %v1887 = vpow.pop %v1886
        %v1888 = vmul.f32 %v1874, 1.442695
        %v1889 = vpow.pop %v1888
        %v1890 = vmul.f32 %v1875, 1.442695
        %v1891 = vpow.pop %v1890
        %v1892 = vmul.f32 %v1876, 1.442695
        %v1893 = vpow.pop %v1892
        %v1894 = vmul.f32 %v1877, 1.442695
        %v1895 = vpow.pop %v1894
        %v1896 = vmul.f32 %v1878, 1.442695
        %v1897 = vpow.pop %v1896
        %v1898 = vmul.f32 %v1879, 1.442695
        %v1899 = vpow.pop %v1898
        %v1900 = vmul.f32 %v1880, 1.442695
        %v1901 = vpow.pop %v1900
        %v1902 = vmul.f32 %v1881, 1.442695
        %v1903 = vpow.pop %v1902
        %v1904 = vmul.f32 %v1882, 1.442695
        %v1905 = vpow.pop %v1904
        %v1906 = vmul.f32 %v1883, 1.442695
        %v1907 = vpow.pop %v1906
        %v1908 = vsel %vm1510, %v1885, 0.0
        %1909 = vadd.xlane.f32.xlu0 %v1908
        %v1910 = vpop.xlane.xlu0 %1909
        %v1911 = vsel %vm1510, %v1887, 0.0
        %1912 = vadd.xlane.f32.xlu0 %v1911
        %v1913 = vpop.xlane.xlu0 %1912
        %v1914 = vsel %vm1510, %v1889, 0.0
        %1915 = vadd.xlane.f32.xlu0 %v1914
        %v1916 = vpop.xlane.xlu0 %1915
        %v1917 = vsel %vm1510, %v1891, 0.0
        %1918 = vadd.xlane.f32.xlu0 %v1917
        %v1919 = vpop.xlane.xlu0 %1918
        %v1920 = vsel %vm1510, %v1893, 0.0
        %1921 = vadd.xlane.f32.xlu0 %v1920
        %v1922 = vpop.xlane.xlu0 %1921
        %v1923 = vsel %vm1510, %v1895, 0.0
        %1924 = vadd.xlane.f32.xlu0 %v1923
        %v1925 = vpop.xlane.xlu0 %1924
        %v1926 = vsel %vm1510, %v1897, 0.0
        %1927 = vadd.xlane.f32.xlu0 %v1926
        %v1928 = vpop.xlane.xlu0 %1927
        %v1929 = vsel %vm1510, %v1899, 0.0
        %1930 = vadd.xlane.f32.xlu0 %v1929
        %v1931 = vpop.xlane.xlu0 %1930
        %v1932 = vsel %vm1510, %v1901, 0.0
        %1933 = vadd.xlane.f32.xlu0 %v1932
        %v1934 = vpop.xlane.xlu0 %1933
        %v1935 = vsel %vm1510, %v1903, 0.0
        %1936 = vadd.xlane.f32.xlu0 %v1935
        %v1937 = vpop.xlane.xlu0 %1936
        %v1938 = vsel %vm1510, %v1905, 0.0
        %1939 = vadd.xlane.f32.xlu0 %v1938
        %v1940 = vpop.xlane.xlu0 %1939
        %v1941 = vsel %vm1510, %v1907, 0.0
        %1942 = vadd.xlane.f32.xlu0 %v1941
        %v1943 = vpop.xlane.xlu0 %1942
        %v1944 = vrcp.pop %v1910
        %v1945 = vrcp.pop %v1913
        %v1946 = vrcp.pop %v1916
        %v1947 = vrcp.pop %v1919
        %v1948 = vrcp.pop %v1922
        %v1949 = vrcp.pop %v1925
        %v1950 = vrcp.pop %v1928
        %v1951 = vrcp.pop %v1931
        %v1952 = vrcp.pop %v1934
        %v1953 = vrcp.pop %v1937
        %v1954 = vrcp.pop %v1940
        %v1955 = vrcp.pop %v1943
        %v1956 = vmul.f32 %v1885, %v1944
        %v1957 = vmul.f32 %v1887, %v1945
        %v1958 = vmul.f32 %v1889, %v1946
        %v1959 = vmul.f32 %v1891, %v1947
        %v1960 = vmul.f32 %v1893, %v1948
        %v1961 = vmul.f32 %v1895, %v1949
        %v1962 = vmul.f32 %v1897, %v1950
        %v1963 = vmul.f32 %v1899, %v1951
        %v1964 = vmul.f32 %v1901, %v1952
        %v1965 = vmul.f32 %v1903, %v1953
        %v1966 = vmul.f32 %v1905, %v1954
        %v1967 = vmul.f32 %v1907, %v1955
        %v1968 = vpack.c.bf16 %v1957, %v1956
        %v1969 = vpack.c.bf16 %v1959, %v1958
        %v1970 = vpack.c.bf16 %v1961, %v1960
        %v1971 = vpack.c.bf16 %v1963, %v1962
        %v1972 = vpack.c.bf16 %v1965, %v1964
        %v1973 = vpack.c.bf16 %v1967, %v1966
        %v1975 = vsel %vm1510, %v1968, 0
        %1977 = vmatprep.subr.bf16.mxu0 0
        %1978 = vmatpush1.bf16.msra.mxu0 %v1494
        %1979 = vmatprep.subr.bf16.mxu0 0
        %1980 = vmatpush1.bf16.msra.mxu0 0
        %1981 = vmatprep.subr.bf16.mxu0 0
        %1982 = vmatpush1.bf16.msra.mxu0 0
        %1983 = vmatprep.subr.bf16.mxu0 0
        %1984 = vmatpush1.bf16.msra.mxu0 0
        %1985 = vmatprep.subr.bf16.mxu0 0
        %1986 = vmatpush1.bf16.msra.mxu0 0
        %1987 = vmatprep.subr.bf16.mxu0 0
        %1988 = vmatpush1.bf16.msra.mxu0 0
        %1989 = vmatprep.subr.bf16.mxu0 0
        %1990 = vmatpush1.bf16.msra.mxu0 0
        %1991 = vmatprep.subr.bf16.mxu0 0
        %1992 = vmatpush1.bf16.msra.mxu0 0
        %1993 = vmatprep.subr.bf16.mxu0 0
        %1994 = vmatpush1.bf16.msra.mxu0 0
        %1995 = vmatprep.subr.bf16.mxu0 0
        %1996 = vmatpush1.bf16.msra.mxu0 0
        %1997 = vmatprep.subr.bf16.mxu0 0
        %1998 = vmatpush1.bf16.msra.mxu0 0
        %1999 = vmatprep.subr.bf16.mxu0 0
        %2000 = vmatpush1.bf16.msra.mxu0 0
        %2001 = vmatprep.subr.bf16.mxu0 0
        %2002 = vmatpush1.bf16.msra.mxu0 0
        %2003 = vmatprep.subr.bf16.mxu0 0
        %2004 = vmatpush1.bf16.msra.mxu0 0
        %2005 = vmatprep.subr.bf16.mxu0 0
        %2006 = vmatpush1.bf16.msra.mxu0 0
        %2007 = vmatprep.subr.bf16.mxu0 0
        %2008 = vmatpush1.bf16.msra.mxu0 0
        %2009 = vmatprep.mubr.bf16.mxu0 0
        %2010 = vmatmul.mubr.bf16.gmra.mrb[0].mxu0 %v1975
        %v2011 = vpop.f32.mrb[0].mxu0
        %v2012 = vadd.f32 0.0, %v2011
        %v2013 = vpop.f32.mrb[0].mxu0
        %v2014 = vpop.f32.mrb[0].mxu0
        %v2015 = vadd.f32 0.0, %v2014
        %v2016 = vpop.f32.mrb[0].mxu0
        %2017 = vdwg.mxu0
        %v2019 = vsel %vm1510, %v1969, 0
        %2021 = vmatprep.subr.bf16.mxu0 0
        %2022 = vmatpush1.bf16.msra.mxu0 %v1495
        %2023 = vmatprep.subr.bf16.mxu0 0
        %2024 = vmatpush1.bf16.msra.mxu0 0
        %2025 = vmatprep.subr.bf16.mxu0 0
        %2026 = vmatpush1.bf16.msra.mxu0 0
        %2027 = vmatprep.subr.bf16.mxu0 0
        %2028 = vmatpush1.bf16.msra.mxu0 0
        %2029 = vmatprep.subr.bf16.mxu0 0
        %2030 = vmatpush1.bf16.msra.mxu0 0
        %2031 = vmatprep.subr.bf16.mxu0 0
        %2032 = vmatpush1.bf16.msra.mxu0 0
        %2033 = vmatprep.subr.bf16.mxu0 0
        %2034 = vmatpush1.bf16.msra.mxu0 0
        %2035 = vmatprep.subr.bf16.mxu0 0
        %2036 = vmatpush1.bf16.msra.mxu0 0
        %2037 = vmatprep.subr.bf16.mxu0 0
        %2038 = vmatpush1.bf16.msra.mxu0 0
        %2039 = vmatprep.subr.bf16.mxu0 0
        %2040 = vmatpush1.bf16.msra.mxu0 0
        %2041 = vmatprep.subr.bf16.mxu0 0
        %2042 = vmatpush1.bf16.msra.mxu0 0
        %2043 = vmatprep.subr.bf16.mxu0 0
        %2044 = vmatpush1.bf16.msra.mxu0 0
        %2045 = vmatprep.subr.bf16.mxu0 0
        %2046 = vmatpush1.bf16.msra.mxu0 0
        %2047 = vmatprep.subr.bf16.mxu0 0
        %2048 = vmatpush1.bf16.msra.mxu0 0
        %2049 = vmatprep.subr.bf16.mxu0 0
        %2050 = vmatpush1.bf16.msra.mxu0 0
        %2051 = vmatprep.subr.bf16.mxu0 0
        %2052 = vmatpush1.bf16.msra.mxu0 0
        %2053 = vmatprep.mubr.bf16.mxu0 0
        %2054 = vmatmul.mubr.bf16.gmra.mrb[0].mxu0 %v2019
        %v2055 = vpop.f32.mrb[0].mxu0
        %v2056 = vadd.f32 0.0, %v2055
        %v2057 = vpop.f32.mrb[0].mxu0
        %v2058 = vpop.f32.mrb[0].mxu0
        %v2059 = vadd.f32 0.0, %v2058
        %v2060 = vpop.f32.mrb[0].mxu0
        %2061 = vdwg.mxu0
        %v2063 = vsel %vm1510, %v1970, 0
        %2065 = vmatprep.subr.bf16.mxu0 0
        %2066 = vmatpush1.bf16.msra.mxu0 %v1496
        %2067 = vmatprep.subr.bf16.mxu0 0
        %2068 = vmatpush1.bf16.msra.mxu0 0
        %2069 = vmatprep.subr.bf16.mxu0 0
        %2070 = vmatpush1.bf16.msra.mxu0 0
        %2071 = vmatprep.subr.bf16.mxu0 0
        %2072 = vmatpush1.bf16.msra.mxu0 0
        %2073 = vmatprep.subr.bf16.mxu0 0
        %2074 = vmatpush1.bf16.msra.mxu0 0
        %2075 = vmatprep.subr.bf16.mxu0 0
        %2076 = vmatpush1.bf16.msra.mxu0 0
        %2077 = vmatprep.subr.bf16.mxu0 0
        %2078 = vmatpush1.bf16.msra.mxu0 0
        %2079 = vmatprep.subr.bf16.mxu0 0
        %2080 = vmatpush1.bf16.msra.mxu0 0
        %2081 = vmatprep.subr.bf16.mxu0 0
        %2082 = vmatpush1.bf16.msra.mxu0 0
        %2083 = vmatprep.subr.bf16.mxu0 0
        %2084 = vmatpush1.bf16.msra.mxu0 0
        %2085 = vmatprep.subr.bf16.mxu0 0
        %2086 = vmatpush1.bf16.msra.mxu0 0
        %2087 = vmatprep.subr.bf16.mxu0 0
        %2088 = vmatpush1.bf16.msra.mxu0 0
        %2089 = vmatprep.subr.bf16.mxu0 0
        %2090 = vmatpush1.bf16.msra.mxu0 0
        %2091 = vmatprep.subr.bf16.mxu0 0
        %2092 = vmatpush1.bf16.msra.mxu0 0
        %2093 = vmatprep.subr.bf16.mxu0 0
        %2094 = vmatpush1.bf16.msra.mxu0 0
        %2095 = vmatprep.subr.bf16.mxu0 0
        %2096 = vmatpush1.bf16.msra.mxu0 0
        %2097 = vmatprep.mubr.bf16.mxu0 0
        %2098 = vmatmul.mubr.bf16.gmra.mrb[0].mxu0 %v2063
        %v2099 = vpop.f32.mrb[0].mxu0
        %v2100 = vadd.f32 0.0, %v2099
        %v2101 = vpop.f32.mrb[0].mxu0
        %v2102 = vpop.f32.mrb[0].mxu0
        %v2103 = vadd.f32 0.0, %v2102
        %v2104 = vpop.f32.mrb[0].mxu0
        %2105 = vdwg.mxu0
        %v2107 = vsel %vm1510, %v1971, 0
        %2109 = vmatprep.subr.bf16.mxu0 0
        %2110 = vmatpush1.bf16.msra.mxu0 %v1497
        %2111 = vmatprep.subr.bf16.mxu0 0
        %2112 = vmatpush1.bf16.msra.mxu0 0
        %2113 = vmatprep.subr.bf16.mxu0 0
        %2114 = vmatpush1.bf16.msra.mxu0 0
        %2115 = vmatprep.subr.bf16.mxu0 0
        %2116 = vmatpush1.bf16.msra.mxu0 0
        %2117 = vmatprep.subr.bf16.mxu0 0
        %2118 = vmatpush1.bf16.msra.mxu0 0
        %2119 = vmatprep.subr.bf16.mxu0 0
        %2120 = vmatpush1.bf16.msra.mxu0 0
        %2121 = vmatprep.subr.bf16.mxu0 0
        %2122 = vmatpush1.bf16.msra.mxu0 0
        %2123 = vmatprep.subr.bf16.mxu0 0
        %2124 = vmatpush1.bf16.msra.mxu0 0
        %2125 = vmatprep.subr.bf16.mxu0 0
        %2126 = vmatpush1.bf16.msra.mxu0 0
        %2127 = vmatprep.subr.bf16.mxu0 0
        %2128 = vmatpush1.bf16.msra.mxu0 0
        %2129 = vmatprep.subr.bf16.mxu0 0
        %2130 = vmatpush1.bf16.msra.mxu0 0
        %2131 = vmatprep.subr.bf16.mxu0 0
        %2132 = vmatpush1.bf16.msra.mxu0 0
        %2133 = vmatprep.subr.bf16.mxu0 0
        %2134 = vmatpush1.bf16.msra.mxu0 0
        %2135 = vmatprep.subr.bf16.mxu0 0
        %2136 = vmatpush1.bf16.msra.mxu0 0
        %2137 = vmatprep.subr.bf16.mxu0 0
        %2138 = vmatpush1.bf16.msra.mxu0 0
        %2139 = vmatprep.subr.bf16.mxu0 0
        %2140 = vmatpush1.bf16.msra.mxu0 0
        %2141 = vmatprep.mubr.bf16.mxu0 0
        %2142 = vmatmul.mubr.bf16.gmra.mrb[0].mxu0 %v2107
        %v2143 = vpop.f32.mrb[0].mxu0
        %v2144 = vadd.f32 0.0, %v2143
        %v2145 = vpop.f32.mrb[0].mxu0
        %v2146 = vpop.f32.mrb[0].mxu0
        %v2147 = vadd.f32 0.0, %v2146
        %v2148 = vpop.f32.mrb[0].mxu0
        %2149 = vdwg.mxu0
        %v2151 = vsel %vm1510, %v1972, 0
        %2153 = vmatprep.subr.bf16.mxu0 0
        %2154 = vmatpush1.bf16.msra.mxu0 %v1498
        %2155 = vmatprep.subr.bf16.mxu0 0
        %2156 = vmatpush1.bf16.msra.mxu0 0
        %2157 = vmatprep.subr.bf16.mxu0 0
        %2158 = vmatpush1.bf16.msra.mxu0 0
        %2159 = vmatprep.subr.bf16.mxu0 0
        %2160 = vmatpush1.bf16.msra.mxu0 0
        %2161 = vmatprep.subr.bf16.mxu0 0
        %2162 = vmatpush1.bf16.msra.mxu0 0
        %2163 = vmatprep.subr.bf16.mxu0 0
        %2164 = vmatpush1.bf16.msra.mxu0 0
        %2165 = vmatprep.subr.bf16.mxu0 0
        %2166 = vmatpush1.bf16.msra.mxu0 0
        %2167 = vmatprep.subr.bf16.mxu0 0
        %2168 = vmatpush1.bf16.msra.mxu0 0
        %2169 = vmatprep.subr.bf16.mxu0 0
        %2170 = vmatpush1.bf16.msra.mxu0 0
        %2171 = vmatprep.subr.bf16.mxu0 0
        %2172 = vmatpush1.bf16.msra.mxu0 0
        %2173 = vmatprep.subr.bf16.mxu0 0
        %2174 = vmatpush1.bf16.msra.mxu0 0
        %2175 = vmatprep.subr.bf16.mxu0 0
        %2176 = vmatpush1.bf16.msra.mxu0 0
        %2177 = vmatprep.subr.bf16.mxu0 0
        %2178 = vmatpush1.bf16.msra.mxu0 0
        %2179 = vmatprep.subr.bf16.mxu0 0
        %2180 = vmatpush1.bf16.msra.mxu0 0
        %2181 = vmatprep.subr.bf16.mxu0 0
        %2182 = vmatpush1.bf16.msra.mxu0 0
        %2183 = vmatprep.subr.bf16.mxu0 0
        %2184 = vmatpush1.bf16.msra.mxu0 0
        %2185 = vmatprep.mubr.bf16.mxu0 0
        %2186 = vmatmul.mubr.bf16.gmra.mrb[0].mxu0 %v2151
        %v2187 = vpop.f32.mrb[0].mxu0
        %v2188 = vadd.f32 0.0, %v2187
        %v2189 = vpop.f32.mrb[0].mxu0
        %v2190 = vpop.f32.mrb[0].mxu0
        %v2191 = vadd.f32 0.0, %v2190
        %v2192 = vpop.f32.mrb[0].mxu0
        %2193 = vdwg.mxu0
        %v2195 = vsel %vm1510, %v1973, 0
        %2197 = vmatprep.subr.bf16.mxu0 0
        %2198 = vmatpush1.bf16.msra.mxu0 %v1499
        %2199 = vmatprep.subr.bf16.mxu0 0
        %2200 = vmatpush1.bf16.msra.mxu0 0
        %2201 = vmatprep.subr.bf16.mxu0 0
        %2202 = vmatpush1.bf16.msra.mxu0 0
        %2203 = vmatprep.subr.bf16.mxu0 0
        %2204 = vmatpush1.bf16.msra.mxu0 0
        %2205 = vmatprep.subr.bf16.mxu0 0
        %2206 = vmatpush1.bf16.msra.mxu0 0
        %2207 = vmatprep.subr.bf16.mxu0 0
        %2208 = vmatpush1.bf16.msra.mxu0 0
        %2209 = vmatprep.subr.bf16.mxu0 0
        %2210 = vmatpush1.bf16.msra.mxu0 0
        %2211 = vmatprep.subr.bf16.mxu0 0
        %2212 = vmatpush1.bf16.msra.mxu0 0
        %2213 = vmatprep.subr.bf16.mxu0 0
        %2214 = vmatpush1.bf16.msra.mxu0 0
        %2215 = vmatprep.subr.bf16.mxu0 0
        %2216 = vmatpush1.bf16.msra.mxu0 0
        %2217 = vmatprep.subr.bf16.mxu0 0
        %2218 = vmatpush1.bf16.msra.mxu0 0
        %2219 = vmatprep.subr.bf16.mxu0 0
        %2220 = vmatpush1.bf16.msra.mxu0 0
        %2221 = vmatprep.subr.bf16.mxu0 0
        %2222 = vmatpush1.bf16.msra.mxu0 0
        %2223 = vmatprep.subr.bf16.mxu0 0
        %2224 = vmatpush1.bf16.msra.mxu0 0
        %2225 = vmatprep.subr.bf16.mxu0 0
        %2226 = vmatpush1.bf16.msra.mxu0 0
        %2227 = vmatprep.subr.bf16.mxu0 0
        %2228 = vmatpush1.bf16.msra.mxu0 0
        %2229 = vmatprep.mubr.bf16.mxu0 0
        %2230 = vmatmul.mubr.bf16.gmra.mrb[0].mxu0 %v2195
        %v2231 = vpop.f32.mrb[0].mxu0
        %v2232 = vadd.f32 0.0, %v2231
        %v2233 = vpop.f32.mrb[0].mxu0
        %v2234 = vpop.f32.mrb[0].mxu0
        %v2235 = vadd.f32 0.0, %v2234
        %v2236 = vpop.f32.mrb[0].mxu0
        %2237 = vdwg.mxu0
        %2238 = vrot.lane.b32.xlu0 %v1488, 112
        %v2239 = vpop.permute.xlu0 %2238
        %2240 = vrot.lane.b32.xlu0 %v1488, 48
        %v2241 = vpop.permute.xlu0 %2240
        %v2243 = vsel %vm1510, %v2239, 0
        %v2246 = vsel %vm1510, %v2241, 0
        %2248 = vmatprep.subr.bf16.mxu0 0
        %2249 = vmatpush1.bf16.xpose.msra.mxu0 %v2246
        %2250 = vmatprep.subr.bf16.mxu0 0
        %2251 = vmatpush1.bf16.xpose.msra.mxu0 0
        %2252 = vmatprep.subr.bf16.mxu0 0
        %2253 = vmatpush1.bf16.xpose.msra.mxu0 0
        %2254 = vmatprep.subr.bf16.mxu0 0
        %2255 = vmatpush1.bf16.xpose.msra.mxu0 0
        %2256 = vmatprep.subr.bf16.mxu0 0
        %2257 = vmatpush1.bf16.xpose.msra.mxu0 0
        %2258 = vmatprep.subr.bf16.mxu0 0
        %2259 = vmatpush1.bf16.xpose.msra.mxu0 0
        %2260 = vmatprep.subr.bf16.mxu0 0
        %2261 = vmatpush1.bf16.xpose.msra.mxu0 0
        %2262 = vmatprep.subr.bf16.mxu0 0
        %2263 = vmatpush1.bf16.xpose.msra.mxu0 0
        %2264 = vmatprep.subr.bf16.mxu0 0
        %2265 = vmatpush1.bf16.xpose.msra.mxu0 0
        %2266 = vmatprep.subr.bf16.mxu0 0
        %2267 = vmatpush1.bf16.xpose.msra.mxu0 0
        %2268 = vmatprep.subr.bf16.mxu0 0
        %2269 = vmatpush1.bf16.xpose.msra.mxu0 0
        %2270 = vmatprep.subr.bf16.mxu0 0
        %2271 = vmatpush1.bf16.xpose.msra.mxu0 0
        %2272 = vmatprep.subr.bf16.mxu0 0
        %2273 = vmatpush1.bf16.xpose.msra.mxu0 0
        %2274 = vmatprep.subr.bf16.mxu0 0
        %2275 = vmatpush1.bf16.xpose.msra.mxu0 0
        %2276 = vmatprep.subr.bf16.mxu0 0
        %2277 = vmatpush1.bf16.xpose.msra.mxu0 0
        %2278 = vmatprep.subr.bf16.mxu0 0
        %2279 = vmatpush1.bf16.xpose.msra.mxu0 0
        %2280 = vmatprep.mubr.bf16.mxu0 0
        %2281 = vmatmul.mubr.bf16.gmra.mrb[0].mxu0 %v2243
        %v2282 = vpop.f32.mrb[0].mxu0
        %v2283 = vadd.f32 0.0, %v2282
        %v2284 = vpop.f32.mrb[0].mxu0
        %v2285 = vpop.f32.mrb[0].mxu0
        %v2286 = vadd.f32 0.0, %v2285
        %v2287 = vpop.f32.mrb[0].mxu0
        %2288 = vdwg.mxu0
        %2289 = vrot.lane.b32.xlu0 %v1489, 112
        %v2290 = vpop.permute.xlu0 %2289
        %2291 = vrot.lane.b32.xlu0 %v1489, 48
        %v2292 = vpop.permute.xlu0 %2291
        %v2294 = vsel %vm1510, %v2290, 0
        %v2297 = vsel %vm1510, %v2292, 0
        %2299 = vmatprep.subr.bf16.mxu0 0
        %2300 = vmatpush1.bf16.xpose.msra.mxu0 %v2297
        %2301 = vmatprep.subr.bf16.mxu0 0
        %2302 = vmatpush1.bf16.xpose.msra.mxu0 0
        %2303 = vmatprep.subr.bf16.mxu0 0
        %2304 = vmatpush1.bf16.xpose.msra.mxu0 0
        %2305 = vmatprep.subr.bf16.mxu0 0
        %2306 = vmatpush1.bf16.xpose.msra.mxu0 0
        %2307 = vmatprep.subr.bf16.mxu0 0
        %2308 = vmatpush1.bf16.xpose.msra.mxu0 0
        %2309 = vmatprep.subr.bf16.mxu0 0
        %2310 = vmatpush1.bf16.xpose.msra.mxu0 0
        %2311 = vmatprep.subr.bf16.mxu0 0
        %2312 = vmatpush1.bf16.xpose.msra.mxu0 0
        %2313 = vmatprep.subr.bf16.mxu0 0
        %2314 = vmatpush1.bf16.xpose.msra.mxu0 0
        %2315 = vmatprep.subr.bf16.mxu0 0
        %2316 = vmatpush1.bf16.xpose.msra.mxu0 0
        %2317 = vmatprep.subr.bf16.mxu0 0
        %2318 = vmatpush1.bf16.xpose.msra.mxu0 0
        %2319 = vmatprep.subr.bf16.mxu0 0
        %2320 = vmatpush1.bf16.xpose.msra.mxu0 0
        %2321 = vmatprep.subr.bf16.mxu0 0
        %2322 = vmatpush1.bf16.xpose.msra.mxu0 0
        %2323 = vmatprep.subr.bf16.mxu0 0
        %2324 = vmatpush1.bf16.xpose.msra.mxu0 0
        %2325 = vmatprep.subr.bf16.mxu0 0
        %2326 = vmatpush1.bf16.xpose.msra.mxu0 0
        %2327 = vmatprep.subr.bf16.mxu0 0
        %2328 = vmatpush1.bf16.xpose.msra.mxu0 0
        %2329 = vmatprep.subr.bf16.mxu0 0
        %2330 = vmatpush1.bf16.xpose.msra.mxu0 0
        %2331 = vmatprep.mubr.bf16.mxu0 0
        %2332 = vmatmul.mubr.bf16.gmra.mrb[0].mxu0 %v2294
        %v2333 = vpop.f32.mrb[0].mxu0
        %v2334 = vadd.f32 0.0, %v2333
        %v2335 = vpop.f32.mrb[0].mxu0
        %v2336 = vpop.f32.mrb[0].mxu0
        %v2337 = vadd.f32 0.0, %v2336
        %v2338 = vpop.f32.mrb[0].mxu0
        %2339 = vdwg.mxu0
        %2340 = vrot.lane.b32.xlu0 %v1490, 112
        %v2341 = vpop.permute.xlu0 %2340
        %2342 = vrot.lane.b32.xlu0 %v1490, 48
        %v2343 = vpop.permute.xlu0 %2342
        %v2345 = vsel %vm1510, %v2341, 0
        %v2348 = vsel %vm1510, %v2343, 0
        %2350 = vmatprep.subr.bf16.mxu0 0
        %2351 = vmatpush1.bf16.xpose.msra.mxu0 %v2348
        %2352 = vmatprep.subr.bf16.mxu0 0
        %2353 = vmatpush1.bf16.xpose.msra.mxu0 0
        %2354 = vmatprep.subr.bf16.mxu0 0
        %2355 = vmatpush1.bf16.xpose.msra.mxu0 0
        %2356 = vmatprep.subr.bf16.mxu0 0
        %2357 = vmatpush1.bf16.xpose.msra.mxu0 0
        %2358 = vmatprep.subr.bf16.mxu0 0
        %2359 = vmatpush1.bf16.xpose.msra.mxu0 0
        %2360 = vmatprep.subr.bf16.mxu0 0
        %2361 = vmatpush1.bf16.xpose.msra.mxu0 0
        %2362 = vmatprep.subr.bf16.mxu0 0
        %2363 = vmatpush1.bf16.xpose.msra.mxu0 0
        %2364 = vmatprep.subr.bf16.mxu0 0
        %2365 = vmatpush1.bf16.xpose.msra.mxu0 0
        %2366 = vmatprep.subr.bf16.mxu0 0
        %2367 = vmatpush1.bf16.xpose.msra.mxu0 0
        %2368 = vmatprep.subr.bf16.mxu0 0
        %2369 = vmatpush1.bf16.xpose.msra.mxu0 0
        %2370 = vmatprep.subr.bf16.mxu0 0
        %2371 = vmatpush1.bf16.xpose.msra.mxu0 0
        %2372 = vmatprep.subr.bf16.mxu0 0
        %2373 = vmatpush1.bf16.xpose.msra.mxu0 0
        %2374 = vmatprep.subr.bf16.mxu0 0
        %2375 = vmatpush1.bf16.xpose.msra.mxu0 0
        %2376 = vmatprep.subr.bf16.mxu0 0
        %2377 = vmatpush1.bf16.xpose.msra.mxu0 0
        %2378 = vmatprep.subr.bf16.mxu0 0
        %2379 = vmatpush1.bf16.xpose.msra.mxu0 0
        %2380 = vmatprep.subr.bf16.mxu0 0
        %2381 = vmatpush1.bf16.xpose.msra.mxu0 0
        %2382 = vmatprep.mubr.bf16.mxu0 0
        %2383 = vmatmul.mubr.bf16.gmra.mrb[0].mxu0 %v2345
        %v2384 = vpop.f32.mrb[0].mxu0
        %v2385 = vadd.f32 0.0, %v2384
        %v2386 = vpop.f32.mrb[0].mxu0
        %v2387 = vpop.f32.mrb[0].mxu0
        %v2388 = vadd.f32 0.0, %v2387
        %v2389 = vpop.f32.mrb[0].mxu0
        %2390 = vdwg.mxu0
        %2391 = vrot.lane.b32.xlu0 %v1491, 112
        %v2392 = vpop.permute.xlu0 %2391
        %2393 = vrot.lane.b32.xlu0 %v1491, 48
        %v2394 = vpop.permute.xlu0 %2393
        %v2396 = vsel %vm1510, %v2392, 0
        %v2399 = vsel %vm1510, %v2394, 0
        %2401 = vmatprep.subr.bf16.mxu0 0
        %2402 = vmatpush1.bf16.xpose.msra.mxu0 %v2399
        %2403 = vmatprep.subr.bf16.mxu0 0
        %2404 = vmatpush1.bf16.xpose.msra.mxu0 0
        %2405 = vmatprep.subr.bf16.mxu0 0
        %2406 = vmatpush1.bf16.xpose.msra.mxu0 0
        %2407 = vmatprep.subr.bf16.mxu0 0
        %2408 = vmatpush1.bf16.xpose.msra.mxu0 0
        %2409 = vmatprep.subr.bf16.mxu0 0
        %2410 = vmatpush1.bf16.xpose.msra.mxu0 0
        %2411 = vmatprep.subr.bf16.mxu0 0
        %2412 = vmatpush1.bf16.xpose.msra.mxu0 0
        %2413 = vmatprep.subr.bf16.mxu0 0
        %2414 = vmatpush1.bf16.xpose.msra.mxu0 0
        %2415 = vmatprep.subr.bf16.mxu0 0
        %2416 = vmatpush1.bf16.xpose.msra.mxu0 0
        %2417 = vmatprep.subr.bf16.mxu0 0
        %2418 = vmatpush1.bf16.xpose.msra.mxu0 0
        %2419 = vmatprep.subr.bf16.mxu0 0
        %2420 = vmatpush1.bf16.xpose.msra.mxu0 0
        %2421 = vmatprep.subr.bf16.mxu0 0
        %2422 = vmatpush1.bf16.xpose.msra.mxu0 0
        %2423 = vmatprep.subr.bf16.mxu0 0
        %2424 = vmatpush1.bf16.xpose.msra.mxu0 0
        %2425 = vmatprep.subr.bf16.mxu0 0
        %2426 = vmatpush1.bf16.xpose.msra.mxu0 0
        %2427 = vmatprep.subr.bf16.mxu0 0
        %2428 = vmatpush1.bf16.xpose.msra.mxu0 0
        %2429 = vmatprep.subr.bf16.mxu0 0
        %2430 = vmatpush1.bf16.xpose.msra.mxu0 0
        %2431 = vmatprep.subr.bf16.mxu0 0
        %2432 = vmatpush1.bf16.xpose.msra.mxu0 0
        %2433 = vmatprep.mubr.bf16.mxu0 0
        %2434 = vmatmul.mubr.bf16.gmra.mrb[0].mxu0 %v2396
        %v2435 = vpop.f32.mrb[0].mxu0
        %v2436 = vadd.f32 0.0, %v2435
        %v2437 = vpop.f32.mrb[0].mxu0
        %v2438 = vpop.f32.mrb[0].mxu0
        %v2439 = vadd.f32 0.0, %v2438
        %v2440 = vpop.f32.mrb[0].mxu0
        %2441 = vdwg.mxu0
        %2442 = vrot.lane.b32.xlu0 %v1492, 112
        %v2443 = vpop.permute.xlu0 %2442
        %2444 = vrot.lane.b32.xlu0 %v1492, 48
        %v2445 = vpop.permute.xlu0 %2444
        %v2447 = vsel %vm1510, %v2443, 0
        %v2450 = vsel %vm1510, %v2445, 0
        %2452 = vmatprep.subr.bf16.mxu0 0
        %2453 = vmatpush1.bf16.xpose.msra.mxu0 %v2450
        %2454 = vmatprep.subr.bf16.mxu0 0
        %2455 = vmatpush1.bf16.xpose.msra.mxu0 0
        %2456 = vmatprep.subr.bf16.mxu0 0
        %2457 = vmatpush1.bf16.xpose.msra.mxu0 0
        %2458 = vmatprep.subr.bf16.mxu0 0
        %2459 = vmatpush1.bf16.xpose.msra.mxu0 0
        %2460 = vmatprep.subr.bf16.mxu0 0
        %2461 = vmatpush1.bf16.xpose.msra.mxu0 0
        %2462 = vmatprep.subr.bf16.mxu0 0
        %2463 = vmatpush1.bf16.xpose.msra.mxu0 0
        %2464 = vmatprep.subr.bf16.mxu0 0
        %2465 = vmatpush1.bf16.xpose.msra.mxu0 0
        %2466 = vmatprep.subr.bf16.mxu0 0
        %2467 = vmatpush1.bf16.xpose.msra.mxu0 0
        %2468 = vmatprep.subr.bf16.mxu0 0
        %2469 = vmatpush1.bf16.xpose.msra.mxu0 0
        %2470 = vmatprep.subr.bf16.mxu0 0
        %2471 = vmatpush1.bf16.xpose.msra.mxu0 0
        %2472 = vmatprep.subr.bf16.mxu0 0
        %2473 = vmatpush1.bf16.xpose.msra.mxu0 0
        %2474 = vmatprep.subr.bf16.mxu0 0
        %2475 = vmatpush1.bf16.xpose.msra.mxu0 0
        %2476 = vmatprep.subr.bf16.mxu0 0
        %2477 = vmatpush1.bf16.xpose.msra.mxu0 0
        %2478 = vmatprep.subr.bf16.mxu0 0
        %2479 = vmatpush1.bf16.xpose.msra.mxu0 0
        %2480 = vmatprep.subr.bf16.mxu0 0
        %2481 = vmatpush1.bf16.xpose.msra.mxu0 0
        %2482 = vmatprep.subr.bf16.mxu0 0
        %2483 = vmatpush1.bf16.xpose.msra.mxu0 0
        %2484 = vmatprep.mubr.bf16.mxu0 0
        %2485 = vmatmul.mubr.bf16.gmra.mrb[0].mxu0 %v2447
        %v2486 = vpop.f32.mrb[0].mxu0
        %v2487 = vadd.f32 0.0, %v2486
        %v2488 = vpop.f32.mrb[0].mxu0
        %v2489 = vpop.f32.mrb[0].mxu0
        %v2490 = vadd.f32 0.0, %v2489
        %v2491 = vpop.f32.mrb[0].mxu0
        %2492 = vdwg.mxu0
        %2493 = vrot.lane.b32.xlu0 %v1493, 112
        %v2494 = vpop.permute.xlu0 %2493
        %2495 = vrot.lane.b32.xlu0 %v1493, 48
        %v2496 = vpop.permute.xlu0 %2495
        %v2498 = vsel %vm1510, %v2494, 0
        %v2501 = vsel %vm1510, %v2496, 0
        %2503 = vmatprep.subr.bf16.mxu0 0
        %2504 = vmatpush1.bf16.xpose.msra.mxu0 %v2501
        %2505 = vmatprep.subr.bf16.mxu0 0
        %2506 = vmatpush1.bf16.xpose.msra.mxu0 0
        %2507 = vmatprep.subr.bf16.mxu0 0
        %2508 = vmatpush1.bf16.xpose.msra.mxu0 0
        %2509 = vmatprep.subr.bf16.mxu0 0
        %2510 = vmatpush1.bf16.xpose.msra.mxu0 0
        %2511 = vmatprep.subr.bf16.mxu0 0
        %2512 = vmatpush1.bf16.xpose.msra.mxu0 0
        %2513 = vmatprep.subr.bf16.mxu0 0
        %2514 = vmatpush1.bf16.xpose.msra.mxu0 0
        %2515 = vmatprep.subr.bf16.mxu0 0
        %2516 = vmatpush1.bf16.xpose.msra.mxu0 0
        %2517 = vmatprep.subr.bf16.mxu0 0
        %2518 = vmatpush1.bf16.xpose.msra.mxu0 0
        %2519 = vmatprep.subr.bf16.mxu0 0
        %2520 = vmatpush1.bf16.xpose.msra.mxu0 0
        %2521 = vmatprep.subr.bf16.mxu0 0
        %2522 = vmatpush1.bf16.xpose.msra.mxu0 0
        %2523 = vmatprep.subr.bf16.mxu0 0
        %2524 = vmatpush1.bf16.xpose.msra.mxu0 0
        %2525 = vmatprep.subr.bf16.mxu0 0
        %2526 = vmatpush1.bf16.xpose.msra.mxu0 0
        %2527 = vmatprep.subr.bf16.mxu0 0
        %2528 = vmatpush1.bf16.xpose.msra.mxu0 0
        %2529 = vmatprep.subr.bf16.mxu0 0
        %2530 = vmatpush1.bf16.xpose.msra.mxu0 0
        %2531 = vmatprep.subr.bf16.mxu0 0
        %2532 = vmatpush1.bf16.xpose.msra.mxu0 0
        %2533 = vmatprep.subr.bf16.mxu0 0
        %2534 = vmatpush1.bf16.xpose.msra.mxu0 0
        %2535 = vmatprep.mubr.bf16.mxu0 0
        %2536 = vmatmul.mubr.bf16.gmra.mrb[0].mxu0 %v2498
        %v2537 = vpop.f32.mrb[0].mxu0
        %v2538 = vadd.f32 0.0, %v2537
        %v2539 = vpop.f32.mrb[0].mxu0
        %v2540 = vpop.f32.mrb[0].mxu0
        %v2541 = vadd.f32 0.0, %v2540
        %v2542 = vpop.f32.mrb[0].mxu0
        %2543 = vdwg.mxu0
        %v2544 = vmul.f32 %v2283, 0.25
        %v2545 = vmul.f32 %v2286, 0.25
        %v2546 = vmul.f32 %v2334, 0.25
        %v2547 = vmul.f32 %v2337, 0.25
        %v2548 = vmul.f32 %v2385, 0.25
        %v2549 = vmul.f32 %v2388, 0.25
        %v2550 = vmul.f32 %v2436, 0.25
        %v2551 = vmul.f32 %v2439, 0.25
        %v2552 = vmul.f32 %v2487, 0.25
        %v2553 = vmul.f32 %v2490, 0.25
        %v2554 = vmul.f32 %v2538, 0.25
        %v2555 = vmul.f32 %v2541, 0.25
        %v2556 = vsel %vm1822, %v2544, -1e+30
        %v2557 = vsel %vm1823, %v2545, -1e+30
        %v2558 = vsel %vm1822, %v2546, -1e+30
        %v2559 = vsel %vm1823, %v2547, -1e+30
        %v2560 = vsel %vm1822, %v2548, -1e+30
        %v2561 = vsel %vm1823, %v2549, -1e+30
        %v2562 = vsel %vm1822, %v2550, -1e+30
        %v2563 = vsel %vm1823, %v2551, -1e+30
        %v2564 = vsel %vm1822, %v2552, -1e+30
        %v2565 = vsel %vm1823, %v2553, -1e+30
        %v2566 = vsel %vm1822, %v2554, -1e+30
        %v2567 = vsel %vm1823, %v2555, -1e+30
        %v2568 = vsel %vm1510, %v2556, -inf
        %2569 = vmax.xlane.f32.xlu0 %v2568
        %v2570 = vpop.xlane.xlu0 %2569
        %v2571 = vsel %vm1510, %v2557, -inf
        %2572 = vmax.xlane.f32.xlu0 %v2571
        %v2573 = vpop.xlane.xlu0 %2572
        %v2574 = vsel %vm1510, %v2558, -inf
        %2575 = vmax.xlane.f32.xlu0 %v2574
        %v2576 = vpop.xlane.xlu0 %2575
        %v2577 = vsel %vm1510, %v2559, -inf
        %2578 = vmax.xlane.f32.xlu0 %v2577
        %v2579 = vpop.xlane.xlu0 %2578
        %v2580 = vsel %vm1510, %v2560, -inf
        %2581 = vmax.xlane.f32.xlu0 %v2580
        %v2582 = vpop.xlane.xlu0 %2581
        %v2583 = vsel %vm1510, %v2561, -inf
        %2584 = vmax.xlane.f32.xlu0 %v2583
        %v2585 = vpop.xlane.xlu0 %2584
        %v2586 = vsel %vm1510, %v2562, -inf
        %2587 = vmax.xlane.f32.xlu0 %v2586
        %v2588 = vpop.xlane.xlu0 %2587
        %v2589 = vsel %vm1510, %v2563, -inf
        %2590 = vmax.xlane.f32.xlu0 %v2589
        %v2591 = vpop.xlane.xlu0 %2590
        %v2592 = vsel %vm1510, %v2564, -inf
        %2593 = vmax.xlane.f32.xlu0 %v2592
        %v2594 = vpop.xlane.xlu0 %2593
        %v2595 = vsel %vm1510, %v2565, -inf
        %2596 = vmax.xlane.f32.xlu0 %v2595
        %v2597 = vpop.xlane.xlu0 %2596
        %v2598 = vsel %vm1510, %v2566, -inf
        %2599 = vmax.xlane.f32.xlu0 %v2598
        %v2600 = vpop.xlane.xlu0 %2599
        %v2601 = vsel %vm1510, %v2567, -inf
        %2602 = vmax.xlane.f32.xlu0 %v2601
        %v2603 = vpop.xlane.xlu0 %2602
        %v2604 = vsub.f32 %v2556, %v2570
        %v2605 = vsub.f32 %v2557, %v2573
        %v2606 = vsub.f32 %v2558, %v2576
        %v2607 = vsub.f32 %v2559, %v2579
        %v2608 = vsub.f32 %v2560, %v2582
        %v2609 = vsub.f32 %v2561, %v2585
        %v2610 = vsub.f32 %v2562, %v2588
        %v2611 = vsub.f32 %v2563, %v2591
        %v2612 = vsub.f32 %v2564, %v2594
        %v2613 = vsub.f32 %v2565, %v2597
        %v2614 = vsub.f32 %v2566, %v2600
        %v2615 = vsub.f32 %v2567, %v2603
        %v2616 = vmul.f32 %v2604, 1.442695
        %v2617 = vpow.pop %v2616
        %v2618 = vmul.f32 %v2605, 1.442695
        %v2619 = vpow.pop %v2618
        %v2620 = vmul.f32 %v2606, 1.442695
        %v2621 = vpow.pop %v2620
        %v2622 = vmul.f32 %v2607, 1.442695
        %v2623 = vpow.pop %v2622
        %v2624 = vmul.f32 %v2608, 1.442695
        %v2625 = vpow.pop %v2624
        %v2626 = vmul.f32 %v2609, 1.442695
        %v2627 = vpow.pop %v2626
        %v2628 = vmul.f32 %v2610, 1.442695
        %v2629 = vpow.pop %v2628
        %v2630 = vmul.f32 %v2611, 1.442695
        %v2631 = vpow.pop %v2630
        %v2632 = vmul.f32 %v2612, 1.442695
        %v2633 = vpow.pop %v2632
        %v2634 = vmul.f32 %v2613, 1.442695
        %v2635 = vpow.pop %v2634
        %v2636 = vmul.f32 %v2614, 1.442695
        %v2637 = vpow.pop %v2636
        %v2638 = vmul.f32 %v2615, 1.442695
        %v2639 = vpow.pop %v2638
        %v2640 = vsel %vm1510, %v2617, 0.0
        %2641 = vadd.xlane.f32.xlu0 %v2640
        %v2642 = vpop.xlane.xlu0 %2641
        %v2643 = vsel %vm1510, %v2619, 0.0
        %2644 = vadd.xlane.f32.xlu0 %v2643
        %v2645 = vpop.xlane.xlu0 %2644
        %v2646 = vsel %vm1510, %v2621, 0.0
        %2647 = vadd.xlane.f32.xlu0 %v2646
        %v2648 = vpop.xlane.xlu0 %2647
        %v2649 = vsel %vm1510, %v2623, 0.0
        %2650 = vadd.xlane.f32.xlu0 %v2649
        %v2651 = vpop.xlane.xlu0 %2650
        %v2652 = vsel %vm1510, %v2625, 0.0
        %2653 = vadd.xlane.f32.xlu0 %v2652
        %v2654 = vpop.xlane.xlu0 %2653
        %v2655 = vsel %vm1510, %v2627, 0.0
        %2656 = vadd.xlane.f32.xlu0 %v2655
        %v2657 = vpop.xlane.xlu0 %2656
        %v2658 = vsel %vm1510, %v2629, 0.0
        %2659 = vadd.xlane.f32.xlu0 %v2658
        %v2660 = vpop.xlane.xlu0 %2659
        %v2661 = vsel %vm1510, %v2631, 0.0
        %2662 = vadd.xlane.f32.xlu0 %v2661
        %v2663 = vpop.xlane.xlu0 %2662
        %v2664 = vsel %vm1510, %v2633, 0.0
        %2665 = vadd.xlane.f32.xlu0 %v2664
        %v2666 = vpop.xlane.xlu0 %2665
        %v2667 = vsel %vm1510, %v2635, 0.0
        %2668 = vadd.xlane.f32.xlu0 %v2667
        %v2669 = vpop.xlane.xlu0 %2668
        %v2670 = vsel %vm1510, %v2637, 0.0
        %2671 = vadd.xlane.f32.xlu0 %v2670
        %v2672 = vpop.xlane.xlu0 %2671
        %v2673 = vsel %vm1510, %v2639, 0.0
        %2674 = vadd.xlane.f32.xlu0 %v2673
        %v2675 = vpop.xlane.xlu0 %2674
        %v2676 = vrcp.pop %v2642
        %v2677 = vrcp.pop %v2645
        %v2678 = vrcp.pop %v2648
        %v2679 = vrcp.pop %v2651
        %v2680 = vrcp.pop %v2654
        %v2681 = vrcp.pop %v2657
        %v2682 = vrcp.pop %v2660
        %v2683 = vrcp.pop %v2663
        %v2684 = vrcp.pop %v2666
        %v2685 = vrcp.pop %v2669
        %v2686 = vrcp.pop %v2672
        %v2687 = vrcp.pop %v2675
        %v2688 = vmul.f32 %v2617, %v2676
        %v2689 = vmul.f32 %v2619, %v2677
        %v2690 = vmul.f32 %v2621, %v2678
        %v2691 = vmul.f32 %v2623, %v2679
        %v2692 = vmul.f32 %v2625, %v2680
        %v2693 = vmul.f32 %v2627, %v2681
        %v2694 = vmul.f32 %v2629, %v2682
        %v2695 = vmul.f32 %v2631, %v2683
        %v2696 = vmul.f32 %v2633, %v2684
        %v2697 = vmul.f32 %v2635, %v2685
        %v2698 = vmul.f32 %v2637, %v2686
        %v2699 = vmul.f32 %v2639, %v2687
        %v2700 = vpack.c.bf16 %v2689, %v2688
        %v2701 = vpack.c.bf16 %v2691, %v2690
        %v2702 = vpack.c.bf16 %v2693, %v2692
        %v2703 = vpack.c.bf16 %v2695, %v2694
        %v2704 = vpack.c.bf16 %v2697, %v2696
        %v2705 = vpack.c.bf16 %v2699, %v2698
        %2707 = vrot.lane.b32.xlu0 %v1494, 112
        %v2708 = vpop.permute.xlu0 %2707
        %v2711 = vsel %vm1510, %v2700, 0
        %2713 = vmatprep.subr.bf16.mxu0 0
        %2714 = vmatpush1.bf16.msra.mxu0 %v2708
        %2715 = vmatprep.subr.bf16.mxu0 0
        %2716 = vmatpush1.bf16.msra.mxu0 0
        %2717 = vmatprep.subr.bf16.mxu0 0
        %2718 = vmatpush1.bf16.msra.mxu0 0
        %2719 = vmatprep.subr.bf16.mxu0 0
        %2720 = vmatpush1.bf16.msra.mxu0 0
        %2721 = vmatprep.subr.bf16.mxu0 0
        %2722 = vmatpush1.bf16.msra.mxu0 0
        %2723 = vmatprep.subr.bf16.mxu0 0
        %2724 = vmatpush1.bf16.msra.mxu0 0
        %2725 = vmatprep.subr.bf16.mxu0 0
        %2726 = vmatpush1.bf16.msra.mxu0 0
        %2727 = vmatprep.subr.bf16.mxu0 0
        %2728 = vmatpush1.bf16.msra.mxu0 0
        %2729 = vmatprep.subr.bf16.mxu0 0
        %2730 = vmatpush1.bf16.msra.mxu0 0
        %2731 = vmatprep.subr.bf16.mxu0 0
        %2732 = vmatpush1.bf16.msra.mxu0 0
        %2733 = vmatprep.subr.bf16.mxu0 0
        %2734 = vmatpush1.bf16.msra.mxu0 0
        %2735 = vmatprep.subr.bf16.mxu0 0
        %2736 = vmatpush1.bf16.msra.mxu0 0
        %2737 = vmatprep.subr.bf16.mxu0 0
        %2738 = vmatpush1.bf16.msra.mxu0 0
        %2739 = vmatprep.subr.bf16.mxu0 0
        %2740 = vmatpush1.bf16.msra.mxu0 0
        %2741 = vmatprep.subr.bf16.mxu0 0
        %2742 = vmatpush1.bf16.msra.mxu0 0
        %2743 = vmatprep.subr.bf16.mxu0 0
        %2744 = vmatpush1.bf16.msra.mxu0 0
        %2745 = vmatprep.mubr.bf16.mxu0 0
        %2746 = vmatmul.mubr.bf16.gmra.mrb[0].mxu0 %v2711
        %v2747 = vpop.f32.mrb[0].mxu0
        %v2748 = vadd.f32 0.0, %v2747
        %v2749 = vpop.f32.mrb[0].mxu0
        %v2750 = vpop.f32.mrb[0].mxu0
        %v2751 = vadd.f32 0.0, %v2750
        %v2752 = vpop.f32.mrb[0].mxu0
        %2753 = vdwg.mxu0
        %2755 = vrot.lane.b32.xlu0 %v1495, 112
        %v2756 = vpop.permute.xlu0 %2755
        %v2759 = vsel %vm1510, %v2701, 0
        %2761 = vmatprep.subr.bf16.mxu0 0
        %2762 = vmatpush1.bf16.msra.mxu0 %v2756
        %2763 = vmatprep.subr.bf16.mxu0 0
        %2764 = vmatpush1.bf16.msra.mxu0 0
        %2765 = vmatprep.subr.bf16.mxu0 0
        %2766 = vmatpush1.bf16.msra.mxu0 0
        %2767 = vmatprep.subr.bf16.mxu0 0
        %2768 = vmatpush1.bf16.msra.mxu0 0
        %2769 = vmatprep.subr.bf16.mxu0 0
        %2770 = vmatpush1.bf16.msra.mxu0 0
        %2771 = vmatprep.subr.bf16.mxu0 0
        %2772 = vmatpush1.bf16.msra.mxu0 0
        %2773 = vmatprep.subr.bf16.mxu0 0
        %2774 = vmatpush1.bf16.msra.mxu0 0
        %2775 = vmatprep.subr.bf16.mxu0 0
        %2776 = vmatpush1.bf16.msra.mxu0 0
        %2777 = vmatprep.subr.bf16.mxu0 0
        %2778 = vmatpush1.bf16.msra.mxu0 0
        %2779 = vmatprep.subr.bf16.mxu0 0
        %2780 = vmatpush1.bf16.msra.mxu0 0
        %2781 = vmatprep.subr.bf16.mxu0 0
        %2782 = vmatpush1.bf16.msra.mxu0 0
        %2783 = vmatprep.subr.bf16.mxu0 0
        %2784 = vmatpush1.bf16.msra.mxu0 0
        %2785 = vmatprep.subr.bf16.mxu0 0
        %2786 = vmatpush1.bf16.msra.mxu0 0
        %2787 = vmatprep.subr.bf16.mxu0 0
        %2788 = vmatpush1.bf16.msra.mxu0 0
        %2789 = vmatprep.subr.bf16.mxu0 0
        %2790 = vmatpush1.bf16.msra.mxu0 0
        %2791 = vmatprep.subr.bf16.mxu0 0
        %2792 = vmatpush1.bf16.msra.mxu0 0
        %2793 = vmatprep.mubr.bf16.mxu0 0
        %2794 = vmatmul.mubr.bf16.gmra.mrb[0].mxu0 %v2759
        %v2795 = vpop.f32.mrb[0].mxu0
        %v2796 = vadd.f32 0.0, %v2795
        %v2797 = vpop.f32.mrb[0].mxu0
        %v2798 = vpop.f32.mrb[0].mxu0
        %v2799 = vadd.f32 0.0, %v2798
        %v2800 = vpop.f32.mrb[0].mxu0
        %2801 = vdwg.mxu0
        %2803 = vrot.lane.b32.xlu0 %v1496, 112
        %v2804 = vpop.permute.xlu0 %2803
        %v2807 = vsel %vm1510, %v2702, 0
        %2809 = vmatprep.subr.bf16.mxu0 0
        %2810 = vmatpush1.bf16.msra.mxu0 %v2804
        %2811 = vmatprep.subr.bf16.mxu0 0
        %2812 = vmatpush1.bf16.msra.mxu0 0
        %2813 = vmatprep.subr.bf16.mxu0 0
        %2814 = vmatpush1.bf16.msra.mxu0 0
        %2815 = vmatprep.subr.bf16.mxu0 0
        %2816 = vmatpush1.bf16.msra.mxu0 0
        %2817 = vmatprep.subr.bf16.mxu0 0
        %2818 = vmatpush1.bf16.msra.mxu0 0
        %2819 = vmatprep.subr.bf16.mxu0 0
        %2820 = vmatpush1.bf16.msra.mxu0 0
        %2821 = vmatprep.subr.bf16.mxu0 0
        %2822 = vmatpush1.bf16.msra.mxu0 0
        %2823 = vmatprep.subr.bf16.mxu0 0
        %2824 = vmatpush1.bf16.msra.mxu0 0
        %2825 = vmatprep.subr.bf16.mxu0 0
        %2826 = vmatpush1.bf16.msra.mxu0 0
        %2827 = vmatprep.subr.bf16.mxu0 0
        %2828 = vmatpush1.bf16.msra.mxu0 0
        %2829 = vmatprep.subr.bf16.mxu0 0
        %2830 = vmatpush1.bf16.msra.mxu0 0
        %2831 = vmatprep.subr.bf16.mxu0 0
        %2832 = vmatpush1.bf16.msra.mxu0 0
        %2833 = vmatprep.subr.bf16.mxu0 0
        %2834 = vmatpush1.bf16.msra.mxu0 0
        %2835 = vmatprep.subr.bf16.mxu0 0
        %2836 = vmatpush1.bf16.msra.mxu0 0
        %2837 = vmatprep.subr.bf16.mxu0 0
        %2838 = vmatpush1.bf16.msra.mxu0 0
        %2839 = vmatprep.subr.bf16.mxu0 0
        %2840 = vmatpush1.bf16.msra.mxu0 0
        %2841 = vmatprep.mubr.bf16.mxu0 0
        %2842 = vmatmul.mubr.bf16.gmra.mrb[0].mxu0 %v2807
        %v2843 = vpop.f32.mrb[0].mxu0
        %v2844 = vadd.f32 0.0, %v2843
        %v2845 = vpop.f32.mrb[0].mxu0
        %v2846 = vpop.f32.mrb[0].mxu0
        %v2847 = vadd.f32 0.0, %v2846
        %v2848 = vpop.f32.mrb[0].mxu0
        %2849 = vdwg.mxu0
        %2851 = vrot.lane.b32.xlu0 %v1497, 112
        %v2852 = vpop.permute.xlu0 %2851
        %v2855 = vsel %vm1510, %v2703, 0
        %2857 = vmatprep.subr.bf16.mxu0 0
        %2858 = vmatpush1.bf16.msra.mxu0 %v2852
        %2859 = vmatprep.subr.bf16.mxu0 0
        %2860 = vmatpush1.bf16.msra.mxu0 0
        %2861 = vmatprep.subr.bf16.mxu0 0
        %2862 = vmatpush1.bf16.msra.mxu0 0
        %2863 = vmatprep.subr.bf16.mxu0 0
        %2864 = vmatpush1.bf16.msra.mxu0 0
        %2865 = vmatprep.subr.bf16.mxu0 0
        %2866 = vmatpush1.bf16.msra.mxu0 0
        %2867 = vmatprep.subr.bf16.mxu0 0
        %2868 = vmatpush1.bf16.msra.mxu0 0
        %2869 = vmatprep.subr.bf16.mxu0 0
        %2870 = vmatpush1.bf16.msra.mxu0 0
        %2871 = vmatprep.subr.bf16.mxu0 0
        %2872 = vmatpush1.bf16.msra.mxu0 0
        %2873 = vmatprep.subr.bf16.mxu0 0
        %2874 = vmatpush1.bf16.msra.mxu0 0
        %2875 = vmatprep.subr.bf16.mxu0 0
        %2876 = vmatpush1.bf16.msra.mxu0 0
        %2877 = vmatprep.subr.bf16.mxu0 0
        %2878 = vmatpush1.bf16.msra.mxu0 0
        %2879 = vmatprep.subr.bf16.mxu0 0
        %2880 = vmatpush1.bf16.msra.mxu0 0
        %2881 = vmatprep.subr.bf16.mxu0 0
        %2882 = vmatpush1.bf16.msra.mxu0 0
        %2883 = vmatprep.subr.bf16.mxu0 0
        %2884 = vmatpush1.bf16.msra.mxu0 0
        %2885 = vmatprep.subr.bf16.mxu0 0
        %2886 = vmatpush1.bf16.msra.mxu0 0
        %2887 = vmatprep.subr.bf16.mxu0 0
        %2888 = vmatpush1.bf16.msra.mxu0 0
        %2889 = vmatprep.mubr.bf16.mxu0 0
        %2890 = vmatmul.mubr.bf16.gmra.mrb[0].mxu0 %v2855
        %v2891 = vpop.f32.mrb[0].mxu0
        %v2892 = vadd.f32 0.0, %v2891
        %v2893 = vpop.f32.mrb[0].mxu0
        %v2894 = vpop.f32.mrb[0].mxu0
        %v2895 = vadd.f32 0.0, %v2894
        %v2896 = vpop.f32.mrb[0].mxu0
        %2897 = vdwg.mxu0
        %2899 = vrot.lane.b32.xlu0 %v1498, 112
        %v2900 = vpop.permute.xlu0 %2899
        %v2903 = vsel %vm1510, %v2704, 0
        %2905 = vmatprep.subr.bf16.mxu0 0
        %2906 = vmatpush1.bf16.msra.mxu0 %v2900
        %2907 = vmatprep.subr.bf16.mxu0 0
        %2908 = vmatpush1.bf16.msra.mxu0 0
        %2909 = vmatprep.subr.bf16.mxu0 0
        %2910 = vmatpush1.bf16.msra.mxu0 0
        %2911 = vmatprep.subr.bf16.mxu0 0
        %2912 = vmatpush1.bf16.msra.mxu0 0
        %2913 = vmatprep.subr.bf16.mxu0 0
        %2914 = vmatpush1.bf16.msra.mxu0 0
        %2915 = vmatprep.subr.bf16.mxu0 0
        %2916 = vmatpush1.bf16.msra.mxu0 0
        %2917 = vmatprep.subr.bf16.mxu0 0
        %2918 = vmatpush1.bf16.msra.mxu0 0
        %2919 = vmatprep.subr.bf16.mxu0 0
        %2920 = vmatpush1.bf16.msra.mxu0 0
        %2921 = vmatprep.subr.bf16.mxu0 0
        %2922 = vmatpush1.bf16.msra.mxu0 0
        %2923 = vmatprep.subr.bf16.mxu0 0
        %2924 = vmatpush1.bf16.msra.mxu0 0
        %2925 = vmatprep.subr.bf16.mxu0 0
        %2926 = vmatpush1.bf16.msra.mxu0 0
        %2927 = vmatprep.subr.bf16.mxu0 0
        %2928 = vmatpush1.bf16.msra.mxu0 0
        %2929 = vmatprep.subr.bf16.mxu0 0
        %2930 = vmatpush1.bf16.msra.mxu0 0
        %2931 = vmatprep.subr.bf16.mxu0 0
        %2932 = vmatpush1.bf16.msra.mxu0 0
        %2933 = vmatprep.subr.bf16.mxu0 0
        %2934 = vmatpush1.bf16.msra.mxu0 0
        %2935 = vmatprep.subr.bf16.mxu0 0
        %2936 = vmatpush1.bf16.msra.mxu0 0
        %2937 = vmatprep.mubr.bf16.mxu0 0
        %2938 = vmatmul.mubr.bf16.gmra.mrb[0].mxu0 %v2903
        %v2939 = vpop.f32.mrb[0].mxu0
        %v2940 = vadd.f32 0.0, %v2939
        %v2941 = vpop.f32.mrb[0].mxu0
        %v2942 = vpop.f32.mrb[0].mxu0
        %v2943 = vadd.f32 0.0, %v2942
        %v2944 = vpop.f32.mrb[0].mxu0
        %2945 = vdwg.mxu0
        %2947 = vrot.lane.b32.xlu0 %v1499, 112
        %v2948 = vpop.permute.xlu0 %2947
        %v2951 = vsel %vm1510, %v2705, 0
        %2953 = vmatprep.subr.bf16.mxu0 0
        %2954 = vmatpush1.bf16.msra.mxu0 %v2948
        %2955 = vmatprep.subr.bf16.mxu0 0
        %2956 = vmatpush1.bf16.msra.mxu0 0
        %2957 = vmatprep.subr.bf16.mxu0 0
        %2958 = vmatpush1.bf16.msra.mxu0 0
        %2959 = vmatprep.subr.bf16.mxu0 0
        %2960 = vmatpush1.bf16.msra.mxu0 0
        %2961 = vmatprep.subr.bf16.mxu0 0
        %2962 = vmatpush1.bf16.msra.mxu0 0
        %2963 = vmatprep.subr.bf16.mxu0 0
        %2964 = vmatpush1.bf16.msra.mxu0 0
        %2965 = vmatprep.subr.bf16.mxu0 0
        %2966 = vmatpush1.bf16.msra.mxu0 0
        %2967 = vmatprep.subr.bf16.mxu0 0
        %2968 = vmatpush1.bf16.msra.mxu0 0
        %2969 = vmatprep.subr.bf16.mxu0 0
        %2970 = vmatpush1.bf16.msra.mxu0 0
        %2971 = vmatprep.subr.bf16.mxu0 0
        %2972 = vmatpush1.bf16.msra.mxu0 0
        %2973 = vmatprep.subr.bf16.mxu0 0
        %2974 = vmatpush1.bf16.msra.mxu0 0
        %2975 = vmatprep.subr.bf16.mxu0 0
        %2976 = vmatpush1.bf16.msra.mxu0 0
        %2977 = vmatprep.subr.bf16.mxu0 0
        %2978 = vmatpush1.bf16.msra.mxu0 0
        %2979 = vmatprep.subr.bf16.mxu0 0
        %2980 = vmatpush1.bf16.msra.mxu0 0
        %2981 = vmatprep.subr.bf16.mxu0 0
        %2982 = vmatpush1.bf16.msra.mxu0 0
        %2983 = vmatprep.subr.bf16.mxu0 0
        %2984 = vmatpush1.bf16.msra.mxu0 0
        %2985 = vmatprep.mubr.bf16.mxu0 0
        %2986 = vmatmul.mubr.bf16.gmra.mrb[0].mxu0 %v2951
        %v2987 = vpop.f32.mrb[0].mxu0
        %v2988 = vadd.f32 0.0, %v2987
        %v2989 = vpop.f32.mrb[0].mxu0
        %v2990 = vpop.f32.mrb[0].mxu0
        %v2991 = vadd.f32 0.0, %v2990
        %v2992 = vpop.f32.mrb[0].mxu0
        %2993 = vdwg.mxu0
        %2994 = vrot.lane.b32.xlu0 %v1488, 96
        %v2995 = vpop.permute.xlu0 %2994
        %2996 = vrot.lane.b32.xlu0 %v1488, 32
        %v2997 = vpop.permute.xlu0 %2996
        %v2999 = vsel %vm1510, %v2995, 0
        %v3002 = vsel %vm1510, %v2997, 0
        %3004 = vmatprep.subr.bf16.mxu0 0
        %3005 = vmatpush1.bf16.xpose.msra.mxu0 %v3002
        %3006 = vmatprep.subr.bf16.mxu0 0
        %3007 = vmatpush1.bf16.xpose.msra.mxu0 0
        %3008 = vmatprep.subr.bf16.mxu0 0
        %3009 = vmatpush1.bf16.xpose.msra.mxu0 0
        %3010 = vmatprep.subr.bf16.mxu0 0
        %3011 = vmatpush1.bf16.xpose.msra.mxu0 0
        %3012 = vmatprep.subr.bf16.mxu0 0
        %3013 = vmatpush1.bf16.xpose.msra.mxu0 0
        %3014 = vmatprep.subr.bf16.mxu0 0
        %3015 = vmatpush1.bf16.xpose.msra.mxu0 0
        %3016 = vmatprep.subr.bf16.mxu0 0
        %3017 = vmatpush1.bf16.xpose.msra.mxu0 0
        %3018 = vmatprep.subr.bf16.mxu0 0
        %3019 = vmatpush1.bf16.xpose.msra.mxu0 0
        %3020 = vmatprep.subr.bf16.mxu0 0
        %3021 = vmatpush1.bf16.xpose.msra.mxu0 0
        %3022 = vmatprep.subr.bf16.mxu0 0
        %3023 = vmatpush1.bf16.xpose.msra.mxu0 0
        %3024 = vmatprep.subr.bf16.mxu0 0
        %3025 = vmatpush1.bf16.xpose.msra.mxu0 0
        %3026 = vmatprep.subr.bf16.mxu0 0
        %3027 = vmatpush1.bf16.xpose.msra.mxu0 0
        %3028 = vmatprep.subr.bf16.mxu0 0
        %3029 = vmatpush1.bf16.xpose.msra.mxu0 0
        %3030 = vmatprep.subr.bf16.mxu0 0
        %3031 = vmatpush1.bf16.xpose.msra.mxu0 0
        %3032 = vmatprep.subr.bf16.mxu0 0
        %3033 = vmatpush1.bf16.xpose.msra.mxu0 0
        %3034 = vmatprep.subr.bf16.mxu0 0
        %3035 = vmatpush1.bf16.xpose.msra.mxu0 0
        %3036 = vmatprep.mubr.bf16.mxu0 0
        %3037 = vmatmul.mubr.bf16.gmra.mrb[0].mxu0 %v2999
        %v3038 = vpop.f32.mrb[0].mxu0
        %v3039 = vadd.f32 0.0, %v3038
        %v3040 = vpop.f32.mrb[0].mxu0
        %v3041 = vpop.f32.mrb[0].mxu0
        %v3042 = vadd.f32 0.0, %v3041
        %v3043 = vpop.f32.mrb[0].mxu0
        %3044 = vdwg.mxu0
        %3045 = vrot.lane.b32.xlu0 %v1489, 96
        %v3046 = vpop.permute.xlu0 %3045
        %3047 = vrot.lane.b32.xlu0 %v1489, 32
        %v3048 = vpop.permute.xlu0 %3047
        %v3050 = vsel %vm1510, %v3046, 0
        %v3053 = vsel %vm1510, %v3048, 0
        %3055 = vmatprep.subr.bf16.mxu0 0
        %3056 = vmatpush1.bf16.xpose.msra.mxu0 %v3053
        %3057 = vmatprep.subr.bf16.mxu0 0
        %3058 = vmatpush1.bf16.xpose.msra.mxu0 0
        %3059 = vmatprep.subr.bf16.mxu0 0
        %3060 = vmatpush1.bf16.xpose.msra.mxu0 0
        %3061 = vmatprep.subr.bf16.mxu0 0
        %3062 = vmatpush1.bf16.xpose.msra.mxu0 0
        %3063 = vmatprep.subr.bf16.mxu0 0
        %3064 = vmatpush1.bf16.xpose.msra.mxu0 0
        %3065 = vmatprep.subr.bf16.mxu0 0
        %3066 = vmatpush1.bf16.xpose.msra.mxu0 0
        %3067 = vmatprep.subr.bf16.mxu0 0
        %3068 = vmatpush1.bf16.xpose.msra.mxu0 0
        %3069 = vmatprep.subr.bf16.mxu0 0
        %3070 = vmatpush1.bf16.xpose.msra.mxu0 0
        %3071 = vmatprep.subr.bf16.mxu0 0
        %3072 = vmatpush1.bf16.xpose.msra.mxu0 0
        %3073 = vmatprep.subr.bf16.mxu0 0
        %3074 = vmatpush1.bf16.xpose.msra.mxu0 0
        %3075 = vmatprep.subr.bf16.mxu0 0
        %3076 = vmatpush1.bf16.xpose.msra.mxu0 0
        %3077 = vmatprep.subr.bf16.mxu0 0
        %3078 = vmatpush1.bf16.xpose.msra.mxu0 0
        %3079 = vmatprep.subr.bf16.mxu0 0
        %3080 = vmatpush1.bf16.xpose.msra.mxu0 0
        %3081 = vmatprep.subr.bf16.mxu0 0
        %3082 = vmatpush1.bf16.xpose.msra.mxu0 0
        %3083 = vmatprep.subr.bf16.mxu0 0
        %3084 = vmatpush1.bf16.xpose.msra.mxu0 0
        %3085 = vmatprep.subr.bf16.mxu0 0
        %3086 = vmatpush1.bf16.xpose.msra.mxu0 0
        %3087 = vmatprep.mubr.bf16.mxu0 0
        %3088 = vmatmul.mubr.bf16.gmra.mrb[0].mxu0 %v3050
        %v3089 = vpop.f32.mrb[0].mxu0
        %v3090 = vadd.f32 0.0, %v3089
        %v3091 = vpop.f32.mrb[0].mxu0
        %v3092 = vpop.f32.mrb[0].mxu0
        %v3093 = vadd.f32 0.0, %v3092
        %v3094 = vpop.f32.mrb[0].mxu0
        %3095 = vdwg.mxu0
        %3096 = vrot.lane.b32.xlu0 %v1490, 96
        %v3097 = vpop.permute.xlu0 %3096
        %3098 = vrot.lane.b32.xlu0 %v1490, 32
        %v3099 = vpop.permute.xlu0 %3098
        %v3101 = vsel %vm1510, %v3097, 0
        %v3104 = vsel %vm1510, %v3099, 0
        %3106 = vmatprep.subr.bf16.mxu0 0
        %3107 = vmatpush1.bf16.xpose.msra.mxu0 %v3104
        %3108 = vmatprep.subr.bf16.mxu0 0
        %3109 = vmatpush1.bf16.xpose.msra.mxu0 0
        %3110 = vmatprep.subr.bf16.mxu0 0
        %3111 = vmatpush1.bf16.xpose.msra.mxu0 0
        %3112 = vmatprep.subr.bf16.mxu0 0
        %3113 = vmatpush1.bf16.xpose.msra.mxu0 0
        %3114 = vmatprep.subr.bf16.mxu0 0
        %3115 = vmatpush1.bf16.xpose.msra.mxu0 0
        %3116 = vmatprep.subr.bf16.mxu0 0
        %3117 = vmatpush1.bf16.xpose.msra.mxu0 0
        %3118 = vmatprep.subr.bf16.mxu0 0
        %3119 = vmatpush1.bf16.xpose.msra.mxu0 0
        %3120 = vmatprep.subr.bf16.mxu0 0
        %3121 = vmatpush1.bf16.xpose.msra.mxu0 0
        %3122 = vmatprep.subr.bf16.mxu0 0
        %3123 = vmatpush1.bf16.xpose.msra.mxu0 0
        %3124 = vmatprep.subr.bf16.mxu0 0
        %3125 = vmatpush1.bf16.xpose.msra.mxu0 0
        %3126 = vmatprep.subr.bf16.mxu0 0
        %3127 = vmatpush1.bf16.xpose.msra.mxu0 0
        %3128 = vmatprep.subr.bf16.mxu0 0
        %3129 = vmatpush1.bf16.xpose.msra.mxu0 0
        %3130 = vmatprep.subr.bf16.mxu0 0
        %3131 = vmatpush1.bf16.xpose.msra.mxu0 0
        %3132 = vmatprep.subr.bf16.mxu0 0
        %3133 = vmatpush1.bf16.xpose.msra.mxu0 0
        %3134 = vmatprep.subr.bf16.mxu0 0
        %3135 = vmatpush1.bf16.xpose.msra.mxu0 0
        %3136 = vmatprep.subr.bf16.mxu0 0
        %3137 = vmatpush1.bf16.xpose.msra.mxu0 0
        %3138 = vmatprep.mubr.bf16.mxu0 0
        %3139 = vmatmul.mubr.bf16.gmra.mrb[0].mxu0 %v3101
        %v3140 = vpop.f32.mrb[0].mxu0
        %v3141 = vadd.f32 0.0, %v3140
        %v3142 = vpop.f32.mrb[0].mxu0
        %v3143 = vpop.f32.mrb[0].mxu0
        %v3144 = vadd.f32 0.0, %v3143
        %v3145 = vpop.f32.mrb[0].mxu0
        %3146 = vdwg.mxu0
        %3147 = vrot.lane.b32.xlu0 %v1491, 96
        %v3148 = vpop.permute.xlu0 %3147
        %3149 = vrot.lane.b32.xlu0 %v1491, 32
        %v3150 = vpop.permute.xlu0 %3149
        %v3152 = vsel %vm1510, %v3148, 0
        %v3155 = vsel %vm1510, %v3150, 0
        %3157 = vmatprep.subr.bf16.mxu0 0
        %3158 = vmatpush1.bf16.xpose.msra.mxu0 %v3155
        %3159 = vmatprep.subr.bf16.mxu0 0
        %3160 = vmatpush1.bf16.xpose.msra.mxu0 0
        %3161 = vmatprep.subr.bf16.mxu0 0
        %3162 = vmatpush1.bf16.xpose.msra.mxu0 0
        %3163 = vmatprep.subr.bf16.mxu0 0
        %3164 = vmatpush1.bf16.xpose.msra.mxu0 0
        %3165 = vmatprep.subr.bf16.mxu0 0
        %3166 = vmatpush1.bf16.xpose.msra.mxu0 0
        %3167 = vmatprep.subr.bf16.mxu0 0
        %3168 = vmatpush1.bf16.xpose.msra.mxu0 0
        %3169 = vmatprep.subr.bf16.mxu0 0
        %3170 = vmatpush1.bf16.xpose.msra.mxu0 0
        %3171 = vmatprep.subr.bf16.mxu0 0
        %3172 = vmatpush1.bf16.xpose.msra.mxu0 0
        %3173 = vmatprep.subr.bf16.mxu0 0
        %3174 = vmatpush1.bf16.xpose.msra.mxu0 0
        %3175 = vmatprep.subr.bf16.mxu0 0
        %3176 = vmatpush1.bf16.xpose.msra.mxu0 0
        %3177 = vmatprep.subr.bf16.mxu0 0
        %3178 = vmatpush1.bf16.xpose.msra.mxu0 0
        %3179 = vmatprep.subr.bf16.mxu0 0
        %3180 = vmatpush1.bf16.xpose.msra.mxu0 0
        %3181 = vmatprep.subr.bf16.mxu0 0
        %3182 = vmatpush1.bf16.xpose.msra.mxu0 0
        %3183 = vmatprep.subr.bf16.mxu0 0
        %3184 = vmatpush1.bf16.xpose.msra.mxu0 0
        %3185 = vmatprep.subr.bf16.mxu0 0
        %3186 = vmatpush1.bf16.xpose.msra.mxu0 0
        %3187 = vmatprep.subr.bf16.mxu0 0
        %3188 = vmatpush1.bf16.xpose.msra.mxu0 0
        %3189 = vmatprep.mubr.bf16.mxu0 0
        %3190 = vmatmul.mubr.bf16.gmra.mrb[0].mxu0 %v3152
        %v3191 = vpop.f32.mrb[0].mxu0
        %v3192 = vadd.f32 0.0, %v3191
        %v3193 = vpop.f32.mrb[0].mxu0
        %v3194 = vpop.f32.mrb[0].mxu0
        %v3195 = vadd.f32 0.0, %v3194
        %v3196 = vpop.f32.mrb[0].mxu0
        %3197 = vdwg.mxu0
        %3198 = vrot.lane.b32.xlu0 %v1492, 96
        %v3199 = vpop.permute.xlu0 %3198
        %3200 = vrot.lane.b32.xlu0 %v1492, 32
        %v3201 = vpop.permute.xlu0 %3200
        %v3203 = vsel %vm1510, %v3199, 0
        %v3206 = vsel %vm1510, %v3201, 0
        %3208 = vmatprep.subr.bf16.mxu0 0
        %3209 = vmatpush1.bf16.xpose.msra.mxu0 %v3206
        %3210 = vmatprep.subr.bf16.mxu0 0
        %3211 = vmatpush1.bf16.xpose.msra.mxu0 0
        %3212 = vmatprep.subr.bf16.mxu0 0
        %3213 = vmatpush1.bf16.xpose.msra.mxu0 0
        %3214 = vmatprep.subr.bf16.mxu0 0
        %3215 = vmatpush1.bf16.xpose.msra.mxu0 0
        %3216 = vmatprep.subr.bf16.mxu0 0
        %3217 = vmatpush1.bf16.xpose.msra.mxu0 0
        %3218 = vmatprep.subr.bf16.mxu0 0
        %3219 = vmatpush1.bf16.xpose.msra.mxu0 0
        %3220 = vmatprep.subr.bf16.mxu0 0
        %3221 = vmatpush1.bf16.xpose.msra.mxu0 0
        %3222 = vmatprep.subr.bf16.mxu0 0
        %3223 = vmatpush1.bf16.xpose.msra.mxu0 0
        %3224 = vmatprep.subr.bf16.mxu0 0
        %3225 = vmatpush1.bf16.xpose.msra.mxu0 0
        %3226 = vmatprep.subr.bf16.mxu0 0
        %3227 = vmatpush1.bf16.xpose.msra.mxu0 0
        %3228 = vmatprep.subr.bf16.mxu0 0
        %3229 = vmatpush1.bf16.xpose.msra.mxu0 0
        %3230 = vmatprep.subr.bf16.mxu0 0
        %3231 = vmatpush1.bf16.xpose.msra.mxu0 0
        %3232 = vmatprep.subr.bf16.mxu0 0
        %3233 = vmatpush1.bf16.xpose.msra.mxu0 0
        %3234 = vmatprep.subr.bf16.mxu0 0
        %3235 = vmatpush1.bf16.xpose.msra.mxu0 0
        %3236 = vmatprep.subr.bf16.mxu0 0
        %3237 = vmatpush1.bf16.xpose.msra.mxu0 0
        %3238 = vmatprep.subr.bf16.mxu0 0
        %3239 = vmatpush1.bf16.xpose.msra.mxu0 0
        %3240 = vmatprep.mubr.bf16.mxu0 0
        %3241 = vmatmul.mubr.bf16.gmra.mrb[0].mxu0 %v3203
        %v3242 = vpop.f32.mrb[0].mxu0
        %v3243 = vadd.f32 0.0, %v3242
        %v3244 = vpop.f32.mrb[0].mxu0
        %v3245 = vpop.f32.mrb[0].mxu0
        %v3246 = vadd.f32 0.0, %v3245
        %v3247 = vpop.f32.mrb[0].mxu0
        %3248 = vdwg.mxu0
        %3249 = vrot.lane.b32.xlu0 %v1493, 96
        %v3250 = vpop.permute.xlu0 %3249
        %3251 = vrot.lane.b32.xlu0 %v1493, 32
        %v3252 = vpop.permute.xlu0 %3251
        %v3254 = vsel %vm1510, %v3250, 0
        %v3257 = vsel %vm1510, %v3252, 0
        %3259 = vmatprep.subr.bf16.mxu0 0
        %3260 = vmatpush1.bf16.xpose.msra.mxu0 %v3257
        %3261 = vmatprep.subr.bf16.mxu0 0
        %3262 = vmatpush1.bf16.xpose.msra.mxu0 0
        %3263 = vmatprep.subr.bf16.mxu0 0
        %3264 = vmatpush1.bf16.xpose.msra.mxu0 0
        %3265 = vmatprep.subr.bf16.mxu0 0
        %3266 = vmatpush1.bf16.xpose.msra.mxu0 0
        %3267 = vmatprep.subr.bf16.mxu0 0
        %3268 = vmatpush1.bf16.xpose.msra.mxu0 0
        %3269 = vmatprep.subr.bf16.mxu0 0
        %3270 = vmatpush1.bf16.xpose.msra.mxu0 0
        %3271 = vmatprep.subr.bf16.mxu0 0
        %3272 = vmatpush1.bf16.xpose.msra.mxu0 0
        %3273 = vmatprep.subr.bf16.mxu0 0
        %3274 = vmatpush1.bf16.xpose.msra.mxu0 0
        %3275 = vmatprep.subr.bf16.mxu0 0
        %3276 = vmatpush1.bf16.xpose.msra.mxu0 0
        %3277 = vmatprep.subr.bf16.mxu0 0
        %3278 = vmatpush1.bf16.xpose.msra.mxu0 0
        %3279 = vmatprep.subr.bf16.mxu0 0
        %3280 = vmatpush1.bf16.xpose.msra.mxu0 0
        %3281 = vmatprep.subr.bf16.mxu0 0
        %3282 = vmatpush1.bf16.xpose.msra.mxu0 0
        %3283 = vmatprep.subr.bf16.mxu0 0
        %3284 = vmatpush1.bf16.xpose.msra.mxu0 0
        %3285 = vmatprep.subr.bf16.mxu0 0
        %3286 = vmatpush1.bf16.xpose.msra.mxu0 0
        %3287 = vmatprep.subr.bf16.mxu0 0
        %3288 = vmatpush1.bf16.xpose.msra.mxu0 0
        %3289 = vmatprep.subr.bf16.mxu0 0
        %3290 = vmatpush1.bf16.xpose.msra.mxu0 0
        %3291 = vmatprep.mubr.bf16.mxu0 0
        %3292 = vmatmul.mubr.bf16.gmra.mrb[0].mxu0 %v3254
        %v3293 = vpop.f32.mrb[0].mxu0
        %v3294 = vadd.f32 0.0, %v3293
        %v3295 = vpop.f32.mrb[0].mxu0
        %v3296 = vpop.f32.mrb[0].mxu0
        %v3297 = vadd.f32 0.0, %v3296
        %v3298 = vpop.f32.mrb[0].mxu0
        %3299 = vdwg.mxu0
        %v3300 = vmul.f32 %v3039, 0.25
        %v3301 = vmul.f32 %v3042, 0.25
        %v3302 = vmul.f32 %v3090, 0.25
        %v3303 = vmul.f32 %v3093, 0.25
        %v3304 = vmul.f32 %v3141, 0.25
        %v3305 = vmul.f32 %v3144, 0.25
        %v3306 = vmul.f32 %v3192, 0.25
        %v3307 = vmul.f32 %v3195, 0.25
        %v3308 = vmul.f32 %v3243, 0.25
        %v3309 = vmul.f32 %v3246, 0.25
        %v3310 = vmul.f32 %v3294, 0.25
        %v3311 = vmul.f32 %v3297, 0.25
        %v3312 = vsel %vm1822, %v3300, -1e+30
        %v3313 = vsel %vm1823, %v3301, -1e+30
        %v3314 = vsel %vm1822, %v3302, -1e+30
        %v3315 = vsel %vm1823, %v3303, -1e+30
        %v3316 = vsel %vm1822, %v3304, -1e+30
        %v3317 = vsel %vm1823, %v3305, -1e+30
        %v3318 = vsel %vm1822, %v3306, -1e+30
        %v3319 = vsel %vm1823, %v3307, -1e+30
        %v3320 = vsel %vm1822, %v3308, -1e+30
        %v3321 = vsel %vm1823, %v3309, -1e+30
        %v3322 = vsel %vm1822, %v3310, -1e+30
        %v3323 = vsel %vm1823, %v3311, -1e+30
        %v3324 = vsel %vm1510, %v3312, -inf
        %3325 = vmax.xlane.f32.xlu0 %v3324
        %v3326 = vpop.xlane.xlu0 %3325
        %v3327 = vsel %vm1510, %v3313, -inf
        %3328 = vmax.xlane.f32.xlu0 %v3327
        %v3329 = vpop.xlane.xlu0 %3328
        %v3330 = vsel %vm1510, %v3314, -inf
        %3331 = vmax.xlane.f32.xlu0 %v3330
        %v3332 = vpop.xlane.xlu0 %3331
        %v3333 = vsel %vm1510, %v3315, -inf
        %3334 = vmax.xlane.f32.xlu0 %v3333
        %v3335 = vpop.xlane.xlu0 %3334
        %v3336 = vsel %vm1510, %v3316, -inf
        %3337 = vmax.xlane.f32.xlu0 %v3336
        %v3338 = vpop.xlane.xlu0 %3337
        %v3339 = vsel %vm1510, %v3317, -inf
        %3340 = vmax.xlane.f32.xlu0 %v3339
        %v3341 = vpop.xlane.xlu0 %3340
        %v3342 = vsel %vm1510, %v3318, -inf
        %3343 = vmax.xlane.f32.xlu0 %v3342
        %v3344 = vpop.xlane.xlu0 %3343
        %v3345 = vsel %vm1510, %v3319, -inf
        %3346 = vmax.xlane.f32.xlu0 %v3345
        %v3347 = vpop.xlane.xlu0 %3346
        %v3348 = vsel %vm1510, %v3320, -inf
        %3349 = vmax.xlane.f32.xlu0 %v3348
        %v3350 = vpop.xlane.xlu0 %3349
        %v3351 = vsel %vm1510, %v3321, -inf
        %3352 = vmax.xlane.f32.xlu0 %v3351
        %v3353 = vpop.xlane.xlu0 %3352
        %v3354 = vsel %vm1510, %v3322, -inf
        %3355 = vmax.xlane.f32.xlu0 %v3354
        %v3356 = vpop.xlane.xlu0 %3355
        %v3357 = vsel %vm1510, %v3323, -inf
        %3358 = vmax.xlane.f32.xlu0 %v3357
        %v3359 = vpop.xlane.xlu0 %3358
        %v3360 = vsub.f32 %v3312, %v3326
        %v3361 = vsub.f32 %v3313, %v3329
        %v3362 = vsub.f32 %v3314, %v3332
        %v3363 = vsub.f32 %v3315, %v3335
        %v3364 = vsub.f32 %v3316, %v3338
        %v3365 = vsub.f32 %v3317, %v3341
        %v3366 = vsub.f32 %v3318, %v3344
        %v3367 = vsub.f32 %v3319, %v3347
        %v3368 = vsub.f32 %v3320, %v3350
        %v3369 = vsub.f32 %v3321, %v3353
        %v3370 = vsub.f32 %v3322, %v3356
        %v3371 = vsub.f32 %v3323, %v3359
        %v3372 = vmul.f32 %v3360, 1.442695
        %v3373 = vpow.pop %v3372
        %v3374 = vmul.f32 %v3361, 1.442695
        %v3375 = vpow.pop %v3374
        %v3376 = vmul.f32 %v3362, 1.442695
        %v3377 = vpow.pop %v3376
        %v3378 = vmul.f32 %v3363, 1.442695
        %v3379 = vpow.pop %v3378
        %v3380 = vmul.f32 %v3364, 1.442695
        %v3381 = vpow.pop %v3380
        %v3382 = vmul.f32 %v3365, 1.442695
        %v3383 = vpow.pop %v3382
        %v3384 = vmul.f32 %v3366, 1.442695
        %v3385 = vpow.pop %v3384
        %v3386 = vmul.f32 %v3367, 1.442695
        %v3387 = vpow.pop %v3386
        %v3388 = vmul.f32 %v3368, 1.442695
        %v3389 = vpow.pop %v3388
        %v3390 = vmul.f32 %v3369, 1.442695
        %v3391 = vpow.pop %v3390
        %v3392 = vmul.f32 %v3370, 1.442695
        %v3393 = vpow.pop %v3392
        %v3394 = vmul.f32 %v3371, 1.442695
        %v3395 = vpow.pop %v3394
        %v3396 = vsel %vm1510, %v3373, 0.0
        %3397 = vadd.xlane.f32.xlu0 %v3396
        %v3398 = vpop.xlane.xlu0 %3397
        %v3399 = vsel %vm1510, %v3375, 0.0
        %3400 = vadd.xlane.f32.xlu0 %v3399
        %v3401 = vpop.xlane.xlu0 %3400
        %v3402 = vsel %vm1510, %v3377, 0.0
        %3403 = vadd.xlane.f32.xlu0 %v3402
        %v3404 = vpop.xlane.xlu0 %3403
        %v3405 = vsel %vm1510, %v3379, 0.0
        %3406 = vadd.xlane.f32.xlu0 %v3405
        %v3407 = vpop.xlane.xlu0 %3406
        %v3408 = vsel %vm1510, %v3381, 0.0
        %3409 = vadd.xlane.f32.xlu0 %v3408
        %v3410 = vpop.xlane.xlu0 %3409
        %v3411 = vsel %vm1510, %v3383, 0.0
        %3412 = vadd.xlane.f32.xlu0 %v3411
        %v3413 = vpop.xlane.xlu0 %3412
        %v3414 = vsel %vm1510, %v3385, 0.0
        %3415 = vadd.xlane.f32.xlu0 %v3414
        %v3416 = vpop.xlane.xlu0 %3415
        %v3417 = vsel %vm1510, %v3387, 0.0
        %3418 = vadd.xlane.f32.xlu0 %v3417
        %v3419 = vpop.xlane.xlu0 %3418
        %v3420 = vsel %vm1510, %v3389, 0.0
        %3421 = vadd.xlane.f32.xlu0 %v3420
        %v3422 = vpop.xlane.xlu0 %3421
        %v3423 = vsel %vm1510, %v3391, 0.0
        %3424 = vadd.xlane.f32.xlu0 %v3423
        %v3425 = vpop.xlane.xlu0 %3424
        %v3426 = vsel %vm1510, %v3393, 0.0
        %3427 = vadd.xlane.f32.xlu0 %v3426
        %v3428 = vpop.xlane.xlu0 %3427
        %v3429 = vsel %vm1510, %v3395, 0.0
        %3430 = vadd.xlane.f32.xlu0 %v3429
        %v3431 = vpop.xlane.xlu0 %3430
        %v3432 = vrcp.pop %v3398
        %v3433 = vrcp.pop %v3401
        %v3434 = vrcp.pop %v3404
        %v3435 = vrcp.pop %v3407
        %v3436 = vrcp.pop %v3410
        %v3437 = vrcp.pop %v3413
        %v3438 = vrcp.pop %v3416
        %v3439 = vrcp.pop %v3419
        %v3440 = vrcp.pop %v3422
        %v3441 = vrcp.pop %v3425
        %v3442 = vrcp.pop %v3428
        %v3443 = vrcp.pop %v3431
        %v3444 = vmul.f32 %v3373, %v3432
        %v3445 = vmul.f32 %v3375, %v3433
        %v3446 = vmul.f32 %v3377, %v3434
        %v3447 = vmul.f32 %v3379, %v3435
        %v3448 = vmul.f32 %v3381, %v3436
        %v3449 = vmul.f32 %v3383, %v3437
        %v3450 = vmul.f32 %v3385, %v3438
        %v3451 = vmul.f32 %v3387, %v3439
        %v3452 = vmul.f32 %v3389, %v3440
        %v3453 = vmul.f32 %v3391, %v3441
        %v3454 = vmul.f32 %v3393, %v3442
        %v3455 = vmul.f32 %v3395, %v3443
        %v3456 = vpack.c.bf16 %v3445, %v3444
        %v3457 = vpack.c.bf16 %v3447, %v3446
        %v3458 = vpack.c.bf16 %v3449, %v3448
        %v3459 = vpack.c.bf16 %v3451, %v3450
        %v3460 = vpack.c.bf16 %v3453, %v3452
        %v3461 = vpack.c.bf16 %v3455, %v3454
        %3462 = vrot.lane.b32.xlu0 %v1494, 96
        %v3463 = vpop.permute.xlu0 %3462
        %v3466 = vsel %vm1510, %v3456, 0
        %3468 = vmatprep.subr.bf16.mxu0 0
        %3469 = vmatpush1.bf16.msra.mxu0 %v3463
        %3470 = vmatprep.subr.bf16.mxu0 0
        %3471 = vmatpush1.bf16.msra.mxu0 0
        %3472 = vmatprep.subr.bf16.mxu0 0
        %3473 = vmatpush1.bf16.msra.mxu0 0
        %3474 = vmatprep.subr.bf16.mxu0 0
        %3475 = vmatpush1.bf16.msra.mxu0 0
        %3476 = vmatprep.subr.bf16.mxu0 0
        %3477 = vmatpush1.bf16.msra.mxu0 0
        %3478 = vmatprep.subr.bf16.mxu0 0
        %3479 = vmatpush1.bf16.msra.mxu0 0
        %3480 = vmatprep.subr.bf16.mxu0 0
        %3481 = vmatpush1.bf16.msra.mxu0 0
        %3482 = vmatprep.subr.bf16.mxu0 0
        %3483 = vmatpush1.bf16.msra.mxu0 0
        %3484 = vmatprep.subr.bf16.mxu0 0
        %3485 = vmatpush1.bf16.msra.mxu0 0
        %3486 = vmatprep.subr.bf16.mxu0 0
        %3487 = vmatpush1.bf16.msra.mxu0 0
        %3488 = vmatprep.subr.bf16.mxu0 0
        %3489 = vmatpush1.bf16.msra.mxu0 0
        %3490 = vmatprep.subr.bf16.mxu0 0
        %3491 = vmatpush1.bf16.msra.mxu0 0
        %3492 = vmatprep.subr.bf16.mxu0 0
        %3493 = vmatpush1.bf16.msra.mxu0 0
        %3494 = vmatprep.subr.bf16.mxu0 0
        %3495 = vmatpush1.bf16.msra.mxu0 0
        %3496 = vmatprep.subr.bf16.mxu0 0
        %3497 = vmatpush1.bf16.msra.mxu0 0
        %3498 = vmatprep.subr.bf16.mxu0 0
        %3499 = vmatpush1.bf16.msra.mxu0 0
        %3500 = vmatprep.mubr.bf16.mxu0 0
        %3501 = vmatmul.mubr.bf16.gmra.mrb[0].mxu0 %v3466
        %v3502 = vpop.f32.mrb[0].mxu0
        %v3503 = vadd.f32 0.0, %v3502
        %v3504 = vpop.f32.mrb[0].mxu0
        %v3505 = vpop.f32.mrb[0].mxu0
        %v3506 = vadd.f32 0.0, %v3505
        %v3507 = vpop.f32.mrb[0].mxu0
        %3508 = vdwg.mxu0
        %3509 = vrot.lane.b32.xlu0 %v1495, 96
        %v3510 = vpop.permute.xlu0 %3509
        %v3513 = vsel %vm1510, %v3457, 0
        %3515 = vmatprep.subr.bf16.mxu0 0
        %3516 = vmatpush1.bf16.msra.mxu0 %v3510
        %3517 = vmatprep.subr.bf16.mxu0 0
        %3518 = vmatpush1.bf16.msra.mxu0 0
        %3519 = vmatprep.subr.bf16.mxu0 0
        %3520 = vmatpush1.bf16.msra.mxu0 0
        %3521 = vmatprep.subr.bf16.mxu0 0
        %3522 = vmatpush1.bf16.msra.mxu0 0
        %3523 = vmatprep.subr.bf16.mxu0 0
        %3524 = vmatpush1.bf16.msra.mxu0 0
        %3525 = vmatprep.subr.bf16.mxu0 0
        %3526 = vmatpush1.bf16.msra.mxu0 0
        %3527 = vmatprep.subr.bf16.mxu0 0
        %3528 = vmatpush1.bf16.msra.mxu0 0
        %3529 = vmatprep.subr.bf16.mxu0 0
        %3530 = vmatpush1.bf16.msra.mxu0 0
        %3531 = vmatprep.subr.bf16.mxu0 0
        %3532 = vmatpush1.bf16.msra.mxu0 0
        %3533 = vmatprep.subr.bf16.mxu0 0
        %3534 = vmatpush1.bf16.msra.mxu0 0
        %3535 = vmatprep.subr.bf16.mxu0 0
        %3536 = vmatpush1.bf16.msra.mxu0 0
        %3537 = vmatprep.subr.bf16.mxu0 0
        %3538 = vmatpush1.bf16.msra.mxu0 0
        %3539 = vmatprep.subr.bf16.mxu0 0
        %3540 = vmatpush1.bf16.msra.mxu0 0
        %3541 = vmatprep.subr.bf16.mxu0 0
        %3542 = vmatpush1.bf16.msra.mxu0 0
        %3543 = vmatprep.subr.bf16.mxu0 0
        %3544 = vmatpush1.bf16.msra.mxu0 0
        %3545 = vmatprep.subr.bf16.mxu0 0
        %3546 = vmatpush1.bf16.msra.mxu0 0
        %3547 = vmatprep.mubr.bf16.mxu0 0
        %3548 = vmatmul.mubr.bf16.gmra.mrb[0].mxu0 %v3513
        %v3549 = vpop.f32.mrb[0].mxu0
        %v3550 = vadd.f32 0.0, %v3549
        %v3551 = vpop.f32.mrb[0].mxu0
        %v3552 = vpop.f32.mrb[0].mxu0
        %v3553 = vadd.f32 0.0, %v3552
        %v3554 = vpop.f32.mrb[0].mxu0
        %3555 = vdwg.mxu0
        %3556 = vrot.lane.b32.xlu0 %v1496, 96
        %v3557 = vpop.permute.xlu0 %3556
        %v3560 = vsel %vm1510, %v3458, 0
        %3562 = vmatprep.subr.bf16.mxu0 0
        %3563 = vmatpush1.bf16.msra.mxu0 %v3557
        %3564 = vmatprep.subr.bf16.mxu0 0
        %3565 = vmatpush1.bf16.msra.mxu0 0
        %3566 = vmatprep.subr.bf16.mxu0 0
        %3567 = vmatpush1.bf16.msra.mxu0 0
        %3568 = vmatprep.subr.bf16.mxu0 0
        %3569 = vmatpush1.bf16.msra.mxu0 0
        %3570 = vmatprep.subr.bf16.mxu0 0
        %3571 = vmatpush1.bf16.msra.mxu0 0
        %3572 = vmatprep.subr.bf16.mxu0 0
        %3573 = vmatpush1.bf16.msra.mxu0 0
        %3574 = vmatprep.subr.bf16.mxu0 0
        %3575 = vmatpush1.bf16.msra.mxu0 0
        %3576 = vmatprep.subr.bf16.mxu0 0
        %3577 = vmatpush1.bf16.msra.mxu0 0
        %3578 = vmatprep.subr.bf16.mxu0 0
        %3579 = vmatpush1.bf16.msra.mxu0 0
        %3580 = vmatprep.subr.bf16.mxu0 0
        %3581 = vmatpush1.bf16.msra.mxu0 0
        %3582 = vmatprep.subr.bf16.mxu0 0
        %3583 = vmatpush1.bf16.msra.mxu0 0
        %3584 = vmatprep.subr.bf16.mxu0 0
        %3585 = vmatpush1.bf16.msra.mxu0 0
        %3586 = vmatprep.subr.bf16.mxu0 0
        %3587 = vmatpush1.bf16.msra.mxu0 0
        %3588 = vmatprep.subr.bf16.mxu0 0
        %3589 = vmatpush1.bf16.msra.mxu0 0
        %3590 = vmatprep.subr.bf16.mxu0 0
        %3591 = vmatpush1.bf16.msra.mxu0 0
        %3592 = vmatprep.subr.bf16.mxu0 0
        %3593 = vmatpush1.bf16.msra.mxu0 0
        %3594 = vmatprep.mubr.bf16.mxu0 0
        %3595 = vmatmul.mubr.bf16.gmra.mrb[0].mxu0 %v3560
        %v3596 = vpop.f32.mrb[0].mxu0
        %v3597 = vadd.f32 0.0, %v3596
        %v3598 = vpop.f32.mrb[0].mxu0
        %v3599 = vpop.f32.mrb[0].mxu0
        %v3600 = vadd.f32 0.0, %v3599
        %v3601 = vpop.f32.mrb[0].mxu0
        %3602 = vdwg.mxu0
        %3603 = vrot.lane.b32.xlu0 %v1497, 96
        %v3604 = vpop.permute.xlu0 %3603
        %v3607 = vsel %vm1510, %v3459, 0
        %3609 = vmatprep.subr.bf16.mxu0 0
        %3610 = vmatpush1.bf16.msra.mxu0 %v3604
        %3611 = vmatprep.subr.bf16.mxu0 0
        %3612 = vmatpush1.bf16.msra.mxu0 0
        %3613 = vmatprep.subr.bf16.mxu0 0
        %3614 = vmatpush1.bf16.msra.mxu0 0
        %3615 = vmatprep.subr.bf16.mxu0 0
        %3616 = vmatpush1.bf16.msra.mxu0 0
        %3617 = vmatprep.subr.bf16.mxu0 0
        %3618 = vmatpush1.bf16.msra.mxu0 0
        %3619 = vmatprep.subr.bf16.mxu0 0
        %3620 = vmatpush1.bf16.msra.mxu0 0
        %3621 = vmatprep.subr.bf16.mxu0 0
        %3622 = vmatpush1.bf16.msra.mxu0 0
        %3623 = vmatprep.subr.bf16.mxu0 0
        %3624 = vmatpush1.bf16.msra.mxu0 0
        %3625 = vmatprep.subr.bf16.mxu0 0
        %3626 = vmatpush1.bf16.msra.mxu0 0
        %3627 = vmatprep.subr.bf16.mxu0 0
        %3628 = vmatpush1.bf16.msra.mxu0 0
        %3629 = vmatprep.subr.bf16.mxu0 0
        %3630 = vmatpush1.bf16.msra.mxu0 0
        %3631 = vmatprep.subr.bf16.mxu0 0
        %3632 = vmatpush1.bf16.msra.mxu0 0
        %3633 = vmatprep.subr.bf16.mxu0 0
        %3634 = vmatpush1.bf16.msra.mxu0 0
        %3635 = vmatprep.subr.bf16.mxu0 0
        %3636 = vmatpush1.bf16.msra.mxu0 0
        %3637 = vmatprep.subr.bf16.mxu0 0
        %3638 = vmatpush1.bf16.msra.mxu0 0
        %3639 = vmatprep.subr.bf16.mxu0 0
        %3640 = vmatpush1.bf16.msra.mxu0 0
        %3641 = vmatprep.mubr.bf16.mxu0 0
        %3642 = vmatmul.mubr.bf16.gmra.mrb[0].mxu0 %v3607
        %v3643 = vpop.f32.mrb[0].mxu0
        %v3644 = vadd.f32 0.0, %v3643
        %v3645 = vpop.f32.mrb[0].mxu0
        %v3646 = vpop.f32.mrb[0].mxu0
        %v3647 = vadd.f32 0.0, %v3646
        %v3648 = vpop.f32.mrb[0].mxu0
        %3649 = vdwg.mxu0
        %3650 = vrot.lane.b32.xlu0 %v1498, 96
        %v3651 = vpop.permute.xlu0 %3650
        %v3654 = vsel %vm1510, %v3460, 0
        %3656 = vmatprep.subr.bf16.mxu0 0
        %3657 = vmatpush1.bf16.msra.mxu0 %v3651
        %3658 = vmatprep.subr.bf16.mxu0 0
        %3659 = vmatpush1.bf16.msra.mxu0 0
        %3660 = vmatprep.subr.bf16.mxu0 0
        %3661 = vmatpush1.bf16.msra.mxu0 0
        %3662 = vmatprep.subr.bf16.mxu0 0
        %3663 = vmatpush1.bf16.msra.mxu0 0
        %3664 = vmatprep.subr.bf16.mxu0 0
        %3665 = vmatpush1.bf16.msra.mxu0 0
        %3666 = vmatprep.subr.bf16.mxu0 0
        %3667 = vmatpush1.bf16.msra.mxu0 0
        %3668 = vmatprep.subr.bf16.mxu0 0
        %3669 = vmatpush1.bf16.msra.mxu0 0
        %3670 = vmatprep.subr.bf16.mxu0 0
        %3671 = vmatpush1.bf16.msra.mxu0 0
        %3672 = vmatprep.subr.bf16.mxu0 0
        %3673 = vmatpush1.bf16.msra.mxu0 0
        %3674 = vmatprep.subr.bf16.mxu0 0
        %3675 = vmatpush1.bf16.msra.mxu0 0
        %3676 = vmatprep.subr.bf16.mxu0 0
        %3677 = vmatpush1.bf16.msra.mxu0 0
        %3678 = vmatprep.subr.bf16.mxu0 0
        %3679 = vmatpush1.bf16.msra.mxu0 0
        %3680 = vmatprep.subr.bf16.mxu0 0
        %3681 = vmatpush1.bf16.msra.mxu0 0
        %3682 = vmatprep.subr.bf16.mxu0 0
        %3683 = vmatpush1.bf16.msra.mxu0 0
        %3684 = vmatprep.subr.bf16.mxu0 0
        %3685 = vmatpush1.bf16.msra.mxu0 0
        %3686 = vmatprep.subr.bf16.mxu0 0
        %3687 = vmatpush1.bf16.msra.mxu0 0
        %3688 = vmatprep.mubr.bf16.mxu0 0
        %3689 = vmatmul.mubr.bf16.gmra.mrb[0].mxu0 %v3654
        %v3690 = vpop.f32.mrb[0].mxu0
        %v3691 = vadd.f32 0.0, %v3690
        %v3692 = vpop.f32.mrb[0].mxu0
        %v3693 = vpop.f32.mrb[0].mxu0
        %v3694 = vadd.f32 0.0, %v3693
        %v3695 = vpop.f32.mrb[0].mxu0
        %3696 = vdwg.mxu0
        %3697 = vrot.lane.b32.xlu0 %v1499, 96
        %v3698 = vpop.permute.xlu0 %3697
        %v3701 = vsel %vm1510, %v3461, 0
        %3703 = vmatprep.subr.bf16.mxu0 0
        %3704 = vmatpush1.bf16.msra.mxu0 %v3698
        %3705 = vmatprep.subr.bf16.mxu0 0
        %3706 = vmatpush1.bf16.msra.mxu0 0
        %3707 = vmatprep.subr.bf16.mxu0 0
        %3708 = vmatpush1.bf16.msra.mxu0 0
        %3709 = vmatprep.subr.bf16.mxu0 0
        %3710 = vmatpush1.bf16.msra.mxu0 0
        %3711 = vmatprep.subr.bf16.mxu0 0
        %3712 = vmatpush1.bf16.msra.mxu0 0
        %3713 = vmatprep.subr.bf16.mxu0 0
        %3714 = vmatpush1.bf16.msra.mxu0 0
        %3715 = vmatprep.subr.bf16.mxu0 0
        %3716 = vmatpush1.bf16.msra.mxu0 0
        %3717 = vmatprep.subr.bf16.mxu0 0
        %3718 = vmatpush1.bf16.msra.mxu0 0
        %3719 = vmatprep.subr.bf16.mxu0 0
        %3720 = vmatpush1.bf16.msra.mxu0 0
        %3721 = vmatprep.subr.bf16.mxu0 0
        %3722 = vmatpush1.bf16.msra.mxu0 0
        %3723 = vmatprep.subr.bf16.mxu0 0
        %3724 = vmatpush1.bf16.msra.mxu0 0
        %3725 = vmatprep.subr.bf16.mxu0 0
        %3726 = vmatpush1.bf16.msra.mxu0 0
        %3727 = vmatprep.subr.bf16.mxu0 0
        %3728 = vmatpush1.bf16.msra.mxu0 0
        %3729 = vmatprep.subr.bf16.mxu0 0
        %3730 = vmatpush1.bf16.msra.mxu0 0
        %3731 = vmatprep.subr.bf16.mxu0 0
        %3732 = vmatpush1.bf16.msra.mxu0 0
        %3733 = vmatprep.subr.bf16.mxu0 0
        %3734 = vmatpush1.bf16.msra.mxu0 0
        %3735 = vmatprep.mubr.bf16.mxu0 0
        %3736 = vmatmul.mubr.bf16.gmra.mrb[0].mxu0 %v3701
        %v3737 = vpop.f32.mrb[0].mxu0
        %v3738 = vadd.f32 0.0, %v3737
        %v3739 = vpop.f32.mrb[0].mxu0
        %v3740 = vpop.f32.mrb[0].mxu0
        %v3741 = vadd.f32 0.0, %v3740
        %v3742 = vpop.f32.mrb[0].mxu0
        %3743 = vdwg.mxu0
        %3744 = vrot.lane.b32.xlu0 %v1488, 80
        %v3745 = vpop.permute.xlu0 %3744
        %3746 = vrot.lane.b32.xlu0 %v1488, 16
        %v3747 = vpop.permute.xlu0 %3746
        %v3749 = vsel %vm1510, %v3745, 0
        %v3752 = vsel %vm1510, %v3747, 0
        %3754 = vmatprep.subr.bf16.mxu0 0
        %3755 = vmatpush1.bf16.xpose.msra.mxu0 %v3752
        %3756 = vmatprep.subr.bf16.mxu0 0
        %3757 = vmatpush1.bf16.xpose.msra.mxu0 0
        %3758 = vmatprep.subr.bf16.mxu0 0
        %3759 = vmatpush1.bf16.xpose.msra.mxu0 0
        %3760 = vmatprep.subr.bf16.mxu0 0
        %3761 = vmatpush1.bf16.xpose.msra.mxu0 0
        %3762 = vmatprep.subr.bf16.mxu0 0
        %3763 = vmatpush1.bf16.xpose.msra.mxu0 0
        %3764 = vmatprep.subr.bf16.mxu0 0
        %3765 = vmatpush1.bf16.xpose.msra.mxu0 0
        %3766 = vmatprep.subr.bf16.mxu0 0
        %3767 = vmatpush1.bf16.xpose.msra.mxu0 0
        %3768 = vmatprep.subr.bf16.mxu0 0
        %3769 = vmatpush1.bf16.xpose.msra.mxu0 0
        %3770 = vmatprep.subr.bf16.mxu0 0
        %3771 = vmatpush1.bf16.xpose.msra.mxu0 0
        %3772 = vmatprep.subr.bf16.mxu0 0
        %3773 = vmatpush1.bf16.xpose.msra.mxu0 0
        %3774 = vmatprep.subr.bf16.mxu0 0
        %3775 = vmatpush1.bf16.xpose.msra.mxu0 0
        %3776 = vmatprep.subr.bf16.mxu0 0
        %3777 = vmatpush1.bf16.xpose.msra.mxu0 0
        %3778 = vmatprep.subr.bf16.mxu0 0
        %3779 = vmatpush1.bf16.xpose.msra.mxu0 0
        %3780 = vmatprep.subr.bf16.mxu0 0
        %3781 = vmatpush1.bf16.xpose.msra.mxu0 0
        %3782 = vmatprep.subr.bf16.mxu0 0
        %3783 = vmatpush1.bf16.xpose.msra.mxu0 0
        %3784 = vmatprep.subr.bf16.mxu0 0
        %3785 = vmatpush1.bf16.xpose.msra.mxu0 0
        %3786 = vmatprep.mubr.bf16.mxu0 0
        %3787 = vmatmul.mubr.bf16.gmra.mrb[0].mxu0 %v3749
        %v3788 = vpop.f32.mrb[0].mxu0
        %v3789 = vadd.f32 0.0, %v3788
        %v3790 = vpop.f32.mrb[0].mxu0
        %v3791 = vpop.f32.mrb[0].mxu0
        %v3792 = vadd.f32 0.0, %v3791
        %v3793 = vpop.f32.mrb[0].mxu0
        %3794 = vdwg.mxu0
        %3795 = vrot.lane.b32.xlu0 %v1489, 80
        %v3796 = vpop.permute.xlu0 %3795
        %3797 = vrot.lane.b32.xlu0 %v1489, 16
        %v3798 = vpop.permute.xlu0 %3797
        %v3800 = vsel %vm1510, %v3796, 0
        %v3803 = vsel %vm1510, %v3798, 0
        %3805 = vmatprep.subr.bf16.mxu0 0
        %3806 = vmatpush1.bf16.xpose.msra.mxu0 %v3803
        %3807 = vmatprep.subr.bf16.mxu0 0
        %3808 = vmatpush1.bf16.xpose.msra.mxu0 0
        %3809 = vmatprep.subr.bf16.mxu0 0
        %3810 = vmatpush1.bf16.xpose.msra.mxu0 0
        %3811 = vmatprep.subr.bf16.mxu0 0
        %3812 = vmatpush1.bf16.xpose.msra.mxu0 0
        %3813 = vmatprep.subr.bf16.mxu0 0
        %3814 = vmatpush1.bf16.xpose.msra.mxu0 0
        %3815 = vmatprep.subr.bf16.mxu0 0
        %3816 = vmatpush1.bf16.xpose.msra.mxu0 0
        %3817 = vmatprep.subr.bf16.mxu0 0
        %3818 = vmatpush1.bf16.xpose.msra.mxu0 0
        %3819 = vmatprep.subr.bf16.mxu0 0
        %3820 = vmatpush1.bf16.xpose.msra.mxu0 0
        %3821 = vmatprep.subr.bf16.mxu0 0
        %3822 = vmatpush1.bf16.xpose.msra.mxu0 0
        %3823 = vmatprep.subr.bf16.mxu0 0
        %3824 = vmatpush1.bf16.xpose.msra.mxu0 0
        %3825 = vmatprep.subr.bf16.mxu0 0
        %3826 = vmatpush1.bf16.xpose.msra.mxu0 0
        %3827 = vmatprep.subr.bf16.mxu0 0
        %3828 = vmatpush1.bf16.xpose.msra.mxu0 0
        %3829 = vmatprep.subr.bf16.mxu0 0
        %3830 = vmatpush1.bf16.xpose.msra.mxu0 0
        %3831 = vmatprep.subr.bf16.mxu0 0
        %3832 = vmatpush1.bf16.xpose.msra.mxu0 0
        %3833 = vmatprep.subr.bf16.mxu0 0
        %3834 = vmatpush1.bf16.xpose.msra.mxu0 0
        %3835 = vmatprep.subr.bf16.mxu0 0
        %3836 = vmatpush1.bf16.xpose.msra.mxu0 0
        %3837 = vmatprep.mubr.bf16.mxu0 0
        %3838 = vmatmul.mubr.bf16.gmra.mrb[0].mxu0 %v3800
        %v3839 = vpop.f32.mrb[0].mxu0
        %v3840 = vadd.f32 0.0, %v3839
        %v3841 = vpop.f32.mrb[0].mxu0
        %v3842 = vpop.f32.mrb[0].mxu0
        %v3843 = vadd.f32 0.0, %v3842
        %v3844 = vpop.f32.mrb[0].mxu0
        %3845 = vdwg.mxu0
        %3846 = vrot.lane.b32.xlu0 %v1490, 80
        %v3847 = vpop.permute.xlu0 %3846
        %3848 = vrot.lane.b32.xlu0 %v1490, 16
        %v3849 = vpop.permute.xlu0 %3848
        %v3851 = vsel %vm1510, %v3847, 0
        %v3854 = vsel %vm1510, %v3849, 0
        %3856 = vmatprep.subr.bf16.mxu0 0
        %3857 = vmatpush1.bf16.xpose.msra.mxu0 %v3854
        %3858 = vmatprep.subr.bf16.mxu0 0
        %3859 = vmatpush1.bf16.xpose.msra.mxu0 0
        %3860 = vmatprep.subr.bf16.mxu0 0
        %3861 = vmatpush1.bf16.xpose.msra.mxu0 0
        %3862 = vmatprep.subr.bf16.mxu0 0
        %3863 = vmatpush1.bf16.xpose.msra.mxu0 0
        %3864 = vmatprep.subr.bf16.mxu0 0
        %3865 = vmatpush1.bf16.xpose.msra.mxu0 0
        %3866 = vmatprep.subr.bf16.mxu0 0
        %3867 = vmatpush1.bf16.xpose.msra.mxu0 0
        %3868 = vmatprep.subr.bf16.mxu0 0
        %3869 = vmatpush1.bf16.xpose.msra.mxu0 0
        %3870 = vmatprep.subr.bf16.mxu0 0
        %3871 = vmatpush1.bf16.xpose.msra.mxu0 0
        %3872 = vmatprep.subr.bf16.mxu0 0
        %3873 = vmatpush1.bf16.xpose.msra.mxu0 0
        %3874 = vmatprep.subr.bf16.mxu0 0
        %3875 = vmatpush1.bf16.xpose.msra.mxu0 0
        %3876 = vmatprep.subr.bf16.mxu0 0
        %3877 = vmatpush1.bf16.xpose.msra.mxu0 0
        %3878 = vmatprep.subr.bf16.mxu0 0
        %3879 = vmatpush1.bf16.xpose.msra.mxu0 0
        %3880 = vmatprep.subr.bf16.mxu0 0
        %3881 = vmatpush1.bf16.xpose.msra.mxu0 0
        %3882 = vmatprep.subr.bf16.mxu0 0
        %3883 = vmatpush1.bf16.xpose.msra.mxu0 0
        %3884 = vmatprep.subr.bf16.mxu0 0
        %3885 = vmatpush1.bf16.xpose.msra.mxu0 0
        %3886 = vmatprep.subr.bf16.mxu0 0
        %3887 = vmatpush1.bf16.xpose.msra.mxu0 0
        %3888 = vmatprep.mubr.bf16.mxu0 0
        %3889 = vmatmul.mubr.bf16.gmra.mrb[0].mxu0 %v3851
        %v3890 = vpop.f32.mrb[0].mxu0
        %v3891 = vadd.f32 0.0, %v3890
        %v3892 = vpop.f32.mrb[0].mxu0
        %v3893 = vpop.f32.mrb[0].mxu0
        %v3894 = vadd.f32 0.0, %v3893
        %v3895 = vpop.f32.mrb[0].mxu0
        %3896 = vdwg.mxu0
        %3897 = vrot.lane.b32.xlu0 %v1491, 80
        %v3898 = vpop.permute.xlu0 %3897
        %3899 = vrot.lane.b32.xlu0 %v1491, 16
        %v3900 = vpop.permute.xlu0 %3899
        %v3902 = vsel %vm1510, %v3898, 0
        %v3905 = vsel %vm1510, %v3900, 0
        %3907 = vmatprep.subr.bf16.mxu0 0
        %3908 = vmatpush1.bf16.xpose.msra.mxu0 %v3905
        %3909 = vmatprep.subr.bf16.mxu0 0
        %3910 = vmatpush1.bf16.xpose.msra.mxu0 0
        %3911 = vmatprep.subr.bf16.mxu0 0
        %3912 = vmatpush1.bf16.xpose.msra.mxu0 0
        %3913 = vmatprep.subr.bf16.mxu0 0
        %3914 = vmatpush1.bf16.xpose.msra.mxu0 0
        %3915 = vmatprep.subr.bf16.mxu0 0
        %3916 = vmatpush1.bf16.xpose.msra.mxu0 0
        %3917 = vmatprep.subr.bf16.mxu0 0
        %3918 = vmatpush1.bf16.xpose.msra.mxu0 0
        %3919 = vmatprep.subr.bf16.mxu0 0
        %3920 = vmatpush1.bf16.xpose.msra.mxu0 0
        %3921 = vmatprep.subr.bf16.mxu0 0
        %3922 = vmatpush1.bf16.xpose.msra.mxu0 0
        %3923 = vmatprep.subr.bf16.mxu0 0
        %3924 = vmatpush1.bf16.xpose.msra.mxu0 0
        %3925 = vmatprep.subr.bf16.mxu0 0
        %3926 = vmatpush1.bf16.xpose.msra.mxu0 0
        %3927 = vmatprep.subr.bf16.mxu0 0
        %3928 = vmatpush1.bf16.xpose.msra.mxu0 0
        %3929 = vmatprep.subr.bf16.mxu0 0
        %3930 = vmatpush1.bf16.xpose.msra.mxu0 0
        %3931 = vmatprep.subr.bf16.mxu0 0
        %3932 = vmatpush1.bf16.xpose.msra.mxu0 0
        %3933 = vmatprep.subr.bf16.mxu0 0
        %3934 = vmatpush1.bf16.xpose.msra.mxu0 0
        %3935 = vmatprep.subr.bf16.mxu0 0
        %3936 = vmatpush1.bf16.xpose.msra.mxu0 0
        %3937 = vmatprep.subr.bf16.mxu0 0
        %3938 = vmatpush1.bf16.xpose.msra.mxu0 0
        %3939 = vmatprep.mubr.bf16.mxu0 0
        %3940 = vmatmul.mubr.bf16.gmra.mrb[0].mxu0 %v3902
        %v3941 = vpop.f32.mrb[0].mxu0
        %v3942 = vadd.f32 0.0, %v3941
        %v3943 = vpop.f32.mrb[0].mxu0
        %v3944 = vpop.f32.mrb[0].mxu0
        %v3945 = vadd.f32 0.0, %v3944
        %v3946 = vpop.f32.mrb[0].mxu0
        %3947 = vdwg.mxu0
        %3948 = vrot.lane.b32.xlu0 %v1492, 80
        %v3949 = vpop.permute.xlu0 %3948
        %3950 = vrot.lane.b32.xlu0 %v1492, 16
        %v3951 = vpop.permute.xlu0 %3950
        %v3953 = vsel %vm1510, %v3949, 0
        %v3956 = vsel %vm1510, %v3951, 0
        %3958 = vmatprep.subr.bf16.mxu0 0
        %3959 = vmatpush1.bf16.xpose.msra.mxu0 %v3956
        %3960 = vmatprep.subr.bf16.mxu0 0
        %3961 = vmatpush1.bf16.xpose.msra.mxu0 0
        %3962 = vmatprep.subr.bf16.mxu0 0
        %3963 = vmatpush1.bf16.xpose.msra.mxu0 0
        %3964 = vmatprep.subr.bf16.mxu0 0
        %3965 = vmatpush1.bf16.xpose.msra.mxu0 0
        %3966 = vmatprep.subr.bf16.mxu0 0
        %3967 = vmatpush1.bf16.xpose.msra.mxu0 0
        %3968 = vmatprep.subr.bf16.mxu0 0
        %3969 = vmatpush1.bf16.xpose.msra.mxu0 0
        %3970 = vmatprep.subr.bf16.mxu0 0
        %3971 = vmatpush1.bf16.xpose.msra.mxu0 0
        %3972 = vmatprep.subr.bf16.mxu0 0
        %3973 = vmatpush1.bf16.xpose.msra.mxu0 0
        %3974 = vmatprep.subr.bf16.mxu0 0
        %3975 = vmatpush1.bf16.xpose.msra.mxu0 0
        %3976 = vmatprep.subr.bf16.mxu0 0
        %3977 = vmatpush1.bf16.xpose.msra.mxu0 0
        %3978 = vmatprep.subr.bf16.mxu0 0
        %3979 = vmatpush1.bf16.xpose.msra.mxu0 0
        %3980 = vmatprep.subr.bf16.mxu0 0
        %3981 = vmatpush1.bf16.xpose.msra.mxu0 0
        %3982 = vmatprep.subr.bf16.mxu0 0
        %3983 = vmatpush1.bf16.xpose.msra.mxu0 0
        %3984 = vmatprep.subr.bf16.mxu0 0
        %3985 = vmatpush1.bf16.xpose.msra.mxu0 0
        %3986 = vmatprep.subr.bf16.mxu0 0
        %3987 = vmatpush1.bf16.xpose.msra.mxu0 0
        %3988 = vmatprep.subr.bf16.mxu0 0
        %3989 = vmatpush1.bf16.xpose.msra.mxu0 0
        %3990 = vmatprep.mubr.bf16.mxu0 0
        %3991 = vmatmul.mubr.bf16.gmra.mrb[0].mxu0 %v3953
        %v3992 = vpop.f32.mrb[0].mxu0
        %v3993 = vadd.f32 0.0, %v3992
        %v3994 = vpop.f32.mrb[0].mxu0
        %v3995 = vpop.f32.mrb[0].mxu0
        %v3996 = vadd.f32 0.0, %v3995
        %v3997 = vpop.f32.mrb[0].mxu0
        %3998 = vdwg.mxu0
        %3999 = vrot.lane.b32.xlu0 %v1493, 80
        %v4000 = vpop.permute.xlu0 %3999
        %4001 = vrot.lane.b32.xlu0 %v1493, 16
        %v4002 = vpop.permute.xlu0 %4001
        %v4004 = vsel %vm1510, %v4000, 0
        %v4007 = vsel %vm1510, %v4002, 0
        %4009 = vmatprep.subr.bf16.mxu0 0
        %4010 = vmatpush1.bf16.xpose.msra.mxu0 %v4007
        %4011 = vmatprep.subr.bf16.mxu0 0
        %4012 = vmatpush1.bf16.xpose.msra.mxu0 0
        %4013 = vmatprep.subr.bf16.mxu0 0
        %4014 = vmatpush1.bf16.xpose.msra.mxu0 0
        %4015 = vmatprep.subr.bf16.mxu0 0
        %4016 = vmatpush1.bf16.xpose.msra.mxu0 0
        %4017 = vmatprep.subr.bf16.mxu0 0
        %4018 = vmatpush1.bf16.xpose.msra.mxu0 0
        %4019 = vmatprep.subr.bf16.mxu0 0
        %4020 = vmatpush1.bf16.xpose.msra.mxu0 0
        %4021 = vmatprep.subr.bf16.mxu0 0
        %4022 = vmatpush1.bf16.xpose.msra.mxu0 0
        %4023 = vmatprep.subr.bf16.mxu0 0
        %4024 = vmatpush1.bf16.xpose.msra.mxu0 0
        %4025 = vmatprep.subr.bf16.mxu0 0
        %4026 = vmatpush1.bf16.xpose.msra.mxu0 0
        %4027 = vmatprep.subr.bf16.mxu0 0
        %4028 = vmatpush1.bf16.xpose.msra.mxu0 0
        %4029 = vmatprep.subr.bf16.mxu0 0
        %4030 = vmatpush1.bf16.xpose.msra.mxu0 0
        %4031 = vmatprep.subr.bf16.mxu0 0
        %4032 = vmatpush1.bf16.xpose.msra.mxu0 0
        %4033 = vmatprep.subr.bf16.mxu0 0
        %4034 = vmatpush1.bf16.xpose.msra.mxu0 0
        %4035 = vmatprep.subr.bf16.mxu0 0
        %4036 = vmatpush1.bf16.xpose.msra.mxu0 0
        %4037 = vmatprep.subr.bf16.mxu0 0
        %4038 = vmatpush1.bf16.xpose.msra.mxu0 0
        %4039 = vmatprep.subr.bf16.mxu0 0
        %4040 = vmatpush1.bf16.xpose.msra.mxu0 0
        %4041 = vmatprep.mubr.bf16.mxu0 0
        %4042 = vmatmul.mubr.bf16.gmra.mrb[0].mxu0 %v4004
        %v4043 = vpop.f32.mrb[0].mxu0
        %v4044 = vadd.f32 0.0, %v4043
        %v4045 = vpop.f32.mrb[0].mxu0
        %v4046 = vpop.f32.mrb[0].mxu0
        %v4047 = vadd.f32 0.0, %v4046
        %v4048 = vpop.f32.mrb[0].mxu0
        %4049 = vdwg.mxu0
        %v4050 = vmul.f32 %v3789, 0.25
        %v4051 = vmul.f32 %v3792, 0.25
        %v4052 = vmul.f32 %v3840, 0.25
        %v4053 = vmul.f32 %v3843, 0.25
        %v4054 = vmul.f32 %v3891, 0.25
        %v4055 = vmul.f32 %v3894, 0.25
        %v4056 = vmul.f32 %v3942, 0.25
        %v4057 = vmul.f32 %v3945, 0.25
        %v4058 = vmul.f32 %v3993, 0.25
        %v4059 = vmul.f32 %v3996, 0.25
        %v4060 = vmul.f32 %v4044, 0.25
        %v4061 = vmul.f32 %v4047, 0.25
        %v4062 = vsel %vm1822, %v4050, -1e+30
        %v4063 = vsel %vm1823, %v4051, -1e+30
        %v4064 = vsel %vm1822, %v4052, -1e+30
        %v4065 = vsel %vm1823, %v4053, -1e+30
        %v4066 = vsel %vm1822, %v4054, -1e+30
        %v4067 = vsel %vm1823, %v4055, -1e+30
        %v4068 = vsel %vm1822, %v4056, -1e+30
        %v4069 = vsel %vm1823, %v4057, -1e+30
        %v4070 = vsel %vm1822, %v4058, -1e+30
        %v4071 = vsel %vm1823, %v4059, -1e+30
        %v4072 = vsel %vm1822, %v4060, -1e+30
        %v4073 = vsel %vm1823, %v4061, -1e+30
        %v4074 = vsel %vm1510, %v4062, -inf
        %4075 = vmax.xlane.f32.xlu0 %v4074
        %v4076 = vpop.xlane.xlu0 %4075
        %v4077 = vsel %vm1510, %v4063, -inf
        %4078 = vmax.xlane.f32.xlu0 %v4077
        %v4079 = vpop.xlane.xlu0 %4078
        %v4080 = vsel %vm1510, %v4064, -inf
        %4081 = vmax.xlane.f32.xlu0 %v4080
        %v4082 = vpop.xlane.xlu0 %4081
        %v4083 = vsel %vm1510, %v4065, -inf
        %4084 = vmax.xlane.f32.xlu0 %v4083
        %v4085 = vpop.xlane.xlu0 %4084
        %v4086 = vsel %vm1510, %v4066, -inf
        %4087 = vmax.xlane.f32.xlu0 %v4086
        %v4088 = vpop.xlane.xlu0 %4087
        %v4089 = vsel %vm1510, %v4067, -inf
        %4090 = vmax.xlane.f32.xlu0 %v4089
        %v4091 = vpop.xlane.xlu0 %4090
        %v4092 = vsel %vm1510, %v4068, -inf
        %4093 = vmax.xlane.f32.xlu0 %v4092
        %v4094 = vpop.xlane.xlu0 %4093
        %v4095 = vsel %vm1510, %v4069, -inf
        %4096 = vmax.xlane.f32.xlu0 %v4095
        %v4097 = vpop.xlane.xlu0 %4096
        %v4098 = vsel %vm1510, %v4070, -inf
        %4099 = vmax.xlane.f32.xlu0 %v4098
        %v4100 = vpop.xlane.xlu0 %4099
        %v4101 = vsel %vm1510, %v4071, -inf
        %4102 = vmax.xlane.f32.xlu0 %v4101
        %v4103 = vpop.xlane.xlu0 %4102
        %v4104 = vsel %vm1510, %v4072, -inf
        %4105 = vmax.xlane.f32.xlu0 %v4104
        %v4106 = vpop.xlane.xlu0 %4105
        %v4107 = vsel %vm1510, %v4073, -inf
        %4108 = vmax.xlane.f32.xlu0 %v4107
        %v4109 = vpop.xlane.xlu0 %4108
        %v4110 = vsub.f32 %v4062, %v4076
        %v4111 = vsub.f32 %v4063, %v4079
        %v4112 = vsub.f32 %v4064, %v4082
        %v4113 = vsub.f32 %v4065, %v4085
        %v4114 = vsub.f32 %v4066, %v4088
        %v4115 = vsub.f32 %v4067, %v4091
        %v4116 = vsub.f32 %v4068, %v4094
        %v4117 = vsub.f32 %v4069, %v4097
        %v4118 = vsub.f32 %v4070, %v4100
        %v4119 = vsub.f32 %v4071, %v4103
        %v4120 = vsub.f32 %v4072, %v4106
        %v4121 = vsub.f32 %v4073, %v4109
        %v4122 = vmul.f32 %v4110, 1.442695
        %v4123 = vpow.pop %v4122
        %v4124 = vmul.f32 %v4111, 1.442695
        %v4125 = vpow.pop %v4124
        %v4126 = vmul.f32 %v4112, 1.442695
        %v4127 = vpow.pop %v4126
        %v4128 = vmul.f32 %v4113, 1.442695
        %v4129 = vpow.pop %v4128
        %v4130 = vmul.f32 %v4114, 1.442695
        %v4131 = vpow.pop %v4130
        %v4132 = vmul.f32 %v4115, 1.442695
        %v4133 = vpow.pop %v4132
        %v4134 = vmul.f32 %v4116, 1.442695
        %v4135 = vpow.pop %v4134
        %v4136 = vmul.f32 %v4117, 1.442695
        %v4137 = vpow.pop %v4136
        %v4138 = vmul.f32 %v4118, 1.442695
        %v4139 = vpow.pop %v4138
        %v4140 = vmul.f32 %v4119, 1.442695
        %v4141 = vpow.pop %v4140
        %v4142 = vmul.f32 %v4120, 1.442695
        %v4143 = vpow.pop %v4142
        %v4144 = vmul.f32 %v4121, 1.442695
        %v4145 = vpow.pop %v4144
        %v4146 = vsel %vm1510, %v4123, 0.0
        %4147 = vadd.xlane.f32.xlu0 %v4146
        %v4148 = vpop.xlane.xlu0 %4147
        %v4149 = vsel %vm1510, %v4125, 0.0
        %4150 = vadd.xlane.f32.xlu0 %v4149
        %v4151 = vpop.xlane.xlu0 %4150
        %v4152 = vsel %vm1510, %v4127, 0.0
        %4153 = vadd.xlane.f32.xlu0 %v4152
        %v4154 = vpop.xlane.xlu0 %4153
        %v4155 = vsel %vm1510, %v4129, 0.0
        %4156 = vadd.xlane.f32.xlu0 %v4155
        %v4157 = vpop.xlane.xlu0 %4156
        %v4158 = vsel %vm1510, %v4131, 0.0
        %4159 = vadd.xlane.f32.xlu0 %v4158
        %v4160 = vpop.xlane.xlu0 %4159
        %v4161 = vsel %vm1510, %v4133, 0.0
        %4162 = vadd.xlane.f32.xlu0 %v4161
        %v4163 = vpop.xlane.xlu0 %4162
        %v4164 = vsel %vm1510, %v4135, 0.0
        %4165 = vadd.xlane.f32.xlu0 %v4164
        %v4166 = vpop.xlane.xlu0 %4165
        %v4167 = vsel %vm1510, %v4137, 0.0
        %4168 = vadd.xlane.f32.xlu0 %v4167
        %v4169 = vpop.xlane.xlu0 %4168
        %v4170 = vsel %vm1510, %v4139, 0.0
        %4171 = vadd.xlane.f32.xlu0 %v4170
        %v4172 = vpop.xlane.xlu0 %4171
        %v4173 = vsel %vm1510, %v4141, 0.0
        %4174 = vadd.xlane.f32.xlu0 %v4173
        %v4175 = vpop.xlane.xlu0 %4174
        %v4176 = vsel %vm1510, %v4143, 0.0
        %4177 = vadd.xlane.f32.xlu0 %v4176
        %v4178 = vpop.xlane.xlu0 %4177
        %v4179 = vsel %vm1510, %v4145, 0.0
        %4180 = vadd.xlane.f32.xlu0 %v4179
        %v4181 = vpop.xlane.xlu0 %4180
        %v4182 = vrcp.pop %v4148
        %v4183 = vrcp.pop %v4151
        %v4184 = vrcp.pop %v4154
        %v4185 = vrcp.pop %v4157
        %v4186 = vrcp.pop %v4160
        %v4187 = vrcp.pop %v4163
        %v4188 = vrcp.pop %v4166
        %v4189 = vrcp.pop %v4169
        %v4190 = vrcp.pop %v4172
        %v4191 = vrcp.pop %v4175
        %v4192 = vrcp.pop %v4178
        %v4193 = vrcp.pop %v4181
        %v4194 = vmul.f32 %v4123, %v4182
        %v4195 = vmul.f32 %v4125, %v4183
        %v4196 = vmul.f32 %v4127, %v4184
        %v4197 = vmul.f32 %v4129, %v4185
        %v4198 = vmul.f32 %v4131, %v4186
        %v4199 = vmul.f32 %v4133, %v4187
        %v4200 = vmul.f32 %v4135, %v4188
        %v4201 = vmul.f32 %v4137, %v4189
        %v4202 = vmul.f32 %v4139, %v4190
        %v4203 = vmul.f32 %v4141, %v4191
        %v4204 = vmul.f32 %v4143, %v4192
        %v4205 = vmul.f32 %v4145, %v4193
        %v4206 = vpack.c.bf16 %v4195, %v4194
        %v4207 = vpack.c.bf16 %v4197, %v4196
        %v4208 = vpack.c.bf16 %v4199, %v4198
        %v4209 = vpack.c.bf16 %v4201, %v4200
        %v4210 = vpack.c.bf16 %v4203, %v4202
        %v4211 = vpack.c.bf16 %v4205, %v4204
        %4212 = vrot.lane.b32.xlu0 %v1494, 80
        %v4213 = vpop.permute.xlu0 %4212
        %v4216 = vsel %vm1510, %v4206, 0
        %4218 = vmatprep.subr.bf16.mxu0 0
        %4219 = vmatpush1.bf16.msra.mxu0 %v4213
        %4220 = vmatprep.subr.bf16.mxu0 0
        %4221 = vmatpush1.bf16.msra.mxu0 0
        %4222 = vmatprep.subr.bf16.mxu0 0
        %4223 = vmatpush1.bf16.msra.mxu0 0
        %4224 = vmatprep.subr.bf16.mxu0 0
        %4225 = vmatpush1.bf16.msra.mxu0 0
        %4226 = vmatprep.subr.bf16.mxu0 0
        %4227 = vmatpush1.bf16.msra.mxu0 0
        %4228 = vmatprep.subr.bf16.mxu0 0
        %4229 = vmatpush1.bf16.msra.mxu0 0
        %4230 = vmatprep.subr.bf16.mxu0 0
        %4231 = vmatpush1.bf16.msra.mxu0 0
        %4232 = vmatprep.subr.bf16.mxu0 0
        %4233 = vmatpush1.bf16.msra.mxu0 0
        %4234 = vmatprep.subr.bf16.mxu0 0
        %4235 = vmatpush1.bf16.msra.mxu0 0
        %4236 = vmatprep.subr.bf16.mxu0 0
        %4237 = vmatpush1.bf16.msra.mxu0 0
        %4238 = vmatprep.subr.bf16.mxu0 0
        %4239 = vmatpush1.bf16.msra.mxu0 0
        %4240 = vmatprep.subr.bf16.mxu0 0
        %4241 = vmatpush1.bf16.msra.mxu0 0
        %4242 = vmatprep.subr.bf16.mxu0 0
        %4243 = vmatpush1.bf16.msra.mxu0 0
        %4244 = vmatprep.subr.bf16.mxu0 0
        %4245 = vmatpush1.bf16.msra.mxu0 0
        %4246 = vmatprep.subr.bf16.mxu0 0
        %4247 = vmatpush1.bf16.msra.mxu0 0
        %4248 = vmatprep.subr.bf16.mxu0 0
        %4249 = vmatpush1.bf16.msra.mxu0 0
        %4250 = vmatprep.mubr.bf16.mxu0 0
        %4251 = vmatmul.mubr.bf16.gmra.mrb[0].mxu0 %v4216
        %v4252 = vpop.f32.mrb[0].mxu0
        %v4253 = vadd.f32 0.0, %v4252
        %v4254 = vpop.f32.mrb[0].mxu0
        %v4255 = vpop.f32.mrb[0].mxu0
        %v4256 = vadd.f32 0.0, %v4255
        %v4257 = vpop.f32.mrb[0].mxu0
        %4258 = vdwg.mxu0
        %4259 = vrot.lane.b32.xlu0 %v1495, 80
        %v4260 = vpop.permute.xlu0 %4259
        %v4263 = vsel %vm1510, %v4207, 0
        %4265 = vmatprep.subr.bf16.mxu0 0
        %4266 = vmatpush1.bf16.msra.mxu0 %v4260
        %4267 = vmatprep.subr.bf16.mxu0 0
        %4268 = vmatpush1.bf16.msra.mxu0 0
        %4269 = vmatprep.subr.bf16.mxu0 0
        %4270 = vmatpush1.bf16.msra.mxu0 0
        %4271 = vmatprep.subr.bf16.mxu0 0
        %4272 = vmatpush1.bf16.msra.mxu0 0
        %4273 = vmatprep.subr.bf16.mxu0 0
        %4274 = vmatpush1.bf16.msra.mxu0 0
        %4275 = vmatprep.subr.bf16.mxu0 0
        %4276 = vmatpush1.bf16.msra.mxu0 0
        %4277 = vmatprep.subr.bf16.mxu0 0
        %4278 = vmatpush1.bf16.msra.mxu0 0
        %4279 = vmatprep.subr.bf16.mxu0 0
        %4280 = vmatpush1.bf16.msra.mxu0 0
        %4281 = vmatprep.subr.bf16.mxu0 0
        %4282 = vmatpush1.bf16.msra.mxu0 0
        %4283 = vmatprep.subr.bf16.mxu0 0
        %4284 = vmatpush1.bf16.msra.mxu0 0
        %4285 = vmatprep.subr.bf16.mxu0 0
        %4286 = vmatpush1.bf16.msra.mxu0 0
        %4287 = vmatprep.subr.bf16.mxu0 0
        %4288 = vmatpush1.bf16.msra.mxu0 0
        %4289 = vmatprep.subr.bf16.mxu0 0
        %4290 = vmatpush1.bf16.msra.mxu0 0
        %4291 = vmatprep.subr.bf16.mxu0 0
        %4292 = vmatpush1.bf16.msra.mxu0 0
        %4293 = vmatprep.subr.bf16.mxu0 0
        %4294 = vmatpush1.bf16.msra.mxu0 0
        %4295 = vmatprep.subr.bf16.mxu0 0
        %4296 = vmatpush1.bf16.msra.mxu0 0
        %4297 = vmatprep.mubr.bf16.mxu0 0
        %4298 = vmatmul.mubr.bf16.gmra.mrb[0].mxu0 %v4263
        %v4299 = vpop.f32.mrb[0].mxu0
        %v4300 = vadd.f32 0.0, %v4299
        %v4301 = vpop.f32.mrb[0].mxu0
        %v4302 = vpop.f32.mrb[0].mxu0
        %v4303 = vadd.f32 0.0, %v4302
        %v4304 = vpop.f32.mrb[0].mxu0
        %4305 = vdwg.mxu0
        %4306 = vrot.lane.b32.xlu0 %v1496, 80
        %v4307 = vpop.permute.xlu0 %4306
        %v4310 = vsel %vm1510, %v4208, 0
        %4312 = vmatprep.subr.bf16.mxu0 0
        %4313 = vmatpush1.bf16.msra.mxu0 %v4307
        %4314 = vmatprep.subr.bf16.mxu0 0
        %4315 = vmatpush1.bf16.msra.mxu0 0
        %4316 = vmatprep.subr.bf16.mxu0 0
        %4317 = vmatpush1.bf16.msra.mxu0 0
        %4318 = vmatprep.subr.bf16.mxu0 0
        %4319 = vmatpush1.bf16.msra.mxu0 0
        %4320 = vmatprep.subr.bf16.mxu0 0
        %4321 = vmatpush1.bf16.msra.mxu0 0
        %4322 = vmatprep.subr.bf16.mxu0 0
        %4323 = vmatpush1.bf16.msra.mxu0 0
        %4324 = vmatprep.subr.bf16.mxu0 0
        %4325 = vmatpush1.bf16.msra.mxu0 0
        %4326 = vmatprep.subr.bf16.mxu0 0
        %4327 = vmatpush1.bf16.msra.mxu0 0
        %4328 = vmatprep.subr.bf16.mxu0 0
        %4329 = vmatpush1.bf16.msra.mxu0 0
        %4330 = vmatprep.subr.bf16.mxu0 0
        %4331 = vmatpush1.bf16.msra.mxu0 0
        %4332 = vmatprep.subr.bf16.mxu0 0
        %4333 = vmatpush1.bf16.msra.mxu0 0
        %4334 = vmatprep.subr.bf16.mxu0 0
        %4335 = vmatpush1.bf16.msra.mxu0 0
        %4336 = vmatprep.subr.bf16.mxu0 0
        %4337 = vmatpush1.bf16.msra.mxu0 0
        %4338 = vmatprep.subr.bf16.mxu0 0
        %4339 = vmatpush1.bf16.msra.mxu0 0
        %4340 = vmatprep.subr.bf16.mxu0 0
        %4341 = vmatpush1.bf16.msra.mxu0 0
        %4342 = vmatprep.subr.bf16.mxu0 0
        %4343 = vmatpush1.bf16.msra.mxu0 0
        %4344 = vmatprep.mubr.bf16.mxu0 0
        %4345 = vmatmul.mubr.bf16.gmra.mrb[0].mxu0 %v4310
        %v4346 = vpop.f32.mrb[0].mxu0
        %v4347 = vadd.f32 0.0, %v4346
        %v4348 = vpop.f32.mrb[0].mxu0
        %v4349 = vpop.f32.mrb[0].mxu0
        %v4350 = vadd.f32 0.0, %v4349
        %v4351 = vpop.f32.mrb[0].mxu0
        %4352 = vdwg.mxu0
        %4353 = vrot.lane.b32.xlu0 %v1497, 80
        %v4354 = vpop.permute.xlu0 %4353
        %v4357 = vsel %vm1510, %v4209, 0
        %4359 = vmatprep.subr.bf16.mxu0 0
        %4360 = vmatpush1.bf16.msra.mxu0 %v4354
        %4361 = vmatprep.subr.bf16.mxu0 0
        %4362 = vmatpush1.bf16.msra.mxu0 0
        %4363 = vmatprep.subr.bf16.mxu0 0
        %4364 = vmatpush1.bf16.msra.mxu0 0
        %4365 = vmatprep.subr.bf16.mxu0 0
        %4366 = vmatpush1.bf16.msra.mxu0 0
        %4367 = vmatprep.subr.bf16.mxu0 0
        %4368 = vmatpush1.bf16.msra.mxu0 0
        %4369 = vmatprep.subr.bf16.mxu0 0
        %4370 = vmatpush1.bf16.msra.mxu0 0
        %4371 = vmatprep.subr.bf16.mxu0 0
        %4372 = vmatpush1.bf16.msra.mxu0 0
        %4373 = vmatprep.subr.bf16.mxu0 0
        %4374 = vmatpush1.bf16.msra.mxu0 0
        %4375 = vmatprep.subr.bf16.mxu0 0
        %4376 = vmatpush1.bf16.msra.mxu0 0
        %4377 = vmatprep.subr.bf16.mxu0 0
        %4378 = vmatpush1.bf16.msra.mxu0 0
        %4379 = vmatprep.subr.bf16.mxu0 0
        %4380 = vmatpush1.bf16.msra.mxu0 0
        %4381 = vmatprep.subr.bf16.mxu0 0
        %4382 = vmatpush1.bf16.msra.mxu0 0
        %4383 = vmatprep.subr.bf16.mxu0 0
        %4384 = vmatpush1.bf16.msra.mxu0 0
        %4385 = vmatprep.subr.bf16.mxu0 0
        %4386 = vmatpush1.bf16.msra.mxu0 0
        %4387 = vmatprep.subr.bf16.mxu0 0
        %4388 = vmatpush1.bf16.msra.mxu0 0
        %4389 = vmatprep.subr.bf16.mxu0 0
        %4390 = vmatpush1.bf16.msra.mxu0 0
        %4391 = vmatprep.mubr.bf16.mxu0 0
        %4392 = vmatmul.mubr.bf16.gmra.mrb[0].mxu0 %v4357
        %v4393 = vpop.f32.mrb[0].mxu0
        %v4394 = vadd.f32 0.0, %v4393
        %v4395 = vpop.f32.mrb[0].mxu0
        %v4396 = vpop.f32.mrb[0].mxu0
        %v4397 = vadd.f32 0.0, %v4396
        %v4398 = vpop.f32.mrb[0].mxu0
        %4399 = vdwg.mxu0
        %4400 = vrot.lane.b32.xlu0 %v1498, 80
        %v4401 = vpop.permute.xlu0 %4400
        %v4404 = vsel %vm1510, %v4210, 0
        %4406 = vmatprep.subr.bf16.mxu0 0
        %4407 = vmatpush1.bf16.msra.mxu0 %v4401
        %4408 = vmatprep.subr.bf16.mxu0 0
        %4409 = vmatpush1.bf16.msra.mxu0 0
        %4410 = vmatprep.subr.bf16.mxu0 0
        %4411 = vmatpush1.bf16.msra.mxu0 0
        %4412 = vmatprep.subr.bf16.mxu0 0
        %4413 = vmatpush1.bf16.msra.mxu0 0
        %4414 = vmatprep.subr.bf16.mxu0 0
        %4415 = vmatpush1.bf16.msra.mxu0 0
        %4416 = vmatprep.subr.bf16.mxu0 0
        %4417 = vmatpush1.bf16.msra.mxu0 0
        %4418 = vmatprep.subr.bf16.mxu0 0
        %4419 = vmatpush1.bf16.msra.mxu0 0
        %4420 = vmatprep.subr.bf16.mxu0 0
        %4421 = vmatpush1.bf16.msra.mxu0 0
        %4422 = vmatprep.subr.bf16.mxu0 0
        %4423 = vmatpush1.bf16.msra.mxu0 0
        %4424 = vmatprep.subr.bf16.mxu0 0
        %4425 = vmatpush1.bf16.msra.mxu0 0
        %4426 = vmatprep.subr.bf16.mxu0 0
        %4427 = vmatpush1.bf16.msra.mxu0 0
        %4428 = vmatprep.subr.bf16.mxu0 0
        %4429 = vmatpush1.bf16.msra.mxu0 0
        %4430 = vmatprep.subr.bf16.mxu0 0
        %4431 = vmatpush1.bf16.msra.mxu0 0
        %4432 = vmatprep.subr.bf16.mxu0 0
        %4433 = vmatpush1.bf16.msra.mxu0 0
        %4434 = vmatprep.subr.bf16.mxu0 0
        %4435 = vmatpush1.bf16.msra.mxu0 0
        %4436 = vmatprep.subr.bf16.mxu0 0
        %4437 = vmatpush1.bf16.msra.mxu0 0
        %4438 = vmatprep.mubr.bf16.mxu0 0
        %4439 = vmatmul.mubr.bf16.gmra.mrb[0].mxu0 %v4404
        %v4440 = vpop.f32.mrb[0].mxu0
        %v4441 = vadd.f32 0.0, %v4440
        %v4442 = vpop.f32.mrb[0].mxu0
        %v4443 = vpop.f32.mrb[0].mxu0
        %v4444 = vadd.f32 0.0, %v4443
        %v4445 = vpop.f32.mrb[0].mxu0
        %4446 = vdwg.mxu0
        %4447 = vrot.lane.b32.xlu0 %v1499, 80
        %v4448 = vpop.permute.xlu0 %4447
        %v4451 = vsel %vm1510, %v4211, 0
        %4453 = vmatprep.subr.bf16.mxu0 0
        %4454 = vmatpush1.bf16.msra.mxu0 %v4448
        %4455 = vmatprep.subr.bf16.mxu0 0
        %4456 = vmatpush1.bf16.msra.mxu0 0
        %4457 = vmatprep.subr.bf16.mxu0 0
        %4458 = vmatpush1.bf16.msra.mxu0 0
        %4459 = vmatprep.subr.bf16.mxu0 0
        %4460 = vmatpush1.bf16.msra.mxu0 0
        %4461 = vmatprep.subr.bf16.mxu0 0
        %4462 = vmatpush1.bf16.msra.mxu0 0
        %4463 = vmatprep.subr.bf16.mxu0 0
        %4464 = vmatpush1.bf16.msra.mxu0 0
        %4465 = vmatprep.subr.bf16.mxu0 0
        %4466 = vmatpush1.bf16.msra.mxu0 0
        %4467 = vmatprep.subr.bf16.mxu0 0
        %4468 = vmatpush1.bf16.msra.mxu0 0
        %4469 = vmatprep.subr.bf16.mxu0 0
        %4470 = vmatpush1.bf16.msra.mxu0 0
        %4471 = vmatprep.subr.bf16.mxu0 0
        %4472 = vmatpush1.bf16.msra.mxu0 0
        %4473 = vmatprep.subr.bf16.mxu0 0
        %4474 = vmatpush1.bf16.msra.mxu0 0
        %4475 = vmatprep.subr.bf16.mxu0 0
        %4476 = vmatpush1.bf16.msra.mxu0 0
        %4477 = vmatprep.subr.bf16.mxu0 0
        %4478 = vmatpush1.bf16.msra.mxu0 0
        %4479 = vmatprep.subr.bf16.mxu0 0
        %4480 = vmatpush1.bf16.msra.mxu0 0
        %4481 = vmatprep.subr.bf16.mxu0 0
        %4482 = vmatpush1.bf16.msra.mxu0 0
        %4483 = vmatprep.subr.bf16.mxu0 0
        %4484 = vmatpush1.bf16.msra.mxu0 0
        %4485 = vmatprep.mubr.bf16.mxu0 0
        %4486 = vmatmul.mubr.bf16.gmra.mrb[0].mxu0 %v4451
        %v4487 = vpop.f32.mrb[0].mxu0
        %v4488 = vadd.f32 0.0, %v4487
        %v4489 = vpop.f32.mrb[0].mxu0
        %v4490 = vpop.f32.mrb[0].mxu0
        %v4491 = vadd.f32 0.0, %v4490
        %v4492 = vpop.f32.mrb[0].mxu0
        %4493 = vdwg.mxu0
        %4506 = vrot.lane.b32.xlu0 %v2748, 16
        %v4507 = vpop.permute.xlu0 %4506
        %4508 = vrot.lane.b32.xlu0 %v2751, 16
        %v4509 = vpop.permute.xlu0 %4508
        %4510 = vrot.lane.b32.xlu0 %v2796, 16
        %v4511 = vpop.permute.xlu0 %4510
        %4512 = vrot.lane.b32.xlu0 %v2799, 16
        %v4513 = vpop.permute.xlu0 %4512
        %4514 = vrot.lane.b32.xlu0 %v2844, 16
        %v4515 = vpop.permute.xlu0 %4514
        %4516 = vrot.lane.b32.xlu0 %v2847, 16
        %v4517 = vpop.permute.xlu0 %4516
        %4518 = vrot.lane.b32.xlu0 %v2892, 16
        %v4519 = vpop.permute.xlu0 %4518
        %4520 = vrot.lane.b32.xlu0 %v2895, 16
        %v4521 = vpop.permute.xlu0 %4520
        %4522 = vrot.lane.b32.xlu0 %v2940, 16
        %v4523 = vpop.permute.xlu0 %4522
        %4524 = vrot.lane.b32.xlu0 %v2943, 16
        %v4525 = vpop.permute.xlu0 %4524
        %4526 = vrot.lane.b32.xlu0 %v2988, 16
        %v4527 = vpop.permute.xlu0 %4526
        %4528 = vrot.lane.b32.xlu0 %v2991, 16
        %v4529 = vpop.permute.xlu0 %4528
        %4554 = vrot.lane.b32.xlu0 %v3503, 32
        %v4555 = vpop.permute.xlu0 %4554
        %4556 = vrot.lane.b32.xlu0 %v3506, 32
        %v4557 = vpop.permute.xlu0 %4556
        %4558 = vrot.lane.b32.xlu0 %v3550, 32
        %v4559 = vpop.permute.xlu0 %4558
        %4560 = vrot.lane.b32.xlu0 %v3553, 32
        %v4561 = vpop.permute.xlu0 %4560
        %4562 = vrot.lane.b32.xlu0 %v3597, 32
        %v4563 = vpop.permute.xlu0 %4562
        %4564 = vrot.lane.b32.xlu0 %v3600, 32
        %v4565 = vpop.permute.xlu0 %4564
        %4566 = vrot.lane.b32.xlu0 %v3644, 32
        %v4567 = vpop.permute.xlu0 %4566
        %4568 = vrot.lane.b32.xlu0 %v3647, 32
        %v4569 = vpop.permute.xlu0 %4568
        %4570 = vrot.lane.b32.xlu0 %v3691, 32
        %v4571 = vpop.permute.xlu0 %4570
        %4572 = vrot.lane.b32.xlu0 %v3694, 32
        %v4573 = vpop.permute.xlu0 %4572
        %4574 = vrot.lane.b32.xlu0 %v3738, 32
        %v4575 = vpop.permute.xlu0 %4574
        %4576 = vrot.lane.b32.xlu0 %v3741, 32
        %v4577 = vpop.permute.xlu0 %4576
        %4602 = vrot.lane.b32.xlu0 %v4253, 48
        %v4603 = vpop.permute.xlu0 %4602
        %4604 = vrot.lane.b32.xlu0 %v4256, 48
        %v4605 = vpop.permute.xlu0 %4604
        %4606 = vrot.lane.b32.xlu0 %v4300, 48
        %v4607 = vpop.permute.xlu0 %4606
        %4608 = vrot.lane.b32.xlu0 %v4303, 48
        %v4609 = vpop.permute.xlu0 %4608
        %4610 = vrot.lane.b32.xlu0 %v4347, 48
        %v4611 = vpop.permute.xlu0 %4610
        %4612 = vrot.lane.b32.xlu0 %v4350, 48
        %v4613 = vpop.permute.xlu0 %4612
        %4614 = vrot.lane.b32.xlu0 %v4394, 48
        %v4615 = vpop.permute.xlu0 %4614
        %4616 = vrot.lane.b32.xlu0 %v4397, 48
        %v4617 = vpop.permute.xlu0 %4616
        %4618 = vrot.lane.b32.xlu0 %v4441, 48
        %v4619 = vpop.permute.xlu0 %4618
        %4620 = vrot.lane.b32.xlu0 %v4444, 48
        %v4621 = vpop.permute.xlu0 %4620
        %4622 = vrot.lane.b32.xlu0 %v4488, 48
        %v4623 = vpop.permute.xlu0 %4622
        %4624 = vrot.lane.b32.xlu0 %v4491, 48
        %v4625 = vpop.permute.xlu0 %4624
        %v4638 = vsel %vm1510, %v2012, %v4507
        %v4639 = vsel %vm1510, %v2015, %v4509
        %v4640 = vsel %vm1510, %v2056, %v4511
        %v4641 = vsel %vm1510, %v2059, %v4513
        %v4642 = vsel %vm1510, %v2100, %v4515
        %v4643 = vsel %vm1510, %v2103, %v4517
        %v4644 = vsel %vm1510, %v2144, %v4519
        %v4645 = vsel %vm1510, %v2147, %v4521
        %v4646 = vsel %vm1510, %v2188, %v4523
        %v4647 = vsel %vm1510, %v2191, %v4525
        %v4648 = vsel %vm1510, %v2232, %v4527
        %v4649 = vsel %vm1510, %v2235, %v4529
        %vm4650 = vcmask 261120
        %v4651 = vsel %vm4650, %v4638, %v4555
        %v4652 = vsel %vm4650, %v4639, %v4557
        %v4653 = vsel %vm4650, %v4640, %v4559
        %v4654 = vsel %vm4650, %v4641, %v4561
        %v4655 = vsel %vm4650, %v4642, %v4563
        %v4656 = vsel %vm4650, %v4643, %v4565
        %v4657 = vsel %vm4650, %v4644, %v4567
        %v4658 = vsel %vm4650, %v4645, %v4569
        %v4659 = vsel %vm4650, %v4646, %v4571
        %v4660 = vsel %vm4650, %v4647, %v4573
        %v4661 = vsel %vm4650, %v4648, %v4575
        %v4662 = vsel %vm4650, %v4649, %v4577
        %vm4663 = vcmask 392192
        %v4664 = vsel %vm4663, %v4651, %v4603
        %v4665 = vsel %vm4663, %v4652, %v4605
        %v4666 = vsel %vm4663, %v4653, %v4607
        %v4667 = vsel %vm4663, %v4654, %v4609
        %v4668 = vsel %vm4663, %v4655, %v4611
        %v4669 = vsel %vm4663, %v4656, %v4613
        %v4670 = vsel %vm4663, %v4657, %v4615
        %v4671 = vsel %vm4663, %v4658, %v4617
        %v4672 = vsel %vm4663, %v4659, %v4619
        %v4673 = vsel %vm4663, %v4660, %v4621
        %v4674 = vsel %vm4663, %v4661, %v4623
        %v4675 = vsel %vm4663, %v4662, %v4625
        %v4676 = vpack.c.bf16 %v4665, %v4664
        %v4677 = vpack.c.bf16 %v4667, %v4666
        %v4678 = vpack.c.bf16 %v4669, %v4668
        %v4679 = vpack.c.bf16 %v4671, %v4670
        %v4680 = vpack.c.bf16 %v4673, %v4672
        %v4681 = vpack.c.bf16 %v4675, %v4674
        %v4682 = vld [vmem:[%s896] sm:$0xf]
        %v4683 = vld [vmem:[%s896 + $0x4] sm:$0xf]
        %v4684 = vld [vmem:[%s896 + $0x8] sm:$0xf]
        %v4685 = vld [vmem:[%s896 + $0xc] sm:$0xf]
        %v4686 = vld [vmem:[%s896 + $0x10] sm:$0xf]
        %v4687 = vld [vmem:[%s896 + $0x14] sm:$0xf]
        %v4688 = vld [vmem:[%s896 + $0x18] sm:$0xf]
        %v4689 = vld [vmem:[%s896 + $0x1c] sm:$0xf]
        %v4690 = vld [vmem:[%s904] sm:$0x1]
        %v4692 = vlaneseq
        %v4693 = vshrl.u32 %v4692, 7
        %v4694 = vsub.s32 0, %v4693
        %v4695 = vrot.slane %v4690, %v4694
        %v4705 = vunpack.c.l.b16 %v4682
        %v4706 = vunpack.c.l.b16 %v4683
        %v4707 = vunpack.c.l.b16 %v4684
        %v4708 = vunpack.c.l.b16 %v4685
        %v4709 = vunpack.c.l.b16 %v4686
        %v4710 = vunpack.c.l.b16 %v4687
        %v4711 = vunpack.c.l.b16 %v4688
        %v4712 = vunpack.c.l.b16 %v4689
        %v4713 = vpack.c.b16 %v4706, %v4705
        %v4714 = vpack.c.b16 %v4708, %v4707
        %v4715 = vpack.c.b16 %v4710, %v4709
        %v4716 = vpack.c.b16 %v4712, %v4711
        %v4722 = vsel %vm1117, %v4676, 0
        %v4725 = vsel %vm1117, %v4677, 0
        %v4728 = vsel %vm1117, %v4678, 0
        %v4731 = vsel %vm1117, %v4679, 0
        %v4734 = vsel %vm1117, %v4680, 0
        %v4737 = vsel %vm1117, %v4681, 0
        %4739 = vmatprep.subr.bf16.mxu0 0
        %4740 = vmatpush1.bf16.msra.mxu0 %v4713
        %4741 = vmatprep.subr.bf16.mxu0 0
        %4742 = vmatpush1.bf16.msra.mxu0 %v4714
        %4743 = vmatprep.subr.bf16.mxu0 0
        %4744 = vmatpush1.bf16.msra.mxu0 %v4715
        %4745 = vmatprep.subr.bf16.mxu0 0
        %4746 = vmatpush1.bf16.msra.mxu0 %v4716
        %4747 = vmatprep.subr.bf16.mxu0 0
        %4748 = vmatpush1.bf16.msra.mxu0 0
        %4749 = vmatprep.subr.bf16.mxu0 0
        %4750 = vmatpush1.bf16.msra.mxu0 0
        %4751 = vmatprep.subr.bf16.mxu0 0
        %4752 = vmatpush1.bf16.msra.mxu0 0
        %4753 = vmatprep.subr.bf16.mxu0 0
        %4754 = vmatpush1.bf16.msra.mxu0 0
        %4755 = vmatprep.subr.bf16.mxu0 0
        %4756 = vmatpush1.bf16.msra.mxu0 0
        %4757 = vmatprep.subr.bf16.mxu0 0
        %4758 = vmatpush1.bf16.msra.mxu0 0
        %4759 = vmatprep.subr.bf16.mxu0 0
        %4760 = vmatpush1.bf16.msra.mxu0 0
        %4761 = vmatprep.subr.bf16.mxu0 0
        %4762 = vmatpush1.bf16.msra.mxu0 0
        %4763 = vmatprep.subr.bf16.mxu0 0
        %4764 = vmatpush1.bf16.msra.mxu0 0
        %4765 = vmatprep.subr.bf16.mxu0 0
        %4766 = vmatpush1.bf16.msra.mxu0 0
        %4767 = vmatprep.subr.bf16.mxu0 0
        %4768 = vmatpush1.bf16.msra.mxu0 0
        %4769 = vmatprep.subr.bf16.mxu0 0
        %4770 = vmatpush1.bf16.msra.mxu0 0
        %4771 = vmatprep.mubr.bf16.mxu0 0
        %4772 = vmatmul.mubr.bf16.gmra.mrb[0].mxu0 %v4722
        %v4773 = vpop.f32.mrb[0].mxu0
        %v4774 = vadd.f32 %v4695, %v4773
        %v4775 = vpop.f32.mrb[0].mxu0
        %v4776 = vpop.f32.mrb[0].mxu0
        %v4777 = vadd.f32 %v4695, %v4776
        %v4778 = vpop.f32.mrb[0].mxu0
        %4779 = vmatprep.mubr.bf16.mxu0 0
        %4780 = vmatmul.mubr.bf16.gmra.mrb[0].mxu0 %v4725
        %v4781 = vpop.f32.mrb[0].mxu0
        %v4782 = vadd.f32 %v4695, %v4781
        %v4783 = vpop.f32.mrb[0].mxu0
        %v4784 = vpop.f32.mrb[0].mxu0
        %v4785 = vadd.f32 %v4695, %v4784
        %v4786 = vpop.f32.mrb[0].mxu0
        %4787 = vmatprep.mubr.bf16.mxu0 0
        %4788 = vmatmul.mubr.bf16.gmra.mrb[0].mxu0 %v4728
        %v4789 = vpop.f32.mrb[0].mxu0
        %v4790 = vadd.f32 %v4695, %v4789
        %v4791 = vpop.f32.mrb[0].mxu0
        %v4792 = vpop.f32.mrb[0].mxu0
        %v4793 = vadd.f32 %v4695, %v4792
        %v4794 = vpop.f32.mrb[0].mxu0
        %4795 = vmatprep.mubr.bf16.mxu0 0
        %4796 = vmatmul.mubr.bf16.gmra.mrb[0].mxu0 %v4731
        %v4797 = vpop.f32.mrb[0].mxu0
        %v4798 = vadd.f32 %v4695, %v4797
        %v4799 = vpop.f32.mrb[0].mxu0
        %v4800 = vpop.f32.mrb[0].mxu0
        %v4801 = vadd.f32 %v4695, %v4800
        %v4802 = vpop.f32.mrb[0].mxu0
        %4803 = vmatprep.mubr.bf16.mxu0 0
        %4804 = vmatmul.mubr.bf16.gmra.mrb[0].mxu0 %v4734
        %v4805 = vpop.f32.mrb[0].mxu0
        %v4806 = vadd.f32 %v4695, %v4805
        %v4807 = vpop.f32.mrb[0].mxu0
        %v4808 = vpop.f32.mrb[0].mxu0
        %v4809 = vadd.f32 %v4695, %v4808
        %v4810 = vpop.f32.mrb[0].mxu0
        %4811 = vmatprep.mubr.bf16.mxu0 0
        %4812 = vmatmul.mubr.bf16.gmra.mrb[0].mxu0 %v4737
        %v4813 = vpop.f32.mrb[0].mxu0
        %v4814 = vadd.f32 %v4695, %v4813
        %v4815 = vpop.f32.mrb[0].mxu0
        %v4816 = vpop.f32.mrb[0].mxu0
        %v4817 = vadd.f32 %v4695, %v4816
        %v4818 = vpop.f32.mrb[0].mxu0
        %4819 = vdwg.mxu0
        %v4820 = vadd.f32 %v1103, %v4774
        %v4821 = vadd.f32 %v1104, %v4777
        %v4822 = vadd.f32 %v1105, %v4782
        %v4823 = vadd.f32 %v1106, %v4785
        %v4824 = vadd.f32 %v1107, %v4790
        %v4825 = vadd.f32 %v1108, %v4793
        %v4826 = vadd.f32 %v1109, %v4798
        %v4827 = vadd.f32 %v1110, %v4801
        %v4828 = vadd.f32 %v1111, %v4806
        %v4829 = vadd.f32 %v1112, %v4809
        %v4830 = vadd.f32 %v1113, %v4814
        %v4831 = vadd.f32 %v1114, %v4817
        %v4832 = vld [vmem:[%s912] sm:$0x1]
        %v4833 = vld [vmem:[%s920] sm:$0x1]
        %v4834 = vsel %vm1117, %v4820, 0.0
        %4835 = vadd.xlane.f32.xlu0 %v4834
        %v4836 = vpop.xlane.xlu0 %4835
        %v4837 = vsel %vm1117, %v4821, 0.0
        %4838 = vadd.xlane.f32.xlu0 %v4837
        %v4839 = vpop.xlane.xlu0 %4838
        %v4840 = vsel %vm1117, %v4822, 0.0
        %4841 = vadd.xlane.f32.xlu0 %v4840
        %v4842 = vpop.xlane.xlu0 %4841
        %v4843 = vsel %vm1117, %v4823, 0.0
        %4844 = vadd.xlane.f32.xlu0 %v4843
        %v4845 = vpop.xlane.xlu0 %4844
        %v4846 = vsel %vm1117, %v4824, 0.0
        %4847 = vadd.xlane.f32.xlu0 %v4846
        %v4848 = vpop.xlane.xlu0 %4847
        %v4849 = vsel %vm1117, %v4825, 0.0
        %4850 = vadd.xlane.f32.xlu0 %v4849
        %v4851 = vpop.xlane.xlu0 %4850
        %v4852 = vsel %vm1117, %v4826, 0.0
        %4853 = vadd.xlane.f32.xlu0 %v4852
        %v4854 = vpop.xlane.xlu0 %4853
        %v4855 = vsel %vm1117, %v4827, 0.0
        %4856 = vadd.xlane.f32.xlu0 %v4855
        %v4857 = vpop.xlane.xlu0 %4856
        %v4858 = vsel %vm1117, %v4828, 0.0
        %4859 = vadd.xlane.f32.xlu0 %v4858
        %v4860 = vpop.xlane.xlu0 %4859
        %v4861 = vsel %vm1117, %v4829, 0.0
        %4862 = vadd.xlane.f32.xlu0 %v4861
        %v4863 = vpop.xlane.xlu0 %4862
        %v4864 = vsel %vm1117, %v4830, 0.0
        %4865 = vadd.xlane.f32.xlu0 %v4864
        %v4866 = vpop.xlane.xlu0 %4865
        %v4867 = vsel %vm1117, %v4831, 0.0
        %4868 = vadd.xlane.f32.xlu0 %v4867
        %v4869 = vpop.xlane.xlu0 %4868
        %v4870 = vmul.f32 %v4836, %v1154
        %v4871 = vmul.f32 %v4839, %v1154
        %v4872 = vmul.f32 %v4842, %v1154
        %v4873 = vmul.f32 %v4845, %v1154
        %v4874 = vmul.f32 %v4848, %v1154
        %v4875 = vmul.f32 %v4851, %v1154
        %v4876 = vmul.f32 %v4854, %v1154
        %v4877 = vmul.f32 %v4857, %v1154
        %v4878 = vmul.f32 %v4860, %v1154
        %v4879 = vmul.f32 %v4863, %v1154
        %v4880 = vmul.f32 %v4866, %v1154
        %v4881 = vmul.f32 %v4869, %v1154
        %v4882 = vsub.f32 %v4820, %v4870
        %v4883 = vsub.f32 %v4821, %v4871
        %v4884 = vsub.f32 %v4822, %v4872
        %v4885 = vsub.f32 %v4823, %v4873
        %v4886 = vsub.f32 %v4824, %v4874
        %v4887 = vsub.f32 %v4825, %v4875
        %v4888 = vsub.f32 %v4826, %v4876
        %v4889 = vsub.f32 %v4827, %v4877
        %v4890 = vsub.f32 %v4828, %v4878
        %v4891 = vsub.f32 %v4829, %v4879
        %v4892 = vsub.f32 %v4830, %v4880
        %v4893 = vsub.f32 %v4831, %v4881
        %v4894 = vmul.f32 %v4882, %v4882
        %v4895 = vmul.f32 %v4883, %v4883
        %v4896 = vmul.f32 %v4884, %v4884
        %v4897 = vmul.f32 %v4885, %v4885
        %v4898 = vmul.f32 %v4886, %v4886
        %v4899 = vmul.f32 %v4887, %v4887
        %v4900 = vmul.f32 %v4888, %v4888
        %v4901 = vmul.f32 %v4889, %v4889
        %v4902 = vmul.f32 %v4890, %v4890
        %v4903 = vmul.f32 %v4891, %v4891
        %v4904 = vmul.f32 %v4892, %v4892
        %v4905 = vmul.f32 %v4893, %v4893
        %v4906 = vsel %vm1117, %v4894, 0.0
        %4907 = vadd.xlane.f32.xlu0 %v4906
        %v4908 = vpop.xlane.xlu0 %4907
        %v4909 = vsel %vm1117, %v4895, 0.0
        %4910 = vadd.xlane.f32.xlu0 %v4909
        %v4911 = vpop.xlane.xlu0 %4910
        %v4912 = vsel %vm1117, %v4896, 0.0
        %4913 = vadd.xlane.f32.xlu0 %v4912
        %v4914 = vpop.xlane.xlu0 %4913
        %v4915 = vsel %vm1117, %v4897, 0.0
        %4916 = vadd.xlane.f32.xlu0 %v4915
        %v4917 = vpop.xlane.xlu0 %4916
        %v4918 = vsel %vm1117, %v4898, 0.0
        %4919 = vadd.xlane.f32.xlu0 %v4918
        %v4920 = vpop.xlane.xlu0 %4919
        %v4921 = vsel %vm1117, %v4899, 0.0
        %4922 = vadd.xlane.f32.xlu0 %v4921
        %v4923 = vpop.xlane.xlu0 %4922
        %v4924 = vsel %vm1117, %v4900, 0.0
        %4925 = vadd.xlane.f32.xlu0 %v4924
        %v4926 = vpop.xlane.xlu0 %4925
        %v4927 = vsel %vm1117, %v4901, 0.0
        %4928 = vadd.xlane.f32.xlu0 %v4927
        %v4929 = vpop.xlane.xlu0 %4928
        %v4930 = vsel %vm1117, %v4902, 0.0
        %4931 = vadd.xlane.f32.xlu0 %v4930
        %v4932 = vpop.xlane.xlu0 %4931
        %v4933 = vsel %vm1117, %v4903, 0.0
        %4934 = vadd.xlane.f32.xlu0 %v4933
        %v4935 = vpop.xlane.xlu0 %4934
        %v4936 = vsel %vm1117, %v4904, 0.0
        %4937 = vadd.xlane.f32.xlu0 %v4936
        %v4938 = vpop.xlane.xlu0 %4937
        %v4939 = vsel %vm1117, %v4905, 0.0
        %4940 = vadd.xlane.f32.xlu0 %v4939
        %v4941 = vpop.xlane.xlu0 %4940
        %v4942 = vmul.f32 %v4908, %v1154
        %v4943 = vmul.f32 %v4911, %v1154
        %v4944 = vmul.f32 %v4914, %v1154
        %v4945 = vmul.f32 %v4917, %v1154
        %v4946 = vmul.f32 %v4920, %v1154
        %v4947 = vmul.f32 %v4923, %v1154
        %v4948 = vmul.f32 %v4926, %v1154
        %v4949 = vmul.f32 %v4929, %v1154
        %v4950 = vmul.f32 %v4932, %v1154
        %v4951 = vmul.f32 %v4935, %v1154
        %v4952 = vmul.f32 %v4938, %v1154
        %v4953 = vmul.f32 %v4941, %v1154
        %v4954 = vadd.f32 %v4942, 1e-05
        %v4955 = vadd.f32 %v4943, 1e-05
        %v4956 = vadd.f32 %v4944, 1e-05
        %v4957 = vadd.f32 %v4945, 1e-05
        %v4958 = vadd.f32 %v4946, 1e-05
        %v4959 = vadd.f32 %v4947, 1e-05
        %v4960 = vadd.f32 %v4948, 1e-05
        %v4961 = vadd.f32 %v4949, 1e-05
        %v4962 = vadd.f32 %v4950, 1e-05
        %v4963 = vadd.f32 %v4951, 1e-05
        %v4964 = vadd.f32 %v4952, 1e-05
        %v4965 = vadd.f32 %v4953, 1e-05
        %v4966 = vrsqrt.pop %v4954
        %v4967 = vrsqrt.pop %v4955
        %v4968 = vrsqrt.pop %v4956
        %v4969 = vrsqrt.pop %v4957
        %v4970 = vrsqrt.pop %v4958
        %v4971 = vrsqrt.pop %v4959
        %v4972 = vrsqrt.pop %v4960
        %v4973 = vrsqrt.pop %v4961
        %v4974 = vrsqrt.pop %v4962
        %v4975 = vrsqrt.pop %v4963
        %v4976 = vrsqrt.pop %v4964
        %v4977 = vrsqrt.pop %v4965
        %v4978 = vmul.f32 %v4882, %v4966
        %v4979 = vmul.f32 %v4883, %v4967
        %v4980 = vmul.f32 %v4884, %v4968
        %v4981 = vmul.f32 %v4885, %v4969
        %v4982 = vmul.f32 %v4886, %v4970
        %v4983 = vmul.f32 %v4887, %v4971
        %v4984 = vmul.f32 %v4888, %v4972
        %v4985 = vmul.f32 %v4889, %v4973
        %v4986 = vmul.f32 %v4890, %v4974
        %v4987 = vmul.f32 %v4891, %v4975
        %v4988 = vmul.f32 %v4892, %v4976
        %v4989 = vmul.f32 %v4893, %v4977
        %v4991 = vlaneseq
        %v4992 = vshrl.u32 %v4991, 7
        %v4993 = vsub.s32 0, %v4992
        %v4994 = vrot.slane %v4832, %v4993
        %v4996 = vmul.f32 %v4978, %v4994
        %v4997 = vmul.f32 %v4979, %v4994
        %v4998 = vmul.f32 %v4980, %v4994
        %v4999 = vmul.f32 %v4981, %v4994
        %v5000 = vmul.f32 %v4982, %v4994
        %v5001 = vmul.f32 %v4983, %v4994
        %v5002 = vmul.f32 %v4984, %v4994
        %v5003 = vmul.f32 %v4985, %v4994
        %v5004 = vmul.f32 %v4986, %v4994
        %v5005 = vmul.f32 %v4987, %v4994
        %v5006 = vmul.f32 %v4988, %v4994
        %v5007 = vmul.f32 %v4989, %v4994
        %v5009 = vlaneseq
        %v5010 = vshrl.u32 %v5009, 7
        %v5011 = vsub.s32 0, %v5010
        %v5012 = vrot.slane %v4833, %v5011
        %v5014 = vadd.f32 %v4996, %v5012
        %v5015 = vadd.f32 %v4997, %v5012
        %v5016 = vadd.f32 %v4998, %v5012
        %v5017 = vadd.f32 %v4999, %v5012
        %v5018 = vadd.f32 %v5000, %v5012
        %v5019 = vadd.f32 %v5001, %v5012
        %v5020 = vadd.f32 %v5002, %v5012
        %v5021 = vadd.f32 %v5003, %v5012
        %v5022 = vadd.f32 %v5004, %v5012
        %v5023 = vadd.f32 %v5005, %v5012
        %v5024 = vadd.f32 %v5006, %v5012
        %v5025 = vadd.f32 %v5007, %v5012
        %v5026 = vpack.c.bf16 %v5015, %v5014
        %v5027 = vpack.c.bf16 %v5017, %v5016
        %v5028 = vpack.c.bf16 %v5019, %v5018
        %v5029 = vpack.c.bf16 %v5021, %v5020
        %v5030 = vpack.c.bf16 %v5023, %v5022
        %v5031 = vpack.c.bf16 %v5025, %v5024
        %v5032 = vld [vmem:[%s929] sm:$0xff]
        %v5033 = vld [vmem:[%s929 + $0x8] sm:$0xff]
        %v5034 = vld [vmem:[%s929 + $0x10] sm:$0xff]
        %v5035 = vld [vmem:[%s929 + $0x18] sm:$0xff]
        %v5036 = vld [vmem:[%s929 + $0x20] sm:$0xff]
        %v5037 = vld [vmem:[%s929 + $0x28] sm:$0xff]
        %v5038 = vld [vmem:[%s929 + $0x30] sm:$0xff]
        %v5039 = vld [vmem:[%s929 + $0x38] sm:$0xff]
        %v5040 = vld [vmem:[%s938] sm:$0x3]
        %v5042 = vlaneseq
        %v5043 = vshrl.u32 %v5042, 7
        %v5044 = vsub.s32 0, %v5043
        %v5045 = vrot.slane %v5040, %v5044
        %v5046 = vlaneseq
        %v5047 = vshrl.u32 %v5046, 7
        %v5048 = vsub.s32 1, %v5047
        %v5049 = vrot.slane %v5040, %v5048
        %v5060 = vunpack.c.l.b16 %v5032
        %v5061 = vunpack.c.h.b16 %v5032
        %v5062 = vunpack.c.l.b16 %v5033
        %v5063 = vunpack.c.h.b16 %v5033
        %v5064 = vunpack.c.l.b16 %v5034
        %v5065 = vunpack.c.h.b16 %v5034
        %v5066 = vunpack.c.l.b16 %v5035
        %v5067 = vunpack.c.h.b16 %v5035
        %v5068 = vunpack.c.l.b16 %v5036
        %v5069 = vunpack.c.h.b16 %v5036
        %v5070 = vunpack.c.l.b16 %v5037
        %v5071 = vunpack.c.h.b16 %v5037
        %v5072 = vunpack.c.l.b16 %v5038
        %v5073 = vunpack.c.h.b16 %v5038
        %v5074 = vunpack.c.l.b16 %v5039
        %v5075 = vunpack.c.h.b16 %v5039
        %v5076 = vpack.c.b16 %v5062, %v5060
        %v5077 = vpack.c.b16 %v5063, %v5061
        %v5078 = vpack.c.b16 %v5066, %v5064
        %v5079 = vpack.c.b16 %v5067, %v5065
        %v5080 = vpack.c.b16 %v5070, %v5068
        %v5081 = vpack.c.b16 %v5071, %v5069
        %v5082 = vpack.c.b16 %v5074, %v5072
        %v5083 = vpack.c.b16 %v5075, %v5073
        %v5093 = vsel %vm1117, %v5026, 0
        %v5096 = vsel %vm1117, %v5027, 0
        %v5099 = vsel %vm1117, %v5028, 0
        %v5102 = vsel %vm1117, %v5029, 0
        %v5105 = vsel %vm1117, %v5030, 0
        %v5108 = vsel %vm1117, %v5031, 0
        %5110 = vmatprep.subr.bf16.mxu0 %v5077
        %5111 = vmatpush1.bf16.msra.mxu0 %v5076
        %5112 = vmatprep.subr.bf16.mxu0 %v5079
        %5113 = vmatpush1.bf16.msra.mxu0 %v5078
        %5114 = vmatprep.subr.bf16.mxu0 %v5081
        %5115 = vmatpush1.bf16.msra.mxu0 %v5080
        %5116 = vmatprep.subr.bf16.mxu0 %v5083
        %5117 = vmatpush1.bf16.msra.mxu0 %v5082
        %5118 = vmatprep.subr.bf16.mxu0 0
        %5119 = vmatpush1.bf16.msra.mxu0 0
        %5120 = vmatprep.subr.bf16.mxu0 0
        %5121 = vmatpush1.bf16.msra.mxu0 0
        %5122 = vmatprep.subr.bf16.mxu0 0
        %5123 = vmatpush1.bf16.msra.mxu0 0
        %5124 = vmatprep.subr.bf16.mxu0 0
        %5125 = vmatpush1.bf16.msra.mxu0 0
        %5126 = vmatprep.subr.bf16.mxu0 0
        %5127 = vmatpush1.bf16.msra.mxu0 0
        %5128 = vmatprep.subr.bf16.mxu0 0
        %5129 = vmatpush1.bf16.msra.mxu0 0
        %5130 = vmatprep.subr.bf16.mxu0 0
        %5131 = vmatpush1.bf16.msra.mxu0 0
        %5132 = vmatprep.subr.bf16.mxu0 0
        %5133 = vmatpush1.bf16.msra.mxu0 0
        %5134 = vmatprep.subr.bf16.mxu0 0
        %5135 = vmatpush1.bf16.msra.mxu0 0
        %5136 = vmatprep.subr.bf16.mxu0 0
        %5137 = vmatpush1.bf16.msra.mxu0 0
        %5138 = vmatprep.subr.bf16.mxu0 0
        %5139 = vmatpush1.bf16.msra.mxu0 0
        %5140 = vmatprep.subr.bf16.mxu0 0
        %5141 = vmatpush1.bf16.msra.mxu0 0
        %5142 = vmatprep.mubr.bf16.mxu0 0
        %5143 = vmatmul.mubr.bf16.gmra.mrb[0].mxu0 %v5093
        %v5144 = vpop.f32.mrb[0].mxu0
        %v5145 = vadd.f32 %v5045, %v5144
        %v5146 = vpop.f32.mrb[0].mxu0
        %v5147 = vadd.f32 %v5049, %v5146
        %v5148 = vpop.f32.mrb[0].mxu0
        %v5149 = vadd.f32 %v5045, %v5148
        %v5150 = vpop.f32.mrb[0].mxu0
        %v5151 = vadd.f32 %v5049, %v5150
        %5152 = vmatprep.mubr.bf16.mxu0 0
        %5153 = vmatmul.mubr.bf16.gmra.mrb[0].mxu0 %v5096
        %v5154 = vpop.f32.mrb[0].mxu0
        %v5155 = vadd.f32 %v5045, %v5154
        %v5156 = vpop.f32.mrb[0].mxu0
        %v5157 = vadd.f32 %v5049, %v5156
        %v5158 = vpop.f32.mrb[0].mxu0
        %v5159 = vadd.f32 %v5045, %v5158
        %v5160 = vpop.f32.mrb[0].mxu0
        %v5161 = vadd.f32 %v5049, %v5160
        %5162 = vmatprep.mubr.bf16.mxu0 0
        %5163 = vmatmul.mubr.bf16.gmra.mrb[0].mxu0 %v5099
        %v5164 = vpop.f32.mrb[0].mxu0
        %v5165 = vadd.f32 %v5045, %v5164
        %v5166 = vpop.f32.mrb[0].mxu0
        %v5167 = vadd.f32 %v5049, %v5166
        %v5168 = vpop.f32.mrb[0].mxu0
        %v5169 = vadd.f32 %v5045, %v5168
        %v5170 = vpop.f32.mrb[0].mxu0
        %v5171 = vadd.f32 %v5049, %v5170
        %5172 = vmatprep.mubr.bf16.mxu0 0
        %5173 = vmatmul.mubr.bf16.gmra.mrb[0].mxu0 %v5102
        %v5174 = vpop.f32.mrb[0].mxu0
        %v5175 = vadd.f32 %v5045, %v5174
        %v5176 = vpop.f32.mrb[0].mxu0
        %v5177 = vadd.f32 %v5049, %v5176
        %v5178 = vpop.f32.mrb[0].mxu0
        %v5179 = vadd.f32 %v5045, %v5178
        %v5180 = vpop.f32.mrb[0].mxu0
        %v5181 = vadd.f32 %v5049, %v5180
        %5182 = vmatprep.mubr.bf16.mxu0 0
        %5183 = vmatmul.mubr.bf16.gmra.mrb[0].mxu0 %v5105
        %v5184 = vpop.f32.mrb[0].mxu0
        %v5185 = vadd.f32 %v5045, %v5184
        %v5186 = vpop.f32.mrb[0].mxu0
        %v5187 = vadd.f32 %v5049, %v5186
        %v5188 = vpop.f32.mrb[0].mxu0
        %v5189 = vadd.f32 %v5045, %v5188
        %v5190 = vpop.f32.mrb[0].mxu0
        %v5191 = vadd.f32 %v5049, %v5190
        %5192 = vmatprep.mubr.bf16.mxu0 0
        %5193 = vmatmul.mubr.bf16.gmra.mrb[0].mxu0 %v5108
        %v5194 = vpop.f32.mrb[0].mxu0
        %v5195 = vadd.f32 %v5045, %v5194
        %v5196 = vpop.f32.mrb[0].mxu0
        %v5197 = vadd.f32 %v5049, %v5196
        %v5198 = vpop.f32.mrb[0].mxu0
        %v5199 = vadd.f32 %v5045, %v5198
        %v5200 = vpop.f32.mrb[0].mxu0
        %v5201 = vadd.f32 %v5049, %v5200
        %5202 = vdwg.mxu0
        %v5203 = vmul.f32 %v5145, 1.702
        %v5204 = vmul.f32 %v5147, 1.702
        %v5205 = vmul.f32 %v5149, 1.702
        %v5206 = vmul.f32 %v5151, 1.702
        %v5207 = vmul.f32 %v5155, 1.702
        %v5208 = vmul.f32 %v5157, 1.702
        %v5209 = vmul.f32 %v5159, 1.702
        %v5210 = vmul.f32 %v5161, 1.702
        %v5211 = vmul.f32 %v5165, 1.702
        %v5212 = vmul.f32 %v5167, 1.702
        %v5213 = vmul.f32 %v5169, 1.702
        %v5214 = vmul.f32 %v5171, 1.702
        %v5215 = vmul.f32 %v5175, 1.702
        %v5216 = vmul.f32 %v5177, 1.702
        %v5217 = vmul.f32 %v5179, 1.702
        %v5218 = vmul.f32 %v5181, 1.702
        %v5219 = vmul.f32 %v5185, 1.702
        %v5220 = vmul.f32 %v5187, 1.702
        %v5221 = vmul.f32 %v5189, 1.702
        %v5222 = vmul.f32 %v5191, 1.702
        %v5223 = vmul.f32 %v5195, 1.702
        %v5224 = vmul.f32 %v5197, 1.702
        %v5225 = vmul.f32 %v5199, 1.702
        %v5226 = vmul.f32 %v5201, 1.702
        %v5227 = vxor.u32 %v5203, 2147483648
        %v5228 = vxor.u32 %v5204, 2147483648
        %v5229 = vxor.u32 %v5205, 2147483648
        %v5230 = vxor.u32 %v5206, 2147483648
        %v5231 = vxor.u32 %v5207, 2147483648
        %v5232 = vxor.u32 %v5208, 2147483648
        %v5233 = vxor.u32 %v5209, 2147483648
        %v5234 = vxor.u32 %v5210, 2147483648
        %v5235 = vxor.u32 %v5211, 2147483648
        %v5236 = vxor.u32 %v5212, 2147483648
        %v5237 = vxor.u32 %v5213, 2147483648
        %v5238 = vxor.u32 %v5214, 2147483648
        %v5239 = vxor.u32 %v5215, 2147483648
        %v5240 = vxor.u32 %v5216, 2147483648
        %v5241 = vxor.u32 %v5217, 2147483648
        %v5242 = vxor.u32 %v5218, 2147483648
        %v5243 = vxor.u32 %v5219, 2147483648
        %v5244 = vxor.u32 %v5220, 2147483648
        %v5245 = vxor.u32 %v5221, 2147483648
        %v5246 = vxor.u32 %v5222, 2147483648
        %v5247 = vxor.u32 %v5223, 2147483648
        %v5248 = vxor.u32 %v5224, 2147483648
        %v5249 = vxor.u32 %v5225, 2147483648
        %v5250 = vxor.u32 %v5226, 2147483648
        %v5251 = vmul.f32 %v5227, 1.442695
        %v5252 = vpow.pop %v5251
        %v5253 = vmul.f32 %v5228, 1.442695
        %v5254 = vpow.pop %v5253
        %v5255 = vmul.f32 %v5229, 1.442695
        %v5256 = vpow.pop %v5255
        %v5257 = vmul.f32 %v5230, 1.442695
        %v5258 = vpow.pop %v5257
        %v5259 = vmul.f32 %v5231, 1.442695
        %v5260 = vpow.pop %v5259
        %v5261 = vmul.f32 %v5232, 1.442695
        %v5262 = vpow.pop %v5261
        %v5263 = vmul.f32 %v5233, 1.442695
        %v5264 = vpow.pop %v5263
        %v5265 = vmul.f32 %v5234, 1.442695
        %v5266 = vpow.pop %v5265
        %v5267 = vmul.f32 %v5235, 1.442695
        %v5268 = vpow.pop %v5267
        %v5269 = vmul.f32 %v5236, 1.442695
        %v5270 = vpow.pop %v5269
        %v5271 = vmul.f32 %v5237, 1.442695
        %v5272 = vpow.pop %v5271
        %v5273 = vmul.f32 %v5238, 1.442695
        %v5274 = vpow.pop %v5273
        %v5275 = vmul.f32 %v5239, 1.442695
        %v5276 = vpow.pop %v5275
        %v5277 = vmul.f32 %v5240, 1.442695
        %v5278 = vpow.pop %v5277
        %v5279 = vmul.f32 %v5241, 1.442695
        %v5280 = vpow.pop %v5279
        %v5281 = vmul.f32 %v5242, 1.442695
        %v5282 = vpow.pop %v5281
        %v5283 = vmul.f32 %v5243, 1.442695
        %v5284 = vpow.pop %v5283
        %v5285 = vmul.f32 %v5244, 1.442695
        %v5286 = vpow.pop %v5285
        %v5287 = vmul.f32 %v5245, 1.442695
        %v5288 = vpow.pop %v5287
        %v5289 = vmul.f32 %v5246, 1.442695
        %v5290 = vpow.pop %v5289
        %v5291 = vmul.f32 %v5247, 1.442695
        %v5292 = vpow.pop %v5291
        %v5293 = vmul.f32 %v5248, 1.442695
        %v5294 = vpow.pop %v5293
        %v5295 = vmul.f32 %v5249, 1.442695
        %v5296 = vpow.pop %v5295
        %v5297 = vmul.f32 %v5250, 1.442695
        %v5298 = vpow.pop %v5297
        %v5299 = vadd.f32 %v5252, 1.0
        %v5300 = vadd.f32 %v5254, 1.0
        %v5301 = vadd.f32 %v5256, 1.0
        %v5302 = vadd.f32 %v5258, 1.0
        %v5303 = vadd.f32 %v5260, 1.0
        %v5304 = vadd.f32 %v5262, 1.0
        %v5305 = vadd.f32 %v5264, 1.0
        %v5306 = vadd.f32 %v5266, 1.0
        %v5307 = vadd.f32 %v5268, 1.0
        %v5308 = vadd.f32 %v5270, 1.0
        %v5309 = vadd.f32 %v5272, 1.0
        %v5310 = vadd.f32 %v5274, 1.0
        %v5311 = vadd.f32 %v5276, 1.0
        %v5312 = vadd.f32 %v5278, 1.0
        %v5313 = vadd.f32 %v5280, 1.0
        %v5314 = vadd.f32 %v5282, 1.0
        %v5315 = vadd.f32 %v5284, 1.0
        %v5316 = vadd.f32 %v5286, 1.0
        %v5317 = vadd.f32 %v5288, 1.0
        %v5318 = vadd.f32 %v5290, 1.0
        %v5319 = vadd.f32 %v5292, 1.0
        %v5320 = vadd.f32 %v5294, 1.0
        %v5321 = vadd.f32 %v5296, 1.0
        %v5322 = vadd.f32 %v5298, 1.0
        %v5323 = vrcp.pop %v5299
        %v5324 = vmul.f32 1.0, %v5323
        %v5325 = vrcp.pop %v5300
        %v5326 = vmul.f32 1.0, %v5325
        %v5327 = vrcp.pop %v5301
        %v5328 = vmul.f32 1.0, %v5327
        %v5329 = vrcp.pop %v5302
        %v5330 = vmul.f32 1.0, %v5329
        %v5331 = vrcp.pop %v5303
        %v5332 = vmul.f32 1.0, %v5331
        %v5333 = vrcp.pop %v5304
        %v5334 = vmul.f32 1.0, %v5333
        %v5335 = vrcp.pop %v5305
        %v5336 = vmul.f32 1.0, %v5335
        %v5337 = vrcp.pop %v5306
        %v5338 = vmul.f32 1.0, %v5337
        %v5339 = vrcp.pop %v5307
        %v5340 = vmul.f32 1.0, %v5339
        %v5341 = vrcp.pop %v5308
        %v5342 = vmul.f32 1.0, %v5341
        %v5343 = vrcp.pop %v5309
        %v5344 = vmul.f32 1.0, %v5343
        %v5345 = vrcp.pop %v5310
        %v5346 = vmul.f32 1.0, %v5345
        %v5347 = vrcp.pop %v5311
        %v5348 = vmul.f32 1.0, %v5347
        %v5349 = vrcp.pop %v5312
        %v5350 = vmul.f32 1.0, %v5349
        %v5351 = vrcp.pop %v5313
        %v5352 = vmul.f32 1.0, %v5351
        %v5353 = vrcp.pop %v5314
        %v5354 = vmul.f32 1.0, %v5353
        %v5355 = vrcp.pop %v5315
        %v5356 = vmul.f32 1.0, %v5355
        %v5357 = vrcp.pop %v5316
        %v5358 = vmul.f32 1.0, %v5357
        %v5359 = vrcp.pop %v5317
        %v5360 = vmul.f32 1.0, %v5359
        %v5361 = vrcp.pop %v5318
        %v5362 = vmul.f32 1.0, %v5361
        %v5363 = vrcp.pop %v5319
        %v5364 = vmul.f32 1.0, %v5363
        %v5365 = vrcp.pop %v5320
        %v5366 = vmul.f32 1.0, %v5365
        %v5367 = vrcp.pop %v5321
        %v5368 = vmul.f32 1.0, %v5367
        %v5369 = vrcp.pop %v5322
        %v5370 = vmul.f32 1.0, %v5369
        %v5371 = vmul.f32 %v5145, %v5324
        %v5372 = vmul.f32 %v5147, %v5326
        %v5373 = vmul.f32 %v5149, %v5328
        %v5374 = vmul.f32 %v5151, %v5330
        %v5375 = vmul.f32 %v5155, %v5332
        %v5376 = vmul.f32 %v5157, %v5334
        %v5377 = vmul.f32 %v5159, %v5336
        %v5378 = vmul.f32 %v5161, %v5338
        %v5379 = vmul.f32 %v5165, %v5340
        %v5380 = vmul.f32 %v5167, %v5342
        %v5381 = vmul.f32 %v5169, %v5344
        %v5382 = vmul.f32 %v5171, %v5346
        %v5383 = vmul.f32 %v5175, %v5348
        %v5384 = vmul.f32 %v5177, %v5350
        %v5385 = vmul.f32 %v5179, %v5352
        %v5386 = vmul.f32 %v5181, %v5354
        %v5387 = vmul.f32 %v5185, %v5356
        %v5388 = vmul.f32 %v5187, %v5358
        %v5389 = vmul.f32 %v5189, %v5360
        %v5390 = vmul.f32 %v5191, %v5362
        %v5391 = vmul.f32 %v5195, %v5364
        %v5392 = vmul.f32 %v5197, %v5366
        %v5393 = vmul.f32 %v5199, %v5368
        %v5394 = vmul.f32 %v5201, %v5370
        %v5395 = vpack.c.bf16 %v5373, %v5371
        %v5396 = vpack.c.bf16 %v5374, %v5372
        %v5397 = vpack.c.bf16 %v5377, %v5375
        %v5398 = vpack.c.bf16 %v5378, %v5376
        %v5399 = vpack.c.bf16 %v5381, %v5379
        %v5400 = vpack.c.bf16 %v5382, %v5380
        %v5401 = vpack.c.bf16 %v5385, %v5383
        %v5402 = vpack.c.bf16 %v5386, %v5384
        %v5403 = vpack.c.bf16 %v5389, %v5387
        %v5404 = vpack.c.bf16 %v5390, %v5388
        %v5405 = vpack.c.bf16 %v5393, %v5391
        %v5406 = vpack.c.bf16 %v5394, %v5392
        %v5407 = vld [vmem:[%s947] sm:$0xf]
        %v5408 = vld [vmem:[%s947 + $0x4] sm:$0xf]
        %v5409 = vld [vmem:[%s947 + $0x8] sm:$0xf]
        %v5410 = vld [vmem:[%s947 + $0xc] sm:$0xf]
        %v5411 = vld [vmem:[%s947 + $0x10] sm:$0xf]
        %v5412 = vld [vmem:[%s947 + $0x14] sm:$0xf]
        %v5413 = vld [vmem:[%s947 + $0x18] sm:$0xf]
        %v5414 = vld [vmem:[%s947 + $0x1c] sm:$0xf]
        %v5415 = vld [vmem:[%s947 + $0x20] sm:$0xf]
        %v5416 = vld [vmem:[%s947 + $0x24] sm:$0xf]
        %v5417 = vld [vmem:[%s947 + $0x28] sm:$0xf]
        %v5418 = vld [vmem:[%s947 + $0x2c] sm:$0xf]
        %v5419 = vld [vmem:[%s947 + $0x30] sm:$0xf]
        %v5420 = vld [vmem:[%s947 + $0x34] sm:$0xf]
        %v5421 = vld [vmem:[%s947 + $0x38] sm:$0xf]
        %v5422 = vld [vmem:[%s947 + $0x3c] sm:$0xf]
        %v5423 = vld [vmem:[%s947 + $0x40] sm:$0xf]
        %v5424 = vld [vmem:[%s947 + $0x44] sm:$0xf]
        %v5425 = vld [vmem:[%s947 + $0x48] sm:$0xf]
        %v5426 = vld [vmem:[%s947 + $0x4c] sm:$0xf]
        %v5427 = vld [vmem:[%s947 + $0x50] sm:$0xf]
        %v5428 = vld [vmem:[%s947 + $0x54] sm:$0xf]
        %v5429 = vld [vmem:[%s947 + $0x58] sm:$0xf]
        %v5430 = vld [vmem:[%s947 + $0x5c] sm:$0xf]
        %v5431 = vld [vmem:[%s947 + $0x60] sm:$0xf]
        %v5432 = vld [vmem:[%s947 + $0x64] sm:$0xf]
        %v5433 = vld [vmem:[%s947 + $0x68] sm:$0xf]
        %v5434 = vld [vmem:[%s947 + $0x6c] sm:$0xf]
        %v5435 = vld [vmem:[%s947 + $0x70] sm:$0xf]
        %v5436 = vld [vmem:[%s947 + $0x74] sm:$0xf]
        %v5437 = vld [vmem:[%s947 + $0x78] sm:$0xf]
        %v5438 = vld [vmem:[%s947 + $0x7c] sm:$0xf]
        %v5439 = vld [vmem:[%s955] sm:$0x1]
        %v5441 = vlaneseq
        %v5442 = vshrl.u32 %v5441, 7
        %v5443 = vsub.s32 0, %v5442
        %v5444 = vrot.slane %v5439, %v5443
        %v5478 = vunpack.c.l.b16 %v5407
        %v5479 = vunpack.c.l.b16 %v5408
        %v5480 = vunpack.c.l.b16 %v5409
        %v5481 = vunpack.c.l.b16 %v5410
        %v5482 = vunpack.c.l.b16 %v5411
        %v5483 = vunpack.c.l.b16 %v5412
        %v5484 = vunpack.c.l.b16 %v5413
        %v5485 = vunpack.c.l.b16 %v5414
        %v5486 = vunpack.c.l.b16 %v5415
        %v5487 = vunpack.c.l.b16 %v5416
        %v5488 = vunpack.c.l.b16 %v5417
        %v5489 = vunpack.c.l.b16 %v5418
        %v5490 = vunpack.c.l.b16 %v5419
        %v5491 = vunpack.c.l.b16 %v5420
        %v5492 = vunpack.c.l.b16 %v5421
        %v5493 = vunpack.c.l.b16 %v5422
        %v5494 = vunpack.c.l.b16 %v5423
        %v5495 = vunpack.c.l.b16 %v5424
        %v5496 = vunpack.c.l.b16 %v5425
        %v5497 = vunpack.c.l.b16 %v5426
        %v5498 = vunpack.c.l.b16 %v5427
        %v5499 = vunpack.c.l.b16 %v5428
        %v5500 = vunpack.c.l.b16 %v5429
        %v5501 = vunpack.c.l.b16 %v5430
        %v5502 = vunpack.c.l.b16 %v5431
        %v5503 = vunpack.c.l.b16 %v5432
        %v5504 = vunpack.c.l.b16 %v5433
        %v5505 = vunpack.c.l.b16 %v5434
        %v5506 = vunpack.c.l.b16 %v5435
        %v5507 = vunpack.c.l.b16 %v5436
        %v5508 = vunpack.c.l.b16 %v5437
        %v5509 = vunpack.c.l.b16 %v5438
        %v5510 = vpack.c.b16 %v5479, %v5478
        %v5511 = vpack.c.b16 %v5481, %v5480
        %v5512 = vpack.c.b16 %v5483, %v5482
        %v5513 = vpack.c.b16 %v5485, %v5484
        %v5514 = vpack.c.b16 %v5487, %v5486
        %v5515 = vpack.c.b16 %v5489, %v5488
        %v5516 = vpack.c.b16 %v5491, %v5490
        %v5517 = vpack.c.b16 %v5493, %v5492
        %v5518 = vpack.c.b16 %v5495, %v5494
        %v5519 = vpack.c.b16 %v5497, %v5496
        %v5520 = vpack.c.b16 %v5499, %v5498
        %v5521 = vpack.c.b16 %v5501, %v5500
        %v5522 = vpack.c.b16 %v5503, %v5502
        %v5523 = vpack.c.b16 %v5505, %v5504
        %v5524 = vpack.c.b16 %v5507, %v5506
        %v5525 = vpack.c.b16 %v5509, %v5508
        %5542 = vmatprep.subr.bf16.mxu0 0
        %5543 = vmatpush1.bf16.msra.mxu0 %v5510
        %5544 = vmatprep.subr.bf16.mxu0 0
        %5545 = vmatpush1.bf16.msra.mxu0 %v5511
        %5546 = vmatprep.subr.bf16.mxu0 0
        %5547 = vmatpush1.bf16.msra.mxu0 %v5512
        %5548 = vmatprep.subr.bf16.mxu0 0
        %5549 = vmatpush1.bf16.msra.mxu0 %v5513
        %5550 = vmatprep.subr.bf16.mxu0 0
        %5551 = vmatpush1.bf16.msra.mxu0 %v5514
        %5552 = vmatprep.subr.bf16.mxu0 0
        %5553 = vmatpush1.bf16.msra.mxu0 %v5515
        %5554 = vmatprep.subr.bf16.mxu0 0
        %5555 = vmatpush1.bf16.msra.mxu0 %v5516
        %5556 = vmatprep.subr.bf16.mxu0 0
        %5557 = vmatpush1.bf16.msra.mxu0 %v5517
        %5558 = vmatprep.subr.bf16.mxu0 0
        %5559 = vmatpush1.bf16.msra.mxu0 %v5518
        %5560 = vmatprep.subr.bf16.mxu0 0
        %5561 = vmatpush1.bf16.msra.mxu0 %v5519
        %5562 = vmatprep.subr.bf16.mxu0 0
        %5563 = vmatpush1.bf16.msra.mxu0 %v5520
        %5564 = vmatprep.subr.bf16.mxu0 0
        %5565 = vmatpush1.bf16.msra.mxu0 %v5521
        %5566 = vmatprep.subr.bf16.mxu0 0
        %5567 = vmatpush1.bf16.msra.mxu0 %v5522
        %5568 = vmatprep.subr.bf16.mxu0 0
        %5569 = vmatpush1.bf16.msra.mxu0 %v5523
        %5570 = vmatprep.subr.bf16.mxu0 0
        %5571 = vmatpush1.bf16.msra.mxu0 %v5524
        %5572 = vmatprep.subr.bf16.mxu0 0
        %5573 = vmatpush1.bf16.msra.mxu0 %v5525
        %5574 = vmatprep.mubr.bf16.mxu0 %v5396
        %5575 = vmatmul.mubr.bf16.gmra.mrb[0].mxu0 %v5395
        %v5576 = vpop.f32.mrb[0].mxu0
        %v5577 = vadd.f32 %v5444, %v5576
        %v5578 = vpop.f32.mrb[0].mxu0
        %v5579 = vpop.f32.mrb[0].mxu0
        %v5580 = vadd.f32 %v5444, %v5579
        %v5581 = vpop.f32.mrb[0].mxu0
        %5582 = vmatprep.mubr.bf16.mxu0 %v5398
        %5583 = vmatmul.mubr.bf16.gmra.mrb[0].mxu0 %v5397
        %v5584 = vpop.f32.mrb[0].mxu0
        %v5585 = vadd.f32 %v5444, %v5584
        %v5586 = vpop.f32.mrb[0].mxu0
        %v5587 = vpop.f32.mrb[0].mxu0
        %v5588 = vadd.f32 %v5444, %v5587
        %v5589 = vpop.f32.mrb[0].mxu0
        %5590 = vmatprep.mubr.bf16.mxu0 %v5400
        %5591 = vmatmul.mubr.bf16.gmra.mrb[0].mxu0 %v5399
        %v5592 = vpop.f32.mrb[0].mxu0
        %v5593 = vadd.f32 %v5444, %v5592
        %v5594 = vpop.f32.mrb[0].mxu0
        %v5595 = vpop.f32.mrb[0].mxu0
        %v5596 = vadd.f32 %v5444, %v5595
        %v5597 = vpop.f32.mrb[0].mxu0
        %5598 = vmatprep.mubr.bf16.mxu0 %v5402
        %5599 = vmatmul.mubr.bf16.gmra.mrb[0].mxu0 %v5401
        %v5600 = vpop.f32.mrb[0].mxu0
        %v5601 = vadd.f32 %v5444, %v5600
        %v5602 = vpop.f32.mrb[0].mxu0
        %v5603 = vpop.f32.mrb[0].mxu0
        %v5604 = vadd.f32 %v5444, %v5603
        %v5605 = vpop.f32.mrb[0].mxu0
        %5606 = vmatprep.mubr.bf16.mxu0 %v5404
        %5607 = vmatmul.mubr.bf16.gmra.mrb[0].mxu0 %v5403
        %v5608 = vpop.f32.mrb[0].mxu0
        %v5609 = vadd.f32 %v5444, %v5608
        %v5610 = vpop.f32.mrb[0].mxu0
        %v5611 = vpop.f32.mrb[0].mxu0
        %v5612 = vadd.f32 %v5444, %v5611
        %v5613 = vpop.f32.mrb[0].mxu0
        %5614 = vmatprep.mubr.bf16.mxu0 %v5406
        %5615 = vmatmul.mubr.bf16.gmra.mrb[0].mxu0 %v5405
        %v5616 = vpop.f32.mrb[0].mxu0
        %v5617 = vadd.f32 %v5444, %v5616
        %v5618 = vpop.f32.mrb[0].mxu0
        %v5619 = vpop.f32.mrb[0].mxu0
        %v5620 = vadd.f32 %v5444, %v5619
        %v5621 = vpop.f32.mrb[0].mxu0
        %5622 = vdwg.mxu0
        %v5623 = vadd.f32 %v4820, %v5577
        %v5624 = vadd.f32 %v4821, %v5580
        %v5625 = vadd.f32 %v4822, %v5585
        %v5626 = vadd.f32 %v4823, %v5588
        %v5627 = vadd.f32 %v4824, %v5593
        %v5628 = vadd.f32 %v4825, %v5596
        %v5629 = vadd.f32 %v4826, %v5601
        %v5630 = vadd.f32 %v4827, %v5604
        %v5631 = vadd.f32 %v4828, %v5609
        %v5632 = vadd.f32 %v4829, %v5612
        %v5633 = vadd.f32 %v4830, %v5617
        %v5634 = vadd.f32 %v4831, %v5620
        %5635 = vst.msk [vmem:[#allocation2] sm:$0xff] %vm1117, %v5623
        %5636 = vst.msk [vmem:[#allocation2 + $0x8] sm:$0xff] %vm1117, %v5624
        %5637 = vst.msk [vmem:[#allocation2 + $0x10] sm:$0xff] %vm1117, %v5625
        %5638 = vst.msk [vmem:[#allocation2 + $0x18] sm:$0xff] %vm1117, %v5626
        %5639 = vst.msk [vmem:[#allocation2 + $0x20] sm:$0xff] %vm1117, %v5627
        %5640 = vst.msk [vmem:[#allocation2 + $0x28] sm:$0xff] %vm1117, %v5628
        %5641 = vst.msk [vmem:[#allocation2 + $0x30] sm:$0xff] %vm1117, %v5629
        %5642 = vst.msk [vmem:[#allocation2 + $0x38] sm:$0xff] %vm1117, %v5630
        %5643 = vst.msk [vmem:[#allocation2 + $0x40] sm:$0xff] %vm1117, %v5631
        %5644 = vst.msk [vmem:[#allocation2 + $0x48] sm:$0xff] %vm1117, %v5632
        %5645 = vst.msk [vmem:[#allocation2 + $0x50] sm:$0xff] %vm1117, %v5633
        %5646 = vst.msk [vmem:[#allocation2 + $0x58] sm:$0xff] %vm1117, %v5634
        %s5647 = smul.u32 %s60, 6
        %s5648 = sld [smem:[#allocation7 + %s5647]]
        %s5649 = scalar_lea.vmem [#allocation2], %s5648
        %v5650 = vld [vmem:[%s5649] sm:$0x1]
        %s5651 = sadd.s32 %s5647, 1
        %s5652 = sld [smem:[#allocation7 + %s5651]]
        %s5653 = sadd.s32 %s5652, 16
        %s5654 = scalar_lea.vmem [#allocation2], %s5653
        %v5655 = vld [vmem:[%s5654] sm:$0x1]
        %s5656 = sadd.s32 %s5647, 2
        %s5657 = sld [smem:[#allocation7 + %s5656]]
        %s5658 = sadd.s32 %s5657, 32
        %s5659 = scalar_lea.vmem [#allocation2], %s5658
        %v5660 = vld [vmem:[%s5659] sm:$0x1]
        %s5661 = sadd.s32 %s5647, 3
        %s5662 = sld [smem:[#allocation7 + %s5661]]
        %s5663 = sadd.s32 %s5662, 48
        %s5664 = scalar_lea.vmem [#allocation2], %s5663
        %v5665 = vld [vmem:[%s5664] sm:$0x1]
        %s5666 = sadd.s32 %s5647, 4
        %s5667 = sld [smem:[#allocation7 + %s5666]]
        %s5668 = sadd.s32 %s5667, 64
        %s5669 = scalar_lea.vmem [#allocation2], %s5668
        %v5670 = vld [vmem:[%s5669] sm:$0x1]
        %s5671 = sadd.s32 %s5647, 5
        %s5672 = sld [smem:[#allocation7 + %s5671]]
        %s5673 = sadd.s32 %s5672, 80
        %s5674 = scalar_lea.vmem [#allocation2], %s5673
        %v5675 = vld [vmem:[%s5674] sm:$0x1]
        %v5677 = vrot.slane %v5655, 7
        %v5680 = vrot.slane %v5660, 6
        %v5683 = vrot.slane %v5665, 5
        %v5686 = vrot.slane %v5670, 4
        %v5689 = vrot.slane %v5675, 3
        %vm5691 = vcmask 1040384
        %v5692 = vsel %vm5691, %v5650, %v5677
        %vm5693 = vcmask 1041408
        %v5694 = vsel %vm5693, %v5692, %v5680
        %vm5695 = vcmask 1042432
        %v5696 = vsel %vm5695, %v5694, %v5683
        %vm5697 = vcmask 1043456
        %v5698 = vsel %vm5697, %v5696, %v5686
        %vm5699 = vcmask 1044480
        %v5700 = vsel %vm5699, %v5698, %v5689
        %v5702 = vcombine.high %v5700, %v5700
        %v5704 = vunpack.c.l.s4 1966171168
        %v5705 = vunpack.c.0.s8 %v5704
        %v5706 = vlaneseq
        %v5707 = vshrl.u32 %v5706, 7
        %v5708 = vsub.s32 %v5705, %v5707
        %v5709 = vrot.slane %v5700, %v5708
        %v5711 = vunpack.c.l.s4 1966171168
        %v5712 = vunpack.c.0.s8 %v5711
        %v5713 = vlaneseq
        %v5714 = vshrl.u32 %v5713, 7
        %v5715 = vsub.s32 %v5712, %v5714
        %v5716 = vrot.slane %v5702, %v5715
        %v5717 = vcombine.high %v5709, %v5709
        %v5718 = vcombine.high %v5716, %v5716
        %v5720 = vunpack.c.l.s4 1966171168
        %v5721 = vunpack.c.0.s8 %v5720
        %v5722 = vlaneseq
        %v5723 = vshrl.u32 %v5722, 7
        %v5724 = vsub.s32 %v5721, %v5723
        %v5725 = vrot.slane %v5709, %v5724
        %v5727 = vunpack.c.l.s4 1966171168
        %v5728 = vunpack.c.0.s8 %v5727
        %v5729 = vlaneseq
        %v5730 = vshrl.u32 %v5729, 7
        %v5731 = vsub.s32 %v5728, %v5730
        %v5732 = vrot.slane %v5716, %v5731
        %v5734 = vunpack.c.l.s4 1966171168
        %v5735 = vunpack.c.0.s8 %v5734
        %v5736 = vlaneseq
        %v5737 = vshrl.u32 %v5736, 7
        %v5738 = vsub.s32 %v5735, %v5737
        %v5739 = vrot.slane %v5717, %v5738
        %v5741 = vunpack.c.l.s4 1966171168
        %v5742 = vunpack.c.0.s8 %v5741
        %v5743 = vlaneseq
        %v5744 = vshrl.u32 %v5743, 7
        %v5745 = vsub.s32 %v5742, %v5744
        %v5746 = vrot.slane %v5718, %v5745
        %v5747 = vcombine.high %v5725, %v5725
        %v5748 = vcombine.high %v5739, %v5739
        %vm5755 = vcmask 516096
        %5756 = vst.msk [vmem:[%s1069] sm:$0x1] %vm5755, %v5725
        %5757 = vst.msk [vmem:[%s1069 + $0x1] sm:$0x1] %vm5755, %v5739
        %5758 = vst.msk [vmem:[%s1069 + $0x2] sm:$0x1] %vm5755, %v5747
        %5759 = vst.msk [vmem:[%s1069 + $0x3] sm:$0x1] %vm5755, %v5748
        %5760 = vst.msk [vmem:[%s1069 + $0x4] sm:$0x1] %vm5755, %v5732
        %5761 = vst.msk [vmem:[%s1069 + $0x5] sm:$0x1] %vm5755, %v5746
        %p5762 = scmp.eq.s32.totalorder %s61, 2
        // Predicated region
        $region161: #{tpu_custom_call.1} parent=87 // pred_check
          %p5763 = pneg %p5762
        $region162: #{tpu_custom_call.1} parent=87 // pred_check_branch
          %5765 = sbr.rel (%p5763) target = $region164
        $region163: #{tpu_custom_call.1} parent=87 // pred_region
          %s5766 = sld [smem:[#allocation7 + %s5647]]
          %s5767 = scalar_lea.vmem [#allocation2], %s5766
          %v5768 = vld [vmem:[%s5767] sm:$0x1]
          %s5769 = sld [smem:[#allocation7 + %s5651]]
          %s5770 = sadd.s32 %s5769, 16
          %s5771 = scalar_lea.vmem [#allocation2], %s5770
          %v5772 = vld [vmem:[%s5771] sm:$0x1]
          %s5773 = sld [smem:[#allocation7 + %s5656]]
          %s5774 = sadd.s32 %s5773, 32
          %s5775 = scalar_lea.vmem [#allocation2], %s5774
          %v5776 = vld [vmem:[%s5775] sm:$0x1]
          %s5777 = sld [smem:[#allocation7 + %s5661]]
          %s5778 = sadd.s32 %s5777, 48
          %s5779 = scalar_lea.vmem [#allocation2], %s5778
          %v5780 = vld [vmem:[%s5779] sm:$0x1]
          %s5781 = sld [smem:[#allocation7 + %s5666]]
          %s5782 = sadd.s32 %s5781, 64
          %s5783 = scalar_lea.vmem [#allocation2], %s5782
          %v5784 = vld [vmem:[%s5783] sm:$0x1]
          %s5785 = sld [smem:[#allocation7 + %s5671]]
          %s5786 = sadd.s32 %s5785, 80
          %s5787 = scalar_lea.vmem [#allocation2], %s5786
          %v5788 = vld [vmem:[%s5787] sm:$0x1]
          %v5790 = vrot.slane %v5772, 7
          %v5793 = vrot.slane %v5776, 6
          %v5796 = vrot.slane %v5780, 5
          %v5799 = vrot.slane %v5784, 4
          %v5802 = vrot.slane %v5788, 3
          %v5804 = vsel %vm5691, %v5768, %v5790
          %v5805 = vsel %vm5693, %v5804, %v5793
          %v5806 = vsel %vm5695, %v5805, %v5796
          %v5807 = vsel %vm5697, %v5806, %v5799
          %v5808 = vsel %vm5699, %v5807, %v5802
          %v5809 = vld [vmem:[#allocation26] sm:$0x1]
          %v5810 = vld [vmem:[#allocation28] sm:$0x1]
          %vm5811 = vcmask 521216
          %v5812 = vsel %vm5811, %v5808, 0.0
          %5813 = vadd.xlane.f32.xlu0 %v5812
          %v5814 = vpop.xlane.xlu0 %5813
          %v5815 = vmul.f32 %v5814, %v1154
          %v5816 = vsub.f32 %v5808, %v5815
          %v5817 = vmul.f32 %v5816, %v5816
          %v5818 = vsel %vm5811, %v5817, 0.0
          %5819 = vadd.xlane.f32.xlu0 %v5818
          %v5820 = vpop.xlane.xlu0 %5819
          %v5821 = vmul.f32 %v5820, %v1154
          %v5822 = vadd.f32 %v5821, 1e-05
          %v5823 = vrsqrt.pop %v5822
          %v5824 = vmul.f32 %v5816, %v5823
          %v5826 = vlaneseq
          %v5827 = vshrl.u32 %v5826, 7
          %v5828 = vsub.s32 0, %v5827
          %v5829 = vrot.slane %v5809, %v5828
          %v5831 = vmul.f32 %v5824, %v5829
          %v5833 = vlaneseq
          %v5834 = vshrl.u32 %v5833, 7
          %v5835 = vsub.s32 0, %v5834
          %v5836 = vrot.slane %v5810, %v5835
          %v5838 = vadd.f32 %v5831, %v5836
          %v5839 = vpack.c.bf16 %v5838, %v5838
          %v5840 = vld [vmem:[#allocation29] sm:$0xf]
          %v5841 = vld [vmem:[#allocation29 + $0x4] sm:$0xf]
          %v5842 = vld [vmem:[#allocation29 + $0x8] sm:$0xf]
          %v5843 = vld [vmem:[#allocation29 + $0xc] sm:$0xf]
          %v5844 = vld [vmem:[#allocation29 + $0x10] sm:$0xf]
          %v5845 = vld [vmem:[#allocation29 + $0x14] sm:$0xf]
          %v5846 = vld [vmem:[#allocation29 + $0x18] sm:$0xf]
          %v5847 = vld [vmem:[#allocation29 + $0x1c] sm:$0xf]
          %v5856 = vunpack.c.l.b16 %v5840
          %v5857 = vunpack.c.l.b16 %v5841
          %v5858 = vunpack.c.l.b16 %v5842
          %v5859 = vunpack.c.l.b16 %v5843
          %v5860 = vunpack.c.l.b16 %v5844
          %v5861 = vunpack.c.l.b16 %v5845
          %v5862 = vunpack.c.l.b16 %v5846
          %v5863 = vunpack.c.l.b16 %v5847
          %v5864 = vpack.c.b16 %v5857, %v5856
          %v5865 = vpack.c.b16 %v5859, %v5858
          %v5866 = vpack.c.b16 %v5861, %v5860
          %v5867 = vpack.c.b16 %v5863, %v5862
          %v5873 = vsel %vm1117, %v5839, 0
          %5875 = vmatprep.subr.bf16.mxu0 0
          %5876 = vmatpush1.bf16.msra.mxu0 %v5864
          %5877 = vmatprep.subr.bf16.mxu0 0
          %5878 = vmatpush1.bf16.msra.mxu0 %v5865
          %5879 = vmatprep.subr.bf16.mxu0 0
          %5880 = vmatpush1.bf16.msra.mxu0 %v5866
          %5881 = vmatprep.subr.bf16.mxu0 0
          %5882 = vmatpush1.bf16.msra.mxu0 %v5867
          %5883 = vmatprep.subr.bf16.mxu0 0
          %5884 = vmatpush1.bf16.msra.mxu0 0
          %5885 = vmatprep.subr.bf16.mxu0 0
          %5886 = vmatpush1.bf16.msra.mxu0 0
          %5887 = vmatprep.subr.bf16.mxu0 0
          %5888 = vmatpush1.bf16.msra.mxu0 0
          %5889 = vmatprep.subr.bf16.mxu0 0
          %5890 = vmatpush1.bf16.msra.mxu0 0
          %5891 = vmatprep.subr.bf16.mxu0 0
          %5892 = vmatpush1.bf16.msra.mxu0 0
          %5893 = vmatprep.subr.bf16.mxu0 0
          %5894 = vmatpush1.bf16.msra.mxu0 0
          %5895 = vmatprep.subr.bf16.mxu0 0
          %5896 = vmatpush1.bf16.msra.mxu0 0
          %5897 = vmatprep.subr.bf16.mxu0 0
          %5898 = vmatpush1.bf16.msra.mxu0 0
          %5899 = vmatprep.subr.bf16.mxu0 0
          %5900 = vmatpush1.bf16.msra.mxu0 0
          %5901 = vmatprep.subr.bf16.mxu0 0
          %5902 = vmatpush1.bf16.msra.mxu0 0
          %5903 = vmatprep.subr.bf16.mxu0 0
          %5904 = vmatpush1.bf16.msra.mxu0 0
          %5905 = vmatprep.subr.bf16.mxu0 0
          %5906 = vmatpush1.bf16.msra.mxu0 0
          %5907 = vmatprep.mubr.bf16.mxu0 0
          %5908 = vmatmul.mubr.bf16.gmra.mrb[0].mxu0 %v5873
          %v5909 = vpop.f32.mrb[0].mxu0
          %v5910 = vadd.f32 0.0, %v5909
          %v5911 = vpop.f32.mrb[0].mxu0
          %v5912 = vpop.f32.mrb[0].mxu0
          %v5913 = vpop.f32.mrb[0].mxu0
          %5914 = vdwg.mxu0
          %v5916 = vcombine.high %v5910, %v5910
          %v5918 = vunpack.c.l.s4 1966171168
          %v5919 = vunpack.c.0.s8 %v5918
          %v5920 = vlaneseq
          %v5921 = vshrl.u32 %v5920, 7
          %v5922 = vsub.s32 %v5919, %v5921
          %v5923 = vrot.slane %v5910, %v5922
          %v5925 = vunpack.c.l.s4 1966171168
          %v5926 = vunpack.c.0.s8 %v5925
          %v5927 = vlaneseq
          %v5928 = vshrl.u32 %v5927, 7
          %v5929 = vsub.s32 %v5926, %v5928
          %v5930 = vrot.slane %v5916, %v5929
          %v5931 = vcombine.high %v5923, %v5923
          %v5932 = vcombine.high %v5930, %v5930
          %v5934 = vunpack.c.l.s4 1966171168
          %v5935 = vunpack.c.0.s8 %v5934
          %v5936 = vlaneseq
          %v5937 = vshrl.u32 %v5936, 7
          %v5938 = vsub.s32 %v5935, %v5937
          %v5939 = vrot.slane %v5923, %v5938
          %v5941 = vunpack.c.l.s4 1966171168
          %v5942 = vunpack.c.0.s8 %v5941
          %v5943 = vlaneseq
          %v5944 = vshrl.u32 %v5943, 7
          %v5945 = vsub.s32 %v5942, %v5944
          %v5946 = vrot.slane %v5930, %v5945
          %v5948 = vunpack.c.l.s4 1966171168
          %v5949 = vunpack.c.0.s8 %v5948
          %v5950 = vlaneseq
          %v5951 = vshrl.u32 %v5950, 7
          %v5952 = vsub.s32 %v5949, %v5951
          %v5953 = vrot.slane %v5931, %v5952
          %v5955 = vunpack.c.l.s4 1966171168
          %v5956 = vunpack.c.0.s8 %v5955
          %v5957 = vlaneseq
          %v5958 = vshrl.u32 %v5957, 7
          %v5959 = vsub.s32 %v5956, %v5958
          %v5960 = vrot.slane %v5932, %v5959
          %v5961 = vcombine.high %v5939, %v5939
          %v5962 = vcombine.high %v5953, %v5953
          %5969 = vst.msk [vmem:[#allocation31] sm:$0x1] %vm5755, %v5939
          %5970 = vst.msk [vmem:[#allocation31 + $0x1] sm:$0x1] %vm5755, %v5953
          %5971 = vst.msk [vmem:[#allocation31 + $0x2] sm:$0x1] %vm5755, %v5961
          %5972 = vst.msk [vmem:[#allocation31 + $0x3] sm:$0x1] %vm5755, %v5962
          %5973 = vst.msk [vmem:[#allocation31 + $0x4] sm:$0x1] %vm5755, %v5946
          %5974 = vst.msk [vmem:[#allocation31 + $0x5] sm:$0x1] %vm5755, %v5960
        $region164: #{tpu_custom_call.1} parent=87 // pred_fallthru
          _
        %s5975 = sand.u32 %s526, 1
        %s5976 = scalar_lea.sflag [#allocation33], %s5975
        %s5977 = sand.u32 %s526, 1
        %s5978 = smul.addr %s5977, 6
        %s5979 = scalar_lea.vmem [#allocation32], %s5978
        // Predicated region
        $region165: #{tpu_custom_call.1} parent=87 // pred_check
          %p5980 = pneg %p508
        $region166: #{tpu_custom_call.1} parent=87 // pred_check_branch
          %5982 = sbr.rel (%p5980) target = $region168
        $region167: #{tpu_custom_call.1} parent=87 // pred_region
          %s5983 = smul.u32 6, %s60
          %s5985 = ssub.s32 96, 96
          %5986 = vsyncadd [#allocation5], %s5985
          %s5987 = smul.addr %s5983, 16
          %s5988 = scalar_lea.hbm %s17, %s5987
          %s5989 = sshll.u32 [#allocation31], 4
          %s5990 = int_to_ptr.vmem [resolvable:$true] %s5989
          %5995 = dma.vmem_to_hbm [thread:$0]  %s5990, 96, %s5988, [#allocation5], 16, 16, 1
        $region168: #{tpu_custom_call.1} parent=87 // pred_fallthru
          _
        // Predicated region
        $region169: #{tpu_custom_call.1} parent=87 // pred_check
          %p5996 = pneg %p536
        $region170: #{tpu_custom_call.1} parent=87 // pred_check_branch
          %5998 = sbr.rel (%p5996) target = $region172
        $region171: #{tpu_custom_call.1} parent=87 // pred_region
          %s5999 = smul.u32 6, %s60
          %s6001 = ssub.s32 96, 96
          %6002 = vsyncadd %s5976, %s6001
          %s6003 = smul.addr %s61, 6
          %s6004 = sadd.s32 %s5999, %s6003
          %s6005 = smul.addr %s6004, 16
          %s6006 = scalar_lea.hbm %s18, %s6005
          %s6007 = sshll.u32 %s5979, 4
          %s6008 = int_to_ptr.vmem [resolvable:$true] %s6007
          %6013 = dma.vmem_to_hbm [thread:$0]  %s6008, 96, %s6006, %s5976, 16, 16, 1
        $region172: #{tpu_custom_call.1} parent=87 // pred_fallthru
          _
        // Predicated region
        $region173: #{tpu_custom_call.1} parent=87 // pred_check
          %p6014 = pneg %p508
        $region174: #{tpu_custom_call.1} parent=87 // pred_check_branch
          %6016 = sbr.rel (%p6014) target = $region176
        $region175: #{tpu_custom_call.1} parent=87 // pred_region
          %6017 = dma.done [#allocation5], 96
        $region176: #{tpu_custom_call.1} parent=87 // pred_fallthru
          _
      $region88: #{tpu_custom_call.1} parent=5 // pred_fallthru
        _
      %p6018 = scmp.le.s32.totalorder 2, %s51
      // Predicated region
      $region177: #{tpu_custom_call.1} parent=5 // pred_check
        %p6019 = pneg %p6018
      $region178: #{tpu_custom_call.1} parent=5 // pred_check_branch
        %6021 = sbr.rel (%p6019) target = $region180
      $region179: #{tpu_custom_call.1} parent=5 // pred_region
        %s6022 = ssub.s32 %s51, 2
        // Predicated region
        $region181: #{tpu_custom_call.1} parent=179 // pred_check
          %p6023 = pneg %p542
        $region182: #{tpu_custom_call.1} parent=179 // pred_check_branch
          %6025 = sbr.rel (%p6023) target = $region184
        $region183: #{tpu_custom_call.1} parent=179 // pred_region
          %s6026 = sand.u32 %s527, 1
          %s6027 = scalar_lea.sflag [#allocation33], %s6026
          %s6028 = sand.u32 %s527, 1
          %s6029 = smul.addr %s6028, 6
          %s6030 = scalar_lea.vmem [#allocation32], %s6029
          %6031 = dma.done %s6027, 96
        $region184: #{tpu_custom_call.1} parent=179 // pred_fallthru
          _
      $region180: #{tpu_custom_call.1} parent=5 // pred_fallthru
        _
    $region6: #{tpu_custom_call.1} parent=1 // loop_footer
      %s55 = sadd.s32 1, %s51
    $region7: #{tpu_custom_call.1} parent=1 // loop_footer_branch
      %50 = sbr.rel target = $region3
    $region8: #{tpu_custom_call.1} parent=1 // loop_exit
      _
    %6032 = vsyncpa [#allocation4], 1
    %s6033 = scalar_lea.sflag [#allocation4], 1
    %6034 = vsyncpa %s6033, 1
    %6035 = vsyncpa [#allocation9], 1
    %s6036 = scalar_lea.sflag [#allocation9], 1
    %6037 = vsyncpa %s6036, 1
    %6038 = vsyncpa [#allocation12], 1
    %s6039 = scalar_lea.sflag [#allocation12], 1
    %6040 = vsyncpa %s6039, 1
    %6041 = vsyncpa [#allocation15], 1
    %s6042 = scalar_lea.sflag [#allocation15], 1
    %6043 = vsyncpa %s6042, 1
    %6044 = vsyncpa [#allocation18], 1
    %s6045 = scalar_lea.sflag [#allocation18], 1
    %6046 = vsyncpa %s6045, 1
    %6047 = vsyncpa [#allocation21], 1
    %s6048 = scalar_lea.sflag [#allocation21], 1
    %6049 = vsyncpa %s6048, 1
    %6050 = vsyncpa [#allocation24], 1
    %s6051 = scalar_lea.sflag [#allocation24], 1
    %6052 = vsyncpa %s6051, 1
    %6053 = vsyncpa [#allocation27], 1
    %6054 = vsyncpa [#allocation30], 1
    %6055 = vsyncpa [#allocation5], 1
    %s6056 = scalar_lea.sflag [#allocation5], 1
    %6057 = vsyncpa %s6056, 1
    %6058 = vsyncpa [#allocation33], 1
    %s6059 = scalar_lea.sflag [#allocation33], 1
    %6060 = vsyncpa %s6059, 1
    %6061 = vsyncpa [#allocation6], 1
    %s6062 = scalar_lea.sflag [#allocation6], 1
    %6063 = vsyncpa %s6062, 1

</llo_original>
